<compile_context>
chip_gen: v7x
topology: tpu7x:2x2x1
jax: 0.10.0
libtpu: 0.0.40
codegen_flags: <defaults>
</compile_context>

<pallas_src>
import functools

import jax
import jax.numpy as jnp
from jax import lax
from jax.experimental import pallas as pl
from jax.experimental.pallas import tpu as pltpu

_LANE = 128   # f32 vreg lane width; padded hidden / class / program-vocab width
_SUB = 8      # f32 sublane tile


def _round_up(x, m):
    return (x + m - 1) // m * m


# ----------------------------------------------------------------------------
# LSTM activations on the gate-padded layout [i | f | o | g], each gate `hp`
# lanes wide.  All slices land on 128-lane (whole-vreg) boundaries.
# ----------------------------------------------------------------------------
def _lstm_cell_padded(gates, c, hp):
    sig = jax.nn.sigmoid(gates[:, :3 * hp])          # one contiguous EUP slab
    i = sig[:, 0 * hp:1 * hp]
    f = sig[:, 1 * hp:2 * hp]
    o = sig[:, 2 * hp:3 * hp]
    g = jnp.tanh(gates[:, 3 * hp:4 * hp])
    c_new = f * c + i * g
    h_new = o * jnp.tanh(c_new)
    return h_new, c_new


# ----------------------------------------------------------------------------
# Fused forward kernel: encoder LSTM -> head -> greedy program decoder LSTM.
#
# Operands:
#   q_ref   (T*Bp, 1) int32   time-major question token ids
#   img_ref (Bp, 128) f32     image features, lane-padded
#   wv_ref  (Vp, 1024) f32    [enc_emb_ih | dec_emb_ih]   (per-token gate rows,
#                              embedding lookup + W_ih + bias pre-folded)
#   wh_ref  (128, 1792) f32   [enc_W_hh | dec_W_hh | out_w | head_wq | head_wi | img_w]
#   b_ref   (8, 128) f32      rows: img_b, cls_b, dfc_b, out_b, argmax pad mask
# ----------------------------------------------------------------------------
def vqa_fused_kernel(q_ref, img_ref, wv_ref, wh_ref, b_ref, ans_ref, prog_ref,
                     *, hp, cp, pp, t_steps, s_steps, sos):
    G = 4 * hp
    Bp = img_ref.shape[0]
    Vp = wv_ref.shape[0]
    TB = q_ref.shape[0]

    # -------- unpack weight slabs (static, 128-aligned lane slices) ----------
    wv = wv_ref[...]
    wh = wh_ref[...]
    enc_emb_ih = wv[:, 0:G]                    # (Vp, G)
    dec_emb_ih = wv[:, G:2 * G]                # (Vp, G)

    off_enc_hh = 0
    off_dec_hh = G
    off_out_w = 2 * G
    off_head_q = 2 * G + pp
    off_head_i = off_head_q + cp + hp
    off_img_w = off_head_i + cp + hp
    enc_w_hh = wh[:, off_enc_hh:off_enc_hh + G]          # (hp, G)
    dec_w_hh = wh[:, off_dec_hh:off_dec_hh + G]          # (hp, G)
    dec_w_merged = wh[:, off_dec_hh:off_out_w + pp]      # (hp, G + pp) = [W_hh | out_w]
    head_wq = wh[:, off_head_q:off_head_q + cp + hp]     # (hp, cp + hp)
    head_wi = wh[:, off_head_i:off_head_i + cp + hp]     # (hp, cp + hp)
    img_w = wh[:, off_img_w:off_img_w + hp]              # (hp, hp)

    b = b_ref[...]
    img_b = b[0:1, :]
    cls_b = b[1:2, :]
    dfc_b = b[2:3, :]
    out_b = b[3:4, :]
    argmax_mask = b[4:5, :]                   # 0 for real program lanes, -1e30 pad

    # -------- question encoder LSTM -----------------------------------------
    # one-hot(token ids) @ enc_emb_ih == embedding lookup + input proj + bias,
    # hoisted out of the recurrence as a single matmul for all T steps.
    iota_q = lax.broadcasted_iota(jnp.int32, (TB, Vp), 1)
    onehot_q = (q_ref[...] == iota_q).astype(jnp.float32)            # (TB, Vp)
    gx_all = jnp.dot(onehot_q, enc_emb_ih,
                     preferred_element_type=jnp.float32)             # (TB, G)

    h = jnp.zeros((Bp, hp), jnp.float32)
    c = jnp.zeros((Bp, hp), jnp.float32)
    for t in range(t_steps):                  # fully unrolled, static trip count
        gates = gx_all[t * Bp:(t + 1) * Bp, :] + jnp.dot(
            h, enc_w_hh, preferred_element_type=jnp.float32)
        h, c = _lstm_cell_padded(gates, c, hp)
    q_enc = h                                  # == h_n.squeeze(0), lane-padded

    # -------- fused head ------------------------------------------------------
    # dropout(p=0.5) is identity in eval/greedy-inference mode.
    img_enc = jnp.maximum(
        jnp.dot(img_ref[...], img_w, preferred_element_type=jnp.float32) + img_b,
        0.0)
    # concat([q_enc, img_enc]) @ [cls_w | dec_fc_w]  ==  two merged dots
    head = (jnp.dot(q_enc, head_wq, preferred_element_type=jnp.float32)
            + jnp.dot(img_enc, head_wi, preferred_element_type=jnp.float32))
    ans_ref[...] = head[:, :cp] + cls_b                       # (Bp, cp) lane-dense
    dec_h = jnp.maximum(head[:, cp:cp + hp] + dfc_b, 0.0)     # decoder h0

    # -------- greedy program decoder LSTM ------------------------------------
    iota_v = lax.broadcasted_iota(jnp.int32, (Bp, Vp), 1)
    iota_p = lax.broadcasted_iota(jnp.int32, (Bp, pp), 1)

    # SOS-token input gates (one-hot @ folded embedding/W_ih/bias table)
    xg = jnp.dot((iota_v == sos).astype(jnp.float32), dec_emb_ih,
                 preferred_element_type=jnp.float32)                 # (Bp, G)
    hg = jnp.dot(dec_h, dec_w_hh, preferred_element_type=jnp.float32)
    dec_c = jnp.zeros((Bp, hp), jnp.float32)

    for t in range(s_steps):                   # fully unrolled, static trip count
        dec_h, dec_c = _lstm_cell_padded(xg + hg, dec_c, hp)
        # ONE merged dot per step: next-step hidden gates + current logits.
        merged = jnp.dot(dec_h, dec_w_merged,
                         preferred_element_type=jnp.float32)         # (Bp, G+pp)
        logits = merged[:, G:G + pp] + out_b                         # pad lanes = 0
        prog_ref[t] = logits                                         # lane-dense store
        if t + 1 < s_steps:
            hg = merged[:, :G]
            # greedy feedback: first-argmax over real program lanes, then the
            # one-hot -> embedding -> W_ih -> +bias chain as one matmul.
            key = logits + argmax_mask
            maxv = jnp.max(key, axis=1, keepdims=True)
            idx = jnp.min(jnp.where(key == maxv, iota_p, pp), axis=1,
                          keepdims=True)
            onehot = (iota_v == idx).astype(jnp.float32)             # (Bp, Vp)
            xg = jnp.dot(onehot, dec_emb_ih,
                         preferred_element_type=jnp.float32)
    # TODO(synk): teacher forcing (np.random < ratio with program_targets) not
    # implemented; default teacher_forcing_ratio=0.0 => pure greedy, matched here.


# ----------------------------------------------------------------------------
# Parameter init (deterministic, PyTorch-like shapes)
# ----------------------------------------------------------------------------
def init_params(key, V, E, H, F, C, P):
    keys = jax.random.split(key, 17)

    def u(k, shape, fan):
        bound = 1.0 / float(fan) ** 0.5
        return jax.random.uniform(k, shape, jnp.float32, -bound, bound)

    emb = 0.1 * jax.random.normal(keys[0], (V, E), jnp.float32)
    emb = emb.at[0].set(0.0)                    # padding_idx=0
    return dict(
        embedding=emb,
        enc_w_ih=u(keys[1], (4 * H, E), H), enc_w_hh=u(keys[2], (4 * H, H), H),
        enc_b_ih=u(keys[3], (4 * H,), H), enc_b_hh=u(keys[4], (4 * H,), H),
        img_w=u(keys[5], (H, F), F), img_b=u(keys[6], (H,), F),
        cls_w=u(keys[7], (C, 2 * H), 2 * H), cls_b=u(keys[8], (C,), 2 * H),
        dec_fc_w=u(keys[9], (H, 2 * H), 2 * H), dec_fc_b=u(keys[10], (H,), 2 * H),
        dec_w_ih=u(keys[11], (4 * H, E), H), dec_w_hh=u(keys[12], (4 * H, H), H),
        dec_b_ih=u(keys[13], (4 * H,), H), dec_b_hh=u(keys[14], (4 * H,), H),
        out_w=u(keys[15], (P, H), H), out_b=u(keys[16], (P,), H),
    )


# ----------------------------------------------------------------------------
# One-time parameter preprocessing: fold embedding lookups, reorder + pad gates
# to 128-lane blocks, merge head / decoder weights, pack everything into 3 slabs.
# ----------------------------------------------------------------------------
def prepare_params(params):
    H = params["enc_w_hh"].shape[1]
    V = params["embedding"].shape[0]
    F = params["img_w"].shape[1]
    C = params["cls_w"].shape[0]
    P = params["out_w"].shape[0]
    assert H <= _LANE and C <= _LANE and P <= _LANE and F <= _LANE
    Hp = Cp = Pp = _LANE
    Vp = _round_up(V, _SUB)
    G = 4 * Hp

    def gate_pad(raw):
        # raw: (rows, 4H) in PyTorch gate order (i,f,g,o) ->
        # (rows, 4*Hp) in order (i,f,o,g), each gate zero-padded to Hp lanes.
        rows = raw.shape[0]
        out = jnp.zeros((rows, G), jnp.float32)
        out = out.at[:, 0 * Hp:0 * Hp + H].set(raw[:, 0 * H:1 * H])   # i
        out = out.at[:, 1 * Hp:1 * Hp + H].set(raw[:, 1 * H:2 * H])   # f
        out = out.at[:, 2 * Hp:2 * Hp + H].set(raw[:, 3 * H:4 * H])   # o
        out = out.at[:, 3 * Hp:3 * Hp + H].set(raw[:, 2 * H:3 * H])   # g
        return out

    def pad2(x, r, c_):
        return jnp.zeros((r, c_), jnp.float32).at[:x.shape[0], :x.shape[1]].set(x)

    emb = params["embedding"]
    enc_b = params["enc_b_ih"] + params["enc_b_hh"]
    dec_b = params["dec_b_ih"] + params["dec_b_hh"]

    # token-row slab: embedding lookup + input projection + bias, per vocab row
    enc_emb_ih = gate_pad(jnp.dot(emb, params["enc_w_ih"].T) + enc_b[None, :])
    dec_emb_ih = gate_pad(jnp.dot(emb, params["dec_w_ih"].T) + dec_b[None, :])
    w_v = pad2(jnp.concatenate([enc_emb_ih, dec_emb_ih], axis=1), Vp, 2 * G)

    # hidden-row slab
    enc_w_hh = pad2(gate_pad(params["enc_w_hh"].T), Hp, G)
    dec_w_hh = pad2(gate_pad(params["dec_w_hh"].T), Hp, G)
    out_w = pad2(params["out_w"].T, Hp, Pp)
    wc_t = params["cls_w"].T            # (2H, C)
    wd_t = params["dec_fc_w"].T         # (2H, H)
    head_wq = jnp.concatenate([pad2(wc_t[:H], Hp, Cp), pad2(wd_t[:H], Hp, Hp)], 1)
    head_wi = jnp.concatenate([pad2(wc_t[H:], Hp, Cp), pad2(wd_t[H:], Hp, Hp)], 1)
    img_w = pad2(params["img_w"].T, Hp, Hp)
    w_h = jnp.concatenate([enc_w_hh, dec_w_hh, out_w, head_wq, head_wi, img_w], 1)

    # bias slab (one 8x128 vreg tile): img_b, cls_b, dfc_b, out_b, argmax pad mask
    bias = jnp.zeros((_SUB, _LANE), jnp.float32)
    bias = bias.at[0, :H].set(params["img_b"])
    bias = bias.at[1, :C].set(params["cls_b"])
    bias = bias.at[2, :H].set(params["dec_fc_b"])
    bias = bias.at[3, :P].set(params["out_b"])
    bias = bias.at[4, P:].set(-1e30)

    return dict(w_v=w_v, w_h=w_h, bias=bias)


# ----------------------------------------------------------------------------
# Forward wrapper: tiny padding glue, then one grid-less pallas_call.
# ----------------------------------------------------------------------------
def vqa_forward(prep, image_features, questions, *, H, S, P, C, sos):
    del H
    B, T = questions.shape
    F = image_features.shape[1]
    Hp = Cp = Pp = _LANE
    Bp = _round_up(B, _SUB)

    # glue: pad batch, lane-pad image features, time-major token-id column
    q_pad = jnp.zeros((Bp, T), jnp.int32).at[:B].set(questions.astype(jnp.int32))
    q_tm = q_pad.T.reshape(T * Bp, 1)
    img_pad = jnp.zeros((Bp, Hp), jnp.float32).at[:B, :F].set(image_features)

    vmem = pl.BlockSpec(memory_space=pltpu.MemorySpace.VMEM)
    ans_pad, prog_pad = pl.pallas_call(
        functools.partial(vqa_fused_kernel, hp=Hp, cp=Cp, pp=Pp,
                          t_steps=T, s_steps=S, sos=sos),
        out_shape=(jax.ShapeDtypeStruct((Bp, Cp), jnp.float32),
                   jax.ShapeDtypeStruct((S, Bp, Pp), jnp.float32)),
        in_specs=[vmem] * 5,
        out_specs=(vmem, vmem),
    )(q_tm, img_pad, prep["w_v"], prep["w_h"], prep["bias"])

    answer = ans_pad[:B, :C]
    program_outputs = jnp.transpose(prog_pad, (1, 0, 2))[:B, :, :P]   # (B, S, P)
    return answer, program_outputs


if __name__ == "__main__":
    # model sizes
    VOCAB, EMB, HID, IMG_FEAT, NUM_CLS = 32, 16, 32, 64, 8
    PROG_VOCAB, PROG_LEN, SOS, EOS = 16, 8, 1, 2
    B, T = 2, 8

    key = jax.random.PRNGKey(0)
    kp, kq, ki = jax.random.split(key, 3)
    params = init_params(kp, VOCAB, EMB, HID, IMG_FEAT, NUM_CLS, PROG_VOCAB)
    questions = jax.random.randint(kq, (B, T), 1, VOCAB, dtype=jnp.int32)
    image_features = jax.random.normal(ki, (B, IMG_FEAT), jnp.float32)

    # one-time parameter prep (fold/transpose/pad/pack), then the hot forward
    prep = prepare_params(params)
    fwd = jax.jit(functools.partial(vqa_forward, H=HID, S=PROG_LEN,
                                    P=PROG_VOCAB, C=NUM_CLS, sos=SOS))
    answer, program_outputs = fwd(prep, image_features, questions)
    jax.block_until_ready((answer, program_outputs))

    assert answer.shape == (B, NUM_CLS)
    assert program_outputs.shape == (B, PROG_LEN, PROG_VOCAB)
    assert bool(jnp.all(jnp.isfinite(answer)))
    assert bool(jnp.all(jnp.isfinite(program_outputs)))
    print("KERNEL_OK")
</pallas_src>

<mosaic_0001>
module attributes {stable_mosaic.version = 11 : i64} {
  func.func @vqa_fused_kernel(%arg0: memref<64x1xi32, #tpu.memory_space<vmem>>, %arg1: memref<8x128xf32, #tpu.memory_space<vmem>>, %arg2: memref<32x1024xf32, #tpu.memory_space<vmem>>, %arg3: memref<128x1792xf32, #tpu.memory_space<vmem>>, %arg4: memref<8x128xf32, #tpu.memory_space<vmem>>, %arg5: memref<8x128xf32, #tpu.memory_space<vmem>>, %arg6: memref<8x8x128xf32, #tpu.memory_space<vmem>>) attributes {dimension_semantics = [], scalar_prefetch = 0 : i64, scratch_operands = 0 : i64, tpu.core_type = #tpu.core_type<tc>} {
    %c0 = arith.constant 0 : index
    %c0_0 = arith.constant 0 : index
    %0 = vector.load %arg2[%c0, %c0_0] : memref<32x1024xf32, #tpu.memory_space<vmem>>, vector<32x1024xf32>
    %c0_1 = arith.constant 0 : index
    %c0_2 = arith.constant 0 : index
    %1 = vector.load %arg3[%c0_1, %c0_2] : memref<128x1792xf32, #tpu.memory_space<vmem>>, vector<128x1792xf32>
    %2 = vector.extract_strided_slice %0 {offsets = [0, 0], sizes = [32, 512], strides = [1, 1]} : vector<32x1024xf32> to vector<32x512xf32>
    %3 = vector.extract_strided_slice %0 {offsets = [0, 512], sizes = [32, 512], strides = [1, 1]} : vector<32x1024xf32> to vector<32x512xf32>
    %4 = vector.extract_strided_slice %1 {offsets = [0, 0], sizes = [128, 512], strides = [1, 1]} : vector<128x1792xf32> to vector<128x512xf32>
    %5 = vector.extract_strided_slice %1 {offsets = [0, 512], sizes = [128, 512], strides = [1, 1]} : vector<128x1792xf32> to vector<128x512xf32>
    %6 = vector.extract_strided_slice %1 {offsets = [0, 512], sizes = [128, 640], strides = [1, 1]} : vector<128x1792xf32> to vector<128x640xf32>
    %7 = vector.extract_strided_slice %1 {offsets = [0, 1152], sizes = [128, 256], strides = [1, 1]} : vector<128x1792xf32> to vector<128x256xf32>
    %8 = vector.extract_strided_slice %1 {offsets = [0, 1408], sizes = [128, 256], strides = [1, 1]} : vector<128x1792xf32> to vector<128x256xf32>
    %9 = vector.extract_strided_slice %1 {offsets = [0, 1664], sizes = [128, 128], strides = [1, 1]} : vector<128x1792xf32> to vector<128x128xf32>
    %c0_3 = arith.constant 0 : index
    %c0_4 = arith.constant 0 : index
    %10 = vector.load %arg4[%c0_3, %c0_4] : memref<8x128xf32, #tpu.memory_space<vmem>>, vector<8x128xf32>
    %11 = vector.extract_strided_slice %10 {offsets = [0, 0], sizes = [1, 128], strides = [1, 1]} : vector<8x128xf32> to vector<1x128xf32>
    %12 = vector.extract_strided_slice %10 {offsets = [1, 0], sizes = [1, 128], strides = [1, 1]} : vector<8x128xf32> to vector<1x128xf32>
    %13 = vector.extract_strided_slice %10 {offsets = [2, 0], sizes = [1, 128], strides = [1, 1]} : vector<8x128xf32> to vector<1x128xf32>
    %14 = vector.extract_strided_slice %10 {offsets = [3, 0], sizes = [1, 128], strides = [1, 1]} : vector<8x128xf32> to vector<1x128xf32>
    %15 = vector.extract_strided_slice %10 {offsets = [4, 0], sizes = [1, 128], strides = [1, 1]} : vector<8x128xf32> to vector<1x128xf32>
    %16 = tpu.iota {dimensions = array<i32: 1>} : vector<64x32xi32>
    %c0_5 = arith.constant 0 : index
    %c0_6 = arith.constant 0 : index
    %17 = vector.load %arg0[%c0_5, %c0_6] : memref<64x1xi32, #tpu.memory_space<vmem>>, vector<64x1xi32>
    %18 = vector.broadcast %17 : vector<64x1xi32> to vector<64x32xi32>
    %19 = arith.cmpi eq, %18, %16 : vector<64x32xi32>
    %20 = arith.extui %19 : vector<64x32xi1> to vector<64x32xi32>
    %21 = arith.sitofp %20 : vector<64x32xi32> to vector<64x32xf32>
    %cst = arith.constant dense<0.000000e+00> : vector<64x512xf32>
    %22 = tpu.matmul %21, %2, %cst {dimension_numbers = #tpu.dot_dimension_numbers<[1], [0], [0], [1], [0, 0, 1, 1], [], []>} : vector<64x32xf32>, vector<32x512xf32>, vector<64x512xf32> -> vector<64x512xf32>
    %cst_7 = arith.constant 0.000000e+00 : f32
    %23 = vector.broadcast %cst_7 : f32 to vector<8x128xf32>
    %cst_8 = arith.constant 0.000000e+00 : f32
    %24 = vector.broadcast %cst_8 : f32 to vector<8x128xf32>
    %25 = vector.extract_strided_slice %22 {offsets = [0, 0], sizes = [8, 512], strides = [1, 1]} : vector<64x512xf32> to vector<8x512xf32>
    %cst_9 = arith.constant dense<0.000000e+00> : vector<8x512xf32>
    %26 = tpu.matmul %23, %4, %cst_9 {dimension_numbers = #tpu.dot_dimension_numbers<[1], [0], [0], [1], [0, 0, 1, 1], [], []>} : vector<8x128xf32>, vector<128x512xf32>, vector<8x512xf32> -> vector<8x512xf32>
    %27 = arith.addf %25, %26 : vector<8x512xf32>
    %28 = vector.extract_strided_slice %27 {offsets = [0, 0], sizes = [8, 384], strides = [1, 1]} : vector<8x512xf32> to vector<8x384xf32>
    %29 = arith.negf %28 : vector<8x384xf32>
    %30 = math.exp %29 : vector<8x384xf32>
    %cst_10 = arith.constant 1.000000e+00 : f32
    %31 = vector.broadcast %cst_10 : f32 to vector<8x384xf32>
    %32 = arith.addf %31, %30 : vector<8x384xf32>
    %33 = arith.divf %31, %32 : vector<8x384xf32>
    %34 = vector.extract_strided_slice %33 {offsets = [0, 0], sizes = [8, 128], strides = [1, 1]} : vector<8x384xf32> to vector<8x128xf32>
    %35 = vector.extract_strided_slice %33 {offsets = [0, 128], sizes = [8, 128], strides = [1, 1]} : vector<8x384xf32> to vector<8x128xf32>
    %36 = vector.extract_strided_slice %33 {offsets = [0, 256], sizes = [8, 128], strides = [1, 1]} : vector<8x384xf32> to vector<8x128xf32>
    %37 = vector.extract_strided_slice %27 {offsets = [0, 384], sizes = [8, 128], strides = [1, 1]} : vector<8x512xf32> to vector<8x128xf32>
    %38 = math.tanh %37 : vector<8x128xf32>
    %39 = arith.mulf %35, %24 : vector<8x128xf32>
    %40 = arith.mulf %34, %38 : vector<8x128xf32>
    %41 = arith.addf %39, %40 : vector<8x128xf32>
    %42 = math.tanh %41 : vector<8x128xf32>
    %43 = arith.mulf %36, %42 : vector<8x128xf32>
    %44 = vector.extract_strided_slice %22 {offsets = [8, 0], sizes = [8, 512], strides = [1, 1]} : vector<64x512xf32> to vector<8x512xf32>
    %cst_11 = arith.constant dense<0.000000e+00> : vector<8x512xf32>
    %45 = tpu.matmul %43, %4, %cst_11 {dimension_numbers = #tpu.dot_dimension_numbers<[1], [0], [0], [1], [0, 0, 1, 1], [], []>} : vector<8x128xf32>, vector<128x512xf32>, vector<8x512xf32> -> vector<8x512xf32>
    %46 = arith.addf %44, %45 : vector<8x512xf32>
    %47 = vector.extract_strided_slice %46 {offsets = [0, 0], sizes = [8, 384], strides = [1, 1]} : vector<8x512xf32> to vector<8x384xf32>
    %48 = arith.negf %47 : vector<8x384xf32>
    %49 = math.exp %48 : vector<8x384xf32>
    %cst_12 = arith.constant 1.000000e+00 : f32
    %50 = vector.broadcast %cst_12 : f32 to vector<8x384xf32>
    %51 = arith.addf %50, %49 : vector<8x384xf32>
    %52 = arith.divf %50, %51 : vector<8x384xf32>
    %53 = vector.extract_strided_slice %52 {offsets = [0, 0], sizes = [8, 128], strides = [1, 1]} : vector<8x384xf32> to vector<8x128xf32>
    %54 = vector.extract_strided_slice %52 {offsets = [0, 128], sizes = [8, 128], strides = [1, 1]} : vector<8x384xf32> to vector<8x128xf32>
    %55 = vector.extract_strided_slice %52 {offsets = [0, 256], sizes = [8, 128], strides = [1, 1]} : vector<8x384xf32> to vector<8x128xf32>
    %56 = vector.extract_strided_slice %46 {offsets = [0, 384], sizes = [8, 128], strides = [1, 1]} : vector<8x512xf32> to vector<8x128xf32>
    %57 = math.tanh %56 : vector<8x128xf32>
    %58 = arith.mulf %54, %41 : vector<8x128xf32>
    %59 = arith.mulf %53, %57 : vector<8x128xf32>
    %60 = arith.addf %58, %59 : vector<8x128xf32>
    %61 = math.tanh %60 : vector<8x128xf32>
    %62 = arith.mulf %55, %61 : vector<8x128xf32>
    %63 = vector.extract_strided_slice %22 {offsets = [16, 0], sizes = [8, 512], strides = [1, 1]} : vector<64x512xf32> to vector<8x512xf32>
    %cst_13 = arith.constant dense<0.000000e+00> : vector<8x512xf32>
    %64 = tpu.matmul %62, %4, %cst_13 {dimension_numbers = #tpu.dot_dimension_numbers<[1], [0], [0], [1], [0, 0, 1, 1], [], []>} : vector<8x128xf32>, vector<128x512xf32>, vector<8x512xf32> -> vector<8x512xf32>
    %65 = arith.addf %63, %64 : vector<8x512xf32>
    %66 = vector.extract_strided_slice %65 {offsets = [0, 0], sizes = [8, 384], strides = [1, 1]} : vector<8x512xf32> to vector<8x384xf32>
    %67 = arith.negf %66 : vector<8x384xf32>
    %68 = math.exp %67 : vector<8x384xf32>
    %cst_14 = arith.constant 1.000000e+00 : f32
    %69 = vector.broadcast %cst_14 : f32 to vector<8x384xf32>
    %70 = arith.addf %69, %68 : vector<8x384xf32>
    %71 = arith.divf %69, %70 : vector<8x384xf32>
    %72 = vector.extract_strided_slice %71 {offsets = [0, 0], sizes = [8, 128], strides = [1, 1]} : vector<8x384xf32> to vector<8x128xf32>
    %73 = vector.extract_strided_slice %71 {offsets = [0, 128], sizes = [8, 128], strides = [1, 1]} : vector<8x384xf32> to vector<8x128xf32>
    %74 = vector.extract_strided_slice %71 {offsets = [0, 256], sizes = [8, 128], strides = [1, 1]} : vector<8x384xf32> to vector<8x128xf32>
    %75 = vector.extract_strided_slice %65 {offsets = [0, 384], sizes = [8, 128], strides = [1, 1]} : vector<8x512xf32> to vector<8x128xf32>
    %76 = math.tanh %75 : vector<8x128xf32>
    %77 = arith.mulf %73, %60 : vector<8x128xf32>
    %78 = arith.mulf %72, %76 : vector<8x128xf32>
    %79 = arith.addf %77, %78 : vector<8x128xf32>
    %80 = math.tanh %79 : vector<8x128xf32>
    %81 = arith.mulf %74, %80 : vector<8x128xf32>
    %82 = vector.extract_strided_slice %22 {offsets = [24, 0], sizes = [8, 512], strides = [1, 1]} : vector<64x512xf32> to vector<8x512xf32>
    %cst_15 = arith.constant dense<0.000000e+00> : vector<8x512xf32>
    %83 = tpu.matmul %81, %4, %cst_15 {dimension_numbers = #tpu.dot_dimension_numbers<[1], [0], [0], [1], [0, 0, 1, 1], [], []>} : vector<8x128xf32>, vector<128x512xf32>, vector<8x512xf32> -> vector<8x512xf32>
    %84 = arith.addf %82, %83 : vector<8x512xf32>
    %85 = vector.extract_strided_slice %84 {offsets = [0, 0], sizes = [8, 384], strides = [1, 1]} : vector<8x512xf32> to vector<8x384xf32>
    %86 = arith.negf %85 : vector<8x384xf32>
    %87 = math.exp %86 : vector<8x384xf32>
    %cst_16 = arith.constant 1.000000e+00 : f32
    %88 = vector.broadcast %cst_16 : f32 to vector<8x384xf32>
    %89 = arith.addf %88, %87 : vector<8x384xf32>
    %90 = arith.divf %88, %89 : vector<8x384xf32>
    %91 = vector.extract_strided_slice %90 {offsets = [0, 0], sizes = [8, 128], strides = [1, 1]} : vector<8x384xf32> to vector<8x128xf32>
    %92 = vector.extract_strided_slice %90 {offsets = [0, 128], sizes = [8, 128], strides = [1, 1]} : vector<8x384xf32> to vector<8x128xf32>
    %93 = vector.extract_strided_slice %90 {offsets = [0, 256], sizes = [8, 128], strides = [1, 1]} : vector<8x384xf32> to vector<8x128xf32>
    %94 = vector.extract_strided_slice %84 {offsets = [0, 384], sizes = [8, 128], strides = [1, 1]} : vector<8x512xf32> to vector<8x128xf32>
    %95 = math.tanh %94 : vector<8x128xf32>
    %96 = arith.mulf %92, %79 : vector<8x128xf32>
    %97 = arith.mulf %91, %95 : vector<8x128xf32>
    %98 = arith.addf %96, %97 : vector<8x128xf32>
    %99 = math.tanh %98 : vector<8x128xf32>
    %100 = arith.mulf %93, %99 : vector<8x128xf32>
    %101 = vector.extract_strided_slice %22 {offsets = [32, 0], sizes = [8, 512], strides = [1, 1]} : vector<64x512xf32> to vector<8x512xf32>
    %cst_17 = arith.constant dense<0.000000e+00> : vector<8x512xf32>
    %102 = tpu.matmul %100, %4, %cst_17 {dimension_numbers = #tpu.dot_dimension_numbers<[1], [0], [0], [1], [0, 0, 1, 1], [], []>} : vector<8x128xf32>, vector<128x512xf32>, vector<8x512xf32> -> vector<8x512xf32>
    %103 = arith.addf %101, %102 : vector<8x512xf32>
    %104 = vector.extract_strided_slice %103 {offsets = [0, 0], sizes = [8, 384], strides = [1, 1]} : vector<8x512xf32> to vector<8x384xf32>
    %105 = arith.negf %104 : vector<8x384xf32>
    %106 = math.exp %105 : vector<8x384xf32>
    %cst_18 = arith.constant 1.000000e+00 : f32
    %107 = vector.broadcast %cst_18 : f32 to vector<8x384xf32>
    %108 = arith.addf %107, %106 : vector<8x384xf32>
    %109 = arith.divf %107, %108 : vector<8x384xf32>
    %110 = vector.extract_strided_slice %109 {offsets = [0, 0], sizes = [8, 128], strides = [1, 1]} : vector<8x384xf32> to vector<8x128xf32>
    %111 = vector.extract_strided_slice %109 {offsets = [0, 128], sizes = [8, 128], strides = [1, 1]} : vector<8x384xf32> to vector<8x128xf32>
    %112 = vector.extract_strided_slice %109 {offsets = [0, 256], sizes = [8, 128], strides = [1, 1]} : vector<8x384xf32> to vector<8x128xf32>
    %113 = vector.extract_strided_slice %103 {offsets = [0, 384], sizes = [8, 128], strides = [1, 1]} : vector<8x512xf32> to vector<8x128xf32>
    %114 = math.tanh %113 : vector<8x128xf32>
    %115 = arith.mulf %111, %98 : vector<8x128xf32>
    %116 = arith.mulf %110, %114 : vector<8x128xf32>
    %117 = arith.addf %115, %116 : vector<8x128xf32>
    %118 = math.tanh %117 : vector<8x128xf32>
    %119 = arith.mulf %112, %118 : vector<8x128xf32>
    %120 = vector.extract_strided_slice %22 {offsets = [40, 0], sizes = [8, 512], strides = [1, 1]} : vector<64x512xf32> to vector<8x512xf32>
    %cst_19 = arith.constant dense<0.000000e+00> : vector<8x512xf32>
    %121 = tpu.matmul %119, %4, %cst_19 {dimension_numbers = #tpu.dot_dimension_numbers<[1], [0], [0], [1], [0, 0, 1, 1], [], []>} : vector<8x128xf32>, vector<128x512xf32>, vector<8x512xf32> -> vector<8x512xf32>
    %122 = arith.addf %120, %121 : vector<8x512xf32>
    %123 = vector.extract_strided_slice %122 {offsets = [0, 0], sizes = [8, 384], strides = [1, 1]} : vector<8x512xf32> to vector<8x384xf32>
    %124 = arith.negf %123 : vector<8x384xf32>
    %125 = math.exp %124 : vector<8x384xf32>
    %cst_20 = arith.constant 1.000000e+00 : f32
    %126 = vector.broadcast %cst_20 : f32 to vector<8x384xf32>
    %127 = arith.addf %126, %125 : vector<8x384xf32>
    %128 = arith.divf %126, %127 : vector<8x384xf32>
    %129 = vector.extract_strided_slice %128 {offsets = [0, 0], sizes = [8, 128], strides = [1, 1]} : vector<8x384xf32> to vector<8x128xf32>
    %130 = vector.extract_strided_slice %128 {offsets = [0, 128], sizes = [8, 128], strides = [1, 1]} : vector<8x384xf32> to vector<8x128xf32>
    %131 = vector.extract_strided_slice %128 {offsets = [0, 256], sizes = [8, 128], strides = [1, 1]} : vector<8x384xf32> to vector<8x128xf32>
    %132 = vector.extract_strided_slice %122 {offsets = [0, 384], sizes = [8, 128], strides = [1, 1]} : vector<8x512xf32> to vector<8x128xf32>
    %133 = math.tanh %132 : vector<8x128xf32>
    %134 = arith.mulf %130, %117 : vector<8x128xf32>
    %135 = arith.mulf %129, %133 : vector<8x128xf32>
    %136 = arith.addf %134, %135 : vector<8x128xf32>
    %137 = math.tanh %136 : vector<8x128xf32>
    %138 = arith.mulf %131, %137 : vector<8x128xf32>
    %139 = vector.extract_strided_slice %22 {offsets = [48, 0], sizes = [8, 512], strides = [1, 1]} : vector<64x512xf32> to vector<8x512xf32>
    %cst_21 = arith.constant dense<0.000000e+00> : vector<8x512xf32>
    %140 = tpu.matmul %138, %4, %cst_21 {dimension_numbers = #tpu.dot_dimension_numbers<[1], [0], [0], [1], [0, 0, 1, 1], [], []>} : vector<8x128xf32>, vector<128x512xf32>, vector<8x512xf32> -> vector<8x512xf32>
    %141 = arith.addf %139, %140 : vector<8x512xf32>
    %142 = vector.extract_strided_slice %141 {offsets = [0, 0], sizes = [8, 384], strides = [1, 1]} : vector<8x512xf32> to vector<8x384xf32>
    %143 = arith.negf %142 : vector<8x384xf32>
    %144 = math.exp %143 : vector<8x384xf32>
    %cst_22 = arith.constant 1.000000e+00 : f32
    %145 = vector.broadcast %cst_22 : f32 to vector<8x384xf32>
    %146 = arith.addf %145, %144 : vector<8x384xf32>
    %147 = arith.divf %145, %146 : vector<8x384xf32>
    %148 = vector.extract_strided_slice %147 {offsets = [0, 0], sizes = [8, 128], strides = [1, 1]} : vector<8x384xf32> to vector<8x128xf32>
    %149 = vector.extract_strided_slice %147 {offsets = [0, 128], sizes = [8, 128], strides = [1, 1]} : vector<8x384xf32> to vector<8x128xf32>
    %150 = vector.extract_strided_slice %147 {offsets = [0, 256], sizes = [8, 128], strides = [1, 1]} : vector<8x384xf32> to vector<8x128xf32>
    %151 = vector.extract_strided_slice %141 {offsets = [0, 384], sizes = [8, 128], strides = [1, 1]} : vector<8x512xf32> to vector<8x128xf32>
    %152 = math.tanh %151 : vector<8x128xf32>
    %153 = arith.mulf %149, %136 : vector<8x128xf32>
    %154 = arith.mulf %148, %152 : vector<8x128xf32>
    %155 = arith.addf %153, %154 : vector<8x128xf32>
    %156 = math.tanh %155 : vector<8x128xf32>
    %157 = arith.mulf %150, %156 : vector<8x128xf32>
    %158 = vector.extract_strided_slice %22 {offsets = [56, 0], sizes = [8, 512], strides = [1, 1]} : vector<64x512xf32> to vector<8x512xf32>
    %cst_23 = arith.constant dense<0.000000e+00> : vector<8x512xf32>
    %159 = tpu.matmul %157, %4, %cst_23 {dimension_numbers = #tpu.dot_dimension_numbers<[1], [0], [0], [1], [0, 0, 1, 1], [], []>} : vector<8x128xf32>, vector<128x512xf32>, vector<8x512xf32> -> vector<8x512xf32>
    %160 = arith.addf %158, %159 : vector<8x512xf32>
    %161 = vector.extract_strided_slice %160 {offsets = [0, 0], sizes = [8, 384], strides = [1, 1]} : vector<8x512xf32> to vector<8x384xf32>
    %162 = arith.negf %161 : vector<8x384xf32>
    %163 = math.exp %162 : vector<8x384xf32>
    %cst_24 = arith.constant 1.000000e+00 : f32
    %164 = vector.broadcast %cst_24 : f32 to vector<8x384xf32>
    %165 = arith.addf %164, %163 : vector<8x384xf32>
    %166 = arith.divf %164, %165 : vector<8x384xf32>
    %167 = vector.extract_strided_slice %166 {offsets = [0, 0], sizes = [8, 128], strides = [1, 1]} : vector<8x384xf32> to vector<8x128xf32>
    %168 = vector.extract_strided_slice %166 {offsets = [0, 128], sizes = [8, 128], strides = [1, 1]} : vector<8x384xf32> to vector<8x128xf32>
    %169 = vector.extract_strided_slice %166 {offsets = [0, 256], sizes = [8, 128], strides = [1, 1]} : vector<8x384xf32> to vector<8x128xf32>
    %170 = vector.extract_strided_slice %160 {offsets = [0, 384], sizes = [8, 128], strides = [1, 1]} : vector<8x512xf32> to vector<8x128xf32>
    %171 = math.tanh %170 : vector<8x128xf32>
    %172 = arith.mulf %168, %155 : vector<8x128xf32>
    %173 = arith.mulf %167, %171 : vector<8x128xf32>
    %174 = arith.addf %172, %173 : vector<8x128xf32>
    %175 = math.tanh %174 : vector<8x128xf32>
    %176 = arith.mulf %169, %175 : vector<8x128xf32>
    %c0_25 = arith.constant 0 : index
    %c0_26 = arith.constant 0 : index
    %177 = vector.load %arg1[%c0_25, %c0_26] : memref<8x128xf32, #tpu.memory_space<vmem>>, vector<8x128xf32>
    %cst_27 = arith.constant dense<0.000000e+00> : vector<8x128xf32>
    %178 = tpu.matmul %177, %9, %cst_27 {dimension_numbers = #tpu.dot_dimension_numbers<[1], [0], [0], [1], [0, 0, 1, 1], [], []>} : vector<8x128xf32>, vector<128x128xf32>, vector<8x128xf32> -> vector<8x128xf32>
    %179 = vector.broadcast %11 : vector<1x128xf32> to vector<8x128xf32>
    %180 = arith.addf %178, %179 : vector<8x128xf32>
    %cst_28 = arith.constant 0.000000e+00 : f32
    %181 = vector.broadcast %cst_28 : f32 to vector<8x128xf32>
    %182 = arith.maximumf %180, %181 : vector<8x128xf32>
    %cst_29 = arith.constant dense<0.000000e+00> : vector<8x256xf32>
    %183 = tpu.matmul %176, %7, %cst_29 {dimension_numbers = #tpu.dot_dimension_numbers<[1], [0], [0], [1], [0, 0, 1, 1], [], []>} : vector<8x128xf32>, vector<128x256xf32>, vector<8x256xf32> -> vector<8x256xf32>
    %cst_30 = arith.constant dense<0.000000e+00> : vector<8x256xf32>
    %184 = tpu.matmul %182, %8, %cst_30 {dimension_numbers = #tpu.dot_dimension_numbers<[1], [0], [0], [1], [0, 0, 1, 1], [], []>} : vector<8x128xf32>, vector<128x256xf32>, vector<8x256xf32> -> vector<8x256xf32>
    %185 = arith.addf %183, %184 : vector<8x256xf32>
    %186 = vector.extract_strided_slice %185 {offsets = [0, 0], sizes = [8, 128], strides = [1, 1]} : vector<8x256xf32> to vector<8x128xf32>
    %187 = vector.broadcast %12 : vector<1x128xf32> to vector<8x128xf32>
    %188 = arith.addf %186, %187 : vector<8x128xf32>
    %c0_31 = arith.constant 0 : index
    %c0_32 = arith.constant 0 : index
    %189 = vector.load %arg5[%c0_31, %c0_32] : memref<8x128xf32, #tpu.memory_space<vmem>>, vector<8x128xf32>
    tpu.vector_store %arg5[%c0_31, %c0_32], %188 {strides = array<i32>} : memref<8x128xf32, #tpu.memory_space<vmem>>, vector<8x128xf32>,
    %190 = vector.extract_strided_slice %185 {offsets = [0, 128], sizes = [8, 128], strides = [1, 1]} : vector<8x256xf32> to vector<8x128xf32>
    %191 = vector.broadcast %13 : vector<1x128xf32> to vector<8x128xf32>
    %192 = arith.addf %190, %191 : vector<8x128xf32>
    %cst_33 = arith.constant 0.000000e+00 : f32
    %193 = vector.broadcast %cst_33 : f32 to vector<8x128xf32>
    %194 = arith.maximumf %192, %193 : vector<8x128xf32>
    %195 = tpu.iota {dimensions = array<i32: 1>} : vector<8x32xi32>
    %196 = tpu.iota {dimensions = array<i32: 1>} : vector<8x128xi32>
    %c1_i32 = arith.constant 1 : i32
    %197 = vector.broadcast %c1_i32 : i32 to vector<8x32xi32>
    %198 = arith.cmpi eq, %195, %197 : vector<8x32xi32>
    %199 = arith.extui %198 : vector<8x32xi1> to vector<8x32xi32>
    %200 = arith.sitofp %199 : vector<8x32xi32> to vector<8x32xf32>
    %cst_34 = arith.constant dense<0.000000e+00> : vector<8x512xf32>
    %201 = tpu.matmul %200, %3, %cst_34 {dimension_numbers = #tpu.dot_dimension_numbers<[1], [0], [0], [1], [0, 0, 1, 1], [], []>} : vector<8x32xf32>, vector<32x512xf32>, vector<8x512xf32> -> vector<8x512xf32>
    %cst_35 = arith.constant dense<0.000000e+00> : vector<8x512xf32>
    %202 = tpu.matmul %194, %5, %cst_35 {dimension_numbers = #tpu.dot_dimension_numbers<[1], [0], [0], [1], [0, 0, 1, 1], [], []>} : vector<8x128xf32>, vector<128x512xf32>, vector<8x512xf32> -> vector<8x512xf32>
    %cst_36 = arith.constant 0.000000e+00 : f32
    %203 = vector.broadcast %cst_36 : f32 to vector<8x128xf32>
    %204 = arith.addf %201, %202 : vector<8x512xf32>
    %205 = vector.extract_strided_slice %204 {offsets = [0, 0], sizes = [8, 384], strides = [1, 1]} : vector<8x512xf32> to vector<8x384xf32>
    %206 = arith.negf %205 : vector<8x384xf32>
    %207 = math.exp %206 : vector<8x384xf32>
    %cst_37 = arith.constant 1.000000e+00 : f32
    %208 = vector.broadcast %cst_37 : f32 to vector<8x384xf32>
    %209 = arith.addf %208, %207 : vector<8x384xf32>
    %210 = arith.divf %208, %209 : vector<8x384xf32>
    %211 = vector.extract_strided_slice %210 {offsets = [0, 0], sizes = [8, 128], strides = [1, 1]} : vector<8x384xf32> to vector<8x128xf32>
    %212 = vector.extract_strided_slice %210 {offsets = [0, 128], sizes = [8, 128], strides = [1, 1]} : vector<8x384xf32> to vector<8x128xf32>
    %213 = vector.extract_strided_slice %210 {offsets = [0, 256], sizes = [8, 128], strides = [1, 1]} : vector<8x384xf32> to vector<8x128xf32>
    %214 = vector.extract_strided_slice %204 {offsets = [0, 384], sizes = [8, 128], strides = [1, 1]} : vector<8x512xf32> to vector<8x128xf32>
    %215 = math.tanh %214 : vector<8x128xf32>
    %216 = arith.mulf %212, %203 : vector<8x128xf32>
    %217 = arith.mulf %211, %215 : vector<8x128xf32>
    %218 = arith.addf %216, %217 : vector<8x128xf32>
    %219 = math.tanh %218 : vector<8x128xf32>
    %220 = arith.mulf %213, %219 : vector<8x128xf32>
    %cst_38 = arith.constant dense<0.000000e+00> : vector<8x640xf32>
    %221 = tpu.matmul %220, %6, %cst_38 {dimension_numbers = #tpu.dot_dimension_numbers<[1], [0], [0], [1], [0, 0, 1, 1], [], []>} : vector<8x128xf32>, vector<128x640xf32>, vector<8x640xf32> -> vector<8x640xf32>
    %222 = vector.extract_strided_slice %221 {offsets = [0, 512], sizes = [8, 128], strides = [1, 1]} : vector<8x640xf32> to vector<8x128xf32>
    %223 = vector.broadcast %14 : vector<1x128xf32> to vector<8x128xf32>
    %224 = arith.addf %222, %223 : vector<8x128xf32>
    %c0_39 = arith.constant 0 : index
    %c0_40 = arith.constant 0 : index
    %c0_41 = arith.constant 0 : index
    %225 = vector.load %arg6[%c0_39, %c0_40, %c0_41] : memref<8x8x128xf32, #tpu.memory_space<vmem>>, vector<1x8x128xf32>
    %226 = vector.shape_cast %225 : vector<1x8x128xf32> to vector<8x128xf32>
    %227 = vector.shape_cast %224 : vector<8x128xf32> to vector<1x8x128xf32>
    tpu.vector_store %arg6[%c0_39, %c0_40, %c0_41], %227 {strides = array<i32>} : memref<8x8x128xf32, #tpu.memory_space<vmem>>, vector<1x8x128xf32>,
    %228 = vector.extract_strided_slice %221 {offsets = [0, 0], sizes = [8, 512], strides = [1, 1]} : vector<8x640xf32> to vector<8x512xf32>
    %229 = vector.broadcast %15 : vector<1x128xf32> to vector<8x128xf32>
    %230 = arith.addf %224, %229 : vector<8x128xf32>
    %cst_42 = arith.constant dense<0xFF800000> : vector<8xf32>
    %231 = vector.multi_reduction <maximumf>, %230, %cst_42 [1] : vector<8x128xf32> to vector<8xf32>
    %232 = vector.shape_cast %231 : vector<8xf32> to vector<8x1xf32>
    %233 = vector.broadcast %232 : vector<8x1xf32> to vector<8x128xf32>
    %234 = arith.cmpf oeq, %230, %233 : vector<8x128xf32>
    %c128_i32 = arith.constant 128 : i32
    %235 = vector.broadcast %c128_i32 : i32 to vector<8x128xi32>
    %236 = arith.select %234, %196, %235 : vector<8x128xi1>, vector<8x128xi32>
    %cst_43 = arith.constant dense<2147483647> : vector<8xi32>
    %237 = vector.multi_reduction <minsi>, %236, %cst_43 [1] : vector<8x128xi32> to vector<8xi32>
    %238 = vector.shape_cast %237 : vector<8xi32> to vector<8x1xi32>
    %239 = vector.broadcast %238 : vector<8x1xi32> to vector<8x32xi32>
    %240 = arith.cmpi eq, %195, %239 : vector<8x32xi32>
    %241 = arith.extui %240 : vector<8x32xi1> to vector<8x32xi32>
    %242 = arith.sitofp %241 : vector<8x32xi32> to vector<8x32xf32>
    %cst_44 = arith.constant dense<0.000000e+00> : vector<8x512xf32>
    %243 = tpu.matmul %242, %3, %cst_44 {dimension_numbers = #tpu.dot_dimension_numbers<[1], [0], [0], [1], [0, 0, 1, 1], [], []>} : vector<8x32xf32>, vector<32x512xf32>, vector<8x512xf32> -> vector<8x512xf32>
    %244 = arith.addf %243, %228 : vector<8x512xf32>
    %245 = vector.extract_strided_slice %244 {offsets = [0, 0], sizes = [8, 384], strides = [1, 1]} : vector<8x512xf32> to vector<8x384xf32>
    %246 = arith.negf %245 : vector<8x384xf32>
    %247 = math.exp %246 : vector<8x384xf32>
    %cst_45 = arith.constant 1.000000e+00 : f32
    %248 = vector.broadcast %cst_45 : f32 to vector<8x384xf32>
    %249 = arith.addf %248, %247 : vector<8x384xf32>
    %250 = arith.divf %248, %249 : vector<8x384xf32>
    %251 = vector.extract_strided_slice %250 {offsets = [0, 0], sizes = [8, 128], strides = [1, 1]} : vector<8x384xf32> to vector<8x128xf32>
    %252 = vector.extract_strided_slice %250 {offsets = [0, 128], sizes = [8, 128], strides = [1, 1]} : vector<8x384xf32> to vector<8x128xf32>
    %253 = vector.extract_strided_slice %250 {offsets = [0, 256], sizes = [8, 128], strides = [1, 1]} : vector<8x384xf32> to vector<8x128xf32>
    %254 = vector.extract_strided_slice %244 {offsets = [0, 384], sizes = [8, 128], strides = [1, 1]} : vector<8x512xf32> to vector<8x128xf32>
    %255 = math.tanh %254 : vector<8x128xf32>
    %256 = arith.mulf %252, %218 : vector<8x128xf32>
    %257 = arith.mulf %251, %255 : vector<8x128xf32>
    %258 = arith.addf %256, %257 : vector<8x128xf32>
    %259 = math.tanh %258 : vector<8x128xf32>
    %260 = arith.mulf %253, %259 : vector<8x128xf32>
    %cst_46 = arith.constant dense<0.000000e+00> : vector<8x640xf32>
    %261 = tpu.matmul %260, %6, %cst_46 {dimension_numbers = #tpu.dot_dimension_numbers<[1], [0], [0], [1], [0, 0, 1, 1], [], []>} : vector<8x128xf32>, vector<128x640xf32>, vector<8x640xf32> -> vector<8x640xf32>
    %262 = vector.extract_strided_slice %261 {offsets = [0, 512], sizes = [8, 128], strides = [1, 1]} : vector<8x640xf32> to vector<8x128xf32>
    %263 = vector.broadcast %14 : vector<1x128xf32> to vector<8x128xf32>
    %264 = arith.addf %262, %263 : vector<8x128xf32>
    %c1 = arith.constant 1 : index
    %c0_47 = arith.constant 0 : index
    %c0_48 = arith.constant 0 : index
    %265 = vector.load %arg6[%c1, %c0_47, %c0_48] : memref<8x8x128xf32, #tpu.memory_space<vmem>>, vector<1x8x128xf32>
    %266 = vector.shape_cast %265 : vector<1x8x128xf32> to vector<8x128xf32>
    %267 = vector.shape_cast %264 : vector<8x128xf32> to vector<1x8x128xf32>
    tpu.vector_store %arg6[%c1, %c0_47, %c0_48], %267 {strides = array<i32>} : memref<8x8x128xf32, #tpu.memory_space<vmem>>, vector<1x8x128xf32>,
    %268 = vector.extract_strided_slice %261 {offsets = [0, 0], sizes = [8, 512], strides = [1, 1]} : vector<8x640xf32> to vector<8x512xf32>
    %269 = vector.broadcast %15 : vector<1x128xf32> to vector<8x128xf32>
    %270 = arith.addf %264, %269 : vector<8x128xf32>
    %cst_49 = arith.constant dense<0xFF800000> : vector<8xf32>
    %271 = vector.multi_reduction <maximumf>, %270, %cst_49 [1] : vector<8x128xf32> to vector<8xf32>
    %272 = vector.shape_cast %271 : vector<8xf32> to vector<8x1xf32>
    %273 = vector.broadcast %272 : vector<8x1xf32> to vector<8x128xf32>
    %274 = arith.cmpf oeq, %270, %273 : vector<8x128xf32>
    %c128_i32_50 = arith.constant 128 : i32
    %275 = vector.broadcast %c128_i32_50 : i32 to vector<8x128xi32>
    %276 = arith.select %274, %196, %275 : vector<8x128xi1>, vector<8x128xi32>
    %cst_51 = arith.constant dense<2147483647> : vector<8xi32>
    %277 = vector.multi_reduction <minsi>, %276, %cst_51 [1] : vector<8x128xi32> to vector<8xi32>
    %278 = vector.shape_cast %277 : vector<8xi32> to vector<8x1xi32>
    %279 = vector.broadcast %278 : vector<8x1xi32> to vector<8x32xi32>
    %280 = arith.cmpi eq, %195, %279 : vector<8x32xi32>
    %281 = arith.extui %280 : vector<8x32xi1> to vector<8x32xi32>
    %282 = arith.sitofp %281 : vector<8x32xi32> to vector<8x32xf32>
    %cst_52 = arith.constant dense<0.000000e+00> : vector<8x512xf32>
    %283 = tpu.matmul %282, %3, %cst_52 {dimension_numbers = #tpu.dot_dimension_numbers<[1], [0], [0], [1], [0, 0, 1, 1], [], []>} : vector<8x32xf32>, vector<32x512xf32>, vector<8x512xf32> -> vector<8x512xf32>
    %284 = arith.addf %283, %268 : vector<8x512xf32>
    %285 = vector.extract_strided_slice %284 {offsets = [0, 0], sizes = [8, 384], strides = [1, 1]} : vector<8x512xf32> to vector<8x384xf32>
    %286 = arith.negf %285 : vector<8x384xf32>
    %287 = math.exp %286 : vector<8x384xf32>
    %cst_53 = arith.constant 1.000000e+00 : f32
    %288 = vector.broadcast %cst_53 : f32 to vector<8x384xf32>
    %289 = arith.addf %288, %287 : vector<8x384xf32>
    %290 = arith.divf %288, %289 : vector<8x384xf32>
    %291 = vector.extract_strided_slice %290 {offsets = [0, 0], sizes = [8, 128], strides = [1, 1]} : vector<8x384xf32> to vector<8x128xf32>
    %292 = vector.extract_strided_slice %290 {offsets = [0, 128], sizes = [8, 128], strides = [1, 1]} : vector<8x384xf32> to vector<8x128xf32>
    %293 = vector.extract_strided_slice %290 {offsets = [0, 256], sizes = [8, 128], strides = [1, 1]} : vector<8x384xf32> to vector<8x128xf32>
    %294 = vector.extract_strided_slice %284 {offsets = [0, 384], sizes = [8, 128], strides = [1, 1]} : vector<8x512xf32> to vector<8x128xf32>
    %295 = math.tanh %294 : vector<8x128xf32>
    %296 = arith.mulf %292, %258 : vector<8x128xf32>
    %297 = arith.mulf %291, %295 : vector<8x128xf32>
    %298 = arith.addf %296, %297 : vector<8x128xf32>
    %299 = math.tanh %298 : vector<8x128xf32>
    %300 = arith.mulf %293, %299 : vector<8x128xf32>
    %cst_54 = arith.constant dense<0.000000e+00> : vector<8x640xf32>
    %301 = tpu.matmul %300, %6, %cst_54 {dimension_numbers = #tpu.dot_dimension_numbers<[1], [0], [0], [1], [0, 0, 1, 1], [], []>} : vector<8x128xf32>, vector<128x640xf32>, vector<8x640xf32> -> vector<8x640xf32>
    %302 = vector.extract_strided_slice %301 {offsets = [0, 512], sizes = [8, 128], strides = [1, 1]} : vector<8x640xf32> to vector<8x128xf32>
    %303 = vector.broadcast %14 : vector<1x128xf32> to vector<8x128xf32>
    %304 = arith.addf %302, %303 : vector<8x128xf32>
    %c2 = arith.constant 2 : index
    %c0_55 = arith.constant 0 : index
    %c0_56 = arith.constant 0 : index
    %305 = vector.load %arg6[%c2, %c0_55, %c0_56] : memref<8x8x128xf32, #tpu.memory_space<vmem>>, vector<1x8x128xf32>
    %306 = vector.shape_cast %305 : vector<1x8x128xf32> to vector<8x128xf32>
    %307 = vector.shape_cast %304 : vector<8x128xf32> to vector<1x8x128xf32>
    tpu.vector_store %arg6[%c2, %c0_55, %c0_56], %307 {strides = array<i32>} : memref<8x8x128xf32, #tpu.memory_space<vmem>>, vector<1x8x128xf32>,
    %308 = vector.extract_strided_slice %301 {offsets = [0, 0], sizes = [8, 512], strides = [1, 1]} : vector<8x640xf32> to vector<8x512xf32>
    %309 = vector.broadcast %15 : vector<1x128xf32> to vector<8x128xf32>
    %310 = arith.addf %304, %309 : vector<8x128xf32>
    %cst_57 = arith.constant dense<0xFF800000> : vector<8xf32>
    %311 = vector.multi_reduction <maximumf>, %310, %cst_57 [1] : vector<8x128xf32> to vector<8xf32>
    %312 = vector.shape_cast %311 : vector<8xf32> to vector<8x1xf32>
    %313 = vector.broadcast %312 : vector<8x1xf32> to vector<8x128xf32>
    %314 = arith.cmpf oeq, %310, %313 : vector<8x128xf32>
    %c128_i32_58 = arith.constant 128 : i32
    %315 = vector.broadcast %c128_i32_58 : i32 to vector<8x128xi32>
    %316 = arith.select %314, %196, %315 : vector<8x128xi1>, vector<8x128xi32>
    %cst_59 = arith.constant dense<2147483647> : vector<8xi32>
    %317 = vector.multi_reduction <minsi>, %316, %cst_59 [1] : vector<8x128xi32> to vector<8xi32>
    %318 = vector.shape_cast %317 : vector<8xi32> to vector<8x1xi32>
    %319 = vector.broadcast %318 : vector<8x1xi32> to vector<8x32xi32>
    %320 = arith.cmpi eq, %195, %319 : vector<8x32xi32>
    %321 = arith.extui %320 : vector<8x32xi1> to vector<8x32xi32>
    %322 = arith.sitofp %321 : vector<8x32xi32> to vector<8x32xf32>
    %cst_60 = arith.constant dense<0.000000e+00> : vector<8x512xf32>
    %323 = tpu.matmul %322, %3, %cst_60 {dimension_numbers = #tpu.dot_dimension_numbers<[1], [0], [0], [1], [0, 0, 1, 1], [], []>} : vector<8x32xf32>, vector<32x512xf32>, vector<8x512xf32> -> vector<8x512xf32>
    %324 = arith.addf %323, %308 : vector<8x512xf32>
    %325 = vector.extract_strided_slice %324 {offsets = [0, 0], sizes = [8, 384], strides = [1, 1]} : vector<8x512xf32> to vector<8x384xf32>
    %326 = arith.negf %325 : vector<8x384xf32>
    %327 = math.exp %326 : vector<8x384xf32>
    %cst_61 = arith.constant 1.000000e+00 : f32
    %328 = vector.broadcast %cst_61 : f32 to vector<8x384xf32>
    %329 = arith.addf %328, %327 : vector<8x384xf32>
    %330 = arith.divf %328, %329 : vector<8x384xf32>
    %331 = vector.extract_strided_slice %330 {offsets = [0, 0], sizes = [8, 128], strides = [1, 1]} : vector<8x384xf32> to vector<8x128xf32>
    %332 = vector.extract_strided_slice %330 {offsets = [0, 128], sizes = [8, 128], strides = [1, 1]} : vector<8x384xf32> to vector<8x128xf32>
    %333 = vector.extract_strided_slice %330 {offsets = [0, 256], sizes = [8, 128], strides = [1, 1]} : vector<8x384xf32> to vector<8x128xf32>
    %334 = vector.extract_strided_slice %324 {offsets = [0, 384], sizes = [8, 128], strides = [1, 1]} : vector<8x512xf32> to vector<8x128xf32>
    %335 = math.tanh %334 : vector<8x128xf32>
    %336 = arith.mulf %332, %298 : vector<8x128xf32>
    %337 = arith.mulf %331, %335 : vector<8x128xf32>
    %338 = arith.addf %336, %337 : vector<8x128xf32>
    %339 = math.tanh %338 : vector<8x128xf32>
    %340 = arith.mulf %333, %339 : vector<8x128xf32>
    %cst_62 = arith.constant dense<0.000000e+00> : vector<8x640xf32>
    %341 = tpu.matmul %340, %6, %cst_62 {dimension_numbers = #tpu.dot_dimension_numbers<[1], [0], [0], [1], [0, 0, 1, 1], [], []>} : vector<8x128xf32>, vector<128x640xf32>, vector<8x640xf32> -> vector<8x640xf32>
    %342 = vector.extract_strided_slice %341 {offsets = [0, 512], sizes = [8, 128], strides = [1, 1]} : vector<8x640xf32> to vector<8x128xf32>
    %343 = vector.broadcast %14 : vector<1x128xf32> to vector<8x128xf32>
    %344 = arith.addf %342, %343 : vector<8x128xf32>
    %c3 = arith.constant 3 : index
    %c0_63 = arith.constant 0 : index
    %c0_64 = arith.constant 0 : index
    %345 = vector.load %arg6[%c3, %c0_63, %c0_64] : memref<8x8x128xf32, #tpu.memory_space<vmem>>, vector<1x8x128xf32>
    %346 = vector.shape_cast %345 : vector<1x8x128xf32> to vector<8x128xf32>
    %347 = vector.shape_cast %344 : vector<8x128xf32> to vector<1x8x128xf32>
    tpu.vector_store %arg6[%c3, %c0_63, %c0_64], %347 {strides = array<i32>} : memref<8x8x128xf32, #tpu.memory_space<vmem>>, vector<1x8x128xf32>,
    %348 = vector.extract_strided_slice %341 {offsets = [0, 0], sizes = [8, 512], strides = [1, 1]} : vector<8x640xf32> to vector<8x512xf32>
    %349 = vector.broadcast %15 : vector<1x128xf32> to vector<8x128xf32>
    %350 = arith.addf %344, %349 : vector<8x128xf32>
    %cst_65 = arith.constant dense<0xFF800000> : vector<8xf32>
    %351 = vector.multi_reduction <maximumf>, %350, %cst_65 [1] : vector<8x128xf32> to vector<8xf32>
    %352 = vector.shape_cast %351 : vector<8xf32> to vector<8x1xf32>
    %353 = vector.broadcast %352 : vector<8x1xf32> to vector<8x128xf32>
    %354 = arith.cmpf oeq, %350, %353 : vector<8x128xf32>
    %c128_i32_66 = arith.constant 128 : i32
    %355 = vector.broadcast %c128_i32_66 : i32 to vector<8x128xi32>
    %356 = arith.select %354, %196, %355 : vector<8x128xi1>, vector<8x128xi32>
    %cst_67 = arith.constant dense<2147483647> : vector<8xi32>
    %357 = vector.multi_reduction <minsi>, %356, %cst_67 [1] : vector<8x128xi32> to vector<8xi32>
    %358 = vector.shape_cast %357 : vector<8xi32> to vector<8x1xi32>
    %359 = vector.broadcast %358 : vector<8x1xi32> to vector<8x32xi32>
    %360 = arith.cmpi eq, %195, %359 : vector<8x32xi32>
    %361 = arith.extui %360 : vector<8x32xi1> to vector<8x32xi32>
    %362 = arith.sitofp %361 : vector<8x32xi32> to vector<8x32xf32>
    %cst_68 = arith.constant dense<0.000000e+00> : vector<8x512xf32>
    %363 = tpu.matmul %362, %3, %cst_68 {dimension_numbers = #tpu.dot_dimension_numbers<[1], [0], [0], [1], [0, 0, 1, 1], [], []>} : vector<8x32xf32>, vector<32x512xf32>, vector<8x512xf32> -> vector<8x512xf32>
    %364 = arith.addf %363, %348 : vector<8x512xf32>
    %365 = vector.extract_strided_slice %364 {offsets = [0, 0], sizes = [8, 384], strides = [1, 1]} : vector<8x512xf32> to vector<8x384xf32>
    %366 = arith.negf %365 : vector<8x384xf32>
    %367 = math.exp %366 : vector<8x384xf32>
    %cst_69 = arith.constant 1.000000e+00 : f32
    %368 = vector.broadcast %cst_69 : f32 to vector<8x384xf32>
    %369 = arith.addf %368, %367 : vector<8x384xf32>
    %370 = arith.divf %368, %369 : vector<8x384xf32>
    %371 = vector.extract_strided_slice %370 {offsets = [0, 0], sizes = [8, 128], strides = [1, 1]} : vector<8x384xf32> to vector<8x128xf32>
    %372 = vector.extract_strided_slice %370 {offsets = [0, 128], sizes = [8, 128], strides = [1, 1]} : vector<8x384xf32> to vector<8x128xf32>
    %373 = vector.extract_strided_slice %370 {offsets = [0, 256], sizes = [8, 128], strides = [1, 1]} : vector<8x384xf32> to vector<8x128xf32>
    %374 = vector.extract_strided_slice %364 {offsets = [0, 384], sizes = [8, 128], strides = [1, 1]} : vector<8x512xf32> to vector<8x128xf32>
    %375 = math.tanh %374 : vector<8x128xf32>
    %376 = arith.mulf %372, %338 : vector<8x128xf32>
    %377 = arith.mulf %371, %375 : vector<8x128xf32>
    %378 = arith.addf %376, %377 : vector<8x128xf32>
    %379 = math.tanh %378 : vector<8x128xf32>
    %380 = arith.mulf %373, %379 : vector<8x128xf32>
    %cst_70 = arith.constant dense<0.000000e+00> : vector<8x640xf32>
    %381 = tpu.matmul %380, %6, %cst_70 {dimension_numbers = #tpu.dot_dimension_numbers<[1], [0], [0], [1], [0, 0, 1, 1], [], []>} : vector<8x128xf32>, vector<128x640xf32>, vector<8x640xf32> -> vector<8x640xf32>
    %382 = vector.extract_strided_slice %381 {offsets = [0, 512], sizes = [8, 128], strides = [1, 1]} : vector<8x640xf32> to vector<8x128xf32>
    %383 = vector.broadcast %14 : vector<1x128xf32> to vector<8x128xf32>
    %384 = arith.addf %382, %383 : vector<8x128xf32>
    %c4 = arith.constant 4 : index
    %c0_71 = arith.constant 0 : index
    %c0_72 = arith.constant 0 : index
    %385 = vector.load %arg6[%c4, %c0_71, %c0_72] : memref<8x8x128xf32, #tpu.memory_space<vmem>>, vector<1x8x128xf32>
    %386 = vector.shape_cast %385 : vector<1x8x128xf32> to vector<8x128xf32>
    %387 = vector.shape_cast %384 : vector<8x128xf32> to vector<1x8x128xf32>
    tpu.vector_store %arg6[%c4, %c0_71, %c0_72], %387 {strides = array<i32>} : memref<8x8x128xf32, #tpu.memory_space<vmem>>, vector<1x8x128xf32>,
    %388 = vector.extract_strided_slice %381 {offsets = [0, 0], sizes = [8, 512], strides = [1, 1]} : vector<8x640xf32> to vector<8x512xf32>
    %389 = vector.broadcast %15 : vector<1x128xf32> to vector<8x128xf32>
    %390 = arith.addf %384, %389 : vector<8x128xf32>
    %cst_73 = arith.constant dense<0xFF800000> : vector<8xf32>
    %391 = vector.multi_reduction <maximumf>, %390, %cst_73 [1] : vector<8x128xf32> to vector<8xf32>
    %392 = vector.shape_cast %391 : vector<8xf32> to vector<8x1xf32>
    %393 = vector.broadcast %392 : vector<8x1xf32> to vector<8x128xf32>
    %394 = arith.cmpf oeq, %390, %393 : vector<8x128xf32>
    %c128_i32_74 = arith.constant 128 : i32
    %395 = vector.broadcast %c128_i32_74 : i32 to vector<8x128xi32>
    %396 = arith.select %394, %196, %395 : vector<8x128xi1>, vector<8x128xi32>
    %cst_75 = arith.constant dense<2147483647> : vector<8xi32>
    %397 = vector.multi_reduction <minsi>, %396, %cst_75 [1] : vector<8x128xi32> to vector<8xi32>
    %398 = vector.shape_cast %397 : vector<8xi32> to vector<8x1xi32>
    %399 = vector.broadcast %398 : vector<8x1xi32> to vector<8x32xi32>
    %400 = arith.cmpi eq, %195, %399 : vector<8x32xi32>
    %401 = arith.extui %400 : vector<8x32xi1> to vector<8x32xi32>
    %402 = arith.sitofp %401 : vector<8x32xi32> to vector<8x32xf32>
    %cst_76 = arith.constant dense<0.000000e+00> : vector<8x512xf32>
    %403 = tpu.matmul %402, %3, %cst_76 {dimension_numbers = #tpu.dot_dimension_numbers<[1], [0], [0], [1], [0, 0, 1, 1], [], []>} : vector<8x32xf32>, vector<32x512xf32>, vector<8x512xf32> -> vector<8x512xf32>
    %404 = arith.addf %403, %388 : vector<8x512xf32>
    %405 = vector.extract_strided_slice %404 {offsets = [0, 0], sizes = [8, 384], strides = [1, 1]} : vector<8x512xf32> to vector<8x384xf32>
    %406 = arith.negf %405 : vector<8x384xf32>
    %407 = math.exp %406 : vector<8x384xf32>
    %cst_77 = arith.constant 1.000000e+00 : f32
    %408 = vector.broadcast %cst_77 : f32 to vector<8x384xf32>
    %409 = arith.addf %408, %407 : vector<8x384xf32>
    %410 = arith.divf %408, %409 : vector<8x384xf32>
    %411 = vector.extract_strided_slice %410 {offsets = [0, 0], sizes = [8, 128], strides = [1, 1]} : vector<8x384xf32> to vector<8x128xf32>
    %412 = vector.extract_strided_slice %410 {offsets = [0, 128], sizes = [8, 128], strides = [1, 1]} : vector<8x384xf32> to vector<8x128xf32>
    %413 = vector.extract_strided_slice %410 {offsets = [0, 256], sizes = [8, 128], strides = [1, 1]} : vector<8x384xf32> to vector<8x128xf32>
    %414 = vector.extract_strided_slice %404 {offsets = [0, 384], sizes = [8, 128], strides = [1, 1]} : vector<8x512xf32> to vector<8x128xf32>
    %415 = math.tanh %414 : vector<8x128xf32>
    %416 = arith.mulf %412, %378 : vector<8x128xf32>
    %417 = arith.mulf %411, %415 : vector<8x128xf32>
    %418 = arith.addf %416, %417 : vector<8x128xf32>
    %419 = math.tanh %418 : vector<8x128xf32>
    %420 = arith.mulf %413, %419 : vector<8x128xf32>
    %cst_78 = arith.constant dense<0.000000e+00> : vector<8x640xf32>
    %421 = tpu.matmul %420, %6, %cst_78 {dimension_numbers = #tpu.dot_dimension_numbers<[1], [0], [0], [1], [0, 0, 1, 1], [], []>} : vector<8x128xf32>, vector<128x640xf32>, vector<8x640xf32> -> vector<8x640xf32>
    %422 = vector.extract_strided_slice %421 {offsets = [0, 512], sizes = [8, 128], strides = [1, 1]} : vector<8x640xf32> to vector<8x128xf32>
    %423 = vector.broadcast %14 : vector<1x128xf32> to vector<8x128xf32>
    %424 = arith.addf %422, %423 : vector<8x128xf32>
    %c5 = arith.constant 5 : index
    %c0_79 = arith.constant 0 : index
    %c0_80 = arith.constant 0 : index
    %425 = vector.load %arg6[%c5, %c0_79, %c0_80] : memref<8x8x128xf32, #tpu.memory_space<vmem>>, vector<1x8x128xf32>
    %426 = vector.shape_cast %425 : vector<1x8x128xf32> to vector<8x128xf32>
    %427 = vector.shape_cast %424 : vector<8x128xf32> to vector<1x8x128xf32>
    tpu.vector_store %arg6[%c5, %c0_79, %c0_80], %427 {strides = array<i32>} : memref<8x8x128xf32, #tpu.memory_space<vmem>>, vector<1x8x128xf32>,
    %428 = vector.extract_strided_slice %421 {offsets = [0, 0], sizes = [8, 512], strides = [1, 1]} : vector<8x640xf32> to vector<8x512xf32>
    %429 = vector.broadcast %15 : vector<1x128xf32> to vector<8x128xf32>
    %430 = arith.addf %424, %429 : vector<8x128xf32>
    %cst_81 = arith.constant dense<0xFF800000> : vector<8xf32>
    %431 = vector.multi_reduction <maximumf>, %430, %cst_81 [1] : vector<8x128xf32> to vector<8xf32>
    %432 = vector.shape_cast %431 : vector<8xf32> to vector<8x1xf32>
    %433 = vector.broadcast %432 : vector<8x1xf32> to vector<8x128xf32>
    %434 = arith.cmpf oeq, %430, %433 : vector<8x128xf32>
    %c128_i32_82 = arith.constant 128 : i32
    %435 = vector.broadcast %c128_i32_82 : i32 to vector<8x128xi32>
    %436 = arith.select %434, %196, %435 : vector<8x128xi1>, vector<8x128xi32>
    %cst_83 = arith.constant dense<2147483647> : vector<8xi32>
    %437 = vector.multi_reduction <minsi>, %436, %cst_83 [1] : vector<8x128xi32> to vector<8xi32>
    %438 = vector.shape_cast %437 : vector<8xi32> to vector<8x1xi32>
    %439 = vector.broadcast %438 : vector<8x1xi32> to vector<8x32xi32>
    %440 = arith.cmpi eq, %195, %439 : vector<8x32xi32>
    %441 = arith.extui %440 : vector<8x32xi1> to vector<8x32xi32>
    %442 = arith.sitofp %441 : vector<8x32xi32> to vector<8x32xf32>
    %cst_84 = arith.constant dense<0.000000e+00> : vector<8x512xf32>
    %443 = tpu.matmul %442, %3, %cst_84 {dimension_numbers = #tpu.dot_dimension_numbers<[1], [0], [0], [1], [0, 0, 1, 1], [], []>} : vector<8x32xf32>, vector<32x512xf32>, vector<8x512xf32> -> vector<8x512xf32>
    %444 = arith.addf %443, %428 : vector<8x512xf32>
    %445 = vector.extract_strided_slice %444 {offsets = [0, 0], sizes = [8, 384], strides = [1, 1]} : vector<8x512xf32> to vector<8x384xf32>
    %446 = arith.negf %445 : vector<8x384xf32>
    %447 = math.exp %446 : vector<8x384xf32>
    %cst_85 = arith.constant 1.000000e+00 : f32
    %448 = vector.broadcast %cst_85 : f32 to vector<8x384xf32>
    %449 = arith.addf %448, %447 : vector<8x384xf32>
    %450 = arith.divf %448, %449 : vector<8x384xf32>
    %451 = vector.extract_strided_slice %450 {offsets = [0, 0], sizes = [8, 128], strides = [1, 1]} : vector<8x384xf32> to vector<8x128xf32>
    %452 = vector.extract_strided_slice %450 {offsets = [0, 128], sizes = [8, 128], strides = [1, 1]} : vector<8x384xf32> to vector<8x128xf32>
    %453 = vector.extract_strided_slice %450 {offsets = [0, 256], sizes = [8, 128], strides = [1, 1]} : vector<8x384xf32> to vector<8x128xf32>
    %454 = vector.extract_strided_slice %444 {offsets = [0, 384], sizes = [8, 128], strides = [1, 1]} : vector<8x512xf32> to vector<8x128xf32>
    %455 = math.tanh %454 : vector<8x128xf32>
    %456 = arith.mulf %452, %418 : vector<8x128xf32>
    %457 = arith.mulf %451, %455 : vector<8x128xf32>
    %458 = arith.addf %456, %457 : vector<8x128xf32>
    %459 = math.tanh %458 : vector<8x128xf32>
    %460 = arith.mulf %453, %459 : vector<8x128xf32>
    %cst_86 = arith.constant dense<0.000000e+00> : vector<8x640xf32>
    %461 = tpu.matmul %460, %6, %cst_86 {dimension_numbers = #tpu.dot_dimension_numbers<[1], [0], [0], [1], [0, 0, 1, 1], [], []>} : vector<8x128xf32>, vector<128x640xf32>, vector<8x640xf32> -> vector<8x640xf32>
    %462 = vector.extract_strided_slice %461 {offsets = [0, 512], sizes = [8, 128], strides = [1, 1]} : vector<8x640xf32> to vector<8x128xf32>
    %463 = vector.broadcast %14 : vector<1x128xf32> to vector<8x128xf32>
    %464 = arith.addf %462, %463 : vector<8x128xf32>
    %c6 = arith.constant 6 : index
    %c0_87 = arith.constant 0 : index
    %c0_88 = arith.constant 0 : index
    %465 = vector.load %arg6[%c6, %c0_87, %c0_88] : memref<8x8x128xf32, #tpu.memory_space<vmem>>, vector<1x8x128xf32>
    %466 = vector.shape_cast %465 : vector<1x8x128xf32> to vector<8x128xf32>
    %467 = vector.shape_cast %464 : vector<8x128xf32> to vector<1x8x128xf32>
    tpu.vector_store %arg6[%c6, %c0_87, %c0_88], %467 {strides = array<i32>} : memref<8x8x128xf32, #tpu.memory_space<vmem>>, vector<1x8x128xf32>,
    %468 = vector.extract_strided_slice %461 {offsets = [0, 0], sizes = [8, 512], strides = [1, 1]} : vector<8x640xf32> to vector<8x512xf32>
    %469 = vector.broadcast %15 : vector<1x128xf32> to vector<8x128xf32>
    %470 = arith.addf %464, %469 : vector<8x128xf32>
    %cst_89 = arith.constant dense<0xFF800000> : vector<8xf32>
    %471 = vector.multi_reduction <maximumf>, %470, %cst_89 [1] : vector<8x128xf32> to vector<8xf32>
    %472 = vector.shape_cast %471 : vector<8xf32> to vector<8x1xf32>
    %473 = vector.broadcast %472 : vector<8x1xf32> to vector<8x128xf32>
    %474 = arith.cmpf oeq, %470, %473 : vector<8x128xf32>
    %c128_i32_90 = arith.constant 128 : i32
    %475 = vector.broadcast %c128_i32_90 : i32 to vector<8x128xi32>
    %476 = arith.select %474, %196, %475 : vector<8x128xi1>, vector<8x128xi32>
    %cst_91 = arith.constant dense<2147483647> : vector<8xi32>
    %477 = vector.multi_reduction <minsi>, %476, %cst_91 [1] : vector<8x128xi32> to vector<8xi32>
    %478 = vector.shape_cast %477 : vector<8xi32> to vector<8x1xi32>
    %479 = vector.broadcast %478 : vector<8x1xi32> to vector<8x32xi32>
    %480 = arith.cmpi eq, %195, %479 : vector<8x32xi32>
    %481 = arith.extui %480 : vector<8x32xi1> to vector<8x32xi32>
    %482 = arith.sitofp %481 : vector<8x32xi32> to vector<8x32xf32>
    %cst_92 = arith.constant dense<0.000000e+00> : vector<8x512xf32>
    %483 = tpu.matmul %482, %3, %cst_92 {dimension_numbers = #tpu.dot_dimension_numbers<[1], [0], [0], [1], [0, 0, 1, 1], [], []>} : vector<8x32xf32>, vector<32x512xf32>, vector<8x512xf32> -> vector<8x512xf32>
    %484 = arith.addf %483, %468 : vector<8x512xf32>
    %485 = vector.extract_strided_slice %484 {offsets = [0, 0], sizes = [8, 384], strides = [1, 1]} : vector<8x512xf32> to vector<8x384xf32>
    %486 = arith.negf %485 : vector<8x384xf32>
    %487 = math.exp %486 : vector<8x384xf32>
    %cst_93 = arith.constant 1.000000e+00 : f32
    %488 = vector.broadcast %cst_93 : f32 to vector<8x384xf32>
    %489 = arith.addf %488, %487 : vector<8x384xf32>
    %490 = arith.divf %488, %489 : vector<8x384xf32>
    %491 = vector.extract_strided_slice %490 {offsets = [0, 0], sizes = [8, 128], strides = [1, 1]} : vector<8x384xf32> to vector<8x128xf32>
    %492 = vector.extract_strided_slice %490 {offsets = [0, 128], sizes = [8, 128], strides = [1, 1]} : vector<8x384xf32> to vector<8x128xf32>
    %493 = vector.extract_strided_slice %490 {offsets = [0, 256], sizes = [8, 128], strides = [1, 1]} : vector<8x384xf32> to vector<8x128xf32>
    %494 = vector.extract_strided_slice %484 {offsets = [0, 384], sizes = [8, 128], strides = [1, 1]} : vector<8x512xf32> to vector<8x128xf32>
    %495 = math.tanh %494 : vector<8x128xf32>
    %496 = arith.mulf %492, %458 : vector<8x128xf32>
    %497 = arith.mulf %491, %495 : vector<8x128xf32>
    %498 = arith.addf %496, %497 : vector<8x128xf32>
    %499 = math.tanh %498 : vector<8x128xf32>
    %500 = arith.mulf %493, %499 : vector<8x128xf32>
    %cst_94 = arith.constant dense<0.000000e+00> : vector<8x640xf32>
    %501 = tpu.matmul %500, %6, %cst_94 {dimension_numbers = #tpu.dot_dimension_numbers<[1], [0], [0], [1], [0, 0, 1, 1], [], []>} : vector<8x128xf32>, vector<128x640xf32>, vector<8x640xf32> -> vector<8x640xf32>
    %502 = vector.extract_strided_slice %501 {offsets = [0, 512], sizes = [8, 128], strides = [1, 1]} : vector<8x640xf32> to vector<8x128xf32>
    %503 = vector.broadcast %14 : vector<1x128xf32> to vector<8x128xf32>
    %504 = arith.addf %502, %503 : vector<8x128xf32>
    %c7 = arith.constant 7 : index
    %c0_95 = arith.constant 0 : index
    %c0_96 = arith.constant 0 : index
    %505 = vector.load %arg6[%c7, %c0_95, %c0_96] : memref<8x8x128xf32, #tpu.memory_space<vmem>>, vector<1x8x128xf32>
    %506 = vector.shape_cast %505 : vector<1x8x128xf32> to vector<8x128xf32>
    %507 = vector.shape_cast %504 : vector<8x128xf32> to vector<1x8x128xf32>
    tpu.vector_store %arg6[%c7, %c0_95, %c0_96], %507 {strides = array<i32>} : memref<8x8x128xf32, #tpu.memory_space<vmem>>, vector<1x8x128xf32>,
    return
  }
}

</mosaic_0001>

<llo_original>
// kernel: vqa_forward.1
$region0: #{vqa_forward.1}
  #allocation0 [shape = 'u32[]', space=smem, size = 0x4, offset = 0x4, fixed_abs, tag = 'smem constant byte address 0x4 - core index']
  #allocation1 [shape = 'u32[144,128]{1,0:T(1,128)}', space=vmem, size = 0x12000, scoped, tag = 'internal scratch']
  %s0 = inlined_call_operand.vmem [shape: s32[64,1], index: 0, kind: input, shape index: {}]
  %s1 = inlined_call_operand.vmem [shape: f32[8,128], index: 1, kind: input, shape index: {}]
  %s2 = inlined_call_operand.hbm [shape: f32[32,1024], index: 2, kind: input, shape index: {}]
  %s3 = inlined_call_operand.hbm [shape: f32[128,1792], index: 3, kind: input, shape index: {}]
  %s4 = inlined_call_operand.vmem [shape: f32[8,128], index: 4, kind: input, shape index: {}]
  %s5 = inlined_call_operand.vmem [shape: f32[8,128], index: 5, kind: output, shape index: {0}]
  %s6 = inlined_call_operand.vmem [shape: f32[8,8,128], index: 6, kind: output, shape index: {1}]
  %7 = xla_tuple %s5, %s6
  %s8 = sld [smem:[#allocation0]]
  $region46: #{vqa_forward.1} parent=0
    _
  %s10 = ssub.s32 1, %s8
  %s11 = scalar_select 0, %s10, %s8
  $region1: #{vqa_forward.1} parent=0
    #allocation2 [shape = 'u8[131072]{0}', space=vmem, size = 0x20000, scoped, tag = 'input window, operand 2, single buffered']
    #allocation3 [shape = 's32[1]{0}', space=sflag, size = 0x4, scoped, tag = 'scoped memory for vqa_forward.1']
    #allocation4 [shape = 'u8[917504]{0}', space=vmem, size = 0xe0000, scoped, tag = 'input window, operand 3, single buffered']
    #allocation5 [shape = 's32[1]{0}', space=sflag, size = 0x4, scoped, tag = 'scoped memory for vqa_forward.1']
    %12 = vsyncpa [#allocation3], 0
    %13 = vsyncpa [#allocation5], 0
    // Predicated region
    $region2: #{vqa_forward.1} parent=1 // pred_check
      _
    $region3: #{vqa_forward.1} parent=1 // pred_check_branch
      %15 = sbr.rel (0) target = $region5
    $region4: #{vqa_forward.1} parent=1 // pred_region
      _
    $region5: #{vqa_forward.1} parent=1 // pred_fallthru
      _
    // Predicated region
    $region6: #{vqa_forward.1} parent=1 // pred_check
      _
    $region7: #{vqa_forward.1} parent=1 // pred_check_branch
      %17 = sbr.rel (0) target = $region9
    $region8: #{vqa_forward.1} parent=1 // pred_region
      _
    $region9: #{vqa_forward.1} parent=1 // pred_fallthru
      _
    // Predicated region
    $region10: #{vqa_forward.1} parent=1 // pred_check
      _
    $region11: #{vqa_forward.1} parent=1 // pred_check_branch
      %19 = sbr.rel (0) target = $region13
    $region12: #{vqa_forward.1} parent=1 // pred_region
      %s21 = ssub.s32 4096, 4096
      %22 = vsyncadd [#allocation3], %s21
      %s23 = sshll.u32 [#allocation2], 4
      %s24 = int_to_ptr.vmem [resolvable:$true] %s23
      %29 = dma.hbm_to_vmem [thread:$0]  %s2, 4096, %s24, [#allocation3], 1024, 1024, 64
    $region13: #{vqa_forward.1} parent=1 // pred_fallthru
      _
    // Predicated region
    $region14: #{vqa_forward.1} parent=1 // pred_check
      _
    $region15: #{vqa_forward.1} parent=1 // pred_check_branch
      %31 = sbr.rel (0) target = $region17
    $region16: #{vqa_forward.1} parent=1 // pred_region
      %s33 = ssub.s32 28672, 28672
      %34 = vsyncadd [#allocation5], %s33
      %s35 = sshll.u32 [#allocation4], 4
      %s36 = int_to_ptr.vmem [resolvable:$true] %s35
      %41 = dma.hbm_to_vmem [thread:$0]  %s3, 28672, %s36, [#allocation5], 1792, 1792, 112
    $region17: #{vqa_forward.1} parent=1 // pred_fallthru
      _
    // Predicated region
    $region18: #{vqa_forward.1} parent=1 // pred_check
      _
    $region19: #{vqa_forward.1} parent=1 // pred_check_branch
      %43 = sbr.rel (0) target = $region21
    $region20: #{vqa_forward.1} parent=1 // pred_region
      _
    $region21: #{vqa_forward.1} parent=1 // pred_fallthru
      _
    // Predicated region
    $region22: #{vqa_forward.1} parent=1 // pred_check
      _
    $region23: #{vqa_forward.1} parent=1 // pred_check_branch
      %45 = sbr.rel (0) target = $region25
    $region24: #{vqa_forward.1} parent=1 // pred_region
      %46 = dma.done [#allocation3], 4096
    $region25: #{vqa_forward.1} parent=1 // pred_fallthru
      _
    // Predicated region
    $region26: #{vqa_forward.1} parent=1 // pred_check
      _
    $region27: #{vqa_forward.1} parent=1 // pred_check_branch
      %48 = sbr.rel (0) target = $region29
    $region28: #{vqa_forward.1} parent=1 // pred_region
      %49 = dma.done [#allocation5], 28672
    $region29: #{vqa_forward.1} parent=1 // pred_fallthru
      _
    %v50 = vld [vmem:[#allocation2] sm:$0xff]
    %v51 = vld [vmem:[#allocation2 + $0x8] sm:$0xff]
    %v52 = vld [vmem:[#allocation2 + $0x10] sm:$0xff]
    %v53 = vld [vmem:[#allocation2 + $0x18] sm:$0xff]
    %v54 = vld [vmem:[#allocation2 + $0x20] sm:$0xff]
    %v55 = vld [vmem:[#allocation2 + $0x28] sm:$0xff]
    %v56 = vld [vmem:[#allocation2 + $0x30] sm:$0xff]
    %v57 = vld [vmem:[#allocation2 + $0x38] sm:$0xff]
    %v58 = vld [vmem:[#allocation2 + $0x40] sm:$0xff]
    %v59 = vld [vmem:[#allocation2 + $0x48] sm:$0xff]
    %v60 = vld [vmem:[#allocation2 + $0x50] sm:$0xff]
    %v61 = vld [vmem:[#allocation2 + $0x58] sm:$0xff]
    %v62 = vld [vmem:[#allocation2 + $0x60] sm:$0xff]
    %v63 = vld [vmem:[#allocation2 + $0x68] sm:$0xff]
    %v64 = vld [vmem:[#allocation2 + $0x70] sm:$0xff]
    %v65 = vld [vmem:[#allocation2 + $0x78] sm:$0xff]
    %v66 = vld [vmem:[#allocation2 + $0x80] sm:$0xff]
    %v67 = vld [vmem:[#allocation2 + $0x88] sm:$0xff]
    %v68 = vld [vmem:[#allocation2 + $0x90] sm:$0xff]
    %v69 = vld [vmem:[#allocation2 + $0x98] sm:$0xff]
    %v70 = vld [vmem:[#allocation2 + $0xa0] sm:$0xff]
    %v71 = vld [vmem:[#allocation2 + $0xa8] sm:$0xff]
    %v72 = vld [vmem:[#allocation2 + $0xb0] sm:$0xff]
    %v73 = vld [vmem:[#allocation2 + $0xb8] sm:$0xff]
    %v74 = vld [vmem:[#allocation2 + $0xc0] sm:$0xff]
    %v75 = vld [vmem:[#allocation2 + $0xc8] sm:$0xff]
    %v76 = vld [vmem:[#allocation2 + $0xd0] sm:$0xff]
    %v77 = vld [vmem:[#allocation2 + $0xd8] sm:$0xff]
    %v78 = vld [vmem:[#allocation2 + $0xe0] sm:$0xff]
    %v79 = vld [vmem:[#allocation2 + $0xe8] sm:$0xff]
    %v80 = vld [vmem:[#allocation2 + $0xf0] sm:$0xff]
    %v81 = vld [vmem:[#allocation2 + $0xf8] sm:$0xff]
    %v82 = vld [vmem:[#allocation4] sm:$0xff]
    %v83 = vld [vmem:[#allocation4 + $0x8] sm:$0xff]
    %v84 = vld [vmem:[#allocation4 + $0x10] sm:$0xff]
    %v85 = vld [vmem:[#allocation4 + $0x18] sm:$0xff]
    %v86 = vld [vmem:[#allocation4 + $0x20] sm:$0xff]
    %v87 = vld [vmem:[#allocation4 + $0x28] sm:$0xff]
    %v88 = vld [vmem:[#allocation4 + $0x30] sm:$0xff]
    %v89 = vld [vmem:[#allocation4 + $0x38] sm:$0xff]
    %v90 = vld [vmem:[#allocation4 + $0x40] sm:$0xff]
    %v91 = vld [vmem:[#allocation4 + $0x48] sm:$0xff]
    %v92 = vld [vmem:[#allocation4 + $0x50] sm:$0xff]
    %v93 = vld [vmem:[#allocation4 + $0x58] sm:$0xff]
    %v94 = vld [vmem:[#allocation4 + $0x60] sm:$0xff]
    %v95 = vld [vmem:[#allocation4 + $0x68] sm:$0xff]
    %v96 = vld [vmem:[#allocation4 + $0x70] sm:$0xff]
    %v97 = vld [vmem:[#allocation4 + $0x78] sm:$0xff]
    %v98 = vld [vmem:[#allocation4 + $0x80] sm:$0xff]
    %v99 = vld [vmem:[#allocation4 + $0x88] sm:$0xff]
    %v100 = vld [vmem:[#allocation4 + $0x90] sm:$0xff]
    %v101 = vld [vmem:[#allocation4 + $0x98] sm:$0xff]
    %v102 = vld [vmem:[#allocation4 + $0xa0] sm:$0xff]
    %v103 = vld [vmem:[#allocation4 + $0xa8] sm:$0xff]
    %v104 = vld [vmem:[#allocation4 + $0xb0] sm:$0xff]
    %v105 = vld [vmem:[#allocation4 + $0xb8] sm:$0xff]
    %v106 = vld [vmem:[#allocation4 + $0xc0] sm:$0xff]
    %v107 = vld [vmem:[#allocation4 + $0xc8] sm:$0xff]
    %v108 = vld [vmem:[#allocation4 + $0xd0] sm:$0xff]
    %v109 = vld [vmem:[#allocation4 + $0xd8] sm:$0xff]
    %v110 = vld [vmem:[#allocation4 + $0xe0] sm:$0xff]
    %v111 = vld [vmem:[#allocation4 + $0xe8] sm:$0xff]
    %v112 = vld [vmem:[#allocation4 + $0xf0] sm:$0xff]
    %v113 = vld [vmem:[#allocation4 + $0xf8] sm:$0xff]
    %v114 = vld [vmem:[#allocation4 + $0x100] sm:$0xff]
    %v115 = vld [vmem:[#allocation4 + $0x108] sm:$0xff]
    %v116 = vld [vmem:[#allocation4 + $0x110] sm:$0xff]
    %v117 = vld [vmem:[#allocation4 + $0x118] sm:$0xff]
    %v118 = vld [vmem:[#allocation4 + $0x120] sm:$0xff]
    %v119 = vld [vmem:[#allocation4 + $0x128] sm:$0xff]
    %v120 = vld [vmem:[#allocation4 + $0x130] sm:$0xff]
    %v121 = vld [vmem:[#allocation4 + $0x138] sm:$0xff]
    %v122 = vld [vmem:[#allocation4 + $0x140] sm:$0xff]
    %v123 = vld [vmem:[#allocation4 + $0x148] sm:$0xff]
    %v124 = vld [vmem:[#allocation4 + $0x150] sm:$0xff]
    %v125 = vld [vmem:[#allocation4 + $0x158] sm:$0xff]
    %v126 = vld [vmem:[#allocation4 + $0x160] sm:$0xff]
    %v127 = vld [vmem:[#allocation4 + $0x168] sm:$0xff]
    %v128 = vld [vmem:[#allocation4 + $0x170] sm:$0xff]
    %v129 = vld [vmem:[#allocation4 + $0x178] sm:$0xff]
    %v130 = vld [vmem:[#allocation4 + $0x180] sm:$0xff]
    %v131 = vld [vmem:[#allocation4 + $0x188] sm:$0xff]
    %v132 = vld [vmem:[#allocation4 + $0x190] sm:$0xff]
    %v133 = vld [vmem:[#allocation4 + $0x198] sm:$0xff]
    %v134 = vld [vmem:[#allocation4 + $0x1a0] sm:$0xff]
    %v135 = vld [vmem:[#allocation4 + $0x1a8] sm:$0xff]
    %v136 = vld [vmem:[#allocation4 + $0x1b0] sm:$0xff]
    %v137 = vld [vmem:[#allocation4 + $0x1b8] sm:$0xff]
    %v138 = vld [vmem:[#allocation4 + $0x1c0] sm:$0xff]
    %v139 = vld [vmem:[#allocation4 + $0x1c8] sm:$0xff]
    %v140 = vld [vmem:[#allocation4 + $0x1d0] sm:$0xff]
    %v141 = vld [vmem:[#allocation4 + $0x1d8] sm:$0xff]
    %v142 = vld [vmem:[#allocation4 + $0x1e0] sm:$0xff]
    %v143 = vld [vmem:[#allocation4 + $0x1e8] sm:$0xff]
    %v144 = vld [vmem:[#allocation4 + $0x1f0] sm:$0xff]
    %v145 = vld [vmem:[#allocation4 + $0x1f8] sm:$0xff]
    %v146 = vld [vmem:[#allocation4 + $0x200] sm:$0xff]
    %v147 = vld [vmem:[#allocation4 + $0x208] sm:$0xff]
    %v148 = vld [vmem:[#allocation4 + $0x210] sm:$0xff]
    %v149 = vld [vmem:[#allocation4 + $0x218] sm:$0xff]
    %v150 = vld [vmem:[#allocation4 + $0x220] sm:$0xff]
    %v151 = vld [vmem:[#allocation4 + $0x228] sm:$0xff]
    %v152 = vld [vmem:[#allocation4 + $0x230] sm:$0xff]
    %v153 = vld [vmem:[#allocation4 + $0x238] sm:$0xff]
    %v154 = vld [vmem:[#allocation4 + $0x240] sm:$0xff]
    %v155 = vld [vmem:[#allocation4 + $0x248] sm:$0xff]
    %v156 = vld [vmem:[#allocation4 + $0x250] sm:$0xff]
    %v157 = vld [vmem:[#allocation4 + $0x258] sm:$0xff]
    %v158 = vld [vmem:[#allocation4 + $0x260] sm:$0xff]
    %v159 = vld [vmem:[#allocation4 + $0x268] sm:$0xff]
    %v160 = vld [vmem:[#allocation4 + $0x270] sm:$0xff]
    %v161 = vld [vmem:[#allocation4 + $0x278] sm:$0xff]
    %v162 = vld [vmem:[#allocation4 + $0x280] sm:$0xff]
    %v163 = vld [vmem:[#allocation4 + $0x288] sm:$0xff]
    %v164 = vld [vmem:[#allocation4 + $0x290] sm:$0xff]
    %v165 = vld [vmem:[#allocation4 + $0x298] sm:$0xff]
    %v166 = vld [vmem:[#allocation4 + $0x2a0] sm:$0xff]
    %v167 = vld [vmem:[#allocation4 + $0x2a8] sm:$0xff]
    %v168 = vld [vmem:[#allocation4 + $0x2b0] sm:$0xff]
    %v169 = vld [vmem:[#allocation4 + $0x2b8] sm:$0xff]
    %v170 = vld [vmem:[#allocation4 + $0x2c0] sm:$0xff]
    %v171 = vld [vmem:[#allocation4 + $0x2c8] sm:$0xff]
    %v172 = vld [vmem:[#allocation4 + $0x2d0] sm:$0xff]
    %v173 = vld [vmem:[#allocation4 + $0x2d8] sm:$0xff]
    %v174 = vld [vmem:[#allocation4 + $0x2e0] sm:$0xff]
    %v175 = vld [vmem:[#allocation4 + $0x2e8] sm:$0xff]
    %v176 = vld [vmem:[#allocation4 + $0x2f0] sm:$0xff]
    %v177 = vld [vmem:[#allocation4 + $0x2f8] sm:$0xff]
    %v178 = vld [vmem:[#allocation4 + $0x300] sm:$0xff]
    %v179 = vld [vmem:[#allocation4 + $0x308] sm:$0xff]
    %v180 = vld [vmem:[#allocation4 + $0x310] sm:$0xff]
    %v181 = vld [vmem:[#allocation4 + $0x318] sm:$0xff]
    %v182 = vld [vmem:[#allocation4 + $0x320] sm:$0xff]
    %v183 = vld [vmem:[#allocation4 + $0x328] sm:$0xff]
    %v184 = vld [vmem:[#allocation4 + $0x330] sm:$0xff]
    %v185 = vld [vmem:[#allocation4 + $0x338] sm:$0xff]
    %v186 = vld [vmem:[#allocation4 + $0x340] sm:$0xff]
    %v187 = vld [vmem:[#allocation4 + $0x348] sm:$0xff]
    %v188 = vld [vmem:[#allocation4 + $0x350] sm:$0xff]
    %v189 = vld [vmem:[#allocation4 + $0x358] sm:$0xff]
    %v190 = vld [vmem:[#allocation4 + $0x360] sm:$0xff]
    %v191 = vld [vmem:[#allocation4 + $0x368] sm:$0xff]
    %v192 = vld [vmem:[#allocation4 + $0x370] sm:$0xff]
    %v193 = vld [vmem:[#allocation4 + $0x378] sm:$0xff]
    %v194 = vld [vmem:[#allocation4 + $0x380] sm:$0xff]
    %v195 = vld [vmem:[#allocation4 + $0x388] sm:$0xff]
    %v196 = vld [vmem:[#allocation4 + $0x390] sm:$0xff]
    %v197 = vld [vmem:[#allocation4 + $0x398] sm:$0xff]
    %v198 = vld [vmem:[#allocation4 + $0x3a0] sm:$0xff]
    %v199 = vld [vmem:[#allocation4 + $0x3a8] sm:$0xff]
    %v200 = vld [vmem:[#allocation4 + $0x3b0] sm:$0xff]
    %v201 = vld [vmem:[#allocation4 + $0x3b8] sm:$0xff]
    %v202 = vld [vmem:[#allocation4 + $0x3c0] sm:$0xff]
    %v203 = vld [vmem:[#allocation4 + $0x3c8] sm:$0xff]
    %v204 = vld [vmem:[#allocation4 + $0x3d0] sm:$0xff]
    %v205 = vld [vmem:[#allocation4 + $0x3d8] sm:$0xff]
    %v206 = vld [vmem:[#allocation4 + $0x3e0] sm:$0xff]
    %v207 = vld [vmem:[#allocation4 + $0x3e8] sm:$0xff]
    %v208 = vld [vmem:[#allocation4 + $0x3f0] sm:$0xff]
    %v209 = vld [vmem:[#allocation4 + $0x3f8] sm:$0xff]
    %v210 = vld [vmem:[#allocation4 + $0x400] sm:$0xff]
    %v211 = vld [vmem:[#allocation4 + $0x408] sm:$0xff]
    %v212 = vld [vmem:[#allocation4 + $0x410] sm:$0xff]
    %v213 = vld [vmem:[#allocation4 + $0x418] sm:$0xff]
    %v214 = vld [vmem:[#allocation4 + $0x420] sm:$0xff]
    %v215 = vld [vmem:[#allocation4 + $0x428] sm:$0xff]
    %v216 = vld [vmem:[#allocation4 + $0x430] sm:$0xff]
    %v217 = vld [vmem:[#allocation4 + $0x438] sm:$0xff]
    %v218 = vld [vmem:[#allocation4 + $0x440] sm:$0xff]
    %v219 = vld [vmem:[#allocation4 + $0x448] sm:$0xff]
    %v220 = vld [vmem:[#allocation4 + $0x450] sm:$0xff]
    %v221 = vld [vmem:[#allocation4 + $0x458] sm:$0xff]
    %v222 = vld [vmem:[#allocation4 + $0x460] sm:$0xff]
    %v223 = vld [vmem:[#allocation4 + $0x468] sm:$0xff]
    %v224 = vld [vmem:[#allocation4 + $0x470] sm:$0xff]
    %v225 = vld [vmem:[#allocation4 + $0x478] sm:$0xff]
    %v226 = vld [vmem:[#allocation4 + $0x480] sm:$0xff]
    %v227 = vld [vmem:[#allocation4 + $0x488] sm:$0xff]
    %v228 = vld [vmem:[#allocation4 + $0x490] sm:$0xff]
    %v229 = vld [vmem:[#allocation4 + $0x498] sm:$0xff]
    %v230 = vld [vmem:[#allocation4 + $0x4a0] sm:$0xff]
    %v231 = vld [vmem:[#allocation4 + $0x4a8] sm:$0xff]
    %v232 = vld [vmem:[#allocation4 + $0x4b0] sm:$0xff]
    %v233 = vld [vmem:[#allocation4 + $0x4b8] sm:$0xff]
    %v234 = vld [vmem:[#allocation4 + $0x4c0] sm:$0xff]
    %v235 = vld [vmem:[#allocation4 + $0x4c8] sm:$0xff]
    %v236 = vld [vmem:[#allocation4 + $0x4d0] sm:$0xff]
    %v237 = vld [vmem:[#allocation4 + $0x4d8] sm:$0xff]
    %v238 = vld [vmem:[#allocation4 + $0x4e0] sm:$0xff]
    %v239 = vld [vmem:[#allocation4 + $0x4e8] sm:$0xff]
    %v240 = vld [vmem:[#allocation4 + $0x4f0] sm:$0xff]
    %v241 = vld [vmem:[#allocation4 + $0x4f8] sm:$0xff]
    %v242 = vld [vmem:[#allocation4 + $0x500] sm:$0xff]
    %v243 = vld [vmem:[#allocation4 + $0x508] sm:$0xff]
    %v244 = vld [vmem:[#allocation4 + $0x510] sm:$0xff]
    %v245 = vld [vmem:[#allocation4 + $0x518] sm:$0xff]
    %v246 = vld [vmem:[#allocation4 + $0x520] sm:$0xff]
    %v247 = vld [vmem:[#allocation4 + $0x528] sm:$0xff]
    %v248 = vld [vmem:[#allocation4 + $0x530] sm:$0xff]
    %v249 = vld [vmem:[#allocation4 + $0x538] sm:$0xff]
    %v250 = vld [vmem:[#allocation4 + $0x540] sm:$0xff]
    %v251 = vld [vmem:[#allocation4 + $0x548] sm:$0xff]
    %v252 = vld [vmem:[#allocation4 + $0x550] sm:$0xff]
    %v253 = vld [vmem:[#allocation4 + $0x558] sm:$0xff]
    %v254 = vld [vmem:[#allocation4 + $0x560] sm:$0xff]
    %v255 = vld [vmem:[#allocation4 + $0x568] sm:$0xff]
    %v256 = vld [vmem:[#allocation4 + $0x570] sm:$0xff]
    %v257 = vld [vmem:[#allocation4 + $0x578] sm:$0xff]
    %v258 = vld [vmem:[#allocation4 + $0x580] sm:$0xff]
    %v259 = vld [vmem:[#allocation4 + $0x588] sm:$0xff]
    %v260 = vld [vmem:[#allocation4 + $0x590] sm:$0xff]
    %v261 = vld [vmem:[#allocation4 + $0x598] sm:$0xff]
    %v262 = vld [vmem:[#allocation4 + $0x5a0] sm:$0xff]
    %v263 = vld [vmem:[#allocation4 + $0x5a8] sm:$0xff]
    %v264 = vld [vmem:[#allocation4 + $0x5b0] sm:$0xff]
    %v265 = vld [vmem:[#allocation4 + $0x5b8] sm:$0xff]
    %v266 = vld [vmem:[#allocation4 + $0x5c0] sm:$0xff]
    %v267 = vld [vmem:[#allocation4 + $0x5c8] sm:$0xff]
    %v268 = vld [vmem:[#allocation4 + $0x5d0] sm:$0xff]
    %v269 = vld [vmem:[#allocation4 + $0x5d8] sm:$0xff]
    %v270 = vld [vmem:[#allocation4 + $0x5e0] sm:$0xff]
    %v271 = vld [vmem:[#allocation4 + $0x5e8] sm:$0xff]
    %v272 = vld [vmem:[#allocation4 + $0x5f0] sm:$0xff]
    %v273 = vld [vmem:[#allocation4 + $0x5f8] sm:$0xff]
    %v274 = vld [vmem:[#allocation4 + $0x600] sm:$0xff]
    %v275 = vld [vmem:[#allocation4 + $0x608] sm:$0xff]
    %v276 = vld [vmem:[#allocation4 + $0x610] sm:$0xff]
    %v277 = vld [vmem:[#allocation4 + $0x618] sm:$0xff]
    %v278 = vld [vmem:[#allocation4 + $0x620] sm:$0xff]
    %v279 = vld [vmem:[#allocation4 + $0x628] sm:$0xff]
    %v280 = vld [vmem:[#allocation4 + $0x630] sm:$0xff]
    %v281 = vld [vmem:[#allocation4 + $0x638] sm:$0xff]
    %v282 = vld [vmem:[#allocation4 + $0x640] sm:$0xff]
    %v283 = vld [vmem:[#allocation4 + $0x648] sm:$0xff]
    %v284 = vld [vmem:[#allocation4 + $0x650] sm:$0xff]
    %v285 = vld [vmem:[#allocation4 + $0x658] sm:$0xff]
    %v286 = vld [vmem:[#allocation4 + $0x660] sm:$0xff]
    %v287 = vld [vmem:[#allocation4 + $0x668] sm:$0xff]
    %v288 = vld [vmem:[#allocation4 + $0x670] sm:$0xff]
    %v289 = vld [vmem:[#allocation4 + $0x678] sm:$0xff]
    %v290 = vld [vmem:[#allocation4 + $0x680] sm:$0xff]
    %v291 = vld [vmem:[#allocation4 + $0x688] sm:$0xff]
    %v292 = vld [vmem:[#allocation4 + $0x690] sm:$0xff]
    %v293 = vld [vmem:[#allocation4 + $0x698] sm:$0xff]
    %v294 = vld [vmem:[#allocation4 + $0x6a0] sm:$0xff]
    %v295 = vld [vmem:[#allocation4 + $0x6a8] sm:$0xff]
    %v296 = vld [vmem:[#allocation4 + $0x6b0] sm:$0xff]
    %v297 = vld [vmem:[#allocation4 + $0x6b8] sm:$0xff]
    %v298 = vld [vmem:[#allocation4 + $0x6c0] sm:$0xff]
    %v299 = vld [vmem:[#allocation4 + $0x6c8] sm:$0xff]
    %v300 = vld [vmem:[#allocation4 + $0x6d0] sm:$0xff]
    %v301 = vld [vmem:[#allocation4 + $0x6d8] sm:$0xff]
    %v302 = vld [vmem:[#allocation4 + $0x6e0] sm:$0xff]
    %v303 = vld [vmem:[#allocation4 + $0x6e8] sm:$0xff]
    %v304 = vld [vmem:[#allocation4 + $0x6f0] sm:$0xff]
    %v305 = vld [vmem:[#allocation4 + $0x6f8] sm:$0xff]
    %v306 = vld [vmem:[%s4] sm:$0xff]
    %v307 = vlaneseq
    %v308 = vand.u32 %v307, 127
    %v309 = vld [vmem:[%s0] sm:$0xff]
    %v310 = vld [vmem:[%s0 + $0x8] sm:$0xff]
    %v311 = vld [vmem:[%s0 + $0x10] sm:$0xff]
    %v312 = vld [vmem:[%s0 + $0x18] sm:$0xff]
    %v313 = vld [vmem:[%s0 + $0x20] sm:$0xff]
    %v314 = vld [vmem:[%s0 + $0x28] sm:$0xff]
    %v315 = vld [vmem:[%s0 + $0x30] sm:$0xff]
    %v316 = vld [vmem:[%s0 + $0x38] sm:$0xff]
    %317 = vset.pattern.permute.xlu0 0
    %318 = vperm.xlu0 %317, %v309
    %v319 = vpop.permute.xlu0 %318
    %320 = vset.pattern.permute.xlu0 0
    %321 = vperm.xlu0 %320, %v310
    %v322 = vpop.permute.xlu0 %321
    %323 = vset.pattern.permute.xlu0 0
    %324 = vperm.xlu0 %323, %v311
    %v325 = vpop.permute.xlu0 %324
    %326 = vset.pattern.permute.xlu0 0
    %327 = vperm.xlu0 %326, %v312
    %v328 = vpop.permute.xlu0 %327
    %329 = vset.pattern.permute.xlu0 0
    %330 = vperm.xlu0 %329, %v313
    %v331 = vpop.permute.xlu0 %330
    %332 = vset.pattern.permute.xlu0 0
    %333 = vperm.xlu0 %332, %v314
    %v334 = vpop.permute.xlu0 %333
    %335 = vset.pattern.permute.xlu0 0
    %336 = vperm.xlu0 %335, %v315
    %v337 = vpop.permute.xlu0 %336
    %338 = vset.pattern.permute.xlu0 0
    %339 = vperm.xlu0 %338, %v316
    %v340 = vpop.permute.xlu0 %339
    %vm341 = vcmp.eq.s32.totalorder %v319, %v308
    %vm342 = vcmp.eq.s32.totalorder %v322, %v308
    %vm343 = vcmp.eq.s32.totalorder %v325, %v308
    %vm344 = vcmp.eq.s32.totalorder %v328, %v308
    %vm345 = vcmp.eq.s32.totalorder %v331, %v308
    %vm346 = vcmp.eq.s32.totalorder %v334, %v308
    %vm347 = vcmp.eq.s32.totalorder %v337, %v308
    %vm348 = vcmp.eq.s32.totalorder %v340, %v308
    %v349 = vsel %vm341, 1, 0
    %v350 = vsel %vm342, 1, 0
    %v351 = vsel %vm343, 1, 0
    %v352 = vsel %vm344, 1, 0
    %v353 = vsel %vm345, 1, 0
    %v354 = vsel %vm346, 1, 0
    %v355 = vsel %vm347, 1, 0
    %v356 = vsel %vm348, 1, 0
    %v357 = vcvt.s32.f32 %v349
    %v358 = vcvt.s32.f32 %v350
    %v359 = vcvt.s32.f32 %v351
    %v360 = vcvt.s32.f32 %v352
    %v361 = vcvt.s32.f32 %v353
    %v362 = vcvt.s32.f32 %v354
    %v363 = vcvt.s32.f32 %v355
    %v364 = vcvt.s32.f32 %v356
    %vm365 = vcmask 261120
    %v367 = vsel %vm365, %v357, 0
    %v370 = vsel %vm365, %v358, 0
    %v373 = vsel %vm365, %v359, 0
    %v376 = vsel %vm365, %v360, 0
    %v379 = vsel %vm365, %v361, 0
    %v382 = vsel %vm365, %v362, 0
    %v385 = vsel %vm365, %v363, 0
    %v388 = vsel %vm365, %v364, 0
    %390 = vmatprep.subr.mxu0 %v51
    %391 = vmatpush1.msra.mxu0 %v50
    %392 = vmatprep.subr.mxu0 %v59
    %393 = vmatpush1.msra.mxu0 %v58
    %394 = vmatprep.subr.mxu0 %v67
    %395 = vmatpush1.msra.mxu0 %v66
    %396 = vmatprep.subr.mxu0 %v75
    %397 = vmatpush1.msra.mxu0 %v74
    %398 = vmatprep.subr.mxu0 0.0
    %399 = vmatpush1.msra.mxu0 0.0
    %400 = vmatprep.subr.mxu0 0.0
    %401 = vmatpush1.msra.mxu0 0.0
    %402 = vmatprep.subr.mxu0 0.0
    %403 = vmatpush1.msra.mxu0 0.0
    %404 = vmatprep.subr.mxu0 0.0
    %405 = vmatpush1.msra.mxu0 0.0
    %406 = vmatprep.subr.mxu0 0.0
    %407 = vmatpush1.msra.mxu0 0.0
    %408 = vmatprep.subr.mxu0 0.0
    %409 = vmatpush1.msra.mxu0 0.0
    %410 = vmatprep.subr.mxu0 0.0
    %411 = vmatpush1.msra.mxu0 0.0
    %412 = vmatprep.subr.mxu0 0.0
    %413 = vmatpush1.msra.mxu0 0.0
    %414 = vmatprep.subr.mxu0 0.0
    %415 = vmatpush1.msra.mxu0 0.0
    %416 = vmatprep.subr.mxu0 0.0
    %417 = vmatpush1.msra.mxu0 0.0
    %418 = vmatprep.subr.mxu0 0.0
    %419 = vmatpush1.msra.mxu0 0.0
    %420 = vmatprep.subr.mxu0 0.0
    %421 = vmatpush1.msra.mxu0 0.0
    %422 = vmatprep.subr.mxu0 0.0
    %423 = vmatpush1.msra.mxu0 0.0
    %424 = vmatprep.subr.mxu0 0.0
    %425 = vmatpush1.msra.mxu0 0.0
    %426 = vmatprep.subr.mxu0 0.0
    %427 = vmatpush1.msra.mxu0 0.0
    %428 = vmatprep.subr.mxu0 0.0
    %429 = vmatpush1.msra.mxu0 0.0
    %430 = vmatprep.subr.mxu0 0.0
    %431 = vmatpush1.msra.mxu0 0.0
    %432 = vmatprep.subr.mxu0 0.0
    %433 = vmatpush1.msra.mxu0 0.0
    %434 = vmatprep.subr.mxu0 0.0
    %435 = vmatpush1.msra.mxu0 0.0
    %436 = vmatprep.subr.mxu0 0.0
    %437 = vmatpush1.msra.mxu0 0.0
    %438 = vmatprep.subr.mxu0 0.0
    %439 = vmatpush1.msra.mxu0 0.0
    %440 = vmatprep.subr.mxu0 0.0
    %441 = vmatpush1.msra.mxu0 0.0
    %442 = vmatprep.subr.mxu0 0.0
    %443 = vmatpush1.msra.mxu0 0.0
    %444 = vmatprep.subr.mxu0 0.0
    %445 = vmatpush1.msra.mxu0 0.0
    %446 = vmatprep.subr.mxu0 0.0
    %447 = vmatpush1.msra.mxu0 0.0
    %448 = vmatprep.subr.mxu0 0.0
    %449 = vmatpush1.msra.mxu0 0.0
    %450 = vmatprep.subr.mxu0 0.0
    %451 = vmatpush1.msra.mxu0 0.0
    %452 = vmatprep.subr.mxu0 0.0
    %453 = vmatpush1.msra.mxu0 0.0
    %454 = vmatprep.mubr.f32.mxu0 0.0
    %455 = vmatmul.mubr.f32.gmra.mrb[0].mxu0 %v367
    %v456 = vpop.f32.mrb[0].mxu0
    %v457 = vadd.f32 0.0, %v456
    %v458 = vpop.f32.mrb[0].mxu0
    %v459 = vadd.f32 0.0, %v458
    %460 = vmatprep.mubr.f32.mxu0 0.0
    %461 = vmatmul.mubr.f32.gmra.mrb[0].mxu0 %v370
    %v462 = vpop.f32.mrb[0].mxu0
    %v463 = vadd.f32 0.0, %v462
    %v464 = vpop.f32.mrb[0].mxu0
    %v465 = vadd.f32 0.0, %v464
    %466 = vmatprep.mubr.f32.mxu0 0.0
    %467 = vmatmul.mubr.f32.gmra.mrb[0].mxu0 %v373
    %v468 = vpop.f32.mrb[0].mxu0
    %v469 = vadd.f32 0.0, %v468
    %v470 = vpop.f32.mrb[0].mxu0
    %v471 = vadd.f32 0.0, %v470
    %472 = vmatprep.mubr.f32.mxu0 0.0
    %473 = vmatmul.mubr.f32.gmra.mrb[0].mxu0 %v376
    %v474 = vpop.f32.mrb[0].mxu0
    %v475 = vadd.f32 0.0, %v474
    %v476 = vpop.f32.mrb[0].mxu0
    %v477 = vadd.f32 0.0, %v476
    %478 = vmatprep.mubr.f32.mxu0 0.0
    %479 = vmatmul.mubr.f32.gmra.mrb[0].mxu0 %v379
    %v480 = vpop.f32.mrb[0].mxu0
    %v481 = vadd.f32 0.0, %v480
    %v482 = vpop.f32.mrb[0].mxu0
    %v483 = vadd.f32 0.0, %v482
    %484 = vmatprep.mubr.f32.mxu0 0.0
    %485 = vmatmul.mubr.f32.gmra.mrb[0].mxu0 %v382
    %v486 = vpop.f32.mrb[0].mxu0
    %v487 = vadd.f32 0.0, %v486
    %v488 = vpop.f32.mrb[0].mxu0
    %v489 = vadd.f32 0.0, %v488
    %490 = vmatprep.mubr.f32.mxu0 0.0
    %491 = vmatmul.mubr.f32.gmra.mrb[0].mxu0 %v385
    %v492 = vpop.f32.mrb[0].mxu0
    %v493 = vadd.f32 0.0, %v492
    %v494 = vpop.f32.mrb[0].mxu0
    %v495 = vadd.f32 0.0, %v494
    %496 = vmatprep.mubr.f32.mxu0 0.0
    %497 = vmatmul.mubr.f32.gmra.mrb[0].mxu0 %v388
    %v498 = vpop.f32.mrb[0].mxu0
    %v499 = vadd.f32 0.0, %v498
    %v500 = vpop.f32.mrb[0].mxu0
    %v501 = vadd.f32 0.0, %v500
    %502 = vdwg.mxu0
    %503 = vmatprep.subr.mxu0 %v53
    %504 = vmatpush1.msra.mxu0 %v52
    %505 = vmatprep.subr.mxu0 %v61
    %506 = vmatpush1.msra.mxu0 %v60
    %507 = vmatprep.subr.mxu0 %v69
    %508 = vmatpush1.msra.mxu0 %v68
    %509 = vmatprep.subr.mxu0 %v77
    %510 = vmatpush1.msra.mxu0 %v76
    %511 = vmatprep.subr.mxu0 0.0
    %512 = vmatpush1.msra.mxu0 0.0
    %513 = vmatprep.subr.mxu0 0.0
    %514 = vmatpush1.msra.mxu0 0.0
    %515 = vmatprep.subr.mxu0 0.0
    %516 = vmatpush1.msra.mxu0 0.0
    %517 = vmatprep.subr.mxu0 0.0
    %518 = vmatpush1.msra.mxu0 0.0
    %519 = vmatprep.subr.mxu0 0.0
    %520 = vmatpush1.msra.mxu0 0.0
    %521 = vmatprep.subr.mxu0 0.0
    %522 = vmatpush1.msra.mxu0 0.0
    %523 = vmatprep.subr.mxu0 0.0
    %524 = vmatpush1.msra.mxu0 0.0
    %525 = vmatprep.subr.mxu0 0.0
    %526 = vmatpush1.msra.mxu0 0.0
    %527 = vmatprep.subr.mxu0 0.0
    %528 = vmatpush1.msra.mxu0 0.0
    %529 = vmatprep.subr.mxu0 0.0
    %530 = vmatpush1.msra.mxu0 0.0
    %531 = vmatprep.subr.mxu0 0.0
    %532 = vmatpush1.msra.mxu0 0.0
    %533 = vmatprep.subr.mxu0 0.0
    %534 = vmatpush1.msra.mxu0 0.0
    %535 = vmatprep.subr.mxu0 0.0
    %536 = vmatpush1.msra.mxu0 0.0
    %537 = vmatprep.subr.mxu0 0.0
    %538 = vmatpush1.msra.mxu0 0.0
    %539 = vmatprep.subr.mxu0 0.0
    %540 = vmatpush1.msra.mxu0 0.0
    %541 = vmatprep.subr.mxu0 0.0
    %542 = vmatpush1.msra.mxu0 0.0
    %543 = vmatprep.subr.mxu0 0.0
    %544 = vmatpush1.msra.mxu0 0.0
    %545 = vmatprep.subr.mxu0 0.0
    %546 = vmatpush1.msra.mxu0 0.0
    %547 = vmatprep.subr.mxu0 0.0
    %548 = vmatpush1.msra.mxu0 0.0
    %549 = vmatprep.subr.mxu0 0.0
    %550 = vmatpush1.msra.mxu0 0.0
    %551 = vmatprep.subr.mxu0 0.0
    %552 = vmatpush1.msra.mxu0 0.0
    %553 = vmatprep.subr.mxu0 0.0
    %554 = vmatpush1.msra.mxu0 0.0
    %555 = vmatprep.subr.mxu0 0.0
    %556 = vmatpush1.msra.mxu0 0.0
    %557 = vmatprep.subr.mxu0 0.0
    %558 = vmatpush1.msra.mxu0 0.0
    %559 = vmatprep.subr.mxu0 0.0
    %560 = vmatpush1.msra.mxu0 0.0
    %561 = vmatprep.subr.mxu0 0.0
    %562 = vmatpush1.msra.mxu0 0.0
    %563 = vmatprep.subr.mxu0 0.0
    %564 = vmatpush1.msra.mxu0 0.0
    %565 = vmatprep.subr.mxu0 0.0
    %566 = vmatpush1.msra.mxu0 0.0
    %567 = vmatprep.mubr.f32.mxu0 0.0
    %568 = vmatmul.mubr.f32.gmra.mrb[0].mxu0 %v367
    %v569 = vpop.f32.mrb[0].mxu0
    %v570 = vadd.f32 0.0, %v569
    %v571 = vpop.f32.mrb[0].mxu0
    %v572 = vadd.f32 0.0, %v571
    %573 = vmatprep.mubr.f32.mxu0 0.0
    %574 = vmatmul.mubr.f32.gmra.mrb[0].mxu0 %v370
    %v575 = vpop.f32.mrb[0].mxu0
    %v576 = vadd.f32 0.0, %v575
    %v577 = vpop.f32.mrb[0].mxu0
    %v578 = vadd.f32 0.0, %v577
    %579 = vmatprep.mubr.f32.mxu0 0.0
    %580 = vmatmul.mubr.f32.gmra.mrb[0].mxu0 %v373
    %v581 = vpop.f32.mrb[0].mxu0
    %v582 = vadd.f32 0.0, %v581
    %v583 = vpop.f32.mrb[0].mxu0
    %v584 = vadd.f32 0.0, %v583
    %585 = vmatprep.mubr.f32.mxu0 0.0
    %586 = vmatmul.mubr.f32.gmra.mrb[0].mxu0 %v376
    %v587 = vpop.f32.mrb[0].mxu0
    %v588 = vadd.f32 0.0, %v587
    %v589 = vpop.f32.mrb[0].mxu0
    %v590 = vadd.f32 0.0, %v589
    %591 = vmatprep.mubr.f32.mxu0 0.0
    %592 = vmatmul.mubr.f32.gmra.mrb[0].mxu0 %v379
    %v593 = vpop.f32.mrb[0].mxu0
    %v594 = vadd.f32 0.0, %v593
    %v595 = vpop.f32.mrb[0].mxu0
    %v596 = vadd.f32 0.0, %v595
    %597 = vmatprep.mubr.f32.mxu0 0.0
    %598 = vmatmul.mubr.f32.gmra.mrb[0].mxu0 %v382
    %v599 = vpop.f32.mrb[0].mxu0
    %v600 = vadd.f32 0.0, %v599
    %v601 = vpop.f32.mrb[0].mxu0
    %v602 = vadd.f32 0.0, %v601
    %603 = vmatprep.mubr.f32.mxu0 0.0
    %604 = vmatmul.mubr.f32.gmra.mrb[0].mxu0 %v385
    %v605 = vpop.f32.mrb[0].mxu0
    %v606 = vadd.f32 0.0, %v605
    %v607 = vpop.f32.mrb[0].mxu0
    %v608 = vadd.f32 0.0, %v607
    %609 = vmatprep.mubr.f32.mxu0 0.0
    %610 = vmatmul.mubr.f32.gmra.mrb[0].mxu0 %v388
    %v611 = vpop.f32.mrb[0].mxu0
    %v612 = vadd.f32 0.0, %v611
    %v613 = vpop.f32.mrb[0].mxu0
    %v614 = vadd.f32 0.0, %v613
    %615 = vdwg.mxu0
    %616 = vmatprep.subr.mxu0 %v83
    %617 = vmatpush1.msra.mxu0 %v82
    %618 = vmatprep.subr.mxu0 %v97
    %619 = vmatpush1.msra.mxu0 %v96
    %620 = vmatprep.subr.mxu0 %v111
    %621 = vmatpush1.msra.mxu0 %v110
    %622 = vmatprep.subr.mxu0 %v125
    %623 = vmatpush1.msra.mxu0 %v124
    %624 = vmatprep.subr.mxu0 %v139
    %625 = vmatpush1.msra.mxu0 %v138
    %626 = vmatprep.subr.mxu0 %v153
    %627 = vmatpush1.msra.mxu0 %v152
    %628 = vmatprep.subr.mxu0 %v167
    %629 = vmatpush1.msra.mxu0 %v166
    %630 = vmatprep.subr.mxu0 %v181
    %631 = vmatpush1.msra.mxu0 %v180
    %632 = vmatprep.subr.mxu0 %v195
    %633 = vmatpush1.msra.mxu0 %v194
    %634 = vmatprep.subr.mxu0 %v209
    %635 = vmatpush1.msra.mxu0 %v208
    %636 = vmatprep.subr.mxu0 %v223
    %637 = vmatpush1.msra.mxu0 %v222
    %638 = vmatprep.subr.mxu0 %v237
    %639 = vmatpush1.msra.mxu0 %v236
    %640 = vmatprep.subr.mxu0 %v251
    %641 = vmatpush1.msra.mxu0 %v250
    %642 = vmatprep.subr.mxu0 %v265
    %643 = vmatpush1.msra.mxu0 %v264
    %644 = vmatprep.subr.mxu0 %v279
    %645 = vmatpush1.msra.mxu0 %v278
    %646 = vmatprep.subr.mxu0 %v293
    %647 = vmatpush1.msra.mxu0 %v292
    %648 = vmatprep.subr.mxu0 0.0
    %649 = vmatpush1.msra.mxu0 0.0
    %650 = vmatprep.subr.mxu0 0.0
    %651 = vmatpush1.msra.mxu0 0.0
    %652 = vmatprep.subr.mxu0 0.0
    %653 = vmatpush1.msra.mxu0 0.0
    %654 = vmatprep.subr.mxu0 0.0
    %655 = vmatpush1.msra.mxu0 0.0
    %656 = vmatprep.subr.mxu0 0.0
    %657 = vmatpush1.msra.mxu0 0.0
    %658 = vmatprep.subr.mxu0 0.0
    %659 = vmatpush1.msra.mxu0 0.0
    %660 = vmatprep.subr.mxu0 0.0
    %661 = vmatpush1.msra.mxu0 0.0
    %662 = vmatprep.subr.mxu0 0.0
    %663 = vmatpush1.msra.mxu0 0.0
    %664 = vmatprep.subr.mxu0 0.0
    %665 = vmatpush1.msra.mxu0 0.0
    %666 = vmatprep.subr.mxu0 0.0
    %667 = vmatpush1.msra.mxu0 0.0
    %668 = vmatprep.subr.mxu0 0.0
    %669 = vmatpush1.msra.mxu0 0.0
    %670 = vmatprep.subr.mxu0 0.0
    %671 = vmatpush1.msra.mxu0 0.0
    %672 = vmatprep.subr.mxu0 0.0
    %673 = vmatpush1.msra.mxu0 0.0
    %674 = vmatprep.subr.mxu0 0.0
    %675 = vmatpush1.msra.mxu0 0.0
    %676 = vmatprep.subr.mxu0 0.0
    %677 = vmatpush1.msra.mxu0 0.0
    %678 = vmatprep.subr.mxu0 0.0
    %679 = vmatpush1.msra.mxu0 0.0
    %680 = vmatprep.mubr.f32.mxu0 0.0
    %681 = vmatmul.mubr.f32.gmra.mrb[0].mxu0 0.0
    %v682 = vpop.f32.mrb[0].mxu0
    %v683 = vadd.f32 0.0, %v682
    %v684 = vpop.f32.mrb[0].mxu0
    %v685 = vadd.f32 0.0, %v684
    %686 = vdwg.mxu0
    %687 = vmatprep.subr.mxu0 %v85
    %688 = vmatpush1.msra.mxu0 %v84
    %689 = vmatprep.subr.mxu0 %v99
    %690 = vmatpush1.msra.mxu0 %v98
    %691 = vmatprep.subr.mxu0 %v113
    %692 = vmatpush1.msra.mxu0 %v112
    %693 = vmatprep.subr.mxu0 %v127
    %694 = vmatpush1.msra.mxu0 %v126
    %695 = vmatprep.subr.mxu0 %v141
    %696 = vmatpush1.msra.mxu0 %v140
    %697 = vmatprep.subr.mxu0 %v155
    %698 = vmatpush1.msra.mxu0 %v154
    %699 = vmatprep.subr.mxu0 %v169
    %700 = vmatpush1.msra.mxu0 %v168
    %701 = vmatprep.subr.mxu0 %v183
    %702 = vmatpush1.msra.mxu0 %v182
    %703 = vmatprep.subr.mxu0 %v197
    %704 = vmatpush1.msra.mxu0 %v196
    %705 = vmatprep.subr.mxu0 %v211
    %706 = vmatpush1.msra.mxu0 %v210
    %707 = vmatprep.subr.mxu0 %v225
    %708 = vmatpush1.msra.mxu0 %v224
    %709 = vmatprep.subr.mxu0 %v239
    %710 = vmatpush1.msra.mxu0 %v238
    %711 = vmatprep.subr.mxu0 %v253
    %712 = vmatpush1.msra.mxu0 %v252
    %713 = vmatprep.subr.mxu0 %v267
    %714 = vmatpush1.msra.mxu0 %v266
    %715 = vmatprep.subr.mxu0 %v281
    %716 = vmatpush1.msra.mxu0 %v280
    %717 = vmatprep.subr.mxu0 %v295
    %718 = vmatpush1.msra.mxu0 %v294
    %719 = vmatprep.subr.mxu0 0.0
    %720 = vmatpush1.msra.mxu0 0.0
    %721 = vmatprep.subr.mxu0 0.0
    %722 = vmatpush1.msra.mxu0 0.0
    %723 = vmatprep.subr.mxu0 0.0
    %724 = vmatpush1.msra.mxu0 0.0
    %725 = vmatprep.subr.mxu0 0.0
    %726 = vmatpush1.msra.mxu0 0.0
    %727 = vmatprep.subr.mxu0 0.0
    %728 = vmatpush1.msra.mxu0 0.0
    %729 = vmatprep.subr.mxu0 0.0
    %730 = vmatpush1.msra.mxu0 0.0
    %731 = vmatprep.subr.mxu0 0.0
    %732 = vmatpush1.msra.mxu0 0.0
    %733 = vmatprep.subr.mxu0 0.0
    %734 = vmatpush1.msra.mxu0 0.0
    %735 = vmatprep.subr.mxu0 0.0
    %736 = vmatpush1.msra.mxu0 0.0
    %737 = vmatprep.subr.mxu0 0.0
    %738 = vmatpush1.msra.mxu0 0.0
    %739 = vmatprep.subr.mxu0 0.0
    %740 = vmatpush1.msra.mxu0 0.0
    %741 = vmatprep.subr.mxu0 0.0
    %742 = vmatpush1.msra.mxu0 0.0
    %743 = vmatprep.subr.mxu0 0.0
    %744 = vmatpush1.msra.mxu0 0.0
    %745 = vmatprep.subr.mxu0 0.0
    %746 = vmatpush1.msra.mxu0 0.0
    %747 = vmatprep.subr.mxu0 0.0
    %748 = vmatpush1.msra.mxu0 0.0
    %749 = vmatprep.subr.mxu0 0.0
    %750 = vmatpush1.msra.mxu0 0.0
    %751 = vmatprep.mubr.f32.mxu0 0.0
    %752 = vmatmul.mubr.f32.gmra.mrb[0].mxu0 0.0
    %v753 = vpop.f32.mrb[0].mxu0
    %v754 = vadd.f32 0.0, %v753
    %v755 = vpop.f32.mrb[0].mxu0
    %v756 = vadd.f32 0.0, %v755
    %757 = vdwg.mxu0
    %v758 = vadd.f32 %v457, %v683
    %v759 = vadd.f32 %v459, %v685
    %v760 = vadd.f32 %v570, %v754
    %v761 = vadd.f32 %v572, %v756
    %v762 = vxor.u32 %v758, 2147483648
    %v763 = vxor.u32 %v759, 2147483648
    %v764 = vxor.u32 %v760, 2147483648
    %v765 = vmul.f32 %v762, 1.442695
    %v766 = vpow.pop %v765
    %v767 = vmul.f32 %v763, 1.442695
    %v768 = vpow.pop %v767
    %v769 = vmul.f32 %v764, 1.442695
    %v770 = vpow.pop %v769
    %v771 = vadd.f32 %v766, 1.0
    %v772 = vadd.f32 %v768, 1.0
    %v773 = vadd.f32 %v770, 1.0
    %v774 = vrcp.pop %v771
    %v775 = vmul.f32 1.0, %v774
    %v776 = vrcp.pop %v772
    %v777 = vmul.f32 1.0, %v776
    %v778 = vrcp.pop %v773
    %v779 = vmul.f32 1.0, %v778
    %v780 = vtanh.pop %v761
    %v781 = vmul.f32 %v777, 0.0
    %v782 = vmul.f32 %v775, %v780
    %v783 = vadd.f32 %v781, %v782
    %v784 = vtanh.pop %v783
    %v785 = vmul.f32 %v779, %v784
    %786 = vmatprep.subr.mxu0 %v83
    %787 = vmatpush1.msra.mxu0 %v82
    %788 = vmatprep.subr.mxu0 %v97
    %789 = vmatpush1.msra.mxu0 %v96
    %790 = vmatprep.subr.mxu0 %v111
    %791 = vmatpush1.msra.mxu0 %v110
    %792 = vmatprep.subr.mxu0 %v125
    %793 = vmatpush1.msra.mxu0 %v124
    %794 = vmatprep.subr.mxu0 %v139
    %795 = vmatpush1.msra.mxu0 %v138
    %796 = vmatprep.subr.mxu0 %v153
    %797 = vmatpush1.msra.mxu0 %v152
    %798 = vmatprep.subr.mxu0 %v167
    %799 = vmatpush1.msra.mxu0 %v166
    %800 = vmatprep.subr.mxu0 %v181
    %801 = vmatpush1.msra.mxu0 %v180
    %802 = vmatprep.subr.mxu0 %v195
    %803 = vmatpush1.msra.mxu0 %v194
    %804 = vmatprep.subr.mxu0 %v209
    %805 = vmatpush1.msra.mxu0 %v208
    %806 = vmatprep.subr.mxu0 %v223
    %807 = vmatpush1.msra.mxu0 %v222
    %808 = vmatprep.subr.mxu0 %v237
    %809 = vmatpush1.msra.mxu0 %v236
    %810 = vmatprep.subr.mxu0 %v251
    %811 = vmatpush1.msra.mxu0 %v250
    %812 = vmatprep.subr.mxu0 %v265
    %813 = vmatpush1.msra.mxu0 %v264
    %814 = vmatprep.subr.mxu0 %v279
    %815 = vmatpush1.msra.mxu0 %v278
    %816 = vmatprep.subr.mxu0 %v293
    %817 = vmatpush1.msra.mxu0 %v292
    %818 = vmatprep.subr.mxu0 0.0
    %819 = vmatpush1.msra.mxu0 0.0
    %820 = vmatprep.subr.mxu0 0.0
    %821 = vmatpush1.msra.mxu0 0.0
    %822 = vmatprep.subr.mxu0 0.0
    %823 = vmatpush1.msra.mxu0 0.0
    %824 = vmatprep.subr.mxu0 0.0
    %825 = vmatpush1.msra.mxu0 0.0
    %826 = vmatprep.subr.mxu0 0.0
    %827 = vmatpush1.msra.mxu0 0.0
    %828 = vmatprep.subr.mxu0 0.0
    %829 = vmatpush1.msra.mxu0 0.0
    %830 = vmatprep.subr.mxu0 0.0
    %831 = vmatpush1.msra.mxu0 0.0
    %832 = vmatprep.subr.mxu0 0.0
    %833 = vmatpush1.msra.mxu0 0.0
    %834 = vmatprep.subr.mxu0 0.0
    %835 = vmatpush1.msra.mxu0 0.0
    %836 = vmatprep.subr.mxu0 0.0
    %837 = vmatpush1.msra.mxu0 0.0
    %838 = vmatprep.subr.mxu0 0.0
    %839 = vmatpush1.msra.mxu0 0.0
    %840 = vmatprep.subr.mxu0 0.0
    %841 = vmatpush1.msra.mxu0 0.0
    %842 = vmatprep.subr.mxu0 0.0
    %843 = vmatpush1.msra.mxu0 0.0
    %844 = vmatprep.subr.mxu0 0.0
    %845 = vmatpush1.msra.mxu0 0.0
    %846 = vmatprep.subr.mxu0 0.0
    %847 = vmatpush1.msra.mxu0 0.0
    %848 = vmatprep.subr.mxu0 0.0
    %849 = vmatpush1.msra.mxu0 0.0
    %850 = vmatprep.mubr.f32.mxu0 0.0
    %851 = vmatmul.mubr.f32.gmra.mrb[0].mxu0 %v785
    %v852 = vpop.f32.mrb[0].mxu0
    %v853 = vadd.f32 0.0, %v852
    %v854 = vpop.f32.mrb[0].mxu0
    %v855 = vadd.f32 0.0, %v854
    %856 = vdwg.mxu0
    %857 = vmatprep.subr.mxu0 %v85
    %858 = vmatpush1.msra.mxu0 %v84
    %859 = vmatprep.subr.mxu0 %v99
    %860 = vmatpush1.msra.mxu0 %v98
    %861 = vmatprep.subr.mxu0 %v113
    %862 = vmatpush1.msra.mxu0 %v112
    %863 = vmatprep.subr.mxu0 %v127
    %864 = vmatpush1.msra.mxu0 %v126
    %865 = vmatprep.subr.mxu0 %v141
    %866 = vmatpush1.msra.mxu0 %v140
    %867 = vmatprep.subr.mxu0 %v155
    %868 = vmatpush1.msra.mxu0 %v154
    %869 = vmatprep.subr.mxu0 %v169
    %870 = vmatpush1.msra.mxu0 %v168
    %871 = vmatprep.subr.mxu0 %v183
    %872 = vmatpush1.msra.mxu0 %v182
    %873 = vmatprep.subr.mxu0 %v197
    %874 = vmatpush1.msra.mxu0 %v196
    %875 = vmatprep.subr.mxu0 %v211
    %876 = vmatpush1.msra.mxu0 %v210
    %877 = vmatprep.subr.mxu0 %v225
    %878 = vmatpush1.msra.mxu0 %v224
    %879 = vmatprep.subr.mxu0 %v239
    %880 = vmatpush1.msra.mxu0 %v238
    %881 = vmatprep.subr.mxu0 %v253
    %882 = vmatpush1.msra.mxu0 %v252
    %883 = vmatprep.subr.mxu0 %v267
    %884 = vmatpush1.msra.mxu0 %v266
    %885 = vmatprep.subr.mxu0 %v281
    %886 = vmatpush1.msra.mxu0 %v280
    %887 = vmatprep.subr.mxu0 %v295
    %888 = vmatpush1.msra.mxu0 %v294
    %889 = vmatprep.subr.mxu0 0.0
    %890 = vmatpush1.msra.mxu0 0.0
    %891 = vmatprep.subr.mxu0 0.0
    %892 = vmatpush1.msra.mxu0 0.0
    %893 = vmatprep.subr.mxu0 0.0
    %894 = vmatpush1.msra.mxu0 0.0
    %895 = vmatprep.subr.mxu0 0.0
    %896 = vmatpush1.msra.mxu0 0.0
    %897 = vmatprep.subr.mxu0 0.0
    %898 = vmatpush1.msra.mxu0 0.0
    %899 = vmatprep.subr.mxu0 0.0
    %900 = vmatpush1.msra.mxu0 0.0
    %901 = vmatprep.subr.mxu0 0.0
    %902 = vmatpush1.msra.mxu0 0.0
    %903 = vmatprep.subr.mxu0 0.0
    %904 = vmatpush1.msra.mxu0 0.0
    %905 = vmatprep.subr.mxu0 0.0
    %906 = vmatpush1.msra.mxu0 0.0
    %907 = vmatprep.subr.mxu0 0.0
    %908 = vmatpush1.msra.mxu0 0.0
    %909 = vmatprep.subr.mxu0 0.0
    %910 = vmatpush1.msra.mxu0 0.0
    %911 = vmatprep.subr.mxu0 0.0
    %912 = vmatpush1.msra.mxu0 0.0
    %913 = vmatprep.subr.mxu0 0.0
    %914 = vmatpush1.msra.mxu0 0.0
    %915 = vmatprep.subr.mxu0 0.0
    %916 = vmatpush1.msra.mxu0 0.0
    %917 = vmatprep.subr.mxu0 0.0
    %918 = vmatpush1.msra.mxu0 0.0
    %919 = vmatprep.subr.mxu0 0.0
    %920 = vmatpush1.msra.mxu0 0.0
    %921 = vmatprep.mubr.f32.mxu0 0.0
    %922 = vmatmul.mubr.f32.gmra.mrb[0].mxu0 %v785
    %v923 = vpop.f32.mrb[0].mxu0
    %v924 = vadd.f32 0.0, %v923
    %v925 = vpop.f32.mrb[0].mxu0
    %v926 = vadd.f32 0.0, %v925
    %927 = vdwg.mxu0
    %v928 = vadd.f32 %v463, %v853
    %v929 = vadd.f32 %v465, %v855
    %v930 = vadd.f32 %v576, %v924
    %v931 = vadd.f32 %v578, %v926
    %v932 = vxor.u32 %v928, 2147483648
    %v933 = vxor.u32 %v929, 2147483648
    %v934 = vxor.u32 %v930, 2147483648
    %v935 = vmul.f32 %v932, 1.442695
    %v936 = vpow.pop %v935
    %v937 = vmul.f32 %v933, 1.442695
    %v938 = vpow.pop %v937
    %v939 = vmul.f32 %v934, 1.442695
    %v940 = vpow.pop %v939
    %v941 = vadd.f32 %v936, 1.0
    %v942 = vadd.f32 %v938, 1.0
    %v943 = vadd.f32 %v940, 1.0
    %v944 = vrcp.pop %v941
    %v945 = vmul.f32 1.0, %v944
    %v946 = vrcp.pop %v942
    %v947 = vmul.f32 1.0, %v946
    %v948 = vrcp.pop %v943
    %v949 = vmul.f32 1.0, %v948
    %v950 = vtanh.pop %v931
    %v951 = vmul.f32 %v947, %v783
    %v952 = vmul.f32 %v945, %v950
    %v953 = vadd.f32 %v951, %v952
    %v954 = vtanh.pop %v953
    %v955 = vmul.f32 %v949, %v954
    %956 = vmatprep.subr.mxu0 %v83
    %957 = vmatpush1.msra.mxu0 %v82
    %958 = vmatprep.subr.mxu0 %v97
    %959 = vmatpush1.msra.mxu0 %v96
    %960 = vmatprep.subr.mxu0 %v111
    %961 = vmatpush1.msra.mxu0 %v110
    %962 = vmatprep.subr.mxu0 %v125
    %963 = vmatpush1.msra.mxu0 %v124
    %964 = vmatprep.subr.mxu0 %v139
    %965 = vmatpush1.msra.mxu0 %v138
    %966 = vmatprep.subr.mxu0 %v153
    %967 = vmatpush1.msra.mxu0 %v152
    %968 = vmatprep.subr.mxu0 %v167
    %969 = vmatpush1.msra.mxu0 %v166
    %970 = vmatprep.subr.mxu0 %v181
    %971 = vmatpush1.msra.mxu0 %v180
    %972 = vmatprep.subr.mxu0 %v195
    %973 = vmatpush1.msra.mxu0 %v194
    %974 = vmatprep.subr.mxu0 %v209
    %975 = vmatpush1.msra.mxu0 %v208
    %976 = vmatprep.subr.mxu0 %v223
    %977 = vmatpush1.msra.mxu0 %v222
    %978 = vmatprep.subr.mxu0 %v237
    %979 = vmatpush1.msra.mxu0 %v236
    %980 = vmatprep.subr.mxu0 %v251
    %981 = vmatpush1.msra.mxu0 %v250
    %982 = vmatprep.subr.mxu0 %v265
    %983 = vmatpush1.msra.mxu0 %v264
    %984 = vmatprep.subr.mxu0 %v279
    %985 = vmatpush1.msra.mxu0 %v278
    %986 = vmatprep.subr.mxu0 %v293
    %987 = vmatpush1.msra.mxu0 %v292
    %988 = vmatprep.subr.mxu0 0.0
    %989 = vmatpush1.msra.mxu0 0.0
    %990 = vmatprep.subr.mxu0 0.0
    %991 = vmatpush1.msra.mxu0 0.0
    %992 = vmatprep.subr.mxu0 0.0
    %993 = vmatpush1.msra.mxu0 0.0
    %994 = vmatprep.subr.mxu0 0.0
    %995 = vmatpush1.msra.mxu0 0.0
    %996 = vmatprep.subr.mxu0 0.0
    %997 = vmatpush1.msra.mxu0 0.0
    %998 = vmatprep.subr.mxu0 0.0
    %999 = vmatpush1.msra.mxu0 0.0
    %1000 = vmatprep.subr.mxu0 0.0
    %1001 = vmatpush1.msra.mxu0 0.0
    %1002 = vmatprep.subr.mxu0 0.0
    %1003 = vmatpush1.msra.mxu0 0.0
    %1004 = vmatprep.subr.mxu0 0.0
    %1005 = vmatpush1.msra.mxu0 0.0
    %1006 = vmatprep.subr.mxu0 0.0
    %1007 = vmatpush1.msra.mxu0 0.0
    %1008 = vmatprep.subr.mxu0 0.0
    %1009 = vmatpush1.msra.mxu0 0.0
    %1010 = vmatprep.subr.mxu0 0.0
    %1011 = vmatpush1.msra.mxu0 0.0
    %1012 = vmatprep.subr.mxu0 0.0
    %1013 = vmatpush1.msra.mxu0 0.0
    %1014 = vmatprep.subr.mxu0 0.0
    %1015 = vmatpush1.msra.mxu0 0.0
    %1016 = vmatprep.subr.mxu0 0.0
    %1017 = vmatpush1.msra.mxu0 0.0
    %1018 = vmatprep.subr.mxu0 0.0
    %1019 = vmatpush1.msra.mxu0 0.0
    %1020 = vmatprep.mubr.f32.mxu0 0.0
    %1021 = vmatmul.mubr.f32.gmra.mrb[0].mxu0 %v955
    %v1022 = vpop.f32.mrb[0].mxu0
    %v1023 = vadd.f32 0.0, %v1022
    %v1024 = vpop.f32.mrb[0].mxu0
    %v1025 = vadd.f32 0.0, %v1024
    %1026 = vdwg.mxu0
    %1027 = vmatprep.subr.mxu0 %v85
    %1028 = vmatpush1.msra.mxu0 %v84
    %1029 = vmatprep.subr.mxu0 %v99
    %1030 = vmatpush1.msra.mxu0 %v98
    %1031 = vmatprep.subr.mxu0 %v113
    %1032 = vmatpush1.msra.mxu0 %v112
    %1033 = vmatprep.subr.mxu0 %v127
    %1034 = vmatpush1.msra.mxu0 %v126
    %1035 = vmatprep.subr.mxu0 %v141
    %1036 = vmatpush1.msra.mxu0 %v140
    %1037 = vmatprep.subr.mxu0 %v155
    %1038 = vmatpush1.msra.mxu0 %v154
    %1039 = vmatprep.subr.mxu0 %v169
    %1040 = vmatpush1.msra.mxu0 %v168
    %1041 = vmatprep.subr.mxu0 %v183
    %1042 = vmatpush1.msra.mxu0 %v182
    %1043 = vmatprep.subr.mxu0 %v197
    %1044 = vmatpush1.msra.mxu0 %v196
    %1045 = vmatprep.subr.mxu0 %v211
    %1046 = vmatpush1.msra.mxu0 %v210
    %1047 = vmatprep.subr.mxu0 %v225
    %1048 = vmatpush1.msra.mxu0 %v224
    %1049 = vmatprep.subr.mxu0 %v239
    %1050 = vmatpush1.msra.mxu0 %v238
    %1051 = vmatprep.subr.mxu0 %v253
    %1052 = vmatpush1.msra.mxu0 %v252
    %1053 = vmatprep.subr.mxu0 %v267
    %1054 = vmatpush1.msra.mxu0 %v266
    %1055 = vmatprep.subr.mxu0 %v281
    %1056 = vmatpush1.msra.mxu0 %v280
    %1057 = vmatprep.subr.mxu0 %v295
    %1058 = vmatpush1.msra.mxu0 %v294
    %1059 = vmatprep.subr.mxu0 0.0
    %1060 = vmatpush1.msra.mxu0 0.0
    %1061 = vmatprep.subr.mxu0 0.0
    %1062 = vmatpush1.msra.mxu0 0.0
    %1063 = vmatprep.subr.mxu0 0.0
    %1064 = vmatpush1.msra.mxu0 0.0
    %1065 = vmatprep.subr.mxu0 0.0
    %1066 = vmatpush1.msra.mxu0 0.0
    %1067 = vmatprep.subr.mxu0 0.0
    %1068 = vmatpush1.msra.mxu0 0.0
    %1069 = vmatprep.subr.mxu0 0.0
    %1070 = vmatpush1.msra.mxu0 0.0
    %1071 = vmatprep.subr.mxu0 0.0
    %1072 = vmatpush1.msra.mxu0 0.0
    %1073 = vmatprep.subr.mxu0 0.0
    %1074 = vmatpush1.msra.mxu0 0.0
    %1075 = vmatprep.subr.mxu0 0.0
    %1076 = vmatpush1.msra.mxu0 0.0
    %1077 = vmatprep.subr.mxu0 0.0
    %1078 = vmatpush1.msra.mxu0 0.0
    %1079 = vmatprep.subr.mxu0 0.0
    %1080 = vmatpush1.msra.mxu0 0.0
    %1081 = vmatprep.subr.mxu0 0.0
    %1082 = vmatpush1.msra.mxu0 0.0
    %1083 = vmatprep.subr.mxu0 0.0
    %1084 = vmatpush1.msra.mxu0 0.0
    %1085 = vmatprep.subr.mxu0 0.0
    %1086 = vmatpush1.msra.mxu0 0.0
    %1087 = vmatprep.subr.mxu0 0.0
    %1088 = vmatpush1.msra.mxu0 0.0
    %1089 = vmatprep.subr.mxu0 0.0
    %1090 = vmatpush1.msra.mxu0 0.0
    %1091 = vmatprep.mubr.f32.mxu0 0.0
    %1092 = vmatmul.mubr.f32.gmra.mrb[0].mxu0 %v955
    %v1093 = vpop.f32.mrb[0].mxu0
    %v1094 = vadd.f32 0.0, %v1093
    %v1095 = vpop.f32.mrb[0].mxu0
    %v1096 = vadd.f32 0.0, %v1095
    %1097 = vdwg.mxu0
    %v1098 = vadd.f32 %v469, %v1023
    %v1099 = vadd.f32 %v471, %v1025
    %v1100 = vadd.f32 %v582, %v1094
    %v1101 = vadd.f32 %v584, %v1096
    %v1102 = vxor.u32 %v1098, 2147483648
    %v1103 = vxor.u32 %v1099, 2147483648
    %v1104 = vxor.u32 %v1100, 2147483648
    %v1105 = vmul.f32 %v1102, 1.442695
    %v1106 = vpow.pop %v1105
    %v1107 = vmul.f32 %v1103, 1.442695
    %v1108 = vpow.pop %v1107
    %v1109 = vmul.f32 %v1104, 1.442695
    %v1110 = vpow.pop %v1109
    %v1111 = vadd.f32 %v1106, 1.0
    %v1112 = vadd.f32 %v1108, 1.0
    %v1113 = vadd.f32 %v1110, 1.0
    %v1114 = vrcp.pop %v1111
    %v1115 = vmul.f32 1.0, %v1114
    %v1116 = vrcp.pop %v1112
    %v1117 = vmul.f32 1.0, %v1116
    %v1118 = vrcp.pop %v1113
    %v1119 = vmul.f32 1.0, %v1118
    %v1120 = vtanh.pop %v1101
    %v1121 = vmul.f32 %v1117, %v953
    %v1122 = vmul.f32 %v1115, %v1120
    %v1123 = vadd.f32 %v1121, %v1122
    %v1124 = vtanh.pop %v1123
    %v1125 = vmul.f32 %v1119, %v1124
    %1126 = vmatprep.subr.mxu0 %v83
    %1127 = vmatpush1.msra.mxu0 %v82
    %1128 = vmatprep.subr.mxu0 %v97
    %1129 = vmatpush1.msra.mxu0 %v96
    %1130 = vmatprep.subr.mxu0 %v111
    %1131 = vmatpush1.msra.mxu0 %v110
    %1132 = vmatprep.subr.mxu0 %v125
    %1133 = vmatpush1.msra.mxu0 %v124
    %1134 = vmatprep.subr.mxu0 %v139
    %1135 = vmatpush1.msra.mxu0 %v138
    %1136 = vmatprep.subr.mxu0 %v153
    %1137 = vmatpush1.msra.mxu0 %v152
    %1138 = vmatprep.subr.mxu0 %v167
    %1139 = vmatpush1.msra.mxu0 %v166
    %1140 = vmatprep.subr.mxu0 %v181
    %1141 = vmatpush1.msra.mxu0 %v180
    %1142 = vmatprep.subr.mxu0 %v195
    %1143 = vmatpush1.msra.mxu0 %v194
    %1144 = vmatprep.subr.mxu0 %v209
    %1145 = vmatpush1.msra.mxu0 %v208
    %1146 = vmatprep.subr.mxu0 %v223
    %1147 = vmatpush1.msra.mxu0 %v222
    %1148 = vmatprep.subr.mxu0 %v237
    %1149 = vmatpush1.msra.mxu0 %v236
    %1150 = vmatprep.subr.mxu0 %v251
    %1151 = vmatpush1.msra.mxu0 %v250
    %1152 = vmatprep.subr.mxu0 %v265
    %1153 = vmatpush1.msra.mxu0 %v264
    %1154 = vmatprep.subr.mxu0 %v279
    %1155 = vmatpush1.msra.mxu0 %v278
    %1156 = vmatprep.subr.mxu0 %v293
    %1157 = vmatpush1.msra.mxu0 %v292
    %1158 = vmatprep.subr.mxu0 0.0
    %1159 = vmatpush1.msra.mxu0 0.0
    %1160 = vmatprep.subr.mxu0 0.0
    %1161 = vmatpush1.msra.mxu0 0.0
    %1162 = vmatprep.subr.mxu0 0.0
    %1163 = vmatpush1.msra.mxu0 0.0
    %1164 = vmatprep.subr.mxu0 0.0
    %1165 = vmatpush1.msra.mxu0 0.0
    %1166 = vmatprep.subr.mxu0 0.0
    %1167 = vmatpush1.msra.mxu0 0.0
    %1168 = vmatprep.subr.mxu0 0.0
    %1169 = vmatpush1.msra.mxu0 0.0
    %1170 = vmatprep.subr.mxu0 0.0
    %1171 = vmatpush1.msra.mxu0 0.0
    %1172 = vmatprep.subr.mxu0 0.0
    %1173 = vmatpush1.msra.mxu0 0.0
    %1174 = vmatprep.subr.mxu0 0.0
    %1175 = vmatpush1.msra.mxu0 0.0
    %1176 = vmatprep.subr.mxu0 0.0
    %1177 = vmatpush1.msra.mxu0 0.0
    %1178 = vmatprep.subr.mxu0 0.0
    %1179 = vmatpush1.msra.mxu0 0.0
    %1180 = vmatprep.subr.mxu0 0.0
    %1181 = vmatpush1.msra.mxu0 0.0
    %1182 = vmatprep.subr.mxu0 0.0
    %1183 = vmatpush1.msra.mxu0 0.0
    %1184 = vmatprep.subr.mxu0 0.0
    %1185 = vmatpush1.msra.mxu0 0.0
    %1186 = vmatprep.subr.mxu0 0.0
    %1187 = vmatpush1.msra.mxu0 0.0
    %1188 = vmatprep.subr.mxu0 0.0
    %1189 = vmatpush1.msra.mxu0 0.0
    %1190 = vmatprep.mubr.f32.mxu0 0.0
    %1191 = vmatmul.mubr.f32.gmra.mrb[0].mxu0 %v1125
    %v1192 = vpop.f32.mrb[0].mxu0
    %v1193 = vadd.f32 0.0, %v1192
    %v1194 = vpop.f32.mrb[0].mxu0
    %v1195 = vadd.f32 0.0, %v1194
    %1196 = vdwg.mxu0
    %1197 = vmatprep.subr.mxu0 %v85
    %1198 = vmatpush1.msra.mxu0 %v84
    %1199 = vmatprep.subr.mxu0 %v99
    %1200 = vmatpush1.msra.mxu0 %v98
    %1201 = vmatprep.subr.mxu0 %v113
    %1202 = vmatpush1.msra.mxu0 %v112
    %1203 = vmatprep.subr.mxu0 %v127
    %1204 = vmatpush1.msra.mxu0 %v126
    %1205 = vmatprep.subr.mxu0 %v141
    %1206 = vmatpush1.msra.mxu0 %v140
    %1207 = vmatprep.subr.mxu0 %v155
    %1208 = vmatpush1.msra.mxu0 %v154
    %1209 = vmatprep.subr.mxu0 %v169
    %1210 = vmatpush1.msra.mxu0 %v168
    %1211 = vmatprep.subr.mxu0 %v183
    %1212 = vmatpush1.msra.mxu0 %v182
    %1213 = vmatprep.subr.mxu0 %v197
    %1214 = vmatpush1.msra.mxu0 %v196
    %1215 = vmatprep.subr.mxu0 %v211
    %1216 = vmatpush1.msra.mxu0 %v210
    %1217 = vmatprep.subr.mxu0 %v225
    %1218 = vmatpush1.msra.mxu0 %v224
    %1219 = vmatprep.subr.mxu0 %v239
    %1220 = vmatpush1.msra.mxu0 %v238
    %1221 = vmatprep.subr.mxu0 %v253
    %1222 = vmatpush1.msra.mxu0 %v252
    %1223 = vmatprep.subr.mxu0 %v267
    %1224 = vmatpush1.msra.mxu0 %v266
    %1225 = vmatprep.subr.mxu0 %v281
    %1226 = vmatpush1.msra.mxu0 %v280
    %1227 = vmatprep.subr.mxu0 %v295
    %1228 = vmatpush1.msra.mxu0 %v294
    %1229 = vmatprep.subr.mxu0 0.0
    %1230 = vmatpush1.msra.mxu0 0.0
    %1231 = vmatprep.subr.mxu0 0.0
    %1232 = vmatpush1.msra.mxu0 0.0
    %1233 = vmatprep.subr.mxu0 0.0
    %1234 = vmatpush1.msra.mxu0 0.0
    %1235 = vmatprep.subr.mxu0 0.0
    %1236 = vmatpush1.msra.mxu0 0.0
    %1237 = vmatprep.subr.mxu0 0.0
    %1238 = vmatpush1.msra.mxu0 0.0
    %1239 = vmatprep.subr.mxu0 0.0
    %1240 = vmatpush1.msra.mxu0 0.0
    %1241 = vmatprep.subr.mxu0 0.0
    %1242 = vmatpush1.msra.mxu0 0.0
    %1243 = vmatprep.subr.mxu0 0.0
    %1244 = vmatpush1.msra.mxu0 0.0
    %1245 = vmatprep.subr.mxu0 0.0
    %1246 = vmatpush1.msra.mxu0 0.0
    %1247 = vmatprep.subr.mxu0 0.0
    %1248 = vmatpush1.msra.mxu0 0.0
    %1249 = vmatprep.subr.mxu0 0.0
    %1250 = vmatpush1.msra.mxu0 0.0
    %1251 = vmatprep.subr.mxu0 0.0
    %1252 = vmatpush1.msra.mxu0 0.0
    %1253 = vmatprep.subr.mxu0 0.0
    %1254 = vmatpush1.msra.mxu0 0.0
    %1255 = vmatprep.subr.mxu0 0.0
    %1256 = vmatpush1.msra.mxu0 0.0
    %1257 = vmatprep.subr.mxu0 0.0
    %1258 = vmatpush1.msra.mxu0 0.0
    %1259 = vmatprep.subr.mxu0 0.0
    %1260 = vmatpush1.msra.mxu0 0.0
    %1261 = vmatprep.mubr.f32.mxu0 0.0
    %1262 = vmatmul.mubr.f32.gmra.mrb[0].mxu0 %v1125
    %v1263 = vpop.f32.mrb[0].mxu0
    %v1264 = vadd.f32 0.0, %v1263
    %v1265 = vpop.f32.mrb[0].mxu0
    %v1266 = vadd.f32 0.0, %v1265
    %1267 = vdwg.mxu0
    %v1268 = vadd.f32 %v475, %v1193
    %v1269 = vadd.f32 %v477, %v1195
    %v1270 = vadd.f32 %v588, %v1264
    %v1271 = vadd.f32 %v590, %v1266
    %v1272 = vxor.u32 %v1268, 2147483648
    %v1273 = vxor.u32 %v1269, 2147483648
    %v1274 = vxor.u32 %v1270, 2147483648
    %v1275 = vmul.f32 %v1272, 1.442695
    %v1276 = vpow.pop %v1275
    %v1277 = vmul.f32 %v1273, 1.442695
    %v1278 = vpow.pop %v1277
    %v1279 = vmul.f32 %v1274, 1.442695
    %v1280 = vpow.pop %v1279
    %v1281 = vadd.f32 %v1276, 1.0
    %v1282 = vadd.f32 %v1278, 1.0
    %v1283 = vadd.f32 %v1280, 1.0
    %v1284 = vrcp.pop %v1281
    %v1285 = vmul.f32 1.0, %v1284
    %v1286 = vrcp.pop %v1282
    %v1287 = vmul.f32 1.0, %v1286
    %v1288 = vrcp.pop %v1283
    %v1289 = vmul.f32 1.0, %v1288
    %v1290 = vtanh.pop %v1271
    %v1291 = vmul.f32 %v1287, %v1123
    %v1292 = vmul.f32 %v1285, %v1290
    %v1293 = vadd.f32 %v1291, %v1292
    %v1294 = vtanh.pop %v1293
    %v1295 = vmul.f32 %v1289, %v1294
    %1296 = vmatprep.subr.mxu0 %v83
    %1297 = vmatpush1.msra.mxu0 %v82
    %1298 = vmatprep.subr.mxu0 %v97
    %1299 = vmatpush1.msra.mxu0 %v96
    %1300 = vmatprep.subr.mxu0 %v111
    %1301 = vmatpush1.msra.mxu0 %v110
    %1302 = vmatprep.subr.mxu0 %v125
    %1303 = vmatpush1.msra.mxu0 %v124
    %1304 = vmatprep.subr.mxu0 %v139
    %1305 = vmatpush1.msra.mxu0 %v138
    %1306 = vmatprep.subr.mxu0 %v153
    %1307 = vmatpush1.msra.mxu0 %v152
    %1308 = vmatprep.subr.mxu0 %v167
    %1309 = vmatpush1.msra.mxu0 %v166
    %1310 = vmatprep.subr.mxu0 %v181
    %1311 = vmatpush1.msra.mxu0 %v180
    %1312 = vmatprep.subr.mxu0 %v195
    %1313 = vmatpush1.msra.mxu0 %v194
    %1314 = vmatprep.subr.mxu0 %v209
    %1315 = vmatpush1.msra.mxu0 %v208
    %1316 = vmatprep.subr.mxu0 %v223
    %1317 = vmatpush1.msra.mxu0 %v222
    %1318 = vmatprep.subr.mxu0 %v237
    %1319 = vmatpush1.msra.mxu0 %v236
    %1320 = vmatprep.subr.mxu0 %v251
    %1321 = vmatpush1.msra.mxu0 %v250
    %1322 = vmatprep.subr.mxu0 %v265
    %1323 = vmatpush1.msra.mxu0 %v264
    %1324 = vmatprep.subr.mxu0 %v279
    %1325 = vmatpush1.msra.mxu0 %v278
    %1326 = vmatprep.subr.mxu0 %v293
    %1327 = vmatpush1.msra.mxu0 %v292
    %1328 = vmatprep.subr.mxu0 0.0
    %1329 = vmatpush1.msra.mxu0 0.0
    %1330 = vmatprep.subr.mxu0 0.0
    %1331 = vmatpush1.msra.mxu0 0.0
    %1332 = vmatprep.subr.mxu0 0.0
    %1333 = vmatpush1.msra.mxu0 0.0
    %1334 = vmatprep.subr.mxu0 0.0
    %1335 = vmatpush1.msra.mxu0 0.0
    %1336 = vmatprep.subr.mxu0 0.0
    %1337 = vmatpush1.msra.mxu0 0.0
    %1338 = vmatprep.subr.mxu0 0.0
    %1339 = vmatpush1.msra.mxu0 0.0
    %1340 = vmatprep.subr.mxu0 0.0
    %1341 = vmatpush1.msra.mxu0 0.0
    %1342 = vmatprep.subr.mxu0 0.0
    %1343 = vmatpush1.msra.mxu0 0.0
    %1344 = vmatprep.subr.mxu0 0.0
    %1345 = vmatpush1.msra.mxu0 0.0
    %1346 = vmatprep.subr.mxu0 0.0
    %1347 = vmatpush1.msra.mxu0 0.0
    %1348 = vmatprep.subr.mxu0 0.0
    %1349 = vmatpush1.msra.mxu0 0.0
    %1350 = vmatprep.subr.mxu0 0.0
    %1351 = vmatpush1.msra.mxu0 0.0
    %1352 = vmatprep.subr.mxu0 0.0
    %1353 = vmatpush1.msra.mxu0 0.0
    %1354 = vmatprep.subr.mxu0 0.0
    %1355 = vmatpush1.msra.mxu0 0.0
    %1356 = vmatprep.subr.mxu0 0.0
    %1357 = vmatpush1.msra.mxu0 0.0
    %1358 = vmatprep.subr.mxu0 0.0
    %1359 = vmatpush1.msra.mxu0 0.0
    %1360 = vmatprep.mubr.f32.mxu0 0.0
    %1361 = vmatmul.mubr.f32.gmra.mrb[0].mxu0 %v1295
    %v1362 = vpop.f32.mrb[0].mxu0
    %v1363 = vadd.f32 0.0, %v1362
    %v1364 = vpop.f32.mrb[0].mxu0
    %v1365 = vadd.f32 0.0, %v1364
    %1366 = vdwg.mxu0
    %1367 = vmatprep.subr.mxu0 %v85
    %1368 = vmatpush1.msra.mxu0 %v84
    %1369 = vmatprep.subr.mxu0 %v99
    %1370 = vmatpush1.msra.mxu0 %v98
    %1371 = vmatprep.subr.mxu0 %v113
    %1372 = vmatpush1.msra.mxu0 %v112
    %1373 = vmatprep.subr.mxu0 %v127
    %1374 = vmatpush1.msra.mxu0 %v126
    %1375 = vmatprep.subr.mxu0 %v141
    %1376 = vmatpush1.msra.mxu0 %v140
    %1377 = vmatprep.subr.mxu0 %v155
    %1378 = vmatpush1.msra.mxu0 %v154
    %1379 = vmatprep.subr.mxu0 %v169
    %1380 = vmatpush1.msra.mxu0 %v168
    %1381 = vmatprep.subr.mxu0 %v183
    %1382 = vmatpush1.msra.mxu0 %v182
    %1383 = vmatprep.subr.mxu0 %v197
    %1384 = vmatpush1.msra.mxu0 %v196
    %1385 = vmatprep.subr.mxu0 %v211
    %1386 = vmatpush1.msra.mxu0 %v210
    %1387 = vmatprep.subr.mxu0 %v225
    %1388 = vmatpush1.msra.mxu0 %v224
    %1389 = vmatprep.subr.mxu0 %v239
    %1390 = vmatpush1.msra.mxu0 %v238
    %1391 = vmatprep.subr.mxu0 %v253
    %1392 = vmatpush1.msra.mxu0 %v252
    %1393 = vmatprep.subr.mxu0 %v267
    %1394 = vmatpush1.msra.mxu0 %v266
    %1395 = vmatprep.subr.mxu0 %v281
    %1396 = vmatpush1.msra.mxu0 %v280
    %1397 = vmatprep.subr.mxu0 %v295
    %1398 = vmatpush1.msra.mxu0 %v294
    %1399 = vmatprep.subr.mxu0 0.0
    %1400 = vmatpush1.msra.mxu0 0.0
    %1401 = vmatprep.subr.mxu0 0.0
    %1402 = vmatpush1.msra.mxu0 0.0
    %1403 = vmatprep.subr.mxu0 0.0
    %1404 = vmatpush1.msra.mxu0 0.0
    %1405 = vmatprep.subr.mxu0 0.0
    %1406 = vmatpush1.msra.mxu0 0.0
    %1407 = vmatprep.subr.mxu0 0.0
    %1408 = vmatpush1.msra.mxu0 0.0
    %1409 = vmatprep.subr.mxu0 0.0
    %1410 = vmatpush1.msra.mxu0 0.0
    %1411 = vmatprep.subr.mxu0 0.0
    %1412 = vmatpush1.msra.mxu0 0.0
    %1413 = vmatprep.subr.mxu0 0.0
    %1414 = vmatpush1.msra.mxu0 0.0
    %1415 = vmatprep.subr.mxu0 0.0
    %1416 = vmatpush1.msra.mxu0 0.0
    %1417 = vmatprep.subr.mxu0 0.0
    %1418 = vmatpush1.msra.mxu0 0.0
    %1419 = vmatprep.subr.mxu0 0.0
    %1420 = vmatpush1.msra.mxu0 0.0
    %1421 = vmatprep.subr.mxu0 0.0
    %1422 = vmatpush1.msra.mxu0 0.0
    %1423 = vmatprep.subr.mxu0 0.0
    %1424 = vmatpush1.msra.mxu0 0.0
    %1425 = vmatprep.subr.mxu0 0.0
    %1426 = vmatpush1.msra.mxu0 0.0
    %1427 = vmatprep.subr.mxu0 0.0
    %1428 = vmatpush1.msra.mxu0 0.0
    %1429 = vmatprep.subr.mxu0 0.0
    %1430 = vmatpush1.msra.mxu0 0.0
    %1431 = vmatprep.mubr.f32.mxu0 0.0
    %1432 = vmatmul.mubr.f32.gmra.mrb[0].mxu0 %v1295
    %v1433 = vpop.f32.mrb[0].mxu0
    %v1434 = vadd.f32 0.0, %v1433
    %v1435 = vpop.f32.mrb[0].mxu0
    %v1436 = vadd.f32 0.0, %v1435
    %1437 = vdwg.mxu0
    %v1438 = vadd.f32 %v481, %v1363
    %v1439 = vadd.f32 %v483, %v1365
    %v1440 = vadd.f32 %v594, %v1434
    %v1441 = vadd.f32 %v596, %v1436
    %v1442 = vxor.u32 %v1438, 2147483648
    %v1443 = vxor.u32 %v1439, 2147483648
    %v1444 = vxor.u32 %v1440, 2147483648
    %v1445 = vmul.f32 %v1442, 1.442695
    %v1446 = vpow.pop %v1445
    %v1447 = vmul.f32 %v1443, 1.442695
    %v1448 = vpow.pop %v1447
    %v1449 = vmul.f32 %v1444, 1.442695
    %v1450 = vpow.pop %v1449
    %v1451 = vadd.f32 %v1446, 1.0
    %v1452 = vadd.f32 %v1448, 1.0
    %v1453 = vadd.f32 %v1450, 1.0
    %v1454 = vrcp.pop %v1451
    %v1455 = vmul.f32 1.0, %v1454
    %v1456 = vrcp.pop %v1452
    %v1457 = vmul.f32 1.0, %v1456
    %v1458 = vrcp.pop %v1453
    %v1459 = vmul.f32 1.0, %v1458
    %v1460 = vtanh.pop %v1441
    %v1461 = vmul.f32 %v1457, %v1293
    %v1462 = vmul.f32 %v1455, %v1460
    %v1463 = vadd.f32 %v1461, %v1462
    %v1464 = vtanh.pop %v1463
    %v1465 = vmul.f32 %v1459, %v1464
    %1466 = vmatprep.subr.mxu0 %v83
    %1467 = vmatpush1.msra.mxu0 %v82
    %1468 = vmatprep.subr.mxu0 %v97
    %1469 = vmatpush1.msra.mxu0 %v96
    %1470 = vmatprep.subr.mxu0 %v111
    %1471 = vmatpush1.msra.mxu0 %v110
    %1472 = vmatprep.subr.mxu0 %v125
    %1473 = vmatpush1.msra.mxu0 %v124
    %1474 = vmatprep.subr.mxu0 %v139
    %1475 = vmatpush1.msra.mxu0 %v138
    %1476 = vmatprep.subr.mxu0 %v153
    %1477 = vmatpush1.msra.mxu0 %v152
    %1478 = vmatprep.subr.mxu0 %v167
    %1479 = vmatpush1.msra.mxu0 %v166
    %1480 = vmatprep.subr.mxu0 %v181
    %1481 = vmatpush1.msra.mxu0 %v180
    %1482 = vmatprep.subr.mxu0 %v195
    %1483 = vmatpush1.msra.mxu0 %v194
    %1484 = vmatprep.subr.mxu0 %v209
    %1485 = vmatpush1.msra.mxu0 %v208
    %1486 = vmatprep.subr.mxu0 %v223
    %1487 = vmatpush1.msra.mxu0 %v222
    %1488 = vmatprep.subr.mxu0 %v237
    %1489 = vmatpush1.msra.mxu0 %v236
    %1490 = vmatprep.subr.mxu0 %v251
    %1491 = vmatpush1.msra.mxu0 %v250
    %1492 = vmatprep.subr.mxu0 %v265
    %1493 = vmatpush1.msra.mxu0 %v264
    %1494 = vmatprep.subr.mxu0 %v279
    %1495 = vmatpush1.msra.mxu0 %v278
    %1496 = vmatprep.subr.mxu0 %v293
    %1497 = vmatpush1.msra.mxu0 %v292
    %1498 = vmatprep.subr.mxu0 0.0
    %1499 = vmatpush1.msra.mxu0 0.0
    %1500 = vmatprep.subr.mxu0 0.0
    %1501 = vmatpush1.msra.mxu0 0.0
    %1502 = vmatprep.subr.mxu0 0.0
    %1503 = vmatpush1.msra.mxu0 0.0
    %1504 = vmatprep.subr.mxu0 0.0
    %1505 = vmatpush1.msra.mxu0 0.0
    %1506 = vmatprep.subr.mxu0 0.0
    %1507 = vmatpush1.msra.mxu0 0.0
    %1508 = vmatprep.subr.mxu0 0.0
    %1509 = vmatpush1.msra.mxu0 0.0
    %1510 = vmatprep.subr.mxu0 0.0
    %1511 = vmatpush1.msra.mxu0 0.0
    %1512 = vmatprep.subr.mxu0 0.0
    %1513 = vmatpush1.msra.mxu0 0.0
    %1514 = vmatprep.subr.mxu0 0.0
    %1515 = vmatpush1.msra.mxu0 0.0
    %1516 = vmatprep.subr.mxu0 0.0
    %1517 = vmatpush1.msra.mxu0 0.0
    %1518 = vmatprep.subr.mxu0 0.0
    %1519 = vmatpush1.msra.mxu0 0.0
    %1520 = vmatprep.subr.mxu0 0.0
    %1521 = vmatpush1.msra.mxu0 0.0
    %1522 = vmatprep.subr.mxu0 0.0
    %1523 = vmatpush1.msra.mxu0 0.0
    %1524 = vmatprep.subr.mxu0 0.0
    %1525 = vmatpush1.msra.mxu0 0.0
    %1526 = vmatprep.subr.mxu0 0.0
    %1527 = vmatpush1.msra.mxu0 0.0
    %1528 = vmatprep.subr.mxu0 0.0
    %1529 = vmatpush1.msra.mxu0 0.0
    %1530 = vmatprep.mubr.f32.mxu0 0.0
    %1531 = vmatmul.mubr.f32.gmra.mrb[0].mxu0 %v1465
    %v1532 = vpop.f32.mrb[0].mxu0
    %v1533 = vadd.f32 0.0, %v1532
    %v1534 = vpop.f32.mrb[0].mxu0
    %v1535 = vadd.f32 0.0, %v1534
    %1536 = vdwg.mxu0
    %1537 = vmatprep.subr.mxu0 %v85
    %1538 = vmatpush1.msra.mxu0 %v84
    %1539 = vmatprep.subr.mxu0 %v99
    %1540 = vmatpush1.msra.mxu0 %v98
    %1541 = vmatprep.subr.mxu0 %v113
    %1542 = vmatpush1.msra.mxu0 %v112
    %1543 = vmatprep.subr.mxu0 %v127
    %1544 = vmatpush1.msra.mxu0 %v126
    %1545 = vmatprep.subr.mxu0 %v141
    %1546 = vmatpush1.msra.mxu0 %v140
    %1547 = vmatprep.subr.mxu0 %v155
    %1548 = vmatpush1.msra.mxu0 %v154
    %1549 = vmatprep.subr.mxu0 %v169
    %1550 = vmatpush1.msra.mxu0 %v168
    %1551 = vmatprep.subr.mxu0 %v183
    %1552 = vmatpush1.msra.mxu0 %v182
    %1553 = vmatprep.subr.mxu0 %v197
    %1554 = vmatpush1.msra.mxu0 %v196
    %1555 = vmatprep.subr.mxu0 %v211
    %1556 = vmatpush1.msra.mxu0 %v210
    %1557 = vmatprep.subr.mxu0 %v225
    %1558 = vmatpush1.msra.mxu0 %v224
    %1559 = vmatprep.subr.mxu0 %v239
    %1560 = vmatpush1.msra.mxu0 %v238
    %1561 = vmatprep.subr.mxu0 %v253
    %1562 = vmatpush1.msra.mxu0 %v252
    %1563 = vmatprep.subr.mxu0 %v267
    %1564 = vmatpush1.msra.mxu0 %v266
    %1565 = vmatprep.subr.mxu0 %v281
    %1566 = vmatpush1.msra.mxu0 %v280
    %1567 = vmatprep.subr.mxu0 %v295
    %1568 = vmatpush1.msra.mxu0 %v294
    %1569 = vmatprep.subr.mxu0 0.0
    %1570 = vmatpush1.msra.mxu0 0.0
    %1571 = vmatprep.subr.mxu0 0.0
    %1572 = vmatpush1.msra.mxu0 0.0
    %1573 = vmatprep.subr.mxu0 0.0
    %1574 = vmatpush1.msra.mxu0 0.0
    %1575 = vmatprep.subr.mxu0 0.0
    %1576 = vmatpush1.msra.mxu0 0.0
    %1577 = vmatprep.subr.mxu0 0.0
    %1578 = vmatpush1.msra.mxu0 0.0
    %1579 = vmatprep.subr.mxu0 0.0
    %1580 = vmatpush1.msra.mxu0 0.0
    %1581 = vmatprep.subr.mxu0 0.0
    %1582 = vmatpush1.msra.mxu0 0.0
    %1583 = vmatprep.subr.mxu0 0.0
    %1584 = vmatpush1.msra.mxu0 0.0
    %1585 = vmatprep.subr.mxu0 0.0
    %1586 = vmatpush1.msra.mxu0 0.0
    %1587 = vmatprep.subr.mxu0 0.0
    %1588 = vmatpush1.msra.mxu0 0.0
    %1589 = vmatprep.subr.mxu0 0.0
    %1590 = vmatpush1.msra.mxu0 0.0
    %1591 = vmatprep.subr.mxu0 0.0
    %1592 = vmatpush1.msra.mxu0 0.0
    %1593 = vmatprep.subr.mxu0 0.0
    %1594 = vmatpush1.msra.mxu0 0.0
    %1595 = vmatprep.subr.mxu0 0.0
    %1596 = vmatpush1.msra.mxu0 0.0
    %1597 = vmatprep.subr.mxu0 0.0
    %1598 = vmatpush1.msra.mxu0 0.0
    %1599 = vmatprep.subr.mxu0 0.0
    %1600 = vmatpush1.msra.mxu0 0.0
    %1601 = vmatprep.mubr.f32.mxu0 0.0
    %1602 = vmatmul.mubr.f32.gmra.mrb[0].mxu0 %v1465
    %v1603 = vpop.f32.mrb[0].mxu0
    %v1604 = vadd.f32 0.0, %v1603
    %v1605 = vpop.f32.mrb[0].mxu0
    %v1606 = vadd.f32 0.0, %v1605
    %1607 = vdwg.mxu0
    %v1608 = vadd.f32 %v487, %v1533
    %v1609 = vadd.f32 %v489, %v1535
    %v1610 = vadd.f32 %v600, %v1604
    %v1611 = vadd.f32 %v602, %v1606
    %v1612 = vxor.u32 %v1608, 2147483648
    %v1613 = vxor.u32 %v1609, 2147483648
    %v1614 = vxor.u32 %v1610, 2147483648
    %v1615 = vmul.f32 %v1612, 1.442695
    %v1616 = vpow.pop %v1615
    %v1617 = vmul.f32 %v1613, 1.442695
    %v1618 = vpow.pop %v1617
    %v1619 = vmul.f32 %v1614, 1.442695
    %v1620 = vpow.pop %v1619
    %v1621 = vadd.f32 %v1616, 1.0
    %v1622 = vadd.f32 %v1618, 1.0
    %v1623 = vadd.f32 %v1620, 1.0
    %v1624 = vrcp.pop %v1621
    %v1625 = vmul.f32 1.0, %v1624
    %v1626 = vrcp.pop %v1622
    %v1627 = vmul.f32 1.0, %v1626
    %v1628 = vrcp.pop %v1623
    %v1629 = vmul.f32 1.0, %v1628
    %v1630 = vtanh.pop %v1611
    %v1631 = vmul.f32 %v1627, %v1463
    %v1632 = vmul.f32 %v1625, %v1630
    %v1633 = vadd.f32 %v1631, %v1632
    %v1634 = vtanh.pop %v1633
    %v1635 = vmul.f32 %v1629, %v1634
    %1636 = vmatprep.subr.mxu0 %v83
    %1637 = vmatpush1.msra.mxu0 %v82
    %1638 = vmatprep.subr.mxu0 %v97
    %1639 = vmatpush1.msra.mxu0 %v96
    %1640 = vmatprep.subr.mxu0 %v111
    %1641 = vmatpush1.msra.mxu0 %v110
    %1642 = vmatprep.subr.mxu0 %v125
    %1643 = vmatpush1.msra.mxu0 %v124
    %1644 = vmatprep.subr.mxu0 %v139
    %1645 = vmatpush1.msra.mxu0 %v138
    %1646 = vmatprep.subr.mxu0 %v153
    %1647 = vmatpush1.msra.mxu0 %v152
    %1648 = vmatprep.subr.mxu0 %v167
    %1649 = vmatpush1.msra.mxu0 %v166
    %1650 = vmatprep.subr.mxu0 %v181
    %1651 = vmatpush1.msra.mxu0 %v180
    %1652 = vmatprep.subr.mxu0 %v195
    %1653 = vmatpush1.msra.mxu0 %v194
    %1654 = vmatprep.subr.mxu0 %v209
    %1655 = vmatpush1.msra.mxu0 %v208
    %1656 = vmatprep.subr.mxu0 %v223
    %1657 = vmatpush1.msra.mxu0 %v222
    %1658 = vmatprep.subr.mxu0 %v237
    %1659 = vmatpush1.msra.mxu0 %v236
    %1660 = vmatprep.subr.mxu0 %v251
    %1661 = vmatpush1.msra.mxu0 %v250
    %1662 = vmatprep.subr.mxu0 %v265
    %1663 = vmatpush1.msra.mxu0 %v264
    %1664 = vmatprep.subr.mxu0 %v279
    %1665 = vmatpush1.msra.mxu0 %v278
    %1666 = vmatprep.subr.mxu0 %v293
    %1667 = vmatpush1.msra.mxu0 %v292
    %1668 = vmatprep.subr.mxu0 0.0
    %1669 = vmatpush1.msra.mxu0 0.0
    %1670 = vmatprep.subr.mxu0 0.0
    %1671 = vmatpush1.msra.mxu0 0.0
    %1672 = vmatprep.subr.mxu0 0.0
    %1673 = vmatpush1.msra.mxu0 0.0
    %1674 = vmatprep.subr.mxu0 0.0
    %1675 = vmatpush1.msra.mxu0 0.0
    %1676 = vmatprep.subr.mxu0 0.0
    %1677 = vmatpush1.msra.mxu0 0.0
    %1678 = vmatprep.subr.mxu0 0.0
    %1679 = vmatpush1.msra.mxu0 0.0
    %1680 = vmatprep.subr.mxu0 0.0
    %1681 = vmatpush1.msra.mxu0 0.0
    %1682 = vmatprep.subr.mxu0 0.0
    %1683 = vmatpush1.msra.mxu0 0.0
    %1684 = vmatprep.subr.mxu0 0.0
    %1685 = vmatpush1.msra.mxu0 0.0
    %1686 = vmatprep.subr.mxu0 0.0
    %1687 = vmatpush1.msra.mxu0 0.0
    %1688 = vmatprep.subr.mxu0 0.0
    %1689 = vmatpush1.msra.mxu0 0.0
    %1690 = vmatprep.subr.mxu0 0.0
    %1691 = vmatpush1.msra.mxu0 0.0
    %1692 = vmatprep.subr.mxu0 0.0
    %1693 = vmatpush1.msra.mxu0 0.0
    %1694 = vmatprep.subr.mxu0 0.0
    %1695 = vmatpush1.msra.mxu0 0.0
    %1696 = vmatprep.subr.mxu0 0.0
    %1697 = vmatpush1.msra.mxu0 0.0
    %1698 = vmatprep.subr.mxu0 0.0
    %1699 = vmatpush1.msra.mxu0 0.0
    %1700 = vmatprep.mubr.f32.mxu0 0.0
    %1701 = vmatmul.mubr.f32.gmra.mrb[0].mxu0 %v1635
    %v1702 = vpop.f32.mrb[0].mxu0
    %v1703 = vadd.f32 0.0, %v1702
    %v1704 = vpop.f32.mrb[0].mxu0
    %v1705 = vadd.f32 0.0, %v1704
    %1706 = vdwg.mxu0
    %1707 = vmatprep.subr.mxu0 %v85
    %1708 = vmatpush1.msra.mxu0 %v84
    %1709 = vmatprep.subr.mxu0 %v99
    %1710 = vmatpush1.msra.mxu0 %v98
    %1711 = vmatprep.subr.mxu0 %v113
    %1712 = vmatpush1.msra.mxu0 %v112
    %1713 = vmatprep.subr.mxu0 %v127
    %1714 = vmatpush1.msra.mxu0 %v126
    %1715 = vmatprep.subr.mxu0 %v141
    %1716 = vmatpush1.msra.mxu0 %v140
    %1717 = vmatprep.subr.mxu0 %v155
    %1718 = vmatpush1.msra.mxu0 %v154
    %1719 = vmatprep.subr.mxu0 %v169
    %1720 = vmatpush1.msra.mxu0 %v168
    %1721 = vmatprep.subr.mxu0 %v183
    %1722 = vmatpush1.msra.mxu0 %v182
    %1723 = vmatprep.subr.mxu0 %v197
    %1724 = vmatpush1.msra.mxu0 %v196
    %1725 = vmatprep.subr.mxu0 %v211
    %1726 = vmatpush1.msra.mxu0 %v210
    %1727 = vmatprep.subr.mxu0 %v225
    %1728 = vmatpush1.msra.mxu0 %v224
    %1729 = vmatprep.subr.mxu0 %v239
    %1730 = vmatpush1.msra.mxu0 %v238
    %1731 = vmatprep.subr.mxu0 %v253
    %1732 = vmatpush1.msra.mxu0 %v252
    %1733 = vmatprep.subr.mxu0 %v267
    %1734 = vmatpush1.msra.mxu0 %v266
    %1735 = vmatprep.subr.mxu0 %v281
    %1736 = vmatpush1.msra.mxu0 %v280
    %1737 = vmatprep.subr.mxu0 %v295
    %1738 = vmatpush1.msra.mxu0 %v294
    %1739 = vmatprep.subr.mxu0 0.0
    %1740 = vmatpush1.msra.mxu0 0.0
    %1741 = vmatprep.subr.mxu0 0.0
    %1742 = vmatpush1.msra.mxu0 0.0
    %1743 = vmatprep.subr.mxu0 0.0
    %1744 = vmatpush1.msra.mxu0 0.0
    %1745 = vmatprep.subr.mxu0 0.0
    %1746 = vmatpush1.msra.mxu0 0.0
    %1747 = vmatprep.subr.mxu0 0.0
    %1748 = vmatpush1.msra.mxu0 0.0
    %1749 = vmatprep.subr.mxu0 0.0
    %1750 = vmatpush1.msra.mxu0 0.0
    %1751 = vmatprep.subr.mxu0 0.0
    %1752 = vmatpush1.msra.mxu0 0.0
    %1753 = vmatprep.subr.mxu0 0.0
    %1754 = vmatpush1.msra.mxu0 0.0
    %1755 = vmatprep.subr.mxu0 0.0
    %1756 = vmatpush1.msra.mxu0 0.0
    %1757 = vmatprep.subr.mxu0 0.0
    %1758 = vmatpush1.msra.mxu0 0.0
    %1759 = vmatprep.subr.mxu0 0.0
    %1760 = vmatpush1.msra.mxu0 0.0
    %1761 = vmatprep.subr.mxu0 0.0
    %1762 = vmatpush1.msra.mxu0 0.0
    %1763 = vmatprep.subr.mxu0 0.0
    %1764 = vmatpush1.msra.mxu0 0.0
    %1765 = vmatprep.subr.mxu0 0.0
    %1766 = vmatpush1.msra.mxu0 0.0
    %1767 = vmatprep.subr.mxu0 0.0
    %1768 = vmatpush1.msra.mxu0 0.0
    %1769 = vmatprep.subr.mxu0 0.0
    %1770 = vmatpush1.msra.mxu0 0.0
    %1771 = vmatprep.mubr.f32.mxu0 0.0
    %1772 = vmatmul.mubr.f32.gmra.mrb[0].mxu0 %v1635
    %v1773 = vpop.f32.mrb[0].mxu0
    %v1774 = vadd.f32 0.0, %v1773
    %v1775 = vpop.f32.mrb[0].mxu0
    %v1776 = vadd.f32 0.0, %v1775
    %1777 = vdwg.mxu0
    %v1778 = vadd.f32 %v493, %v1703
    %v1779 = vadd.f32 %v495, %v1705
    %v1780 = vadd.f32 %v606, %v1774
    %v1781 = vadd.f32 %v608, %v1776
    %v1782 = vxor.u32 %v1778, 2147483648
    %v1783 = vxor.u32 %v1779, 2147483648
    %v1784 = vxor.u32 %v1780, 2147483648
    %v1785 = vmul.f32 %v1782, 1.442695
    %v1786 = vpow.pop %v1785
    %v1787 = vmul.f32 %v1783, 1.442695
    %v1788 = vpow.pop %v1787
    %v1789 = vmul.f32 %v1784, 1.442695
    %v1790 = vpow.pop %v1789
    %v1791 = vadd.f32 %v1786, 1.0
    %v1792 = vadd.f32 %v1788, 1.0
    %v1793 = vadd.f32 %v1790, 1.0
    %v1794 = vrcp.pop %v1791
    %v1795 = vmul.f32 1.0, %v1794
    %v1796 = vrcp.pop %v1792
    %v1797 = vmul.f32 1.0, %v1796
    %v1798 = vrcp.pop %v1793
    %v1799 = vmul.f32 1.0, %v1798
    %v1800 = vtanh.pop %v1781
    %v1801 = vmul.f32 %v1797, %v1633
    %v1802 = vmul.f32 %v1795, %v1800
    %v1803 = vadd.f32 %v1801, %v1802
    %v1804 = vtanh.pop %v1803
    %v1805 = vmul.f32 %v1799, %v1804
    %1806 = vmatprep.subr.mxu0 %v83
    %1807 = vmatpush1.msra.mxu0 %v82
    %1808 = vmatprep.subr.mxu0 %v97
    %1809 = vmatpush1.msra.mxu0 %v96
    %1810 = vmatprep.subr.mxu0 %v111
    %1811 = vmatpush1.msra.mxu0 %v110
    %1812 = vmatprep.subr.mxu0 %v125
    %1813 = vmatpush1.msra.mxu0 %v124
    %1814 = vmatprep.subr.mxu0 %v139
    %1815 = vmatpush1.msra.mxu0 %v138
    %1816 = vmatprep.subr.mxu0 %v153
    %1817 = vmatpush1.msra.mxu0 %v152
    %1818 = vmatprep.subr.mxu0 %v167
    %1819 = vmatpush1.msra.mxu0 %v166
    %1820 = vmatprep.subr.mxu0 %v181
    %1821 = vmatpush1.msra.mxu0 %v180
    %1822 = vmatprep.subr.mxu0 %v195
    %1823 = vmatpush1.msra.mxu0 %v194
    %1824 = vmatprep.subr.mxu0 %v209
    %1825 = vmatpush1.msra.mxu0 %v208
    %1826 = vmatprep.subr.mxu0 %v223
    %1827 = vmatpush1.msra.mxu0 %v222
    %1828 = vmatprep.subr.mxu0 %v237
    %1829 = vmatpush1.msra.mxu0 %v236
    %1830 = vmatprep.subr.mxu0 %v251
    %1831 = vmatpush1.msra.mxu0 %v250
    %1832 = vmatprep.subr.mxu0 %v265
    %1833 = vmatpush1.msra.mxu0 %v264
    %1834 = vmatprep.subr.mxu0 %v279
    %1835 = vmatpush1.msra.mxu0 %v278
    %1836 = vmatprep.subr.mxu0 %v293
    %1837 = vmatpush1.msra.mxu0 %v292
    %1838 = vmatprep.subr.mxu0 0.0
    %1839 = vmatpush1.msra.mxu0 0.0
    %1840 = vmatprep.subr.mxu0 0.0
    %1841 = vmatpush1.msra.mxu0 0.0
    %1842 = vmatprep.subr.mxu0 0.0
    %1843 = vmatpush1.msra.mxu0 0.0
    %1844 = vmatprep.subr.mxu0 0.0
    %1845 = vmatpush1.msra.mxu0 0.0
    %1846 = vmatprep.subr.mxu0 0.0
    %1847 = vmatpush1.msra.mxu0 0.0
    %1848 = vmatprep.subr.mxu0 0.0
    %1849 = vmatpush1.msra.mxu0 0.0
    %1850 = vmatprep.subr.mxu0 0.0
    %1851 = vmatpush1.msra.mxu0 0.0
    %1852 = vmatprep.subr.mxu0 0.0
    %1853 = vmatpush1.msra.mxu0 0.0
    %1854 = vmatprep.subr.mxu0 0.0
    %1855 = vmatpush1.msra.mxu0 0.0
    %1856 = vmatprep.subr.mxu0 0.0
    %1857 = vmatpush1.msra.mxu0 0.0
    %1858 = vmatprep.subr.mxu0 0.0
    %1859 = vmatpush1.msra.mxu0 0.0
    %1860 = vmatprep.subr.mxu0 0.0
    %1861 = vmatpush1.msra.mxu0 0.0
    %1862 = vmatprep.subr.mxu0 0.0
    %1863 = vmatpush1.msra.mxu0 0.0
    %1864 = vmatprep.subr.mxu0 0.0
    %1865 = vmatpush1.msra.mxu0 0.0
    %1866 = vmatprep.subr.mxu0 0.0
    %1867 = vmatpush1.msra.mxu0 0.0
    %1868 = vmatprep.subr.mxu0 0.0
    %1869 = vmatpush1.msra.mxu0 0.0
    %1870 = vmatprep.mubr.f32.mxu0 0.0
    %1871 = vmatmul.mubr.f32.gmra.mrb[0].mxu0 %v1805
    %v1872 = vpop.f32.mrb[0].mxu0
    %v1873 = vadd.f32 0.0, %v1872
    %v1874 = vpop.f32.mrb[0].mxu0
    %v1875 = vadd.f32 0.0, %v1874
    %1876 = vdwg.mxu0
    %1877 = vmatprep.subr.mxu0 %v85
    %1878 = vmatpush1.msra.mxu0 %v84
    %1879 = vmatprep.subr.mxu0 %v99
    %1880 = vmatpush1.msra.mxu0 %v98
    %1881 = vmatprep.subr.mxu0 %v113
    %1882 = vmatpush1.msra.mxu0 %v112
    %1883 = vmatprep.subr.mxu0 %v127
    %1884 = vmatpush1.msra.mxu0 %v126
    %1885 = vmatprep.subr.mxu0 %v141
    %1886 = vmatpush1.msra.mxu0 %v140
    %1887 = vmatprep.subr.mxu0 %v155
    %1888 = vmatpush1.msra.mxu0 %v154
    %1889 = vmatprep.subr.mxu0 %v169
    %1890 = vmatpush1.msra.mxu0 %v168
    %1891 = vmatprep.subr.mxu0 %v183
    %1892 = vmatpush1.msra.mxu0 %v182
    %1893 = vmatprep.subr.mxu0 %v197
    %1894 = vmatpush1.msra.mxu0 %v196
    %1895 = vmatprep.subr.mxu0 %v211
    %1896 = vmatpush1.msra.mxu0 %v210
    %1897 = vmatprep.subr.mxu0 %v225
    %1898 = vmatpush1.msra.mxu0 %v224
    %1899 = vmatprep.subr.mxu0 %v239
    %1900 = vmatpush1.msra.mxu0 %v238
    %1901 = vmatprep.subr.mxu0 %v253
    %1902 = vmatpush1.msra.mxu0 %v252
    %1903 = vmatprep.subr.mxu0 %v267
    %1904 = vmatpush1.msra.mxu0 %v266
    %1905 = vmatprep.subr.mxu0 %v281
    %1906 = vmatpush1.msra.mxu0 %v280
    %1907 = vmatprep.subr.mxu0 %v295
    %1908 = vmatpush1.msra.mxu0 %v294
    %1909 = vmatprep.subr.mxu0 0.0
    %1910 = vmatpush1.msra.mxu0 0.0
    %1911 = vmatprep.subr.mxu0 0.0
    %1912 = vmatpush1.msra.mxu0 0.0
    %1913 = vmatprep.subr.mxu0 0.0
    %1914 = vmatpush1.msra.mxu0 0.0
    %1915 = vmatprep.subr.mxu0 0.0
    %1916 = vmatpush1.msra.mxu0 0.0
    %1917 = vmatprep.subr.mxu0 0.0
    %1918 = vmatpush1.msra.mxu0 0.0
    %1919 = vmatprep.subr.mxu0 0.0
    %1920 = vmatpush1.msra.mxu0 0.0
    %1921 = vmatprep.subr.mxu0 0.0
    %1922 = vmatpush1.msra.mxu0 0.0
    %1923 = vmatprep.subr.mxu0 0.0
    %1924 = vmatpush1.msra.mxu0 0.0
    %1925 = vmatprep.subr.mxu0 0.0
    %1926 = vmatpush1.msra.mxu0 0.0
    %1927 = vmatprep.subr.mxu0 0.0
    %1928 = vmatpush1.msra.mxu0 0.0
    %1929 = vmatprep.subr.mxu0 0.0
    %1930 = vmatpush1.msra.mxu0 0.0
    %1931 = vmatprep.subr.mxu0 0.0
    %1932 = vmatpush1.msra.mxu0 0.0
    %1933 = vmatprep.subr.mxu0 0.0
    %1934 = vmatpush1.msra.mxu0 0.0
    %1935 = vmatprep.subr.mxu0 0.0
    %1936 = vmatpush1.msra.mxu0 0.0
    %1937 = vmatprep.subr.mxu0 0.0
    %1938 = vmatpush1.msra.mxu0 0.0
    %1939 = vmatprep.subr.mxu0 0.0
    %1940 = vmatpush1.msra.mxu0 0.0
    %1941 = vmatprep.mubr.f32.mxu0 0.0
    %1942 = vmatmul.mubr.f32.gmra.mrb[0].mxu0 %v1805
    %v1943 = vpop.f32.mrb[0].mxu0
    %v1944 = vadd.f32 0.0, %v1943
    %v1945 = vpop.f32.mrb[0].mxu0
    %v1946 = vadd.f32 0.0, %v1945
    %1947 = vdwg.mxu0
    %v1948 = vadd.f32 %v499, %v1873
    %v1949 = vadd.f32 %v501, %v1875
    %v1950 = vadd.f32 %v612, %v1944
    %v1951 = vadd.f32 %v614, %v1946
    %v1952 = vxor.u32 %v1948, 2147483648
    %v1953 = vxor.u32 %v1949, 2147483648
    %v1954 = vxor.u32 %v1950, 2147483648
    %v1955 = vmul.f32 %v1952, 1.442695
    %v1956 = vpow.pop %v1955
    %v1957 = vmul.f32 %v1953, 1.442695
    %v1958 = vpow.pop %v1957
    %v1959 = vmul.f32 %v1954, 1.442695
    %v1960 = vpow.pop %v1959
    %v1961 = vadd.f32 %v1956, 1.0
    %v1962 = vadd.f32 %v1958, 1.0
    %v1963 = vadd.f32 %v1960, 1.0
    %v1964 = vrcp.pop %v1961
    %v1965 = vmul.f32 1.0, %v1964
    %v1966 = vrcp.pop %v1962
    %v1967 = vmul.f32 1.0, %v1966
    %v1968 = vrcp.pop %v1963
    %v1969 = vmul.f32 1.0, %v1968
    %v1970 = vtanh.pop %v1951
    %v1971 = vmul.f32 %v1967, %v1803
    %v1972 = vmul.f32 %v1965, %v1970
    %v1973 = vadd.f32 %v1971, %v1972
    %v1974 = vtanh.pop %v1973
    %v1975 = vmul.f32 %v1969, %v1974
    %v1976 = vld [vmem:[%s1] sm:$0xff]
    %v1977 = vlaneseq
    %v1978 = vshrl.u32 %v1977, 7
    %v1979 = vsub.s32 0, %v1978
    %v1980 = vrot.slane %v306, %v1979
    %1981 = vmatprep.subr.mxu0 0.0
    %1982 = vmatpush1.msra.mxu0 %v95
    %1983 = vmatprep.subr.mxu0 0.0
    %1984 = vmatpush1.msra.mxu0 %v109
    %1985 = vmatprep.subr.mxu0 0.0
    %1986 = vmatpush1.msra.mxu0 %v123
    %1987 = vmatprep.subr.mxu0 0.0
    %1988 = vmatpush1.msra.mxu0 %v137
    %1989 = vmatprep.subr.mxu0 0.0
    %1990 = vmatpush1.msra.mxu0 %v151
    %1991 = vmatprep.subr.mxu0 0.0
    %1992 = vmatpush1.msra.mxu0 %v165
    %1993 = vmatprep.subr.mxu0 0.0
    %1994 = vmatpush1.msra.mxu0 %v179
    %1995 = vmatprep.subr.mxu0 0.0
    %1996 = vmatpush1.msra.mxu0 %v193
    %1997 = vmatprep.subr.mxu0 0.0
    %1998 = vmatpush1.msra.mxu0 %v207
    %1999 = vmatprep.subr.mxu0 0.0
    %2000 = vmatpush1.msra.mxu0 %v221
    %2001 = vmatprep.subr.mxu0 0.0
    %2002 = vmatpush1.msra.mxu0 %v235
    %2003 = vmatprep.subr.mxu0 0.0
    %2004 = vmatpush1.msra.mxu0 %v249
    %2005 = vmatprep.subr.mxu0 0.0
    %2006 = vmatpush1.msra.mxu0 %v263
    %2007 = vmatprep.subr.mxu0 0.0
    %2008 = vmatpush1.msra.mxu0 %v277
    %2009 = vmatprep.subr.mxu0 0.0
    %2010 = vmatpush1.msra.mxu0 %v291
    %2011 = vmatprep.subr.mxu0 0.0
    %2012 = vmatpush1.msra.mxu0 %v305
    %2013 = vmatprep.subr.mxu0 0.0
    %2014 = vmatpush1.msra.mxu0 0.0
    %2015 = vmatprep.subr.mxu0 0.0
    %2016 = vmatpush1.msra.mxu0 0.0
    %2017 = vmatprep.subr.mxu0 0.0
    %2018 = vmatpush1.msra.mxu0 0.0
    %2019 = vmatprep.subr.mxu0 0.0
    %2020 = vmatpush1.msra.mxu0 0.0
    %2021 = vmatprep.subr.mxu0 0.0
    %2022 = vmatpush1.msra.mxu0 0.0
    %2023 = vmatprep.subr.mxu0 0.0
    %2024 = vmatpush1.msra.mxu0 0.0
    %2025 = vmatprep.subr.mxu0 0.0
    %2026 = vmatpush1.msra.mxu0 0.0
    %2027 = vmatprep.subr.mxu0 0.0
    %2028 = vmatpush1.msra.mxu0 0.0
    %2029 = vmatprep.subr.mxu0 0.0
    %2030 = vmatpush1.msra.mxu0 0.0
    %2031 = vmatprep.subr.mxu0 0.0
    %2032 = vmatpush1.msra.mxu0 0.0
    %2033 = vmatprep.subr.mxu0 0.0
    %2034 = vmatpush1.msra.mxu0 0.0
    %2035 = vmatprep.subr.mxu0 0.0
    %2036 = vmatpush1.msra.mxu0 0.0
    %2037 = vmatprep.subr.mxu0 0.0
    %2038 = vmatpush1.msra.mxu0 0.0
    %2039 = vmatprep.subr.mxu0 0.0
    %2040 = vmatpush1.msra.mxu0 0.0
    %2041 = vmatprep.subr.mxu0 0.0
    %2042 = vmatpush1.msra.mxu0 0.0
    %2043 = vmatprep.subr.mxu0 0.0
    %2044 = vmatpush1.msra.mxu0 0.0
    %2045 = vmatprep.mubr.f32.mxu0 0.0
    %2046 = vmatmul.mubr.f32.gmra.mrb[0].mxu0 %v1976
    %v2047 = vpop.f32.mrb[0].mxu0
    %v2048 = vadd.f32 %v1980, %v2047
    %v2049 = vpop.f32.mrb[0].mxu0
    %2050 = vdwg.mxu0
    %v2051 = vmax.f32 %v2048, 0.0
    %2052 = vmatprep.subr.mxu0 %v94
    %2053 = vmatpush1.msra.mxu0 %v93
    %2054 = vmatprep.subr.mxu0 %v108
    %2055 = vmatpush1.msra.mxu0 %v107
    %2056 = vmatprep.subr.mxu0 %v122
    %2057 = vmatpush1.msra.mxu0 %v121
    %2058 = vmatprep.subr.mxu0 %v136
    %2059 = vmatpush1.msra.mxu0 %v135
    %2060 = vmatprep.subr.mxu0 %v150
    %2061 = vmatpush1.msra.mxu0 %v149
    %2062 = vmatprep.subr.mxu0 %v164
    %2063 = vmatpush1.msra.mxu0 %v163
    %2064 = vmatprep.subr.mxu0 %v178
    %2065 = vmatpush1.msra.mxu0 %v177
    %2066 = vmatprep.subr.mxu0 %v192
    %2067 = vmatpush1.msra.mxu0 %v191
    %2068 = vmatprep.subr.mxu0 %v206
    %2069 = vmatpush1.msra.mxu0 %v205
    %2070 = vmatprep.subr.mxu0 %v220
    %2071 = vmatpush1.msra.mxu0 %v219
    %2072 = vmatprep.subr.mxu0 %v234
    %2073 = vmatpush1.msra.mxu0 %v233
    %2074 = vmatprep.subr.mxu0 %v248
    %2075 = vmatpush1.msra.mxu0 %v247
    %2076 = vmatprep.subr.mxu0 %v262
    %2077 = vmatpush1.msra.mxu0 %v261
    %2078 = vmatprep.subr.mxu0 %v276
    %2079 = vmatpush1.msra.mxu0 %v275
    %2080 = vmatprep.subr.mxu0 %v290
    %2081 = vmatpush1.msra.mxu0 %v289
    %2082 = vmatprep.subr.mxu0 %v304
    %2083 = vmatpush1.msra.mxu0 %v303
    %2084 = vmatprep.subr.mxu0 0.0
    %2085 = vmatpush1.msra.mxu0 0.0
    %2086 = vmatprep.subr.mxu0 0.0
    %2087 = vmatpush1.msra.mxu0 0.0
    %2088 = vmatprep.subr.mxu0 0.0
    %2089 = vmatpush1.msra.mxu0 0.0
    %2090 = vmatprep.subr.mxu0 0.0
    %2091 = vmatpush1.msra.mxu0 0.0
    %2092 = vmatprep.subr.mxu0 0.0
    %2093 = vmatpush1.msra.mxu0 0.0
    %2094 = vmatprep.subr.mxu0 0.0
    %2095 = vmatpush1.msra.mxu0 0.0
    %2096 = vmatprep.subr.mxu0 0.0
    %2097 = vmatpush1.msra.mxu0 0.0
    %2098 = vmatprep.subr.mxu0 0.0
    %2099 = vmatpush1.msra.mxu0 0.0
    %2100 = vmatprep.subr.mxu0 0.0
    %2101 = vmatpush1.msra.mxu0 0.0
    %2102 = vmatprep.subr.mxu0 0.0
    %2103 = vmatpush1.msra.mxu0 0.0
    %2104 = vmatprep.subr.mxu0 0.0
    %2105 = vmatpush1.msra.mxu0 0.0
    %2106 = vmatprep.subr.mxu0 0.0
    %2107 = vmatpush1.msra.mxu0 0.0
    %2108 = vmatprep.subr.mxu0 0.0
    %2109 = vmatpush1.msra.mxu0 0.0
    %2110 = vmatprep.subr.mxu0 0.0
    %2111 = vmatpush1.msra.mxu0 0.0
    %2112 = vmatprep.subr.mxu0 0.0
    %2113 = vmatpush1.msra.mxu0 0.0
    %2114 = vmatprep.subr.mxu0 0.0
    %2115 = vmatpush1.msra.mxu0 0.0
    %2116 = vmatprep.mubr.f32.mxu0 0.0
    %2117 = vmatmul.mubr.f32.gmra.mrb[0].mxu0 %v2051
    %v2118 = vpop.f32.mrb[0].mxu0
    %v2119 = vadd.f32 0.0, %v2118
    %v2120 = vpop.f32.mrb[0].mxu0
    %v2121 = vadd.f32 0.0, %v2120
    %2122 = vdwg.mxu0
    %2123 = vmatprep.subr.mxu0 %v92
    %2124 = vmatpush1.msra.mxu0 %v91
    %2125 = vmatprep.subr.mxu0 %v106
    %2126 = vmatpush1.msra.mxu0 %v105
    %2127 = vmatprep.subr.mxu0 %v120
    %2128 = vmatpush1.msra.mxu0 %v119
    %2129 = vmatprep.subr.mxu0 %v134
    %2130 = vmatpush1.msra.mxu0 %v133
    %2131 = vmatprep.subr.mxu0 %v148
    %2132 = vmatpush1.msra.mxu0 %v147
    %2133 = vmatprep.subr.mxu0 %v162
    %2134 = vmatpush1.msra.mxu0 %v161
    %2135 = vmatprep.subr.mxu0 %v176
    %2136 = vmatpush1.msra.mxu0 %v175
    %2137 = vmatprep.subr.mxu0 %v190
    %2138 = vmatpush1.msra.mxu0 %v189
    %2139 = vmatprep.subr.mxu0 %v204
    %2140 = vmatpush1.msra.mxu0 %v203
    %2141 = vmatprep.subr.mxu0 %v218
    %2142 = vmatpush1.msra.mxu0 %v217
    %2143 = vmatprep.subr.mxu0 %v232
    %2144 = vmatpush1.msra.mxu0 %v231
    %2145 = vmatprep.subr.mxu0 %v246
    %2146 = vmatpush1.msra.mxu0 %v245
    %2147 = vmatprep.subr.mxu0 %v260
    %2148 = vmatpush1.msra.mxu0 %v259
    %2149 = vmatprep.subr.mxu0 %v274
    %2150 = vmatpush1.msra.mxu0 %v273
    %2151 = vmatprep.subr.mxu0 %v288
    %2152 = vmatpush1.msra.mxu0 %v287
    %2153 = vmatprep.subr.mxu0 %v302
    %2154 = vmatpush1.msra.mxu0 %v301
    %2155 = vmatprep.subr.mxu0 0.0
    %2156 = vmatpush1.msra.mxu0 0.0
    %2157 = vmatprep.subr.mxu0 0.0
    %2158 = vmatpush1.msra.mxu0 0.0
    %2159 = vmatprep.subr.mxu0 0.0
    %2160 = vmatpush1.msra.mxu0 0.0
    %2161 = vmatprep.subr.mxu0 0.0
    %2162 = vmatpush1.msra.mxu0 0.0
    %2163 = vmatprep.subr.mxu0 0.0
    %2164 = vmatpush1.msra.mxu0 0.0
    %2165 = vmatprep.subr.mxu0 0.0
    %2166 = vmatpush1.msra.mxu0 0.0
    %2167 = vmatprep.subr.mxu0 0.0
    %2168 = vmatpush1.msra.mxu0 0.0
    %2169 = vmatprep.subr.mxu0 0.0
    %2170 = vmatpush1.msra.mxu0 0.0
    %2171 = vmatprep.subr.mxu0 0.0
    %2172 = vmatpush1.msra.mxu0 0.0
    %2173 = vmatprep.subr.mxu0 0.0
    %2174 = vmatpush1.msra.mxu0 0.0
    %2175 = vmatprep.subr.mxu0 0.0
    %2176 = vmatpush1.msra.mxu0 0.0
    %2177 = vmatprep.subr.mxu0 0.0
    %2178 = vmatpush1.msra.mxu0 0.0
    %2179 = vmatprep.subr.mxu0 0.0
    %2180 = vmatpush1.msra.mxu0 0.0
    %2181 = vmatprep.subr.mxu0 0.0
    %2182 = vmatpush1.msra.mxu0 0.0
    %2183 = vmatprep.subr.mxu0 0.0
    %2184 = vmatpush1.msra.mxu0 0.0
    %2185 = vmatprep.subr.mxu0 0.0
    %2186 = vmatpush1.msra.mxu0 0.0
    %2187 = vmatprep.mubr.f32.mxu0 0.0
    %2188 = vmatmul.mubr.f32.gmra.mrb[0].mxu0 %v1975
    %v2189 = vpop.f32.mrb[0].mxu0
    %v2190 = vadd.f32 %v2119, %v2189
    %v2191 = vpop.f32.mrb[0].mxu0
    %v2192 = vadd.f32 %v2121, %v2191
    %2193 = vdwg.mxu0
    %v2194 = vlaneseq
    %v2195 = vshrl.u32 %v2194, 7
    %v2196 = vsub.s32 1, %v2195
    %v2197 = vrot.slane %v306, %v2196
    %v2198 = vadd.f32 %v2190, %v2197
    %2199 = vst [vmem:[%s5] sm:$0xff] %v2198
    %v2200 = vlaneseq
    %v2201 = vshrl.u32 %v2200, 7
    %v2202 = vsub.s32 2, %v2201
    %v2203 = vrot.slane %v306, %v2202
    %v2204 = vadd.f32 %v2192, %v2203
    %v2205 = vmax.f32 %v2204, 0.0
    %vm2206 = vcmp.eq.s32.totalorder %v308, 1
    %v2207 = vsel %vm2206, 1, 0
    %v2208 = vcvt.s32.f32 %v2207
    %2209 = vmatprep.subr.mxu0 %v87
    %2210 = vmatpush1.msra.mxu0 %v86
    %2211 = vmatprep.subr.mxu0 %v101
    %2212 = vmatpush1.msra.mxu0 %v100
    %2213 = vmatprep.subr.mxu0 %v115
    %2214 = vmatpush1.msra.mxu0 %v114
    %2215 = vmatprep.subr.mxu0 %v129
    %2216 = vmatpush1.msra.mxu0 %v128
    %2217 = vmatprep.subr.mxu0 %v143
    %2218 = vmatpush1.msra.mxu0 %v142
    %2219 = vmatprep.subr.mxu0 %v157
    %2220 = vmatpush1.msra.mxu0 %v156
    %2221 = vmatprep.subr.mxu0 %v171
    %2222 = vmatpush1.msra.mxu0 %v170
    %2223 = vmatprep.subr.mxu0 %v185
    %2224 = vmatpush1.msra.mxu0 %v184
    %2225 = vmatprep.subr.mxu0 %v199
    %2226 = vmatpush1.msra.mxu0 %v198
    %2227 = vmatprep.subr.mxu0 %v213
    %2228 = vmatpush1.msra.mxu0 %v212
    %2229 = vmatprep.subr.mxu0 %v227
    %2230 = vmatpush1.msra.mxu0 %v226
    %2231 = vmatprep.subr.mxu0 %v241
    %2232 = vmatpush1.msra.mxu0 %v240
    %2233 = vmatprep.subr.mxu0 %v255
    %2234 = vmatpush1.msra.mxu0 %v254
    %2235 = vmatprep.subr.mxu0 %v269
    %2236 = vmatpush1.msra.mxu0 %v268
    %2237 = vmatprep.subr.mxu0 %v283
    %2238 = vmatpush1.msra.mxu0 %v282
    %2239 = vmatprep.subr.mxu0 %v297
    %2240 = vmatpush1.msra.mxu0 %v296
    %2241 = vmatprep.subr.mxu0 0.0
    %2242 = vmatpush1.msra.mxu0 0.0
    %2243 = vmatprep.subr.mxu0 0.0
    %2244 = vmatpush1.msra.mxu0 0.0
    %2245 = vmatprep.subr.mxu0 0.0
    %2246 = vmatpush1.msra.mxu0 0.0
    %2247 = vmatprep.subr.mxu0 0.0
    %2248 = vmatpush1.msra.mxu0 0.0
    %2249 = vmatprep.subr.mxu0 0.0
    %2250 = vmatpush1.msra.mxu0 0.0
    %2251 = vmatprep.subr.mxu0 0.0
    %2252 = vmatpush1.msra.mxu0 0.0
    %2253 = vmatprep.subr.mxu0 0.0
    %2254 = vmatpush1.msra.mxu0 0.0
    %2255 = vmatprep.subr.mxu0 0.0
    %2256 = vmatpush1.msra.mxu0 0.0
    %2257 = vmatprep.subr.mxu0 0.0
    %2258 = vmatpush1.msra.mxu0 0.0
    %2259 = vmatprep.subr.mxu0 0.0
    %2260 = vmatpush1.msra.mxu0 0.0
    %2261 = vmatprep.subr.mxu0 0.0
    %2262 = vmatpush1.msra.mxu0 0.0
    %2263 = vmatprep.subr.mxu0 0.0
    %2264 = vmatpush1.msra.mxu0 0.0
    %2265 = vmatprep.subr.mxu0 0.0
    %2266 = vmatpush1.msra.mxu0 0.0
    %2267 = vmatprep.subr.mxu0 0.0
    %2268 = vmatpush1.msra.mxu0 0.0
    %2269 = vmatprep.subr.mxu0 0.0
    %2270 = vmatpush1.msra.mxu0 0.0
    %2271 = vmatprep.subr.mxu0 0.0
    %2272 = vmatpush1.msra.mxu0 0.0
    %2273 = vmatprep.mubr.f32.mxu0 0.0
    %2274 = vmatmul.mubr.f32.gmra.mrb[0].mxu0 %v2205
    %v2275 = vpop.f32.mrb[0].mxu0
    %v2276 = vadd.f32 0.0, %v2275
    %v2277 = vpop.f32.mrb[0].mxu0
    %v2278 = vadd.f32 0.0, %v2277
    %2279 = vdwg.mxu0
    %2280 = vmatprep.subr.mxu0 %v89
    %2281 = vmatpush1.msra.mxu0 %v88
    %2282 = vmatprep.subr.mxu0 %v103
    %2283 = vmatpush1.msra.mxu0 %v102
    %2284 = vmatprep.subr.mxu0 %v117
    %2285 = vmatpush1.msra.mxu0 %v116
    %2286 = vmatprep.subr.mxu0 %v131
    %2287 = vmatpush1.msra.mxu0 %v130
    %2288 = vmatprep.subr.mxu0 %v145
    %2289 = vmatpush1.msra.mxu0 %v144
    %2290 = vmatprep.subr.mxu0 %v159
    %2291 = vmatpush1.msra.mxu0 %v158
    %2292 = vmatprep.subr.mxu0 %v173
    %2293 = vmatpush1.msra.mxu0 %v172
    %2294 = vmatprep.subr.mxu0 %v187
    %2295 = vmatpush1.msra.mxu0 %v186
    %2296 = vmatprep.subr.mxu0 %v201
    %2297 = vmatpush1.msra.mxu0 %v200
    %2298 = vmatprep.subr.mxu0 %v215
    %2299 = vmatpush1.msra.mxu0 %v214
    %2300 = vmatprep.subr.mxu0 %v229
    %2301 = vmatpush1.msra.mxu0 %v228
    %2302 = vmatprep.subr.mxu0 %v243
    %2303 = vmatpush1.msra.mxu0 %v242
    %2304 = vmatprep.subr.mxu0 %v257
    %2305 = vmatpush1.msra.mxu0 %v256
    %2306 = vmatprep.subr.mxu0 %v271
    %2307 = vmatpush1.msra.mxu0 %v270
    %2308 = vmatprep.subr.mxu0 %v285
    %2309 = vmatpush1.msra.mxu0 %v284
    %2310 = vmatprep.subr.mxu0 %v299
    %2311 = vmatpush1.msra.mxu0 %v298
    %2312 = vmatprep.subr.mxu0 0.0
    %2313 = vmatpush1.msra.mxu0 0.0
    %2314 = vmatprep.subr.mxu0 0.0
    %2315 = vmatpush1.msra.mxu0 0.0
    %2316 = vmatprep.subr.mxu0 0.0
    %2317 = vmatpush1.msra.mxu0 0.0
    %2318 = vmatprep.subr.mxu0 0.0
    %2319 = vmatpush1.msra.mxu0 0.0
    %2320 = vmatprep.subr.mxu0 0.0
    %2321 = vmatpush1.msra.mxu0 0.0
    %2322 = vmatprep.subr.mxu0 0.0
    %2323 = vmatpush1.msra.mxu0 0.0
    %2324 = vmatprep.subr.mxu0 0.0
    %2325 = vmatpush1.msra.mxu0 0.0
    %2326 = vmatprep.subr.mxu0 0.0
    %2327 = vmatpush1.msra.mxu0 0.0
    %2328 = vmatprep.subr.mxu0 0.0
    %2329 = vmatpush1.msra.mxu0 0.0
    %2330 = vmatprep.subr.mxu0 0.0
    %2331 = vmatpush1.msra.mxu0 0.0
    %2332 = vmatprep.subr.mxu0 0.0
    %2333 = vmatpush1.msra.mxu0 0.0
    %2334 = vmatprep.subr.mxu0 0.0
    %2335 = vmatpush1.msra.mxu0 0.0
    %2336 = vmatprep.subr.mxu0 0.0
    %2337 = vmatpush1.msra.mxu0 0.0
    %2338 = vmatprep.subr.mxu0 0.0
    %2339 = vmatpush1.msra.mxu0 0.0
    %2340 = vmatprep.subr.mxu0 0.0
    %2341 = vmatpush1.msra.mxu0 0.0
    %2342 = vmatprep.subr.mxu0 0.0
    %2343 = vmatpush1.msra.mxu0 0.0
    %2344 = vmatprep.mubr.f32.mxu0 0.0
    %2345 = vmatmul.mubr.f32.gmra.mrb[0].mxu0 %v2205
    %v2346 = vpop.f32.mrb[0].mxu0
    %v2347 = vadd.f32 0.0, %v2346
    %v2348 = vpop.f32.mrb[0].mxu0
    %v2349 = vadd.f32 0.0, %v2348
    %2350 = vdwg.mxu0
    %v2352 = vsel %vm365, %v2208, 0
    %2354 = vmatprep.subr.mxu0 %v55
    %2355 = vmatpush1.msra.mxu0 %v54
    %2356 = vmatprep.subr.mxu0 %v63
    %2357 = vmatpush1.msra.mxu0 %v62
    %2358 = vmatprep.subr.mxu0 %v71
    %2359 = vmatpush1.msra.mxu0 %v70
    %2360 = vmatprep.subr.mxu0 %v79
    %2361 = vmatpush1.msra.mxu0 %v78
    %2362 = vmatprep.subr.mxu0 0.0
    %2363 = vmatpush1.msra.mxu0 0.0
    %2364 = vmatprep.subr.mxu0 0.0
    %2365 = vmatpush1.msra.mxu0 0.0
    %2366 = vmatprep.subr.mxu0 0.0
    %2367 = vmatpush1.msra.mxu0 0.0
    %2368 = vmatprep.subr.mxu0 0.0
    %2369 = vmatpush1.msra.mxu0 0.0
    %2370 = vmatprep.subr.mxu0 0.0
    %2371 = vmatpush1.msra.mxu0 0.0
    %2372 = vmatprep.subr.mxu0 0.0
    %2373 = vmatpush1.msra.mxu0 0.0
    %2374 = vmatprep.subr.mxu0 0.0
    %2375 = vmatpush1.msra.mxu0 0.0
    %2376 = vmatprep.subr.mxu0 0.0
    %2377 = vmatpush1.msra.mxu0 0.0
    %2378 = vmatprep.subr.mxu0 0.0
    %2379 = vmatpush1.msra.mxu0 0.0
    %2380 = vmatprep.subr.mxu0 0.0
    %2381 = vmatpush1.msra.mxu0 0.0
    %2382 = vmatprep.subr.mxu0 0.0
    %2383 = vmatpush1.msra.mxu0 0.0
    %2384 = vmatprep.subr.mxu0 0.0
    %2385 = vmatpush1.msra.mxu0 0.0
    %2386 = vmatprep.subr.mxu0 0.0
    %2387 = vmatpush1.msra.mxu0 0.0
    %2388 = vmatprep.subr.mxu0 0.0
    %2389 = vmatpush1.msra.mxu0 0.0
    %2390 = vmatprep.subr.mxu0 0.0
    %2391 = vmatpush1.msra.mxu0 0.0
    %2392 = vmatprep.subr.mxu0 0.0
    %2393 = vmatpush1.msra.mxu0 0.0
    %2394 = vmatprep.subr.mxu0 0.0
    %2395 = vmatpush1.msra.mxu0 0.0
    %2396 = vmatprep.subr.mxu0 0.0
    %2397 = vmatpush1.msra.mxu0 0.0
    %2398 = vmatprep.subr.mxu0 0.0
    %2399 = vmatpush1.msra.mxu0 0.0
    %2400 = vmatprep.subr.mxu0 0.0
    %2401 = vmatpush1.msra.mxu0 0.0
    %2402 = vmatprep.subr.mxu0 0.0
    %2403 = vmatpush1.msra.mxu0 0.0
    %2404 = vmatprep.subr.mxu0 0.0
    %2405 = vmatpush1.msra.mxu0 0.0
    %2406 = vmatprep.subr.mxu0 0.0
    %2407 = vmatpush1.msra.mxu0 0.0
    %2408 = vmatprep.subr.mxu0 0.0
    %2409 = vmatpush1.msra.mxu0 0.0
    %2410 = vmatprep.subr.mxu0 0.0
    %2411 = vmatpush1.msra.mxu0 0.0
    %2412 = vmatprep.subr.mxu0 0.0
    %2413 = vmatpush1.msra.mxu0 0.0
    %2414 = vmatprep.subr.mxu0 0.0
    %2415 = vmatpush1.msra.mxu0 0.0
    %2416 = vmatprep.subr.mxu0 0.0
    %2417 = vmatpush1.msra.mxu0 0.0
    %2418 = vmatprep.mubr.f32.mxu0 0.0
    %2419 = vmatmul.mubr.f32.gmra.mrb[0].mxu0 %v2352
    %v2420 = vpop.f32.mrb[0].mxu0
    %v2421 = vadd.f32 %v2276, %v2420
    %v2422 = vpop.f32.mrb[0].mxu0
    %v2423 = vadd.f32 %v2278, %v2422
    %2424 = vdwg.mxu0
    %2425 = vmatprep.subr.mxu0 %v57
    %2426 = vmatpush1.msra.mxu0 %v56
    %2427 = vmatprep.subr.mxu0 %v65
    %2428 = vmatpush1.msra.mxu0 %v64
    %2429 = vmatprep.subr.mxu0 %v73
    %2430 = vmatpush1.msra.mxu0 %v72
    %2431 = vmatprep.subr.mxu0 %v81
    %2432 = vmatpush1.msra.mxu0 %v80
    %2433 = vmatprep.subr.mxu0 0.0
    %2434 = vmatpush1.msra.mxu0 0.0
    %2435 = vmatprep.subr.mxu0 0.0
    %2436 = vmatpush1.msra.mxu0 0.0
    %2437 = vmatprep.subr.mxu0 0.0
    %2438 = vmatpush1.msra.mxu0 0.0
    %2439 = vmatprep.subr.mxu0 0.0
    %2440 = vmatpush1.msra.mxu0 0.0
    %2441 = vmatprep.subr.mxu0 0.0
    %2442 = vmatpush1.msra.mxu0 0.0
    %2443 = vmatprep.subr.mxu0 0.0
    %2444 = vmatpush1.msra.mxu0 0.0
    %2445 = vmatprep.subr.mxu0 0.0
    %2446 = vmatpush1.msra.mxu0 0.0
    %2447 = vmatprep.subr.mxu0 0.0
    %2448 = vmatpush1.msra.mxu0 0.0
    %2449 = vmatprep.subr.mxu0 0.0
    %2450 = vmatpush1.msra.mxu0 0.0
    %2451 = vmatprep.subr.mxu0 0.0
    %2452 = vmatpush1.msra.mxu0 0.0
    %2453 = vmatprep.subr.mxu0 0.0
    %2454 = vmatpush1.msra.mxu0 0.0
    %2455 = vmatprep.subr.mxu0 0.0
    %2456 = vmatpush1.msra.mxu0 0.0
    %2457 = vmatprep.subr.mxu0 0.0
    %2458 = vmatpush1.msra.mxu0 0.0
    %2459 = vmatprep.subr.mxu0 0.0
    %2460 = vmatpush1.msra.mxu0 0.0
    %2461 = vmatprep.subr.mxu0 0.0
    %2462 = vmatpush1.msra.mxu0 0.0
    %2463 = vmatprep.subr.mxu0 0.0
    %2464 = vmatpush1.msra.mxu0 0.0
    %2465 = vmatprep.subr.mxu0 0.0
    %2466 = vmatpush1.msra.mxu0 0.0
    %2467 = vmatprep.subr.mxu0 0.0
    %2468 = vmatpush1.msra.mxu0 0.0
    %2469 = vmatprep.subr.mxu0 0.0
    %2470 = vmatpush1.msra.mxu0 0.0
    %2471 = vmatprep.subr.mxu0 0.0
    %2472 = vmatpush1.msra.mxu0 0.0
    %2473 = vmatprep.subr.mxu0 0.0
    %2474 = vmatpush1.msra.mxu0 0.0
    %2475 = vmatprep.subr.mxu0 0.0
    %2476 = vmatpush1.msra.mxu0 0.0
    %2477 = vmatprep.subr.mxu0 0.0
    %2478 = vmatpush1.msra.mxu0 0.0
    %2479 = vmatprep.subr.mxu0 0.0
    %2480 = vmatpush1.msra.mxu0 0.0
    %2481 = vmatprep.subr.mxu0 0.0
    %2482 = vmatpush1.msra.mxu0 0.0
    %2483 = vmatprep.subr.mxu0 0.0
    %2484 = vmatpush1.msra.mxu0 0.0
    %2485 = vmatprep.subr.mxu0 0.0
    %2486 = vmatpush1.msra.mxu0 0.0
    %2487 = vmatprep.subr.mxu0 0.0
    %2488 = vmatpush1.msra.mxu0 0.0
    %2489 = vmatprep.mubr.f32.mxu0 0.0
    %2490 = vmatmul.mubr.f32.gmra.mrb[0].mxu0 %v2352
    %v2491 = vpop.f32.mrb[0].mxu0
    %v2492 = vadd.f32 %v2347, %v2491
    %v2493 = vpop.f32.mrb[0].mxu0
    %v2494 = vadd.f32 %v2349, %v2493
    %2495 = vdwg.mxu0
    %v2496 = vxor.u32 %v2421, 2147483648
    %v2497 = vxor.u32 %v2423, 2147483648
    %v2498 = vxor.u32 %v2492, 2147483648
    %v2499 = vmul.f32 %v2496, 1.442695
    %v2500 = vpow.pop %v2499
    %v2501 = vmul.f32 %v2497, 1.442695
    %v2502 = vpow.pop %v2501
    %v2503 = vmul.f32 %v2498, 1.442695
    %v2504 = vpow.pop %v2503
    %v2505 = vadd.f32 %v2500, 1.0
    %v2506 = vadd.f32 %v2502, 1.0
    %v2507 = vadd.f32 %v2504, 1.0
    %v2508 = vrcp.pop %v2505
    %v2509 = vmul.f32 1.0, %v2508
    %v2510 = vrcp.pop %v2506
    %v2511 = vmul.f32 1.0, %v2510
    %v2512 = vrcp.pop %v2507
    %v2513 = vmul.f32 1.0, %v2512
    %v2514 = vtanh.pop %v2494
    %v2515 = vmul.f32 %v2511, 0.0
    %v2516 = vmul.f32 %v2509, %v2514
    %v2517 = vadd.f32 %v2515, %v2516
    %v2518 = vtanh.pop %v2517
    %v2519 = vmul.f32 %v2513, %v2518
    %2520 = vmatprep.subr.mxu0 %v87
    %2521 = vmatpush1.msra.mxu0 %v86
    %2522 = vmatprep.subr.mxu0 %v101
    %2523 = vmatpush1.msra.mxu0 %v100
    %2524 = vmatprep.subr.mxu0 %v115
    %2525 = vmatpush1.msra.mxu0 %v114
    %2526 = vmatprep.subr.mxu0 %v129
    %2527 = vmatpush1.msra.mxu0 %v128
    %2528 = vmatprep.subr.mxu0 %v143
    %2529 = vmatpush1.msra.mxu0 %v142
    %2530 = vmatprep.subr.mxu0 %v157
    %2531 = vmatpush1.msra.mxu0 %v156
    %2532 = vmatprep.subr.mxu0 %v171
    %2533 = vmatpush1.msra.mxu0 %v170
    %2534 = vmatprep.subr.mxu0 %v185
    %2535 = vmatpush1.msra.mxu0 %v184
    %2536 = vmatprep.subr.mxu0 %v199
    %2537 = vmatpush1.msra.mxu0 %v198
    %2538 = vmatprep.subr.mxu0 %v213
    %2539 = vmatpush1.msra.mxu0 %v212
    %2540 = vmatprep.subr.mxu0 %v227
    %2541 = vmatpush1.msra.mxu0 %v226
    %2542 = vmatprep.subr.mxu0 %v241
    %2543 = vmatpush1.msra.mxu0 %v240
    %2544 = vmatprep.subr.mxu0 %v255
    %2545 = vmatpush1.msra.mxu0 %v254
    %2546 = vmatprep.subr.mxu0 %v269
    %2547 = vmatpush1.msra.mxu0 %v268
    %2548 = vmatprep.subr.mxu0 %v283
    %2549 = vmatpush1.msra.mxu0 %v282
    %2550 = vmatprep.subr.mxu0 %v297
    %2551 = vmatpush1.msra.mxu0 %v296
    %2552 = vmatprep.subr.mxu0 0.0
    %2553 = vmatpush1.msra.mxu0 0.0
    %2554 = vmatprep.subr.mxu0 0.0
    %2555 = vmatpush1.msra.mxu0 0.0
    %2556 = vmatprep.subr.mxu0 0.0
    %2557 = vmatpush1.msra.mxu0 0.0
    %2558 = vmatprep.subr.mxu0 0.0
    %2559 = vmatpush1.msra.mxu0 0.0
    %2560 = vmatprep.subr.mxu0 0.0
    %2561 = vmatpush1.msra.mxu0 0.0
    %2562 = vmatprep.subr.mxu0 0.0
    %2563 = vmatpush1.msra.mxu0 0.0
    %2564 = vmatprep.subr.mxu0 0.0
    %2565 = vmatpush1.msra.mxu0 0.0
    %2566 = vmatprep.subr.mxu0 0.0
    %2567 = vmatpush1.msra.mxu0 0.0
    %2568 = vmatprep.subr.mxu0 0.0
    %2569 = vmatpush1.msra.mxu0 0.0
    %2570 = vmatprep.subr.mxu0 0.0
    %2571 = vmatpush1.msra.mxu0 0.0
    %2572 = vmatprep.subr.mxu0 0.0
    %2573 = vmatpush1.msra.mxu0 0.0
    %2574 = vmatprep.subr.mxu0 0.0
    %2575 = vmatpush1.msra.mxu0 0.0
    %2576 = vmatprep.subr.mxu0 0.0
    %2577 = vmatpush1.msra.mxu0 0.0
    %2578 = vmatprep.subr.mxu0 0.0
    %2579 = vmatpush1.msra.mxu0 0.0
    %2580 = vmatprep.subr.mxu0 0.0
    %2581 = vmatpush1.msra.mxu0 0.0
    %2582 = vmatprep.subr.mxu0 0.0
    %2583 = vmatpush1.msra.mxu0 0.0
    %2584 = vmatprep.mubr.f32.mxu0 0.0
    %2585 = vmatmul.mubr.f32.gmra.mrb[0].mxu0 %v2519
    %v2586 = vpop.f32.mrb[0].mxu0
    %v2587 = vadd.f32 0.0, %v2586
    %v2588 = vpop.f32.mrb[0].mxu0
    %v2589 = vadd.f32 0.0, %v2588
    %2590 = vdwg.mxu0
    %2591 = vmatprep.subr.mxu0 %v89
    %2592 = vmatpush1.msra.mxu0 %v88
    %2593 = vmatprep.subr.mxu0 %v103
    %2594 = vmatpush1.msra.mxu0 %v102
    %2595 = vmatprep.subr.mxu0 %v117
    %2596 = vmatpush1.msra.mxu0 %v116
    %2597 = vmatprep.subr.mxu0 %v131
    %2598 = vmatpush1.msra.mxu0 %v130
    %2599 = vmatprep.subr.mxu0 %v145
    %2600 = vmatpush1.msra.mxu0 %v144
    %2601 = vmatprep.subr.mxu0 %v159
    %2602 = vmatpush1.msra.mxu0 %v158
    %2603 = vmatprep.subr.mxu0 %v173
    %2604 = vmatpush1.msra.mxu0 %v172
    %2605 = vmatprep.subr.mxu0 %v187
    %2606 = vmatpush1.msra.mxu0 %v186
    %2607 = vmatprep.subr.mxu0 %v201
    %2608 = vmatpush1.msra.mxu0 %v200
    %2609 = vmatprep.subr.mxu0 %v215
    %2610 = vmatpush1.msra.mxu0 %v214
    %2611 = vmatprep.subr.mxu0 %v229
    %2612 = vmatpush1.msra.mxu0 %v228
    %2613 = vmatprep.subr.mxu0 %v243
    %2614 = vmatpush1.msra.mxu0 %v242
    %2615 = vmatprep.subr.mxu0 %v257
    %2616 = vmatpush1.msra.mxu0 %v256
    %2617 = vmatprep.subr.mxu0 %v271
    %2618 = vmatpush1.msra.mxu0 %v270
    %2619 = vmatprep.subr.mxu0 %v285
    %2620 = vmatpush1.msra.mxu0 %v284
    %2621 = vmatprep.subr.mxu0 %v299
    %2622 = vmatpush1.msra.mxu0 %v298
    %2623 = vmatprep.subr.mxu0 0.0
    %2624 = vmatpush1.msra.mxu0 0.0
    %2625 = vmatprep.subr.mxu0 0.0
    %2626 = vmatpush1.msra.mxu0 0.0
    %2627 = vmatprep.subr.mxu0 0.0
    %2628 = vmatpush1.msra.mxu0 0.0
    %2629 = vmatprep.subr.mxu0 0.0
    %2630 = vmatpush1.msra.mxu0 0.0
    %2631 = vmatprep.subr.mxu0 0.0
    %2632 = vmatpush1.msra.mxu0 0.0
    %2633 = vmatprep.subr.mxu0 0.0
    %2634 = vmatpush1.msra.mxu0 0.0
    %2635 = vmatprep.subr.mxu0 0.0
    %2636 = vmatpush1.msra.mxu0 0.0
    %2637 = vmatprep.subr.mxu0 0.0
    %2638 = vmatpush1.msra.mxu0 0.0
    %2639 = vmatprep.subr.mxu0 0.0
    %2640 = vmatpush1.msra.mxu0 0.0
    %2641 = vmatprep.subr.mxu0 0.0
    %2642 = vmatpush1.msra.mxu0 0.0
    %2643 = vmatprep.subr.mxu0 0.0
    %2644 = vmatpush1.msra.mxu0 0.0
    %2645 = vmatprep.subr.mxu0 0.0
    %2646 = vmatpush1.msra.mxu0 0.0
    %2647 = vmatprep.subr.mxu0 0.0
    %2648 = vmatpush1.msra.mxu0 0.0
    %2649 = vmatprep.subr.mxu0 0.0
    %2650 = vmatpush1.msra.mxu0 0.0
    %2651 = vmatprep.subr.mxu0 0.0
    %2652 = vmatpush1.msra.mxu0 0.0
    %2653 = vmatprep.subr.mxu0 0.0
    %2654 = vmatpush1.msra.mxu0 0.0
    %2655 = vmatprep.mubr.f32.mxu0 0.0
    %2656 = vmatmul.mubr.f32.gmra.mrb[0].mxu0 %v2519
    %v2657 = vpop.f32.mrb[0].mxu0
    %v2658 = vadd.f32 0.0, %v2657
    %v2659 = vpop.f32.mrb[0].mxu0
    %v2660 = vadd.f32 0.0, %v2659
    %2661 = vdwg.mxu0
    %2662 = vmatprep.subr.mxu0 0.0
    %2663 = vmatpush1.msra.mxu0 %v90
    %2664 = vmatprep.subr.mxu0 0.0
    %2665 = vmatpush1.msra.mxu0 %v104
    %2666 = vmatprep.subr.mxu0 0.0
    %2667 = vmatpush1.msra.mxu0 %v118
    %2668 = vmatprep.subr.mxu0 0.0
    %2669 = vmatpush1.msra.mxu0 %v132
    %2670 = vmatprep.subr.mxu0 0.0
    %2671 = vmatpush1.msra.mxu0 %v146
    %2672 = vmatprep.subr.mxu0 0.0
    %2673 = vmatpush1.msra.mxu0 %v160
    %2674 = vmatprep.subr.mxu0 0.0
    %2675 = vmatpush1.msra.mxu0 %v174
    %2676 = vmatprep.subr.mxu0 0.0
    %2677 = vmatpush1.msra.mxu0 %v188
    %2678 = vmatprep.subr.mxu0 0.0
    %2679 = vmatpush1.msra.mxu0 %v202
    %2680 = vmatprep.subr.mxu0 0.0
    %2681 = vmatpush1.msra.mxu0 %v216
    %2682 = vmatprep.subr.mxu0 0.0
    %2683 = vmatpush1.msra.mxu0 %v230
    %2684 = vmatprep.subr.mxu0 0.0
    %2685 = vmatpush1.msra.mxu0 %v244
    %2686 = vmatprep.subr.mxu0 0.0
    %2687 = vmatpush1.msra.mxu0 %v258
    %2688 = vmatprep.subr.mxu0 0.0
    %2689 = vmatpush1.msra.mxu0 %v272
    %2690 = vmatprep.subr.mxu0 0.0
    %2691 = vmatpush1.msra.mxu0 %v286
    %2692 = vmatprep.subr.mxu0 0.0
    %2693 = vmatpush1.msra.mxu0 %v300
    %2694 = vmatprep.subr.mxu0 0.0
    %2695 = vmatpush1.msra.mxu0 0.0
    %2696 = vmatprep.subr.mxu0 0.0
    %2697 = vmatpush1.msra.mxu0 0.0
    %2698 = vmatprep.subr.mxu0 0.0
    %2699 = vmatpush1.msra.mxu0 0.0
    %2700 = vmatprep.subr.mxu0 0.0
    %2701 = vmatpush1.msra.mxu0 0.0
    %2702 = vmatprep.subr.mxu0 0.0
    %2703 = vmatpush1.msra.mxu0 0.0
    %2704 = vmatprep.subr.mxu0 0.0
    %2705 = vmatpush1.msra.mxu0 0.0
    %2706 = vmatprep.subr.mxu0 0.0
    %2707 = vmatpush1.msra.mxu0 0.0
    %2708 = vmatprep.subr.mxu0 0.0
    %2709 = vmatpush1.msra.mxu0 0.0
    %2710 = vmatprep.subr.mxu0 0.0
    %2711 = vmatpush1.msra.mxu0 0.0
    %2712 = vmatprep.subr.mxu0 0.0
    %2713 = vmatpush1.msra.mxu0 0.0
    %2714 = vmatprep.subr.mxu0 0.0
    %2715 = vmatpush1.msra.mxu0 0.0
    %2716 = vmatprep.subr.mxu0 0.0
    %2717 = vmatpush1.msra.mxu0 0.0
    %2718 = vmatprep.subr.mxu0 0.0
    %2719 = vmatpush1.msra.mxu0 0.0
    %2720 = vmatprep.subr.mxu0 0.0
    %2721 = vmatpush1.msra.mxu0 0.0
    %2722 = vmatprep.subr.mxu0 0.0
    %2723 = vmatpush1.msra.mxu0 0.0
    %2724 = vmatprep.subr.mxu0 0.0
    %2725 = vmatpush1.msra.mxu0 0.0
    %2726 = vmatprep.mubr.f32.mxu0 0.0
    %2727 = vmatmul.mubr.f32.gmra.mrb[0].mxu0 %v2519
    %v2728 = vpop.f32.mrb[0].mxu0
    %v2729 = vadd.f32 0.0, %v2728
    %v2730 = vpop.f32.mrb[0].mxu0
    %2731 = vdwg.mxu0
    %v2732 = vlaneseq
    %v2733 = vshrl.u32 %v2732, 7
    %v2734 = vsub.s32 3, %v2733
    %v2735 = vrot.slane %v306, %v2734
    %v2736 = vadd.f32 %v2729, %v2735
    %2737 = vst [vmem:[%s6] sm:$0xff] %v2736
    %v2738 = vlaneseq
    %v2739 = vshrl.u32 %v2738, 7
    %v2740 = vsub.s32 4, %v2739
    %v2741 = vrot.slane %v306, %v2740
    %v2742 = vadd.f32 %v2736, %v2741
    %2743 = vmax.xlane.f32.xlu0 %v2742
    %v2744 = vpop.xlane.xlu0 %2743
    %vm2745 = vcmp.eq.f32.partialorder %v2742, %v2744
    %v2746 = vsel %vm2745, %v308, 128
    %v2747 = vand.u32 %v2746, 65535
    %v2748 = vshra.s32 %v2746, 16
    %v2749 = vcvt.s32.f32 %v2747
    %v2750 = vcvt.s32.f32 %v2748
    %2751 = vmin.xlane.f32.xlu0 %v2750
    %v2752 = vpop.xlane.xlu0 %2751
    %vm2753 = vcmp.eq.f32.partialorder %v2750, %v2752
    %v2754 = vsel %vm2753, %v2749, inf
    %2755 = vmin.xlane.f32.xlu0 %v2754
    %v2756 = vpop.xlane.xlu0 %2755
    %v2757 = vcvt.f32.s32 %v2756
    %v2758 = vcvt.f32.s32 %v2752
    %v2759 = vshll.u32 %v2758, 16
    %v2760 = vadd.s32 %v2759, %v2757
    %vm2761 = vcmp.eq.s32.totalorder %v308, %v2760
    %v2762 = vsel %vm2761, 1, 0
    %v2763 = vcvt.s32.f32 %v2762
    %v2765 = vsel %vm365, %v2763, 0
    %2767 = vmatprep.subr.mxu0 %v55
    %2768 = vmatpush1.msra.mxu0 %v54
    %2769 = vmatprep.subr.mxu0 %v63
    %2770 = vmatpush1.msra.mxu0 %v62
    %2771 = vmatprep.subr.mxu0 %v71
    %2772 = vmatpush1.msra.mxu0 %v70
    %2773 = vmatprep.subr.mxu0 %v79
    %2774 = vmatpush1.msra.mxu0 %v78
    %2775 = vmatprep.subr.mxu0 0.0
    %2776 = vmatpush1.msra.mxu0 0.0
    %2777 = vmatprep.subr.mxu0 0.0
    %2778 = vmatpush1.msra.mxu0 0.0
    %2779 = vmatprep.subr.mxu0 0.0
    %2780 = vmatpush1.msra.mxu0 0.0
    %2781 = vmatprep.subr.mxu0 0.0
    %2782 = vmatpush1.msra.mxu0 0.0
    %2783 = vmatprep.subr.mxu0 0.0
    %2784 = vmatpush1.msra.mxu0 0.0
    %2785 = vmatprep.subr.mxu0 0.0
    %2786 = vmatpush1.msra.mxu0 0.0
    %2787 = vmatprep.subr.mxu0 0.0
    %2788 = vmatpush1.msra.mxu0 0.0
    %2789 = vmatprep.subr.mxu0 0.0
    %2790 = vmatpush1.msra.mxu0 0.0
    %2791 = vmatprep.subr.mxu0 0.0
    %2792 = vmatpush1.msra.mxu0 0.0
    %2793 = vmatprep.subr.mxu0 0.0
    %2794 = vmatpush1.msra.mxu0 0.0
    %2795 = vmatprep.subr.mxu0 0.0
    %2796 = vmatpush1.msra.mxu0 0.0
    %2797 = vmatprep.subr.mxu0 0.0
    %2798 = vmatpush1.msra.mxu0 0.0
    %2799 = vmatprep.subr.mxu0 0.0
    %2800 = vmatpush1.msra.mxu0 0.0
    %2801 = vmatprep.subr.mxu0 0.0
    %2802 = vmatpush1.msra.mxu0 0.0
    %2803 = vmatprep.subr.mxu0 0.0
    %2804 = vmatpush1.msra.mxu0 0.0
    %2805 = vmatprep.subr.mxu0 0.0
    %2806 = vmatpush1.msra.mxu0 0.0
    %2807 = vmatprep.subr.mxu0 0.0
    %2808 = vmatpush1.msra.mxu0 0.0
    %2809 = vmatprep.subr.mxu0 0.0
    %2810 = vmatpush1.msra.mxu0 0.0
    %2811 = vmatprep.subr.mxu0 0.0
    %2812 = vmatpush1.msra.mxu0 0.0
    %2813 = vmatprep.subr.mxu0 0.0
    %2814 = vmatpush1.msra.mxu0 0.0
    %2815 = vmatprep.subr.mxu0 0.0
    %2816 = vmatpush1.msra.mxu0 0.0
    %2817 = vmatprep.subr.mxu0 0.0
    %2818 = vmatpush1.msra.mxu0 0.0
    %2819 = vmatprep.subr.mxu0 0.0
    %2820 = vmatpush1.msra.mxu0 0.0
    %2821 = vmatprep.subr.mxu0 0.0
    %2822 = vmatpush1.msra.mxu0 0.0
    %2823 = vmatprep.subr.mxu0 0.0
    %2824 = vmatpush1.msra.mxu0 0.0
    %2825 = vmatprep.subr.mxu0 0.0
    %2826 = vmatpush1.msra.mxu0 0.0
    %2827 = vmatprep.subr.mxu0 0.0
    %2828 = vmatpush1.msra.mxu0 0.0
    %2829 = vmatprep.subr.mxu0 0.0
    %2830 = vmatpush1.msra.mxu0 0.0
    %2831 = vmatprep.mubr.f32.mxu0 0.0
    %2832 = vmatmul.mubr.f32.gmra.mrb[0].mxu0 %v2765
    %v2833 = vpop.f32.mrb[0].mxu0
    %v2834 = vadd.f32 %v2587, %v2833
    %v2835 = vpop.f32.mrb[0].mxu0
    %v2836 = vadd.f32 %v2589, %v2835
    %2837 = vdwg.mxu0
    %2838 = vmatprep.subr.mxu0 %v57
    %2839 = vmatpush1.msra.mxu0 %v56
    %2840 = vmatprep.subr.mxu0 %v65
    %2841 = vmatpush1.msra.mxu0 %v64
    %2842 = vmatprep.subr.mxu0 %v73
    %2843 = vmatpush1.msra.mxu0 %v72
    %2844 = vmatprep.subr.mxu0 %v81
    %2845 = vmatpush1.msra.mxu0 %v80
    %2846 = vmatprep.subr.mxu0 0.0
    %2847 = vmatpush1.msra.mxu0 0.0
    %2848 = vmatprep.subr.mxu0 0.0
    %2849 = vmatpush1.msra.mxu0 0.0
    %2850 = vmatprep.subr.mxu0 0.0
    %2851 = vmatpush1.msra.mxu0 0.0
    %2852 = vmatprep.subr.mxu0 0.0
    %2853 = vmatpush1.msra.mxu0 0.0
    %2854 = vmatprep.subr.mxu0 0.0
    %2855 = vmatpush1.msra.mxu0 0.0
    %2856 = vmatprep.subr.mxu0 0.0
    %2857 = vmatpush1.msra.mxu0 0.0
    %2858 = vmatprep.subr.mxu0 0.0
    %2859 = vmatpush1.msra.mxu0 0.0
    %2860 = vmatprep.subr.mxu0 0.0
    %2861 = vmatpush1.msra.mxu0 0.0
    %2862 = vmatprep.subr.mxu0 0.0
    %2863 = vmatpush1.msra.mxu0 0.0
    %2864 = vmatprep.subr.mxu0 0.0
    %2865 = vmatpush1.msra.mxu0 0.0
    %2866 = vmatprep.subr.mxu0 0.0
    %2867 = vmatpush1.msra.mxu0 0.0
    %2868 = vmatprep.subr.mxu0 0.0
    %2869 = vmatpush1.msra.mxu0 0.0
    %2870 = vmatprep.subr.mxu0 0.0
    %2871 = vmatpush1.msra.mxu0 0.0
    %2872 = vmatprep.subr.mxu0 0.0
    %2873 = vmatpush1.msra.mxu0 0.0
    %2874 = vmatprep.subr.mxu0 0.0
    %2875 = vmatpush1.msra.mxu0 0.0
    %2876 = vmatprep.subr.mxu0 0.0
    %2877 = vmatpush1.msra.mxu0 0.0
    %2878 = vmatprep.subr.mxu0 0.0
    %2879 = vmatpush1.msra.mxu0 0.0
    %2880 = vmatprep.subr.mxu0 0.0
    %2881 = vmatpush1.msra.mxu0 0.0
    %2882 = vmatprep.subr.mxu0 0.0
    %2883 = vmatpush1.msra.mxu0 0.0
    %2884 = vmatprep.subr.mxu0 0.0
    %2885 = vmatpush1.msra.mxu0 0.0
    %2886 = vmatprep.subr.mxu0 0.0
    %2887 = vmatpush1.msra.mxu0 0.0
    %2888 = vmatprep.subr.mxu0 0.0
    %2889 = vmatpush1.msra.mxu0 0.0
    %2890 = vmatprep.subr.mxu0 0.0
    %2891 = vmatpush1.msra.mxu0 0.0
    %2892 = vmatprep.subr.mxu0 0.0
    %2893 = vmatpush1.msra.mxu0 0.0
    %2894 = vmatprep.subr.mxu0 0.0
    %2895 = vmatpush1.msra.mxu0 0.0
    %2896 = vmatprep.subr.mxu0 0.0
    %2897 = vmatpush1.msra.mxu0 0.0
    %2898 = vmatprep.subr.mxu0 0.0
    %2899 = vmatpush1.msra.mxu0 0.0
    %2900 = vmatprep.subr.mxu0 0.0
    %2901 = vmatpush1.msra.mxu0 0.0
    %2902 = vmatprep.mubr.f32.mxu0 0.0
    %2903 = vmatmul.mubr.f32.gmra.mrb[0].mxu0 %v2765
    %v2904 = vpop.f32.mrb[0].mxu0
    %v2905 = vadd.f32 %v2658, %v2904
    %v2906 = vpop.f32.mrb[0].mxu0
    %v2907 = vadd.f32 %v2660, %v2906
    %2908 = vdwg.mxu0
    %v2909 = vxor.u32 %v2834, 2147483648
    %v2910 = vxor.u32 %v2836, 2147483648
    %v2911 = vxor.u32 %v2905, 2147483648
    %v2912 = vmul.f32 %v2909, 1.442695
    %v2913 = vpow.pop %v2912
    %v2914 = vmul.f32 %v2910, 1.442695
    %v2915 = vpow.pop %v2914
    %v2916 = vmul.f32 %v2911, 1.442695
    %v2917 = vpow.pop %v2916
    %v2918 = vadd.f32 %v2913, 1.0
    %v2919 = vadd.f32 %v2915, 1.0
    %v2920 = vadd.f32 %v2917, 1.0
    %v2921 = vrcp.pop %v2918
    %v2922 = vmul.f32 1.0, %v2921
    %v2923 = vrcp.pop %v2919
    %v2924 = vmul.f32 1.0, %v2923
    %v2925 = vrcp.pop %v2920
    %v2926 = vmul.f32 1.0, %v2925
    %v2927 = vtanh.pop %v2907
    %v2928 = vmul.f32 %v2924, %v2517
    %v2929 = vmul.f32 %v2922, %v2927
    %v2930 = vadd.f32 %v2928, %v2929
    %v2931 = vtanh.pop %v2930
    %v2932 = vmul.f32 %v2926, %v2931
    %2933 = vmatprep.subr.mxu0 %v87
    %2934 = vmatpush1.msra.mxu0 %v86
    %2935 = vmatprep.subr.mxu0 %v101
    %2936 = vmatpush1.msra.mxu0 %v100
    %2937 = vmatprep.subr.mxu0 %v115
    %2938 = vmatpush1.msra.mxu0 %v114
    %2939 = vmatprep.subr.mxu0 %v129
    %2940 = vmatpush1.msra.mxu0 %v128
    %2941 = vmatprep.subr.mxu0 %v143
    %2942 = vmatpush1.msra.mxu0 %v142
    %2943 = vmatprep.subr.mxu0 %v157
    %2944 = vmatpush1.msra.mxu0 %v156
    %2945 = vmatprep.subr.mxu0 %v171
    %2946 = vmatpush1.msra.mxu0 %v170
    %2947 = vmatprep.subr.mxu0 %v185
    %2948 = vmatpush1.msra.mxu0 %v184
    %2949 = vmatprep.subr.mxu0 %v199
    %2950 = vmatpush1.msra.mxu0 %v198
    %2951 = vmatprep.subr.mxu0 %v213
    %2952 = vmatpush1.msra.mxu0 %v212
    %2953 = vmatprep.subr.mxu0 %v227
    %2954 = vmatpush1.msra.mxu0 %v226
    %2955 = vmatprep.subr.mxu0 %v241
    %2956 = vmatpush1.msra.mxu0 %v240
    %2957 = vmatprep.subr.mxu0 %v255
    %2958 = vmatpush1.msra.mxu0 %v254
    %2959 = vmatprep.subr.mxu0 %v269
    %2960 = vmatpush1.msra.mxu0 %v268
    %2961 = vmatprep.subr.mxu0 %v283
    %2962 = vmatpush1.msra.mxu0 %v282
    %2963 = vmatprep.subr.mxu0 %v297
    %2964 = vmatpush1.msra.mxu0 %v296
    %2965 = vmatprep.subr.mxu0 0.0
    %2966 = vmatpush1.msra.mxu0 0.0
    %2967 = vmatprep.subr.mxu0 0.0
    %2968 = vmatpush1.msra.mxu0 0.0
    %2969 = vmatprep.subr.mxu0 0.0
    %2970 = vmatpush1.msra.mxu0 0.0
    %2971 = vmatprep.subr.mxu0 0.0
    %2972 = vmatpush1.msra.mxu0 0.0
    %2973 = vmatprep.subr.mxu0 0.0
    %2974 = vmatpush1.msra.mxu0 0.0
    %2975 = vmatprep.subr.mxu0 0.0
    %2976 = vmatpush1.msra.mxu0 0.0
    %2977 = vmatprep.subr.mxu0 0.0
    %2978 = vmatpush1.msra.mxu0 0.0
    %2979 = vmatprep.subr.mxu0 0.0
    %2980 = vmatpush1.msra.mxu0 0.0
    %2981 = vmatprep.subr.mxu0 0.0
    %2982 = vmatpush1.msra.mxu0 0.0
    %2983 = vmatprep.subr.mxu0 0.0
    %2984 = vmatpush1.msra.mxu0 0.0
    %2985 = vmatprep.subr.mxu0 0.0
    %2986 = vmatpush1.msra.mxu0 0.0
    %2987 = vmatprep.subr.mxu0 0.0
    %2988 = vmatpush1.msra.mxu0 0.0
    %2989 = vmatprep.subr.mxu0 0.0
    %2990 = vmatpush1.msra.mxu0 0.0
    %2991 = vmatprep.subr.mxu0 0.0
    %2992 = vmatpush1.msra.mxu0 0.0
    %2993 = vmatprep.subr.mxu0 0.0
    %2994 = vmatpush1.msra.mxu0 0.0
    %2995 = vmatprep.subr.mxu0 0.0
    %2996 = vmatpush1.msra.mxu0 0.0
    %2997 = vmatprep.mubr.f32.mxu0 0.0
    %2998 = vmatmul.mubr.f32.gmra.mrb[0].mxu0 %v2932
    %v2999 = vpop.f32.mrb[0].mxu0
    %v3000 = vadd.f32 0.0, %v2999
    %v3001 = vpop.f32.mrb[0].mxu0
    %v3002 = vadd.f32 0.0, %v3001
    %3003 = vdwg.mxu0
    %3004 = vmatprep.subr.mxu0 %v89
    %3005 = vmatpush1.msra.mxu0 %v88
    %3006 = vmatprep.subr.mxu0 %v103
    %3007 = vmatpush1.msra.mxu0 %v102
    %3008 = vmatprep.subr.mxu0 %v117
    %3009 = vmatpush1.msra.mxu0 %v116
    %3010 = vmatprep.subr.mxu0 %v131
    %3011 = vmatpush1.msra.mxu0 %v130
    %3012 = vmatprep.subr.mxu0 %v145
    %3013 = vmatpush1.msra.mxu0 %v144
    %3014 = vmatprep.subr.mxu0 %v159
    %3015 = vmatpush1.msra.mxu0 %v158
    %3016 = vmatprep.subr.mxu0 %v173
    %3017 = vmatpush1.msra.mxu0 %v172
    %3018 = vmatprep.subr.mxu0 %v187
    %3019 = vmatpush1.msra.mxu0 %v186
    %3020 = vmatprep.subr.mxu0 %v201
    %3021 = vmatpush1.msra.mxu0 %v200
    %3022 = vmatprep.subr.mxu0 %v215
    %3023 = vmatpush1.msra.mxu0 %v214
    %3024 = vmatprep.subr.mxu0 %v229
    %3025 = vmatpush1.msra.mxu0 %v228
    %3026 = vmatprep.subr.mxu0 %v243
    %3027 = vmatpush1.msra.mxu0 %v242
    %3028 = vmatprep.subr.mxu0 %v257
    %3029 = vmatpush1.msra.mxu0 %v256
    %3030 = vmatprep.subr.mxu0 %v271
    %3031 = vmatpush1.msra.mxu0 %v270
    %3032 = vmatprep.subr.mxu0 %v285
    %3033 = vmatpush1.msra.mxu0 %v284
    %3034 = vmatprep.subr.mxu0 %v299
    %3035 = vmatpush1.msra.mxu0 %v298
    %3036 = vmatprep.subr.mxu0 0.0
    %3037 = vmatpush1.msra.mxu0 0.0
    %3038 = vmatprep.subr.mxu0 0.0
    %3039 = vmatpush1.msra.mxu0 0.0
    %3040 = vmatprep.subr.mxu0 0.0
    %3041 = vmatpush1.msra.mxu0 0.0
    %3042 = vmatprep.subr.mxu0 0.0
    %3043 = vmatpush1.msra.mxu0 0.0
    %3044 = vmatprep.subr.mxu0 0.0
    %3045 = vmatpush1.msra.mxu0 0.0
    %3046 = vmatprep.subr.mxu0 0.0
    %3047 = vmatpush1.msra.mxu0 0.0
    %3048 = vmatprep.subr.mxu0 0.0
    %3049 = vmatpush1.msra.mxu0 0.0
    %3050 = vmatprep.subr.mxu0 0.0
    %3051 = vmatpush1.msra.mxu0 0.0
    %3052 = vmatprep.subr.mxu0 0.0
    %3053 = vmatpush1.msra.mxu0 0.0
    %3054 = vmatprep.subr.mxu0 0.0
    %3055 = vmatpush1.msra.mxu0 0.0
    %3056 = vmatprep.subr.mxu0 0.0
    %3057 = vmatpush1.msra.mxu0 0.0
    %3058 = vmatprep.subr.mxu0 0.0
    %3059 = vmatpush1.msra.mxu0 0.0
    %3060 = vmatprep.subr.mxu0 0.0
    %3061 = vmatpush1.msra.mxu0 0.0
    %3062 = vmatprep.subr.mxu0 0.0
    %3063 = vmatpush1.msra.mxu0 0.0
    %3064 = vmatprep.subr.mxu0 0.0
    %3065 = vmatpush1.msra.mxu0 0.0
    %3066 = vmatprep.subr.mxu0 0.0
    %3067 = vmatpush1.msra.mxu0 0.0
    %3068 = vmatprep.mubr.f32.mxu0 0.0
    %3069 = vmatmul.mubr.f32.gmra.mrb[0].mxu0 %v2932
    %v3070 = vpop.f32.mrb[0].mxu0
    %v3071 = vadd.f32 0.0, %v3070
    %v3072 = vpop.f32.mrb[0].mxu0
    %v3073 = vadd.f32 0.0, %v3072
    %3074 = vdwg.mxu0
    %3075 = vmatprep.subr.mxu0 0.0
    %3076 = vmatpush1.msra.mxu0 %v90
    %3077 = vmatprep.subr.mxu0 0.0
    %3078 = vmatpush1.msra.mxu0 %v104
    %3079 = vmatprep.subr.mxu0 0.0
    %3080 = vmatpush1.msra.mxu0 %v118
    %3081 = vmatprep.subr.mxu0 0.0
    %3082 = vmatpush1.msra.mxu0 %v132
    %3083 = vmatprep.subr.mxu0 0.0
    %3084 = vmatpush1.msra.mxu0 %v146
    %3085 = vmatprep.subr.mxu0 0.0
    %3086 = vmatpush1.msra.mxu0 %v160
    %3087 = vmatprep.subr.mxu0 0.0
    %3088 = vmatpush1.msra.mxu0 %v174
    %3089 = vmatprep.subr.mxu0 0.0
    %3090 = vmatpush1.msra.mxu0 %v188
    %3091 = vmatprep.subr.mxu0 0.0
    %3092 = vmatpush1.msra.mxu0 %v202
    %3093 = vmatprep.subr.mxu0 0.0
    %3094 = vmatpush1.msra.mxu0 %v216
    %3095 = vmatprep.subr.mxu0 0.0
    %3096 = vmatpush1.msra.mxu0 %v230
    %3097 = vmatprep.subr.mxu0 0.0
    %3098 = vmatpush1.msra.mxu0 %v244
    %3099 = vmatprep.subr.mxu0 0.0
    %3100 = vmatpush1.msra.mxu0 %v258
    %3101 = vmatprep.subr.mxu0 0.0
    %3102 = vmatpush1.msra.mxu0 %v272
    %3103 = vmatprep.subr.mxu0 0.0
    %3104 = vmatpush1.msra.mxu0 %v286
    %3105 = vmatprep.subr.mxu0 0.0
    %3106 = vmatpush1.msra.mxu0 %v300
    %3107 = vmatprep.subr.mxu0 0.0
    %3108 = vmatpush1.msra.mxu0 0.0
    %3109 = vmatprep.subr.mxu0 0.0
    %3110 = vmatpush1.msra.mxu0 0.0
    %3111 = vmatprep.subr.mxu0 0.0
    %3112 = vmatpush1.msra.mxu0 0.0
    %3113 = vmatprep.subr.mxu0 0.0
    %3114 = vmatpush1.msra.mxu0 0.0
    %3115 = vmatprep.subr.mxu0 0.0
    %3116 = vmatpush1.msra.mxu0 0.0
    %3117 = vmatprep.subr.mxu0 0.0
    %3118 = vmatpush1.msra.mxu0 0.0
    %3119 = vmatprep.subr.mxu0 0.0
    %3120 = vmatpush1.msra.mxu0 0.0
    %3121 = vmatprep.subr.mxu0 0.0
    %3122 = vmatpush1.msra.mxu0 0.0
    %3123 = vmatprep.subr.mxu0 0.0
    %3124 = vmatpush1.msra.mxu0 0.0
    %3125 = vmatprep.subr.mxu0 0.0
    %3126 = vmatpush1.msra.mxu0 0.0
    %3127 = vmatprep.subr.mxu0 0.0
    %3128 = vmatpush1.msra.mxu0 0.0
    %3129 = vmatprep.subr.mxu0 0.0
    %3130 = vmatpush1.msra.mxu0 0.0
    %3131 = vmatprep.subr.mxu0 0.0
    %3132 = vmatpush1.msra.mxu0 0.0
    %3133 = vmatprep.subr.mxu0 0.0
    %3134 = vmatpush1.msra.mxu0 0.0
    %3135 = vmatprep.subr.mxu0 0.0
    %3136 = vmatpush1.msra.mxu0 0.0
    %3137 = vmatprep.subr.mxu0 0.0
    %3138 = vmatpush1.msra.mxu0 0.0
    %3139 = vmatprep.mubr.f32.mxu0 0.0
    %3140 = vmatmul.mubr.f32.gmra.mrb[0].mxu0 %v2932
    %v3141 = vpop.f32.mrb[0].mxu0
    %v3142 = vadd.f32 0.0, %v3141
    %v3143 = vpop.f32.mrb[0].mxu0
    %3144 = vdwg.mxu0
    %v3145 = vadd.f32 %v3142, %v2735
    %s3146 = scalar_lea.vmem %s6, 8
    %3147 = vst [vmem:[%s3146] sm:$0xff] %v3145
    %v3148 = vadd.f32 %v3145, %v2741
    %3149 = vmax.xlane.f32.xlu0 %v3148
    %v3150 = vpop.xlane.xlu0 %3149
    %vm3151 = vcmp.eq.f32.partialorder %v3148, %v3150
    %v3152 = vsel %vm3151, %v308, 128
    %v3153 = vand.u32 %v3152, 65535
    %v3154 = vshra.s32 %v3152, 16
    %v3155 = vcvt.s32.f32 %v3153
    %v3156 = vcvt.s32.f32 %v3154
    %3157 = vmin.xlane.f32.xlu0 %v3156
    %v3158 = vpop.xlane.xlu0 %3157
    %vm3159 = vcmp.eq.f32.partialorder %v3156, %v3158
    %v3160 = vsel %vm3159, %v3155, inf
    %3161 = vmin.xlane.f32.xlu0 %v3160
    %v3162 = vpop.xlane.xlu0 %3161
    %v3163 = vcvt.f32.s32 %v3162
    %v3164 = vcvt.f32.s32 %v3158
    %v3165 = vshll.u32 %v3164, 16
    %v3166 = vadd.s32 %v3165, %v3163
    %vm3167 = vcmp.eq.s32.totalorder %v308, %v3166
    %v3168 = vsel %vm3167, 1, 0
    %v3169 = vcvt.s32.f32 %v3168
    %v3171 = vsel %vm365, %v3169, 0
    %3173 = vmatprep.subr.mxu0 %v55
    %3174 = vmatpush1.msra.mxu0 %v54
    %3175 = vmatprep.subr.mxu0 %v63
    %3176 = vmatpush1.msra.mxu0 %v62
    %3177 = vmatprep.subr.mxu0 %v71
    %3178 = vmatpush1.msra.mxu0 %v70
    %3179 = vmatprep.subr.mxu0 %v79
    %3180 = vmatpush1.msra.mxu0 %v78
    %3181 = vmatprep.subr.mxu0 0.0
    %3182 = vmatpush1.msra.mxu0 0.0
    %3183 = vmatprep.subr.mxu0 0.0
    %3184 = vmatpush1.msra.mxu0 0.0
    %3185 = vmatprep.subr.mxu0 0.0
    %3186 = vmatpush1.msra.mxu0 0.0
    %3187 = vmatprep.subr.mxu0 0.0
    %3188 = vmatpush1.msra.mxu0 0.0
    %3189 = vmatprep.subr.mxu0 0.0
    %3190 = vmatpush1.msra.mxu0 0.0
    %3191 = vmatprep.subr.mxu0 0.0
    %3192 = vmatpush1.msra.mxu0 0.0
    %3193 = vmatprep.subr.mxu0 0.0
    %3194 = vmatpush1.msra.mxu0 0.0
    %3195 = vmatprep.subr.mxu0 0.0
    %3196 = vmatpush1.msra.mxu0 0.0
    %3197 = vmatprep.subr.mxu0 0.0
    %3198 = vmatpush1.msra.mxu0 0.0
    %3199 = vmatprep.subr.mxu0 0.0
    %3200 = vmatpush1.msra.mxu0 0.0
    %3201 = vmatprep.subr.mxu0 0.0
    %3202 = vmatpush1.msra.mxu0 0.0
    %3203 = vmatprep.subr.mxu0 0.0
    %3204 = vmatpush1.msra.mxu0 0.0
    %3205 = vmatprep.subr.mxu0 0.0
    %3206 = vmatpush1.msra.mxu0 0.0
    %3207 = vmatprep.subr.mxu0 0.0
    %3208 = vmatpush1.msra.mxu0 0.0
    %3209 = vmatprep.subr.mxu0 0.0
    %3210 = vmatpush1.msra.mxu0 0.0
    %3211 = vmatprep.subr.mxu0 0.0
    %3212 = vmatpush1.msra.mxu0 0.0
    %3213 = vmatprep.subr.mxu0 0.0
    %3214 = vmatpush1.msra.mxu0 0.0
    %3215 = vmatprep.subr.mxu0 0.0
    %3216 = vmatpush1.msra.mxu0 0.0
    %3217 = vmatprep.subr.mxu0 0.0
    %3218 = vmatpush1.msra.mxu0 0.0
    %3219 = vmatprep.subr.mxu0 0.0
    %3220 = vmatpush1.msra.mxu0 0.0
    %3221 = vmatprep.subr.mxu0 0.0
    %3222 = vmatpush1.msra.mxu0 0.0
    %3223 = vmatprep.subr.mxu0 0.0
    %3224 = vmatpush1.msra.mxu0 0.0
    %3225 = vmatprep.subr.mxu0 0.0
    %3226 = vmatpush1.msra.mxu0 0.0
    %3227 = vmatprep.subr.mxu0 0.0
    %3228 = vmatpush1.msra.mxu0 0.0
    %3229 = vmatprep.subr.mxu0 0.0
    %3230 = vmatpush1.msra.mxu0 0.0
    %3231 = vmatprep.subr.mxu0 0.0
    %3232 = vmatpush1.msra.mxu0 0.0
    %3233 = vmatprep.subr.mxu0 0.0
    %3234 = vmatpush1.msra.mxu0 0.0
    %3235 = vmatprep.subr.mxu0 0.0
    %3236 = vmatpush1.msra.mxu0 0.0
    %3237 = vmatprep.mubr.f32.mxu0 0.0
    %3238 = vmatmul.mubr.f32.gmra.mrb[0].mxu0 %v3171
    %v3239 = vpop.f32.mrb[0].mxu0
    %v3240 = vadd.f32 %v3000, %v3239
    %v3241 = vpop.f32.mrb[0].mxu0
    %v3242 = vadd.f32 %v3002, %v3241
    %3243 = vdwg.mxu0
    %3244 = vmatprep.subr.mxu0 %v57
    %3245 = vmatpush1.msra.mxu0 %v56
    %3246 = vmatprep.subr.mxu0 %v65
    %3247 = vmatpush1.msra.mxu0 %v64
    %3248 = vmatprep.subr.mxu0 %v73
    %3249 = vmatpush1.msra.mxu0 %v72
    %3250 = vmatprep.subr.mxu0 %v81
    %3251 = vmatpush1.msra.mxu0 %v80
    %3252 = vmatprep.subr.mxu0 0.0
    %3253 = vmatpush1.msra.mxu0 0.0
    %3254 = vmatprep.subr.mxu0 0.0
    %3255 = vmatpush1.msra.mxu0 0.0
    %3256 = vmatprep.subr.mxu0 0.0
    %3257 = vmatpush1.msra.mxu0 0.0
    %3258 = vmatprep.subr.mxu0 0.0
    %3259 = vmatpush1.msra.mxu0 0.0
    %3260 = vmatprep.subr.mxu0 0.0
    %3261 = vmatpush1.msra.mxu0 0.0
    %3262 = vmatprep.subr.mxu0 0.0
    %3263 = vmatpush1.msra.mxu0 0.0
    %3264 = vmatprep.subr.mxu0 0.0
    %3265 = vmatpush1.msra.mxu0 0.0
    %3266 = vmatprep.subr.mxu0 0.0
    %3267 = vmatpush1.msra.mxu0 0.0
    %3268 = vmatprep.subr.mxu0 0.0
    %3269 = vmatpush1.msra.mxu0 0.0
    %3270 = vmatprep.subr.mxu0 0.0
    %3271 = vmatpush1.msra.mxu0 0.0
    %3272 = vmatprep.subr.mxu0 0.0
    %3273 = vmatpush1.msra.mxu0 0.0
    %3274 = vmatprep.subr.mxu0 0.0
    %3275 = vmatpush1.msra.mxu0 0.0
    %3276 = vmatprep.subr.mxu0 0.0
    %3277 = vmatpush1.msra.mxu0 0.0
    %3278 = vmatprep.subr.mxu0 0.0
    %3279 = vmatpush1.msra.mxu0 0.0
    %3280 = vmatprep.subr.mxu0 0.0
    %3281 = vmatpush1.msra.mxu0 0.0
    %3282 = vmatprep.subr.mxu0 0.0
    %3283 = vmatpush1.msra.mxu0 0.0
    %3284 = vmatprep.subr.mxu0 0.0
    %3285 = vmatpush1.msra.mxu0 0.0
    %3286 = vmatprep.subr.mxu0 0.0
    %3287 = vmatpush1.msra.mxu0 0.0
    %3288 = vmatprep.subr.mxu0 0.0
    %3289 = vmatpush1.msra.mxu0 0.0
    %3290 = vmatprep.subr.mxu0 0.0
    %3291 = vmatpush1.msra.mxu0 0.0
    %3292 = vmatprep.subr.mxu0 0.0
    %3293 = vmatpush1.msra.mxu0 0.0
    %3294 = vmatprep.subr.mxu0 0.0
    %3295 = vmatpush1.msra.mxu0 0.0
    %3296 = vmatprep.subr.mxu0 0.0
    %3297 = vmatpush1.msra.mxu0 0.0
    %3298 = vmatprep.subr.mxu0 0.0
    %3299 = vmatpush1.msra.mxu0 0.0
    %3300 = vmatprep.subr.mxu0 0.0
    %3301 = vmatpush1.msra.mxu0 0.0
    %3302 = vmatprep.subr.mxu0 0.0
    %3303 = vmatpush1.msra.mxu0 0.0
    %3304 = vmatprep.subr.mxu0 0.0
    %3305 = vmatpush1.msra.mxu0 0.0
    %3306 = vmatprep.subr.mxu0 0.0
    %3307 = vmatpush1.msra.mxu0 0.0
    %3308 = vmatprep.mubr.f32.mxu0 0.0
    %3309 = vmatmul.mubr.f32.gmra.mrb[0].mxu0 %v3171
    %v3310 = vpop.f32.mrb[0].mxu0
    %v3311 = vadd.f32 %v3071, %v3310
    %v3312 = vpop.f32.mrb[0].mxu0
    %v3313 = vadd.f32 %v3073, %v3312
    %3314 = vdwg.mxu0
    %v3315 = vxor.u32 %v3240, 2147483648
    %v3316 = vxor.u32 %v3242, 2147483648
    %v3317 = vxor.u32 %v3311, 2147483648
    %v3318 = vmul.f32 %v3315, 1.442695
    %v3319 = vpow.pop %v3318
    %v3320 = vmul.f32 %v3316, 1.442695
    %v3321 = vpow.pop %v3320
    %v3322 = vmul.f32 %v3317, 1.442695
    %v3323 = vpow.pop %v3322
    %v3324 = vadd.f32 %v3319, 1.0
    %v3325 = vadd.f32 %v3321, 1.0
    %v3326 = vadd.f32 %v3323, 1.0
    %v3327 = vrcp.pop %v3324
    %v3328 = vmul.f32 1.0, %v3327
    %v3329 = vrcp.pop %v3325
    %v3330 = vmul.f32 1.0, %v3329
    %v3331 = vrcp.pop %v3326
    %v3332 = vmul.f32 1.0, %v3331
    %v3333 = vtanh.pop %v3313
    %v3334 = vmul.f32 %v3330, %v2930
    %v3335 = vmul.f32 %v3328, %v3333
    %v3336 = vadd.f32 %v3334, %v3335
    %v3337 = vtanh.pop %v3336
    %v3338 = vmul.f32 %v3332, %v3337
    %3339 = vmatprep.subr.mxu0 %v87
    %3340 = vmatpush1.msra.mxu0 %v86
    %3341 = vmatprep.subr.mxu0 %v101
    %3342 = vmatpush1.msra.mxu0 %v100
    %3343 = vmatprep.subr.mxu0 %v115
    %3344 = vmatpush1.msra.mxu0 %v114
    %3345 = vmatprep.subr.mxu0 %v129
    %3346 = vmatpush1.msra.mxu0 %v128
    %3347 = vmatprep.subr.mxu0 %v143
    %3348 = vmatpush1.msra.mxu0 %v142
    %3349 = vmatprep.subr.mxu0 %v157
    %3350 = vmatpush1.msra.mxu0 %v156
    %3351 = vmatprep.subr.mxu0 %v171
    %3352 = vmatpush1.msra.mxu0 %v170
    %3353 = vmatprep.subr.mxu0 %v185
    %3354 = vmatpush1.msra.mxu0 %v184
    %3355 = vmatprep.subr.mxu0 %v199
    %3356 = vmatpush1.msra.mxu0 %v198
    %3357 = vmatprep.subr.mxu0 %v213
    %3358 = vmatpush1.msra.mxu0 %v212
    %3359 = vmatprep.subr.mxu0 %v227
    %3360 = vmatpush1.msra.mxu0 %v226
    %3361 = vmatprep.subr.mxu0 %v241
    %3362 = vmatpush1.msra.mxu0 %v240
    %3363 = vmatprep.subr.mxu0 %v255
    %3364 = vmatpush1.msra.mxu0 %v254
    %3365 = vmatprep.subr.mxu0 %v269
    %3366 = vmatpush1.msra.mxu0 %v268
    %3367 = vmatprep.subr.mxu0 %v283
    %3368 = vmatpush1.msra.mxu0 %v282
    %3369 = vmatprep.subr.mxu0 %v297
    %3370 = vmatpush1.msra.mxu0 %v296
    %3371 = vmatprep.subr.mxu0 0.0
    %3372 = vmatpush1.msra.mxu0 0.0
    %3373 = vmatprep.subr.mxu0 0.0
    %3374 = vmatpush1.msra.mxu0 0.0
    %3375 = vmatprep.subr.mxu0 0.0
    %3376 = vmatpush1.msra.mxu0 0.0
    %3377 = vmatprep.subr.mxu0 0.0
    %3378 = vmatpush1.msra.mxu0 0.0
    %3379 = vmatprep.subr.mxu0 0.0
    %3380 = vmatpush1.msra.mxu0 0.0
    %3381 = vmatprep.subr.mxu0 0.0
    %3382 = vmatpush1.msra.mxu0 0.0
    %3383 = vmatprep.subr.mxu0 0.0
    %3384 = vmatpush1.msra.mxu0 0.0
    %3385 = vmatprep.subr.mxu0 0.0
    %3386 = vmatpush1.msra.mxu0 0.0
    %3387 = vmatprep.subr.mxu0 0.0
    %3388 = vmatpush1.msra.mxu0 0.0
    %3389 = vmatprep.subr.mxu0 0.0
    %3390 = vmatpush1.msra.mxu0 0.0
    %3391 = vmatprep.subr.mxu0 0.0
    %3392 = vmatpush1.msra.mxu0 0.0
    %3393 = vmatprep.subr.mxu0 0.0
    %3394 = vmatpush1.msra.mxu0 0.0
    %3395 = vmatprep.subr.mxu0 0.0
    %3396 = vmatpush1.msra.mxu0 0.0
    %3397 = vmatprep.subr.mxu0 0.0
    %3398 = vmatpush1.msra.mxu0 0.0
    %3399 = vmatprep.subr.mxu0 0.0
    %3400 = vmatpush1.msra.mxu0 0.0
    %3401 = vmatprep.subr.mxu0 0.0
    %3402 = vmatpush1.msra.mxu0 0.0
    %3403 = vmatprep.mubr.f32.mxu0 0.0
    %3404 = vmatmul.mubr.f32.gmra.mrb[0].mxu0 %v3338
    %v3405 = vpop.f32.mrb[0].mxu0
    %v3406 = vadd.f32 0.0, %v3405
    %v3407 = vpop.f32.mrb[0].mxu0
    %v3408 = vadd.f32 0.0, %v3407
    %3409 = vdwg.mxu0
    %3410 = vmatprep.subr.mxu0 %v89
    %3411 = vmatpush1.msra.mxu0 %v88
    %3412 = vmatprep.subr.mxu0 %v103
    %3413 = vmatpush1.msra.mxu0 %v102
    %3414 = vmatprep.subr.mxu0 %v117
    %3415 = vmatpush1.msra.mxu0 %v116
    %3416 = vmatprep.subr.mxu0 %v131
    %3417 = vmatpush1.msra.mxu0 %v130
    %3418 = vmatprep.subr.mxu0 %v145
    %3419 = vmatpush1.msra.mxu0 %v144
    %3420 = vmatprep.subr.mxu0 %v159
    %3421 = vmatpush1.msra.mxu0 %v158
    %3422 = vmatprep.subr.mxu0 %v173
    %3423 = vmatpush1.msra.mxu0 %v172
    %3424 = vmatprep.subr.mxu0 %v187
    %3425 = vmatpush1.msra.mxu0 %v186
    %3426 = vmatprep.subr.mxu0 %v201
    %3427 = vmatpush1.msra.mxu0 %v200
    %3428 = vmatprep.subr.mxu0 %v215
    %3429 = vmatpush1.msra.mxu0 %v214
    %3430 = vmatprep.subr.mxu0 %v229
    %3431 = vmatpush1.msra.mxu0 %v228
    %3432 = vmatprep.subr.mxu0 %v243
    %3433 = vmatpush1.msra.mxu0 %v242
    %3434 = vmatprep.subr.mxu0 %v257
    %3435 = vmatpush1.msra.mxu0 %v256
    %3436 = vmatprep.subr.mxu0 %v271
    %3437 = vmatpush1.msra.mxu0 %v270
    %3438 = vmatprep.subr.mxu0 %v285
    %3439 = vmatpush1.msra.mxu0 %v284
    %3440 = vmatprep.subr.mxu0 %v299
    %3441 = vmatpush1.msra.mxu0 %v298
    %3442 = vmatprep.subr.mxu0 0.0
    %3443 = vmatpush1.msra.mxu0 0.0
    %3444 = vmatprep.subr.mxu0 0.0
    %3445 = vmatpush1.msra.mxu0 0.0
    %3446 = vmatprep.subr.mxu0 0.0
    %3447 = vmatpush1.msra.mxu0 0.0
    %3448 = vmatprep.subr.mxu0 0.0
    %3449 = vmatpush1.msra.mxu0 0.0
    %3450 = vmatprep.subr.mxu0 0.0
    %3451 = vmatpush1.msra.mxu0 0.0
    %3452 = vmatprep.subr.mxu0 0.0
    %3453 = vmatpush1.msra.mxu0 0.0
    %3454 = vmatprep.subr.mxu0 0.0
    %3455 = vmatpush1.msra.mxu0 0.0
    %3456 = vmatprep.subr.mxu0 0.0
    %3457 = vmatpush1.msra.mxu0 0.0
    %3458 = vmatprep.subr.mxu0 0.0
    %3459 = vmatpush1.msra.mxu0 0.0
    %3460 = vmatprep.subr.mxu0 0.0
    %3461 = vmatpush1.msra.mxu0 0.0
    %3462 = vmatprep.subr.mxu0 0.0
    %3463 = vmatpush1.msra.mxu0 0.0
    %3464 = vmatprep.subr.mxu0 0.0
    %3465 = vmatpush1.msra.mxu0 0.0
    %3466 = vmatprep.subr.mxu0 0.0
    %3467 = vmatpush1.msra.mxu0 0.0
    %3468 = vmatprep.subr.mxu0 0.0
    %3469 = vmatpush1.msra.mxu0 0.0
    %3470 = vmatprep.subr.mxu0 0.0
    %3471 = vmatpush1.msra.mxu0 0.0
    %3472 = vmatprep.subr.mxu0 0.0
    %3473 = vmatpush1.msra.mxu0 0.0
    %3474 = vmatprep.mubr.f32.mxu0 0.0
    %3475 = vmatmul.mubr.f32.gmra.mrb[0].mxu0 %v3338
    %v3476 = vpop.f32.mrb[0].mxu0
    %v3477 = vadd.f32 0.0, %v3476
    %v3478 = vpop.f32.mrb[0].mxu0
    %v3479 = vadd.f32 0.0, %v3478
    %3480 = vdwg.mxu0
    %3481 = vmatprep.subr.mxu0 0.0
    %3482 = vmatpush1.msra.mxu0 %v90
    %3483 = vmatprep.subr.mxu0 0.0
    %3484 = vmatpush1.msra.mxu0 %v104
    %3485 = vmatprep.subr.mxu0 0.0
    %3486 = vmatpush1.msra.mxu0 %v118
    %3487 = vmatprep.subr.mxu0 0.0
    %3488 = vmatpush1.msra.mxu0 %v132
    %3489 = vmatprep.subr.mxu0 0.0
    %3490 = vmatpush1.msra.mxu0 %v146
    %3491 = vmatprep.subr.mxu0 0.0
    %3492 = vmatpush1.msra.mxu0 %v160
    %3493 = vmatprep.subr.mxu0 0.0
    %3494 = vmatpush1.msra.mxu0 %v174
    %3495 = vmatprep.subr.mxu0 0.0
    %3496 = vmatpush1.msra.mxu0 %v188
    %3497 = vmatprep.subr.mxu0 0.0
    %3498 = vmatpush1.msra.mxu0 %v202
    %3499 = vmatprep.subr.mxu0 0.0
    %3500 = vmatpush1.msra.mxu0 %v216
    %3501 = vmatprep.subr.mxu0 0.0
    %3502 = vmatpush1.msra.mxu0 %v230
    %3503 = vmatprep.subr.mxu0 0.0
    %3504 = vmatpush1.msra.mxu0 %v244
    %3505 = vmatprep.subr.mxu0 0.0
    %3506 = vmatpush1.msra.mxu0 %v258
    %3507 = vmatprep.subr.mxu0 0.0
    %3508 = vmatpush1.msra.mxu0 %v272
    %3509 = vmatprep.subr.mxu0 0.0
    %3510 = vmatpush1.msra.mxu0 %v286
    %3511 = vmatprep.subr.mxu0 0.0
    %3512 = vmatpush1.msra.mxu0 %v300
    %3513 = vmatprep.subr.mxu0 0.0
    %3514 = vmatpush1.msra.mxu0 0.0
    %3515 = vmatprep.subr.mxu0 0.0
    %3516 = vmatpush1.msra.mxu0 0.0
    %3517 = vmatprep.subr.mxu0 0.0
    %3518 = vmatpush1.msra.mxu0 0.0
    %3519 = vmatprep.subr.mxu0 0.0
    %3520 = vmatpush1.msra.mxu0 0.0
    %3521 = vmatprep.subr.mxu0 0.0
    %3522 = vmatpush1.msra.mxu0 0.0
    %3523 = vmatprep.subr.mxu0 0.0
    %3524 = vmatpush1.msra.mxu0 0.0
    %3525 = vmatprep.subr.mxu0 0.0
    %3526 = vmatpush1.msra.mxu0 0.0
    %3527 = vmatprep.subr.mxu0 0.0
    %3528 = vmatpush1.msra.mxu0 0.0
    %3529 = vmatprep.subr.mxu0 0.0
    %3530 = vmatpush1.msra.mxu0 0.0
    %3531 = vmatprep.subr.mxu0 0.0
    %3532 = vmatpush1.msra.mxu0 0.0
    %3533 = vmatprep.subr.mxu0 0.0
    %3534 = vmatpush1.msra.mxu0 0.0
    %3535 = vmatprep.subr.mxu0 0.0
    %3536 = vmatpush1.msra.mxu0 0.0
    %3537 = vmatprep.subr.mxu0 0.0
    %3538 = vmatpush1.msra.mxu0 0.0
    %3539 = vmatprep.subr.mxu0 0.0
    %3540 = vmatpush1.msra.mxu0 0.0
    %3541 = vmatprep.subr.mxu0 0.0
    %3542 = vmatpush1.msra.mxu0 0.0
    %3543 = vmatprep.subr.mxu0 0.0
    %3544 = vmatpush1.msra.mxu0 0.0
    %3545 = vmatprep.mubr.f32.mxu0 0.0
    %3546 = vmatmul.mubr.f32.gmra.mrb[0].mxu0 %v3338
    %v3547 = vpop.f32.mrb[0].mxu0
    %v3548 = vadd.f32 0.0, %v3547
    %v3549 = vpop.f32.mrb[0].mxu0
    %3550 = vdwg.mxu0
    %v3551 = vadd.f32 %v3548, %v2735
    %s3552 = scalar_lea.vmem %s6, 16
    %3553 = vst [vmem:[%s3552] sm:$0xff] %v3551
    %v3554 = vadd.f32 %v3551, %v2741
    %3555 = vmax.xlane.f32.xlu0 %v3554
    %v3556 = vpop.xlane.xlu0 %3555
    %vm3557 = vcmp.eq.f32.partialorder %v3554, %v3556
    %v3558 = vsel %vm3557, %v308, 128
    %v3559 = vand.u32 %v3558, 65535
    %v3560 = vshra.s32 %v3558, 16
    %v3561 = vcvt.s32.f32 %v3559
    %v3562 = vcvt.s32.f32 %v3560
    %3563 = vmin.xlane.f32.xlu0 %v3562
    %v3564 = vpop.xlane.xlu0 %3563
    %vm3565 = vcmp.eq.f32.partialorder %v3562, %v3564
    %v3566 = vsel %vm3565, %v3561, inf
    %3567 = vmin.xlane.f32.xlu0 %v3566
    %v3568 = vpop.xlane.xlu0 %3567
    %v3569 = vcvt.f32.s32 %v3568
    %v3570 = vcvt.f32.s32 %v3564
    %v3571 = vshll.u32 %v3570, 16
    %v3572 = vadd.s32 %v3571, %v3569
    %vm3573 = vcmp.eq.s32.totalorder %v308, %v3572
    %v3574 = vsel %vm3573, 1, 0
    %v3575 = vcvt.s32.f32 %v3574
    %v3577 = vsel %vm365, %v3575, 0
    %3579 = vmatprep.subr.mxu0 %v55
    %3580 = vmatpush1.msra.mxu0 %v54
    %3581 = vmatprep.subr.mxu0 %v63
    %3582 = vmatpush1.msra.mxu0 %v62
    %3583 = vmatprep.subr.mxu0 %v71
    %3584 = vmatpush1.msra.mxu0 %v70
    %3585 = vmatprep.subr.mxu0 %v79
    %3586 = vmatpush1.msra.mxu0 %v78
    %3587 = vmatprep.subr.mxu0 0.0
    %3588 = vmatpush1.msra.mxu0 0.0
    %3589 = vmatprep.subr.mxu0 0.0
    %3590 = vmatpush1.msra.mxu0 0.0
    %3591 = vmatprep.subr.mxu0 0.0
    %3592 = vmatpush1.msra.mxu0 0.0
    %3593 = vmatprep.subr.mxu0 0.0
    %3594 = vmatpush1.msra.mxu0 0.0
    %3595 = vmatprep.subr.mxu0 0.0
    %3596 = vmatpush1.msra.mxu0 0.0
    %3597 = vmatprep.subr.mxu0 0.0
    %3598 = vmatpush1.msra.mxu0 0.0
    %3599 = vmatprep.subr.mxu0 0.0
    %3600 = vmatpush1.msra.mxu0 0.0
    %3601 = vmatprep.subr.mxu0 0.0
    %3602 = vmatpush1.msra.mxu0 0.0
    %3603 = vmatprep.subr.mxu0 0.0
    %3604 = vmatpush1.msra.mxu0 0.0
    %3605 = vmatprep.subr.mxu0 0.0
    %3606 = vmatpush1.msra.mxu0 0.0
    %3607 = vmatprep.subr.mxu0 0.0
    %3608 = vmatpush1.msra.mxu0 0.0
    %3609 = vmatprep.subr.mxu0 0.0
    %3610 = vmatpush1.msra.mxu0 0.0
    %3611 = vmatprep.subr.mxu0 0.0
    %3612 = vmatpush1.msra.mxu0 0.0
    %3613 = vmatprep.subr.mxu0 0.0
    %3614 = vmatpush1.msra.mxu0 0.0
    %3615 = vmatprep.subr.mxu0 0.0
    %3616 = vmatpush1.msra.mxu0 0.0
    %3617 = vmatprep.subr.mxu0 0.0
    %3618 = vmatpush1.msra.mxu0 0.0
    %3619 = vmatprep.subr.mxu0 0.0
    %3620 = vmatpush1.msra.mxu0 0.0
    %3621 = vmatprep.subr.mxu0 0.0
    %3622 = vmatpush1.msra.mxu0 0.0
    %3623 = vmatprep.subr.mxu0 0.0
    %3624 = vmatpush1.msra.mxu0 0.0
    %3625 = vmatprep.subr.mxu0 0.0
    %3626 = vmatpush1.msra.mxu0 0.0
    %3627 = vmatprep.subr.mxu0 0.0
    %3628 = vmatpush1.msra.mxu0 0.0
    %3629 = vmatprep.subr.mxu0 0.0
    %3630 = vmatpush1.msra.mxu0 0.0
    %3631 = vmatprep.subr.mxu0 0.0
    %3632 = vmatpush1.msra.mxu0 0.0
    %3633 = vmatprep.subr.mxu0 0.0
    %3634 = vmatpush1.msra.mxu0 0.0
    %3635 = vmatprep.subr.mxu0 0.0
    %3636 = vmatpush1.msra.mxu0 0.0
    %3637 = vmatprep.subr.mxu0 0.0
    %3638 = vmatpush1.msra.mxu0 0.0
    %3639 = vmatprep.subr.mxu0 0.0
    %3640 = vmatpush1.msra.mxu0 0.0
    %3641 = vmatprep.subr.mxu0 0.0
    %3642 = vmatpush1.msra.mxu0 0.0
    %3643 = vmatprep.mubr.f32.mxu0 0.0
    %3644 = vmatmul.mubr.f32.gmra.mrb[0].mxu0 %v3577
    %v3645 = vpop.f32.mrb[0].mxu0
    %v3646 = vadd.f32 %v3406, %v3645
    %v3647 = vpop.f32.mrb[0].mxu0
    %v3648 = vadd.f32 %v3408, %v3647
    %3649 = vdwg.mxu0
    %3650 = vmatprep.subr.mxu0 %v57
    %3651 = vmatpush1.msra.mxu0 %v56
    %3652 = vmatprep.subr.mxu0 %v65
    %3653 = vmatpush1.msra.mxu0 %v64
    %3654 = vmatprep.subr.mxu0 %v73
    %3655 = vmatpush1.msra.mxu0 %v72
    %3656 = vmatprep.subr.mxu0 %v81
    %3657 = vmatpush1.msra.mxu0 %v80
    %3658 = vmatprep.subr.mxu0 0.0
    %3659 = vmatpush1.msra.mxu0 0.0
    %3660 = vmatprep.subr.mxu0 0.0
    %3661 = vmatpush1.msra.mxu0 0.0
    %3662 = vmatprep.subr.mxu0 0.0
    %3663 = vmatpush1.msra.mxu0 0.0
    %3664 = vmatprep.subr.mxu0 0.0
    %3665 = vmatpush1.msra.mxu0 0.0
    %3666 = vmatprep.subr.mxu0 0.0
    %3667 = vmatpush1.msra.mxu0 0.0
    %3668 = vmatprep.subr.mxu0 0.0
    %3669 = vmatpush1.msra.mxu0 0.0
    %3670 = vmatprep.subr.mxu0 0.0
    %3671 = vmatpush1.msra.mxu0 0.0
    %3672 = vmatprep.subr.mxu0 0.0
    %3673 = vmatpush1.msra.mxu0 0.0
    %3674 = vmatprep.subr.mxu0 0.0
    %3675 = vmatpush1.msra.mxu0 0.0
    %3676 = vmatprep.subr.mxu0 0.0
    %3677 = vmatpush1.msra.mxu0 0.0
    %3678 = vmatprep.subr.mxu0 0.0
    %3679 = vmatpush1.msra.mxu0 0.0
    %3680 = vmatprep.subr.mxu0 0.0
    %3681 = vmatpush1.msra.mxu0 0.0
    %3682 = vmatprep.subr.mxu0 0.0
    %3683 = vmatpush1.msra.mxu0 0.0
    %3684 = vmatprep.subr.mxu0 0.0
    %3685 = vmatpush1.msra.mxu0 0.0
    %3686 = vmatprep.subr.mxu0 0.0
    %3687 = vmatpush1.msra.mxu0 0.0
    %3688 = vmatprep.subr.mxu0 0.0
    %3689 = vmatpush1.msra.mxu0 0.0
    %3690 = vmatprep.subr.mxu0 0.0
    %3691 = vmatpush1.msra.mxu0 0.0
    %3692 = vmatprep.subr.mxu0 0.0
    %3693 = vmatpush1.msra.mxu0 0.0
    %3694 = vmatprep.subr.mxu0 0.0
    %3695 = vmatpush1.msra.mxu0 0.0
    %3696 = vmatprep.subr.mxu0 0.0
    %3697 = vmatpush1.msra.mxu0 0.0
    %3698 = vmatprep.subr.mxu0 0.0
    %3699 = vmatpush1.msra.mxu0 0.0
    %3700 = vmatprep.subr.mxu0 0.0
    %3701 = vmatpush1.msra.mxu0 0.0
    %3702 = vmatprep.subr.mxu0 0.0
    %3703 = vmatpush1.msra.mxu0 0.0
    %3704 = vmatprep.subr.mxu0 0.0
    %3705 = vmatpush1.msra.mxu0 0.0
    %3706 = vmatprep.subr.mxu0 0.0
    %3707 = vmatpush1.msra.mxu0 0.0
    %3708 = vmatprep.subr.mxu0 0.0
    %3709 = vmatpush1.msra.mxu0 0.0
    %3710 = vmatprep.subr.mxu0 0.0
    %3711 = vmatpush1.msra.mxu0 0.0
    %3712 = vmatprep.subr.mxu0 0.0
    %3713 = vmatpush1.msra.mxu0 0.0
    %3714 = vmatprep.mubr.f32.mxu0 0.0
    %3715 = vmatmul.mubr.f32.gmra.mrb[0].mxu0 %v3577
    %v3716 = vpop.f32.mrb[0].mxu0
    %v3717 = vadd.f32 %v3477, %v3716
    %v3718 = vpop.f32.mrb[0].mxu0
    %v3719 = vadd.f32 %v3479, %v3718
    %3720 = vdwg.mxu0
    %v3721 = vxor.u32 %v3646, 2147483648
    %v3722 = vxor.u32 %v3648, 2147483648
    %v3723 = vxor.u32 %v3717, 2147483648
    %v3724 = vmul.f32 %v3721, 1.442695
    %v3725 = vpow.pop %v3724
    %v3726 = vmul.f32 %v3722, 1.442695
    %v3727 = vpow.pop %v3726
    %v3728 = vmul.f32 %v3723, 1.442695
    %v3729 = vpow.pop %v3728
    %v3730 = vadd.f32 %v3725, 1.0
    %v3731 = vadd.f32 %v3727, 1.0
    %v3732 = vadd.f32 %v3729, 1.0
    %v3733 = vrcp.pop %v3730
    %v3734 = vmul.f32 1.0, %v3733
    %v3735 = vrcp.pop %v3731
    %v3736 = vmul.f32 1.0, %v3735
    %v3737 = vrcp.pop %v3732
    %v3738 = vmul.f32 1.0, %v3737
    %v3739 = vtanh.pop %v3719
    %v3740 = vmul.f32 %v3736, %v3336
    %v3741 = vmul.f32 %v3734, %v3739
    %v3742 = vadd.f32 %v3740, %v3741
    %v3743 = vtanh.pop %v3742
    %v3744 = vmul.f32 %v3738, %v3743
    %3745 = vmatprep.subr.mxu0 %v87
    %3746 = vmatpush1.msra.mxu0 %v86
    %3747 = vmatprep.subr.mxu0 %v101
    %3748 = vmatpush1.msra.mxu0 %v100
    %3749 = vmatprep.subr.mxu0 %v115
    %3750 = vmatpush1.msra.mxu0 %v114
    %3751 = vmatprep.subr.mxu0 %v129
    %3752 = vmatpush1.msra.mxu0 %v128
    %3753 = vmatprep.subr.mxu0 %v143
    %3754 = vmatpush1.msra.mxu0 %v142
    %3755 = vmatprep.subr.mxu0 %v157
    %3756 = vmatpush1.msra.mxu0 %v156
    %3757 = vmatprep.subr.mxu0 %v171
    %3758 = vmatpush1.msra.mxu0 %v170
    %3759 = vmatprep.subr.mxu0 %v185
    %3760 = vmatpush1.msra.mxu0 %v184
    %3761 = vmatprep.subr.mxu0 %v199
    %3762 = vmatpush1.msra.mxu0 %v198
    %3763 = vmatprep.subr.mxu0 %v213
    %3764 = vmatpush1.msra.mxu0 %v212
    %3765 = vmatprep.subr.mxu0 %v227
    %3766 = vmatpush1.msra.mxu0 %v226
    %3767 = vmatprep.subr.mxu0 %v241
    %3768 = vmatpush1.msra.mxu0 %v240
    %3769 = vmatprep.subr.mxu0 %v255
    %3770 = vmatpush1.msra.mxu0 %v254
    %3771 = vmatprep.subr.mxu0 %v269
    %3772 = vmatpush1.msra.mxu0 %v268
    %3773 = vmatprep.subr.mxu0 %v283
    %3774 = vmatpush1.msra.mxu0 %v282
    %3775 = vmatprep.subr.mxu0 %v297
    %3776 = vmatpush1.msra.mxu0 %v296
    %3777 = vmatprep.subr.mxu0 0.0
    %3778 = vmatpush1.msra.mxu0 0.0
    %3779 = vmatprep.subr.mxu0 0.0
    %3780 = vmatpush1.msra.mxu0 0.0
    %3781 = vmatprep.subr.mxu0 0.0
    %3782 = vmatpush1.msra.mxu0 0.0
    %3783 = vmatprep.subr.mxu0 0.0
    %3784 = vmatpush1.msra.mxu0 0.0
    %3785 = vmatprep.subr.mxu0 0.0
    %3786 = vmatpush1.msra.mxu0 0.0
    %3787 = vmatprep.subr.mxu0 0.0
    %3788 = vmatpush1.msra.mxu0 0.0
    %3789 = vmatprep.subr.mxu0 0.0
    %3790 = vmatpush1.msra.mxu0 0.0
    %3791 = vmatprep.subr.mxu0 0.0
    %3792 = vmatpush1.msra.mxu0 0.0
    %3793 = vmatprep.subr.mxu0 0.0
    %3794 = vmatpush1.msra.mxu0 0.0
    %3795 = vmatprep.subr.mxu0 0.0
    %3796 = vmatpush1.msra.mxu0 0.0
    %3797 = vmatprep.subr.mxu0 0.0
    %3798 = vmatpush1.msra.mxu0 0.0
    %3799 = vmatprep.subr.mxu0 0.0
    %3800 = vmatpush1.msra.mxu0 0.0
    %3801 = vmatprep.subr.mxu0 0.0
    %3802 = vmatpush1.msra.mxu0 0.0
    %3803 = vmatprep.subr.mxu0 0.0
    %3804 = vmatpush1.msra.mxu0 0.0
    %3805 = vmatprep.subr.mxu0 0.0
    %3806 = vmatpush1.msra.mxu0 0.0
    %3807 = vmatprep.subr.mxu0 0.0
    %3808 = vmatpush1.msra.mxu0 0.0
    %3809 = vmatprep.mubr.f32.mxu0 0.0
    %3810 = vmatmul.mubr.f32.gmra.mrb[0].mxu0 %v3744
    %v3811 = vpop.f32.mrb[0].mxu0
    %v3812 = vadd.f32 0.0, %v3811
    %v3813 = vpop.f32.mrb[0].mxu0
    %v3814 = vadd.f32 0.0, %v3813
    %3815 = vdwg.mxu0
    %3816 = vmatprep.subr.mxu0 %v89
    %3817 = vmatpush1.msra.mxu0 %v88
    %3818 = vmatprep.subr.mxu0 %v103
    %3819 = vmatpush1.msra.mxu0 %v102
    %3820 = vmatprep.subr.mxu0 %v117
    %3821 = vmatpush1.msra.mxu0 %v116
    %3822 = vmatprep.subr.mxu0 %v131
    %3823 = vmatpush1.msra.mxu0 %v130
    %3824 = vmatprep.subr.mxu0 %v145
    %3825 = vmatpush1.msra.mxu0 %v144
    %3826 = vmatprep.subr.mxu0 %v159
    %3827 = vmatpush1.msra.mxu0 %v158
    %3828 = vmatprep.subr.mxu0 %v173
    %3829 = vmatpush1.msra.mxu0 %v172
    %3830 = vmatprep.subr.mxu0 %v187
    %3831 = vmatpush1.msra.mxu0 %v186
    %3832 = vmatprep.subr.mxu0 %v201
    %3833 = vmatpush1.msra.mxu0 %v200
    %3834 = vmatprep.subr.mxu0 %v215
    %3835 = vmatpush1.msra.mxu0 %v214
    %3836 = vmatprep.subr.mxu0 %v229
    %3837 = vmatpush1.msra.mxu0 %v228
    %3838 = vmatprep.subr.mxu0 %v243
    %3839 = vmatpush1.msra.mxu0 %v242
    %3840 = vmatprep.subr.mxu0 %v257
    %3841 = vmatpush1.msra.mxu0 %v256
    %3842 = vmatprep.subr.mxu0 %v271
    %3843 = vmatpush1.msra.mxu0 %v270
    %3844 = vmatprep.subr.mxu0 %v285
    %3845 = vmatpush1.msra.mxu0 %v284
    %3846 = vmatprep.subr.mxu0 %v299
    %3847 = vmatpush1.msra.mxu0 %v298
    %3848 = vmatprep.subr.mxu0 0.0
    %3849 = vmatpush1.msra.mxu0 0.0
    %3850 = vmatprep.subr.mxu0 0.0
    %3851 = vmatpush1.msra.mxu0 0.0
    %3852 = vmatprep.subr.mxu0 0.0
    %3853 = vmatpush1.msra.mxu0 0.0
    %3854 = vmatprep.subr.mxu0 0.0
    %3855 = vmatpush1.msra.mxu0 0.0
    %3856 = vmatprep.subr.mxu0 0.0
    %3857 = vmatpush1.msra.mxu0 0.0
    %3858 = vmatprep.subr.mxu0 0.0
    %3859 = vmatpush1.msra.mxu0 0.0
    %3860 = vmatprep.subr.mxu0 0.0
    %3861 = vmatpush1.msra.mxu0 0.0
    %3862 = vmatprep.subr.mxu0 0.0
    %3863 = vmatpush1.msra.mxu0 0.0
    %3864 = vmatprep.subr.mxu0 0.0
    %3865 = vmatpush1.msra.mxu0 0.0
    %3866 = vmatprep.subr.mxu0 0.0
    %3867 = vmatpush1.msra.mxu0 0.0
    %3868 = vmatprep.subr.mxu0 0.0
    %3869 = vmatpush1.msra.mxu0 0.0
    %3870 = vmatprep.subr.mxu0 0.0
    %3871 = vmatpush1.msra.mxu0 0.0
    %3872 = vmatprep.subr.mxu0 0.0
    %3873 = vmatpush1.msra.mxu0 0.0
    %3874 = vmatprep.subr.mxu0 0.0
    %3875 = vmatpush1.msra.mxu0 0.0
    %3876 = vmatprep.subr.mxu0 0.0
    %3877 = vmatpush1.msra.mxu0 0.0
    %3878 = vmatprep.subr.mxu0 0.0
    %3879 = vmatpush1.msra.mxu0 0.0
    %3880 = vmatprep.mubr.f32.mxu0 0.0
    %3881 = vmatmul.mubr.f32.gmra.mrb[0].mxu0 %v3744
    %v3882 = vpop.f32.mrb[0].mxu0
    %v3883 = vadd.f32 0.0, %v3882
    %v3884 = vpop.f32.mrb[0].mxu0
    %v3885 = vadd.f32 0.0, %v3884
    %3886 = vdwg.mxu0
    %3887 = vmatprep.subr.mxu0 0.0
    %3888 = vmatpush1.msra.mxu0 %v90
    %3889 = vmatprep.subr.mxu0 0.0
    %3890 = vmatpush1.msra.mxu0 %v104
    %3891 = vmatprep.subr.mxu0 0.0
    %3892 = vmatpush1.msra.mxu0 %v118
    %3893 = vmatprep.subr.mxu0 0.0
    %3894 = vmatpush1.msra.mxu0 %v132
    %3895 = vmatprep.subr.mxu0 0.0
    %3896 = vmatpush1.msra.mxu0 %v146
    %3897 = vmatprep.subr.mxu0 0.0
    %3898 = vmatpush1.msra.mxu0 %v160
    %3899 = vmatprep.subr.mxu0 0.0
    %3900 = vmatpush1.msra.mxu0 %v174
    %3901 = vmatprep.subr.mxu0 0.0
    %3902 = vmatpush1.msra.mxu0 %v188
    %3903 = vmatprep.subr.mxu0 0.0
    %3904 = vmatpush1.msra.mxu0 %v202
    %3905 = vmatprep.subr.mxu0 0.0
    %3906 = vmatpush1.msra.mxu0 %v216
    %3907 = vmatprep.subr.mxu0 0.0
    %3908 = vmatpush1.msra.mxu0 %v230
    %3909 = vmatprep.subr.mxu0 0.0
    %3910 = vmatpush1.msra.mxu0 %v244
    %3911 = vmatprep.subr.mxu0 0.0
    %3912 = vmatpush1.msra.mxu0 %v258
    %3913 = vmatprep.subr.mxu0 0.0
    %3914 = vmatpush1.msra.mxu0 %v272
    %3915 = vmatprep.subr.mxu0 0.0
    %3916 = vmatpush1.msra.mxu0 %v286
    %3917 = vmatprep.subr.mxu0 0.0
    %3918 = vmatpush1.msra.mxu0 %v300
    %3919 = vmatprep.subr.mxu0 0.0
    %3920 = vmatpush1.msra.mxu0 0.0
    %3921 = vmatprep.subr.mxu0 0.0
    %3922 = vmatpush1.msra.mxu0 0.0
    %3923 = vmatprep.subr.mxu0 0.0
    %3924 = vmatpush1.msra.mxu0 0.0
    %3925 = vmatprep.subr.mxu0 0.0
    %3926 = vmatpush1.msra.mxu0 0.0
    %3927 = vmatprep.subr.mxu0 0.0
    %3928 = vmatpush1.msra.mxu0 0.0
    %3929 = vmatprep.subr.mxu0 0.0
    %3930 = vmatpush1.msra.mxu0 0.0
    %3931 = vmatprep.subr.mxu0 0.0
    %3932 = vmatpush1.msra.mxu0 0.0
    %3933 = vmatprep.subr.mxu0 0.0
    %3934 = vmatpush1.msra.mxu0 0.0
    %3935 = vmatprep.subr.mxu0 0.0
    %3936 = vmatpush1.msra.mxu0 0.0
    %3937 = vmatprep.subr.mxu0 0.0
    %3938 = vmatpush1.msra.mxu0 0.0
    %3939 = vmatprep.subr.mxu0 0.0
    %3940 = vmatpush1.msra.mxu0 0.0
    %3941 = vmatprep.subr.mxu0 0.0
    %3942 = vmatpush1.msra.mxu0 0.0
    %3943 = vmatprep.subr.mxu0 0.0
    %3944 = vmatpush1.msra.mxu0 0.0
    %3945 = vmatprep.subr.mxu0 0.0
    %3946 = vmatpush1.msra.mxu0 0.0
    %3947 = vmatprep.subr.mxu0 0.0
    %3948 = vmatpush1.msra.mxu0 0.0
    %3949 = vmatprep.subr.mxu0 0.0
    %3950 = vmatpush1.msra.mxu0 0.0
    %3951 = vmatprep.mubr.f32.mxu0 0.0
    %3952 = vmatmul.mubr.f32.gmra.mrb[0].mxu0 %v3744
    %v3953 = vpop.f32.mrb[0].mxu0
    %v3954 = vadd.f32 0.0, %v3953
    %v3955 = vpop.f32.mrb[0].mxu0
    %3956 = vdwg.mxu0
    %v3957 = vadd.f32 %v3954, %v2735
    %s3958 = scalar_lea.vmem %s6, 24
    %3959 = vst [vmem:[%s3958] sm:$0xff] %v3957
    %v3960 = vadd.f32 %v3957, %v2741
    %3961 = vmax.xlane.f32.xlu0 %v3960
    %v3962 = vpop.xlane.xlu0 %3961
    %vm3963 = vcmp.eq.f32.partialorder %v3960, %v3962
    %v3964 = vsel %vm3963, %v308, 128
    %v3965 = vand.u32 %v3964, 65535
    %v3966 = vshra.s32 %v3964, 16
    %v3967 = vcvt.s32.f32 %v3965
    %v3968 = vcvt.s32.f32 %v3966
    %3969 = vmin.xlane.f32.xlu0 %v3968
    %v3970 = vpop.xlane.xlu0 %3969
    %vm3971 = vcmp.eq.f32.partialorder %v3968, %v3970
    %v3972 = vsel %vm3971, %v3967, inf
    %3973 = vmin.xlane.f32.xlu0 %v3972
    %v3974 = vpop.xlane.xlu0 %3973
    %v3975 = vcvt.f32.s32 %v3974
    %v3976 = vcvt.f32.s32 %v3970
    %v3977 = vshll.u32 %v3976, 16
    %v3978 = vadd.s32 %v3977, %v3975
    %vm3979 = vcmp.eq.s32.totalorder %v308, %v3978
    %v3980 = vsel %vm3979, 1, 0
    %v3981 = vcvt.s32.f32 %v3980
    %v3983 = vsel %vm365, %v3981, 0
    %3985 = vmatprep.subr.mxu0 %v55
    %3986 = vmatpush1.msra.mxu0 %v54
    %3987 = vmatprep.subr.mxu0 %v63
    %3988 = vmatpush1.msra.mxu0 %v62
    %3989 = vmatprep.subr.mxu0 %v71
    %3990 = vmatpush1.msra.mxu0 %v70
    %3991 = vmatprep.subr.mxu0 %v79
    %3992 = vmatpush1.msra.mxu0 %v78
    %3993 = vmatprep.subr.mxu0 0.0
    %3994 = vmatpush1.msra.mxu0 0.0
    %3995 = vmatprep.subr.mxu0 0.0
    %3996 = vmatpush1.msra.mxu0 0.0
    %3997 = vmatprep.subr.mxu0 0.0
    %3998 = vmatpush1.msra.mxu0 0.0
    %3999 = vmatprep.subr.mxu0 0.0
    %4000 = vmatpush1.msra.mxu0 0.0
    %4001 = vmatprep.subr.mxu0 0.0
    %4002 = vmatpush1.msra.mxu0 0.0
    %4003 = vmatprep.subr.mxu0 0.0
    %4004 = vmatpush1.msra.mxu0 0.0
    %4005 = vmatprep.subr.mxu0 0.0
    %4006 = vmatpush1.msra.mxu0 0.0
    %4007 = vmatprep.subr.mxu0 0.0
    %4008 = vmatpush1.msra.mxu0 0.0
    %4009 = vmatprep.subr.mxu0 0.0
    %4010 = vmatpush1.msra.mxu0 0.0
    %4011 = vmatprep.subr.mxu0 0.0
    %4012 = vmatpush1.msra.mxu0 0.0
    %4013 = vmatprep.subr.mxu0 0.0
    %4014 = vmatpush1.msra.mxu0 0.0
    %4015 = vmatprep.subr.mxu0 0.0
    %4016 = vmatpush1.msra.mxu0 0.0
    %4017 = vmatprep.subr.mxu0 0.0
    %4018 = vmatpush1.msra.mxu0 0.0
    %4019 = vmatprep.subr.mxu0 0.0
    %4020 = vmatpush1.msra.mxu0 0.0
    %4021 = vmatprep.subr.mxu0 0.0
    %4022 = vmatpush1.msra.mxu0 0.0
    %4023 = vmatprep.subr.mxu0 0.0
    %4024 = vmatpush1.msra.mxu0 0.0
    %4025 = vmatprep.subr.mxu0 0.0
    %4026 = vmatpush1.msra.mxu0 0.0
    %4027 = vmatprep.subr.mxu0 0.0
    %4028 = vmatpush1.msra.mxu0 0.0
    %4029 = vmatprep.subr.mxu0 0.0
    %4030 = vmatpush1.msra.mxu0 0.0
    %4031 = vmatprep.subr.mxu0 0.0
    %4032 = vmatpush1.msra.mxu0 0.0
    %4033 = vmatprep.subr.mxu0 0.0
    %4034 = vmatpush1.msra.mxu0 0.0
    %4035 = vmatprep.subr.mxu0 0.0
    %4036 = vmatpush1.msra.mxu0 0.0
    %4037 = vmatprep.subr.mxu0 0.0
    %4038 = vmatpush1.msra.mxu0 0.0
    %4039 = vmatprep.subr.mxu0 0.0
    %4040 = vmatpush1.msra.mxu0 0.0
    %4041 = vmatprep.subr.mxu0 0.0
    %4042 = vmatpush1.msra.mxu0 0.0
    %4043 = vmatprep.subr.mxu0 0.0
    %4044 = vmatpush1.msra.mxu0 0.0
    %4045 = vmatprep.subr.mxu0 0.0
    %4046 = vmatpush1.msra.mxu0 0.0
    %4047 = vmatprep.subr.mxu0 0.0
    %4048 = vmatpush1.msra.mxu0 0.0
    %4049 = vmatprep.mubr.f32.mxu0 0.0
    %4050 = vmatmul.mubr.f32.gmra.mrb[0].mxu0 %v3983
    %v4051 = vpop.f32.mrb[0].mxu0
    %v4052 = vadd.f32 %v3812, %v4051
    %v4053 = vpop.f32.mrb[0].mxu0
    %v4054 = vadd.f32 %v3814, %v4053
    %4055 = vdwg.mxu0
    %4056 = vmatprep.subr.mxu0 %v57
    %4057 = vmatpush1.msra.mxu0 %v56
    %4058 = vmatprep.subr.mxu0 %v65
    %4059 = vmatpush1.msra.mxu0 %v64
    %4060 = vmatprep.subr.mxu0 %v73
    %4061 = vmatpush1.msra.mxu0 %v72
    %4062 = vmatprep.subr.mxu0 %v81
    %4063 = vmatpush1.msra.mxu0 %v80
    %4064 = vmatprep.subr.mxu0 0.0
    %4065 = vmatpush1.msra.mxu0 0.0
    %4066 = vmatprep.subr.mxu0 0.0
    %4067 = vmatpush1.msra.mxu0 0.0
    %4068 = vmatprep.subr.mxu0 0.0
    %4069 = vmatpush1.msra.mxu0 0.0
    %4070 = vmatprep.subr.mxu0 0.0
    %4071 = vmatpush1.msra.mxu0 0.0
    %4072 = vmatprep.subr.mxu0 0.0
    %4073 = vmatpush1.msra.mxu0 0.0
    %4074 = vmatprep.subr.mxu0 0.0
    %4075 = vmatpush1.msra.mxu0 0.0
    %4076 = vmatprep.subr.mxu0 0.0
    %4077 = vmatpush1.msra.mxu0 0.0
    %4078 = vmatprep.subr.mxu0 0.0
    %4079 = vmatpush1.msra.mxu0 0.0
    %4080 = vmatprep.subr.mxu0 0.0
    %4081 = vmatpush1.msra.mxu0 0.0
    %4082 = vmatprep.subr.mxu0 0.0
    %4083 = vmatpush1.msra.mxu0 0.0
    %4084 = vmatprep.subr.mxu0 0.0
    %4085 = vmatpush1.msra.mxu0 0.0
    %4086 = vmatprep.subr.mxu0 0.0
    %4087 = vmatpush1.msra.mxu0 0.0
    %4088 = vmatprep.subr.mxu0 0.0
    %4089 = vmatpush1.msra.mxu0 0.0
    %4090 = vmatprep.subr.mxu0 0.0
    %4091 = vmatpush1.msra.mxu0 0.0
    %4092 = vmatprep.subr.mxu0 0.0
    %4093 = vmatpush1.msra.mxu0 0.0
    %4094 = vmatprep.subr.mxu0 0.0
    %4095 = vmatpush1.msra.mxu0 0.0
    %4096 = vmatprep.subr.mxu0 0.0
    %4097 = vmatpush1.msra.mxu0 0.0
    %4098 = vmatprep.subr.mxu0 0.0
    %4099 = vmatpush1.msra.mxu0 0.0
    %4100 = vmatprep.subr.mxu0 0.0
    %4101 = vmatpush1.msra.mxu0 0.0
    %4102 = vmatprep.subr.mxu0 0.0
    %4103 = vmatpush1.msra.mxu0 0.0
    %4104 = vmatprep.subr.mxu0 0.0
    %4105 = vmatpush1.msra.mxu0 0.0
    %4106 = vmatprep.subr.mxu0 0.0
    %4107 = vmatpush1.msra.mxu0 0.0
    %4108 = vmatprep.subr.mxu0 0.0
    %4109 = vmatpush1.msra.mxu0 0.0
    %4110 = vmatprep.subr.mxu0 0.0
    %4111 = vmatpush1.msra.mxu0 0.0
    %4112 = vmatprep.subr.mxu0 0.0
    %4113 = vmatpush1.msra.mxu0 0.0
    %4114 = vmatprep.subr.mxu0 0.0
    %4115 = vmatpush1.msra.mxu0 0.0
    %4116 = vmatprep.subr.mxu0 0.0
    %4117 = vmatpush1.msra.mxu0 0.0
    %4118 = vmatprep.subr.mxu0 0.0
    %4119 = vmatpush1.msra.mxu0 0.0
    %4120 = vmatprep.mubr.f32.mxu0 0.0
    %4121 = vmatmul.mubr.f32.gmra.mrb[0].mxu0 %v3983
    %v4122 = vpop.f32.mrb[0].mxu0
    %v4123 = vadd.f32 %v3883, %v4122
    %v4124 = vpop.f32.mrb[0].mxu0
    %v4125 = vadd.f32 %v3885, %v4124
    %4126 = vdwg.mxu0
    %v4127 = vxor.u32 %v4052, 2147483648
    %v4128 = vxor.u32 %v4054, 2147483648
    %v4129 = vxor.u32 %v4123, 2147483648
    %v4130 = vmul.f32 %v4127, 1.442695
    %v4131 = vpow.pop %v4130
    %v4132 = vmul.f32 %v4128, 1.442695
    %v4133 = vpow.pop %v4132
    %v4134 = vmul.f32 %v4129, 1.442695
    %v4135 = vpow.pop %v4134
    %v4136 = vadd.f32 %v4131, 1.0
    %v4137 = vadd.f32 %v4133, 1.0
    %v4138 = vadd.f32 %v4135, 1.0
    %v4139 = vrcp.pop %v4136
    %v4140 = vmul.f32 1.0, %v4139
    %v4141 = vrcp.pop %v4137
    %v4142 = vmul.f32 1.0, %v4141
    %v4143 = vrcp.pop %v4138
    %v4144 = vmul.f32 1.0, %v4143
    %v4145 = vtanh.pop %v4125
    %v4146 = vmul.f32 %v4142, %v3742
    %v4147 = vmul.f32 %v4140, %v4145
    %v4148 = vadd.f32 %v4146, %v4147
    %v4149 = vtanh.pop %v4148
    %v4150 = vmul.f32 %v4144, %v4149
    %4151 = vmatprep.subr.mxu0 %v87
    %4152 = vmatpush1.msra.mxu0 %v86
    %4153 = vmatprep.subr.mxu0 %v101
    %4154 = vmatpush1.msra.mxu0 %v100
    %4155 = vmatprep.subr.mxu0 %v115
    %4156 = vmatpush1.msra.mxu0 %v114
    %4157 = vmatprep.subr.mxu0 %v129
    %4158 = vmatpush1.msra.mxu0 %v128
    %4159 = vmatprep.subr.mxu0 %v143
    %4160 = vmatpush1.msra.mxu0 %v142
    %4161 = vmatprep.subr.mxu0 %v157
    %4162 = vmatpush1.msra.mxu0 %v156
    %4163 = vmatprep.subr.mxu0 %v171
    %4164 = vmatpush1.msra.mxu0 %v170
    %4165 = vmatprep.subr.mxu0 %v185
    %4166 = vmatpush1.msra.mxu0 %v184
    %4167 = vmatprep.subr.mxu0 %v199
    %4168 = vmatpush1.msra.mxu0 %v198
    %4169 = vmatprep.subr.mxu0 %v213
    %4170 = vmatpush1.msra.mxu0 %v212
    %4171 = vmatprep.subr.mxu0 %v227
    %4172 = vmatpush1.msra.mxu0 %v226
    %4173 = vmatprep.subr.mxu0 %v241
    %4174 = vmatpush1.msra.mxu0 %v240
    %4175 = vmatprep.subr.mxu0 %v255
    %4176 = vmatpush1.msra.mxu0 %v254
    %4177 = vmatprep.subr.mxu0 %v269
    %4178 = vmatpush1.msra.mxu0 %v268
    %4179 = vmatprep.subr.mxu0 %v283
    %4180 = vmatpush1.msra.mxu0 %v282
    %4181 = vmatprep.subr.mxu0 %v297
    %4182 = vmatpush1.msra.mxu0 %v296
    %4183 = vmatprep.subr.mxu0 0.0
    %4184 = vmatpush1.msra.mxu0 0.0
    %4185 = vmatprep.subr.mxu0 0.0
    %4186 = vmatpush1.msra.mxu0 0.0
    %4187 = vmatprep.subr.mxu0 0.0
    %4188 = vmatpush1.msra.mxu0 0.0
    %4189 = vmatprep.subr.mxu0 0.0
    %4190 = vmatpush1.msra.mxu0 0.0
    %4191 = vmatprep.subr.mxu0 0.0
    %4192 = vmatpush1.msra.mxu0 0.0
    %4193 = vmatprep.subr.mxu0 0.0
    %4194 = vmatpush1.msra.mxu0 0.0
    %4195 = vmatprep.subr.mxu0 0.0
    %4196 = vmatpush1.msra.mxu0 0.0
    %4197 = vmatprep.subr.mxu0 0.0
    %4198 = vmatpush1.msra.mxu0 0.0
    %4199 = vmatprep.subr.mxu0 0.0
    %4200 = vmatpush1.msra.mxu0 0.0
    %4201 = vmatprep.subr.mxu0 0.0
    %4202 = vmatpush1.msra.mxu0 0.0
    %4203 = vmatprep.subr.mxu0 0.0
    %4204 = vmatpush1.msra.mxu0 0.0
    %4205 = vmatprep.subr.mxu0 0.0
    %4206 = vmatpush1.msra.mxu0 0.0
    %4207 = vmatprep.subr.mxu0 0.0
    %4208 = vmatpush1.msra.mxu0 0.0
    %4209 = vmatprep.subr.mxu0 0.0
    %4210 = vmatpush1.msra.mxu0 0.0
    %4211 = vmatprep.subr.mxu0 0.0
    %4212 = vmatpush1.msra.mxu0 0.0
    %4213 = vmatprep.subr.mxu0 0.0
    %4214 = vmatpush1.msra.mxu0 0.0
    %4215 = vmatprep.mubr.f32.mxu0 0.0
    %4216 = vmatmul.mubr.f32.gmra.mrb[0].mxu0 %v4150
    %v4217 = vpop.f32.mrb[0].mxu0
    %v4218 = vadd.f32 0.0, %v4217
    %v4219 = vpop.f32.mrb[0].mxu0
    %v4220 = vadd.f32 0.0, %v4219
    %4221 = vdwg.mxu0
    %4222 = vmatprep.subr.mxu0 %v89
    %4223 = vmatpush1.msra.mxu0 %v88
    %4224 = vmatprep.subr.mxu0 %v103
    %4225 = vmatpush1.msra.mxu0 %v102
    %4226 = vmatprep.subr.mxu0 %v117
    %4227 = vmatpush1.msra.mxu0 %v116
    %4228 = vmatprep.subr.mxu0 %v131
    %4229 = vmatpush1.msra.mxu0 %v130
    %4230 = vmatprep.subr.mxu0 %v145
    %4231 = vmatpush1.msra.mxu0 %v144
    %4232 = vmatprep.subr.mxu0 %v159
    %4233 = vmatpush1.msra.mxu0 %v158
    %4234 = vmatprep.subr.mxu0 %v173
    %4235 = vmatpush1.msra.mxu0 %v172
    %4236 = vmatprep.subr.mxu0 %v187
    %4237 = vmatpush1.msra.mxu0 %v186
    %4238 = vmatprep.subr.mxu0 %v201
    %4239 = vmatpush1.msra.mxu0 %v200
    %4240 = vmatprep.subr.mxu0 %v215
    %4241 = vmatpush1.msra.mxu0 %v214
    %4242 = vmatprep.subr.mxu0 %v229
    %4243 = vmatpush1.msra.mxu0 %v228
    %4244 = vmatprep.subr.mxu0 %v243
    %4245 = vmatpush1.msra.mxu0 %v242
    %4246 = vmatprep.subr.mxu0 %v257
    %4247 = vmatpush1.msra.mxu0 %v256
    %4248 = vmatprep.subr.mxu0 %v271
    %4249 = vmatpush1.msra.mxu0 %v270
    %4250 = vmatprep.subr.mxu0 %v285
    %4251 = vmatpush1.msra.mxu0 %v284
    %4252 = vmatprep.subr.mxu0 %v299
    %4253 = vmatpush1.msra.mxu0 %v298
    %4254 = vmatprep.subr.mxu0 0.0
    %4255 = vmatpush1.msra.mxu0 0.0
    %4256 = vmatprep.subr.mxu0 0.0
    %4257 = vmatpush1.msra.mxu0 0.0
    %4258 = vmatprep.subr.mxu0 0.0
    %4259 = vmatpush1.msra.mxu0 0.0
    %4260 = vmatprep.subr.mxu0 0.0
    %4261 = vmatpush1.msra.mxu0 0.0
    %4262 = vmatprep.subr.mxu0 0.0
    %4263 = vmatpush1.msra.mxu0 0.0
    %4264 = vmatprep.subr.mxu0 0.0
    %4265 = vmatpush1.msra.mxu0 0.0
    %4266 = vmatprep.subr.mxu0 0.0
    %4267 = vmatpush1.msra.mxu0 0.0
    %4268 = vmatprep.subr.mxu0 0.0
    %4269 = vmatpush1.msra.mxu0 0.0
    %4270 = vmatprep.subr.mxu0 0.0
    %4271 = vmatpush1.msra.mxu0 0.0
    %4272 = vmatprep.subr.mxu0 0.0
    %4273 = vmatpush1.msra.mxu0 0.0
    %4274 = vmatprep.subr.mxu0 0.0
    %4275 = vmatpush1.msra.mxu0 0.0
    %4276 = vmatprep.subr.mxu0 0.0
    %4277 = vmatpush1.msra.mxu0 0.0
    %4278 = vmatprep.subr.mxu0 0.0
    %4279 = vmatpush1.msra.mxu0 0.0
    %4280 = vmatprep.subr.mxu0 0.0
    %4281 = vmatpush1.msra.mxu0 0.0
    %4282 = vmatprep.subr.mxu0 0.0
    %4283 = vmatpush1.msra.mxu0 0.0
    %4284 = vmatprep.subr.mxu0 0.0
    %4285 = vmatpush1.msra.mxu0 0.0
    %4286 = vmatprep.mubr.f32.mxu0 0.0
    %4287 = vmatmul.mubr.f32.gmra.mrb[0].mxu0 %v4150
    %v4288 = vpop.f32.mrb[0].mxu0
    %v4289 = vadd.f32 0.0, %v4288
    %v4290 = vpop.f32.mrb[0].mxu0
    %v4291 = vadd.f32 0.0, %v4290
    %4292 = vdwg.mxu0
    %4293 = vmatprep.subr.mxu0 0.0
    %4294 = vmatpush1.msra.mxu0 %v90
    %4295 = vmatprep.subr.mxu0 0.0
    %4296 = vmatpush1.msra.mxu0 %v104
    %4297 = vmatprep.subr.mxu0 0.0
    %4298 = vmatpush1.msra.mxu0 %v118
    %4299 = vmatprep.subr.mxu0 0.0
    %4300 = vmatpush1.msra.mxu0 %v132
    %4301 = vmatprep.subr.mxu0 0.0
    %4302 = vmatpush1.msra.mxu0 %v146
    %4303 = vmatprep.subr.mxu0 0.0
    %4304 = vmatpush1.msra.mxu0 %v160
    %4305 = vmatprep.subr.mxu0 0.0
    %4306 = vmatpush1.msra.mxu0 %v174
    %4307 = vmatprep.subr.mxu0 0.0
    %4308 = vmatpush1.msra.mxu0 %v188
    %4309 = vmatprep.subr.mxu0 0.0
    %4310 = vmatpush1.msra.mxu0 %v202
    %4311 = vmatprep.subr.mxu0 0.0
    %4312 = vmatpush1.msra.mxu0 %v216
    %4313 = vmatprep.subr.mxu0 0.0
    %4314 = vmatpush1.msra.mxu0 %v230
    %4315 = vmatprep.subr.mxu0 0.0
    %4316 = vmatpush1.msra.mxu0 %v244
    %4317 = vmatprep.subr.mxu0 0.0
    %4318 = vmatpush1.msra.mxu0 %v258
    %4319 = vmatprep.subr.mxu0 0.0
    %4320 = vmatpush1.msra.mxu0 %v272
    %4321 = vmatprep.subr.mxu0 0.0
    %4322 = vmatpush1.msra.mxu0 %v286
    %4323 = vmatprep.subr.mxu0 0.0
    %4324 = vmatpush1.msra.mxu0 %v300
    %4325 = vmatprep.subr.mxu0 0.0
    %4326 = vmatpush1.msra.mxu0 0.0
    %4327 = vmatprep.subr.mxu0 0.0
    %4328 = vmatpush1.msra.mxu0 0.0
    %4329 = vmatprep.subr.mxu0 0.0
    %4330 = vmatpush1.msra.mxu0 0.0
    %4331 = vmatprep.subr.mxu0 0.0
    %4332 = vmatpush1.msra.mxu0 0.0
    %4333 = vmatprep.subr.mxu0 0.0
    %4334 = vmatpush1.msra.mxu0 0.0
    %4335 = vmatprep.subr.mxu0 0.0
    %4336 = vmatpush1.msra.mxu0 0.0
    %4337 = vmatprep.subr.mxu0 0.0
    %4338 = vmatpush1.msra.mxu0 0.0
    %4339 = vmatprep.subr.mxu0 0.0
    %4340 = vmatpush1.msra.mxu0 0.0
    %4341 = vmatprep.subr.mxu0 0.0
    %4342 = vmatpush1.msra.mxu0 0.0
    %4343 = vmatprep.subr.mxu0 0.0
    %4344 = vmatpush1.msra.mxu0 0.0
    %4345 = vmatprep.subr.mxu0 0.0
    %4346 = vmatpush1.msra.mxu0 0.0
    %4347 = vmatprep.subr.mxu0 0.0
    %4348 = vmatpush1.msra.mxu0 0.0
    %4349 = vmatprep.subr.mxu0 0.0
    %4350 = vmatpush1.msra.mxu0 0.0
    %4351 = vmatprep.subr.mxu0 0.0
    %4352 = vmatpush1.msra.mxu0 0.0
    %4353 = vmatprep.subr.mxu0 0.0
    %4354 = vmatpush1.msra.mxu0 0.0
    %4355 = vmatprep.subr.mxu0 0.0
    %4356 = vmatpush1.msra.mxu0 0.0
    %4357 = vmatprep.mubr.f32.mxu0 0.0
    %4358 = vmatmul.mubr.f32.gmra.mrb[0].mxu0 %v4150
    %v4359 = vpop.f32.mrb[0].mxu0
    %v4360 = vadd.f32 0.0, %v4359
    %v4361 = vpop.f32.mrb[0].mxu0
    %4362 = vdwg.mxu0
    %v4363 = vadd.f32 %v4360, %v2735
    %s4364 = scalar_lea.vmem %s6, 32
    %4365 = vst [vmem:[%s4364] sm:$0xff] %v4363
    %v4366 = vadd.f32 %v4363, %v2741
    %4367 = vmax.xlane.f32.xlu0 %v4366
    %v4368 = vpop.xlane.xlu0 %4367
    %vm4369 = vcmp.eq.f32.partialorder %v4366, %v4368
    %v4370 = vsel %vm4369, %v308, 128
    %v4371 = vand.u32 %v4370, 65535
    %v4372 = vshra.s32 %v4370, 16
    %v4373 = vcvt.s32.f32 %v4371
    %v4374 = vcvt.s32.f32 %v4372
    %4375 = vmin.xlane.f32.xlu0 %v4374
    %v4376 = vpop.xlane.xlu0 %4375
    %vm4377 = vcmp.eq.f32.partialorder %v4374, %v4376
    %v4378 = vsel %vm4377, %v4373, inf
    %4379 = vmin.xlane.f32.xlu0 %v4378
    %v4380 = vpop.xlane.xlu0 %4379
    %v4381 = vcvt.f32.s32 %v4380
    %v4382 = vcvt.f32.s32 %v4376
    %v4383 = vshll.u32 %v4382, 16
    %v4384 = vadd.s32 %v4383, %v4381
    %vm4385 = vcmp.eq.s32.totalorder %v308, %v4384
    %v4386 = vsel %vm4385, 1, 0
    %v4387 = vcvt.s32.f32 %v4386
    %v4389 = vsel %vm365, %v4387, 0
    %4391 = vmatprep.subr.mxu0 %v55
    %4392 = vmatpush1.msra.mxu0 %v54
    %4393 = vmatprep.subr.mxu0 %v63
    %4394 = vmatpush1.msra.mxu0 %v62
    %4395 = vmatprep.subr.mxu0 %v71
    %4396 = vmatpush1.msra.mxu0 %v70
    %4397 = vmatprep.subr.mxu0 %v79
    %4398 = vmatpush1.msra.mxu0 %v78
    %4399 = vmatprep.subr.mxu0 0.0
    %4400 = vmatpush1.msra.mxu0 0.0
    %4401 = vmatprep.subr.mxu0 0.0
    %4402 = vmatpush1.msra.mxu0 0.0
    %4403 = vmatprep.subr.mxu0 0.0
    %4404 = vmatpush1.msra.mxu0 0.0
    %4405 = vmatprep.subr.mxu0 0.0
    %4406 = vmatpush1.msra.mxu0 0.0
    %4407 = vmatprep.subr.mxu0 0.0
    %4408 = vmatpush1.msra.mxu0 0.0
    %4409 = vmatprep.subr.mxu0 0.0
    %4410 = vmatpush1.msra.mxu0 0.0
    %4411 = vmatprep.subr.mxu0 0.0
    %4412 = vmatpush1.msra.mxu0 0.0
    %4413 = vmatprep.subr.mxu0 0.0
    %4414 = vmatpush1.msra.mxu0 0.0
    %4415 = vmatprep.subr.mxu0 0.0
    %4416 = vmatpush1.msra.mxu0 0.0
    %4417 = vmatprep.subr.mxu0 0.0
    %4418 = vmatpush1.msra.mxu0 0.0
    %4419 = vmatprep.subr.mxu0 0.0
    %4420 = vmatpush1.msra.mxu0 0.0
    %4421 = vmatprep.subr.mxu0 0.0
    %4422 = vmatpush1.msra.mxu0 0.0
    %4423 = vmatprep.subr.mxu0 0.0
    %4424 = vmatpush1.msra.mxu0 0.0
    %4425 = vmatprep.subr.mxu0 0.0
    %4426 = vmatpush1.msra.mxu0 0.0
    %4427 = vmatprep.subr.mxu0 0.0
    %4428 = vmatpush1.msra.mxu0 0.0
    %4429 = vmatprep.subr.mxu0 0.0
    %4430 = vmatpush1.msra.mxu0 0.0
    %4431 = vmatprep.subr.mxu0 0.0
    %4432 = vmatpush1.msra.mxu0 0.0
    %4433 = vmatprep.subr.mxu0 0.0
    %4434 = vmatpush1.msra.mxu0 0.0
    %4435 = vmatprep.subr.mxu0 0.0
    %4436 = vmatpush1.msra.mxu0 0.0
    %4437 = vmatprep.subr.mxu0 0.0
    %4438 = vmatpush1.msra.mxu0 0.0
    %4439 = vmatprep.subr.mxu0 0.0
    %4440 = vmatpush1.msra.mxu0 0.0
    %4441 = vmatprep.subr.mxu0 0.0
    %4442 = vmatpush1.msra.mxu0 0.0
    %4443 = vmatprep.subr.mxu0 0.0
    %4444 = vmatpush1.msra.mxu0 0.0
    %4445 = vmatprep.subr.mxu0 0.0
    %4446 = vmatpush1.msra.mxu0 0.0
    %4447 = vmatprep.subr.mxu0 0.0
    %4448 = vmatpush1.msra.mxu0 0.0
    %4449 = vmatprep.subr.mxu0 0.0
    %4450 = vmatpush1.msra.mxu0 0.0
    %4451 = vmatprep.subr.mxu0 0.0
    %4452 = vmatpush1.msra.mxu0 0.0
    %4453 = vmatprep.subr.mxu0 0.0
    %4454 = vmatpush1.msra.mxu0 0.0
    %4455 = vmatprep.mubr.f32.mxu0 0.0
    %4456 = vmatmul.mubr.f32.gmra.mrb[0].mxu0 %v4389
    %v4457 = vpop.f32.mrb[0].mxu0
    %v4458 = vadd.f32 %v4218, %v4457
    %v4459 = vpop.f32.mrb[0].mxu0
    %v4460 = vadd.f32 %v4220, %v4459
    %4461 = vdwg.mxu0
    %4462 = vmatprep.subr.mxu0 %v57
    %4463 = vmatpush1.msra.mxu0 %v56
    %4464 = vmatprep.subr.mxu0 %v65
    %4465 = vmatpush1.msra.mxu0 %v64
    %4466 = vmatprep.subr.mxu0 %v73
    %4467 = vmatpush1.msra.mxu0 %v72
    %4468 = vmatprep.subr.mxu0 %v81
    %4469 = vmatpush1.msra.mxu0 %v80
    %4470 = vmatprep.subr.mxu0 0.0
    %4471 = vmatpush1.msra.mxu0 0.0
    %4472 = vmatprep.subr.mxu0 0.0
    %4473 = vmatpush1.msra.mxu0 0.0
    %4474 = vmatprep.subr.mxu0 0.0
    %4475 = vmatpush1.msra.mxu0 0.0
    %4476 = vmatprep.subr.mxu0 0.0
    %4477 = vmatpush1.msra.mxu0 0.0
    %4478 = vmatprep.subr.mxu0 0.0
    %4479 = vmatpush1.msra.mxu0 0.0
    %4480 = vmatprep.subr.mxu0 0.0
    %4481 = vmatpush1.msra.mxu0 0.0
    %4482 = vmatprep.subr.mxu0 0.0
    %4483 = vmatpush1.msra.mxu0 0.0
    %4484 = vmatprep.subr.mxu0 0.0
    %4485 = vmatpush1.msra.mxu0 0.0
    %4486 = vmatprep.subr.mxu0 0.0
    %4487 = vmatpush1.msra.mxu0 0.0
    %4488 = vmatprep.subr.mxu0 0.0
    %4489 = vmatpush1.msra.mxu0 0.0
    %4490 = vmatprep.subr.mxu0 0.0
    %4491 = vmatpush1.msra.mxu0 0.0
    %4492 = vmatprep.subr.mxu0 0.0
    %4493 = vmatpush1.msra.mxu0 0.0
    %4494 = vmatprep.subr.mxu0 0.0
    %4495 = vmatpush1.msra.mxu0 0.0
    %4496 = vmatprep.subr.mxu0 0.0
    %4497 = vmatpush1.msra.mxu0 0.0
    %4498 = vmatprep.subr.mxu0 0.0
    %4499 = vmatpush1.msra.mxu0 0.0
    %4500 = vmatprep.subr.mxu0 0.0
    %4501 = vmatpush1.msra.mxu0 0.0
    %4502 = vmatprep.subr.mxu0 0.0
    %4503 = vmatpush1.msra.mxu0 0.0
    %4504 = vmatprep.subr.mxu0 0.0
    %4505 = vmatpush1.msra.mxu0 0.0
    %4506 = vmatprep.subr.mxu0 0.0
    %4507 = vmatpush1.msra.mxu0 0.0
    %4508 = vmatprep.subr.mxu0 0.0
    %4509 = vmatpush1.msra.mxu0 0.0
    %4510 = vmatprep.subr.mxu0 0.0
    %4511 = vmatpush1.msra.mxu0 0.0
    %4512 = vmatprep.subr.mxu0 0.0
    %4513 = vmatpush1.msra.mxu0 0.0
    %4514 = vmatprep.subr.mxu0 0.0
    %4515 = vmatpush1.msra.mxu0 0.0
    %4516 = vmatprep.subr.mxu0 0.0
    %4517 = vmatpush1.msra.mxu0 0.0
    %4518 = vmatprep.subr.mxu0 0.0
    %4519 = vmatpush1.msra.mxu0 0.0
    %4520 = vmatprep.subr.mxu0 0.0
    %4521 = vmatpush1.msra.mxu0 0.0
    %4522 = vmatprep.subr.mxu0 0.0
    %4523 = vmatpush1.msra.mxu0 0.0
    %4524 = vmatprep.subr.mxu0 0.0
    %4525 = vmatpush1.msra.mxu0 0.0
    %4526 = vmatprep.mubr.f32.mxu0 0.0
    %4527 = vmatmul.mubr.f32.gmra.mrb[0].mxu0 %v4389
    %v4528 = vpop.f32.mrb[0].mxu0
    %v4529 = vadd.f32 %v4289, %v4528
    %v4530 = vpop.f32.mrb[0].mxu0
    %v4531 = vadd.f32 %v4291, %v4530
    %4532 = vdwg.mxu0
    %v4533 = vxor.u32 %v4458, 2147483648
    %v4534 = vxor.u32 %v4460, 2147483648
    %v4535 = vxor.u32 %v4529, 2147483648
    %v4536 = vmul.f32 %v4533, 1.442695
    %v4537 = vpow.pop %v4536
    %v4538 = vmul.f32 %v4534, 1.442695
    %v4539 = vpow.pop %v4538
    %v4540 = vmul.f32 %v4535, 1.442695
    %v4541 = vpow.pop %v4540
    %v4542 = vadd.f32 %v4537, 1.0
    %v4543 = vadd.f32 %v4539, 1.0
    %v4544 = vadd.f32 %v4541, 1.0
    %v4545 = vrcp.pop %v4542
    %v4546 = vmul.f32 1.0, %v4545
    %v4547 = vrcp.pop %v4543
    %v4548 = vmul.f32 1.0, %v4547
    %v4549 = vrcp.pop %v4544
    %v4550 = vmul.f32 1.0, %v4549
    %v4551 = vtanh.pop %v4531
    %v4552 = vmul.f32 %v4548, %v4148
    %v4553 = vmul.f32 %v4546, %v4551
    %v4554 = vadd.f32 %v4552, %v4553
    %v4555 = vtanh.pop %v4554
    %v4556 = vmul.f32 %v4550, %v4555
    %4557 = vmatprep.subr.mxu0 %v87
    %4558 = vmatpush1.msra.mxu0 %v86
    %4559 = vmatprep.subr.mxu0 %v101
    %4560 = vmatpush1.msra.mxu0 %v100
    %4561 = vmatprep.subr.mxu0 %v115
    %4562 = vmatpush1.msra.mxu0 %v114
    %4563 = vmatprep.subr.mxu0 %v129
    %4564 = vmatpush1.msra.mxu0 %v128
    %4565 = vmatprep.subr.mxu0 %v143
    %4566 = vmatpush1.msra.mxu0 %v142
    %4567 = vmatprep.subr.mxu0 %v157
    %4568 = vmatpush1.msra.mxu0 %v156
    %4569 = vmatprep.subr.mxu0 %v171
    %4570 = vmatpush1.msra.mxu0 %v170
    %4571 = vmatprep.subr.mxu0 %v185
    %4572 = vmatpush1.msra.mxu0 %v184
    %4573 = vmatprep.subr.mxu0 %v199
    %4574 = vmatpush1.msra.mxu0 %v198
    %4575 = vmatprep.subr.mxu0 %v213
    %4576 = vmatpush1.msra.mxu0 %v212
    %4577 = vmatprep.subr.mxu0 %v227
    %4578 = vmatpush1.msra.mxu0 %v226
    %4579 = vmatprep.subr.mxu0 %v241
    %4580 = vmatpush1.msra.mxu0 %v240
    %4581 = vmatprep.subr.mxu0 %v255
    %4582 = vmatpush1.msra.mxu0 %v254
    %4583 = vmatprep.subr.mxu0 %v269
    %4584 = vmatpush1.msra.mxu0 %v268
    %4585 = vmatprep.subr.mxu0 %v283
    %4586 = vmatpush1.msra.mxu0 %v282
    %4587 = vmatprep.subr.mxu0 %v297
    %4588 = vmatpush1.msra.mxu0 %v296
    %4589 = vmatprep.subr.mxu0 0.0
    %4590 = vmatpush1.msra.mxu0 0.0
    %4591 = vmatprep.subr.mxu0 0.0
    %4592 = vmatpush1.msra.mxu0 0.0
    %4593 = vmatprep.subr.mxu0 0.0
    %4594 = vmatpush1.msra.mxu0 0.0
    %4595 = vmatprep.subr.mxu0 0.0
    %4596 = vmatpush1.msra.mxu0 0.0
    %4597 = vmatprep.subr.mxu0 0.0
    %4598 = vmatpush1.msra.mxu0 0.0
    %4599 = vmatprep.subr.mxu0 0.0
    %4600 = vmatpush1.msra.mxu0 0.0
    %4601 = vmatprep.subr.mxu0 0.0
    %4602 = vmatpush1.msra.mxu0 0.0
    %4603 = vmatprep.subr.mxu0 0.0
    %4604 = vmatpush1.msra.mxu0 0.0
    %4605 = vmatprep.subr.mxu0 0.0
    %4606 = vmatpush1.msra.mxu0 0.0
    %4607 = vmatprep.subr.mxu0 0.0
    %4608 = vmatpush1.msra.mxu0 0.0
    %4609 = vmatprep.subr.mxu0 0.0
    %4610 = vmatpush1.msra.mxu0 0.0
    %4611 = vmatprep.subr.mxu0 0.0
    %4612 = vmatpush1.msra.mxu0 0.0
    %4613 = vmatprep.subr.mxu0 0.0
    %4614 = vmatpush1.msra.mxu0 0.0
    %4615 = vmatprep.subr.mxu0 0.0
    %4616 = vmatpush1.msra.mxu0 0.0
    %4617 = vmatprep.subr.mxu0 0.0
    %4618 = vmatpush1.msra.mxu0 0.0
    %4619 = vmatprep.subr.mxu0 0.0
    %4620 = vmatpush1.msra.mxu0 0.0
    %4621 = vmatprep.mubr.f32.mxu0 0.0
    %4622 = vmatmul.mubr.f32.gmra.mrb[0].mxu0 %v4556
    %v4623 = vpop.f32.mrb[0].mxu0
    %v4624 = vadd.f32 0.0, %v4623
    %v4625 = vpop.f32.mrb[0].mxu0
    %v4626 = vadd.f32 0.0, %v4625
    %4627 = vdwg.mxu0
    %4628 = vmatprep.subr.mxu0 %v89
    %4629 = vmatpush1.msra.mxu0 %v88
    %4630 = vmatprep.subr.mxu0 %v103
    %4631 = vmatpush1.msra.mxu0 %v102
    %4632 = vmatprep.subr.mxu0 %v117
    %4633 = vmatpush1.msra.mxu0 %v116
    %4634 = vmatprep.subr.mxu0 %v131
    %4635 = vmatpush1.msra.mxu0 %v130
    %4636 = vmatprep.subr.mxu0 %v145
    %4637 = vmatpush1.msra.mxu0 %v144
    %4638 = vmatprep.subr.mxu0 %v159
    %4639 = vmatpush1.msra.mxu0 %v158
    %4640 = vmatprep.subr.mxu0 %v173
    %4641 = vmatpush1.msra.mxu0 %v172
    %4642 = vmatprep.subr.mxu0 %v187
    %4643 = vmatpush1.msra.mxu0 %v186
    %4644 = vmatprep.subr.mxu0 %v201
    %4645 = vmatpush1.msra.mxu0 %v200
    %4646 = vmatprep.subr.mxu0 %v215
    %4647 = vmatpush1.msra.mxu0 %v214
    %4648 = vmatprep.subr.mxu0 %v229
    %4649 = vmatpush1.msra.mxu0 %v228
    %4650 = vmatprep.subr.mxu0 %v243
    %4651 = vmatpush1.msra.mxu0 %v242
    %4652 = vmatprep.subr.mxu0 %v257
    %4653 = vmatpush1.msra.mxu0 %v256
    %4654 = vmatprep.subr.mxu0 %v271
    %4655 = vmatpush1.msra.mxu0 %v270
    %4656 = vmatprep.subr.mxu0 %v285
    %4657 = vmatpush1.msra.mxu0 %v284
    %4658 = vmatprep.subr.mxu0 %v299
    %4659 = vmatpush1.msra.mxu0 %v298
    %4660 = vmatprep.subr.mxu0 0.0
    %4661 = vmatpush1.msra.mxu0 0.0
    %4662 = vmatprep.subr.mxu0 0.0
    %4663 = vmatpush1.msra.mxu0 0.0
    %4664 = vmatprep.subr.mxu0 0.0
    %4665 = vmatpush1.msra.mxu0 0.0
    %4666 = vmatprep.subr.mxu0 0.0
    %4667 = vmatpush1.msra.mxu0 0.0
    %4668 = vmatprep.subr.mxu0 0.0
    %4669 = vmatpush1.msra.mxu0 0.0
    %4670 = vmatprep.subr.mxu0 0.0
    %4671 = vmatpush1.msra.mxu0 0.0
    %4672 = vmatprep.subr.mxu0 0.0
    %4673 = vmatpush1.msra.mxu0 0.0
    %4674 = vmatprep.subr.mxu0 0.0
    %4675 = vmatpush1.msra.mxu0 0.0
    %4676 = vmatprep.subr.mxu0 0.0
    %4677 = vmatpush1.msra.mxu0 0.0
    %4678 = vmatprep.subr.mxu0 0.0
    %4679 = vmatpush1.msra.mxu0 0.0
    %4680 = vmatprep.subr.mxu0 0.0
    %4681 = vmatpush1.msra.mxu0 0.0
    %4682 = vmatprep.subr.mxu0 0.0
    %4683 = vmatpush1.msra.mxu0 0.0
    %4684 = vmatprep.subr.mxu0 0.0
    %4685 = vmatpush1.msra.mxu0 0.0
    %4686 = vmatprep.subr.mxu0 0.0
    %4687 = vmatpush1.msra.mxu0 0.0
    %4688 = vmatprep.subr.mxu0 0.0
    %4689 = vmatpush1.msra.mxu0 0.0
    %4690 = vmatprep.subr.mxu0 0.0
    %4691 = vmatpush1.msra.mxu0 0.0
    %4692 = vmatprep.mubr.f32.mxu0 0.0
    %4693 = vmatmul.mubr.f32.gmra.mrb[0].mxu0 %v4556
    %v4694 = vpop.f32.mrb[0].mxu0
    %v4695 = vadd.f32 0.0, %v4694
    %v4696 = vpop.f32.mrb[0].mxu0
    %v4697 = vadd.f32 0.0, %v4696
    %4698 = vdwg.mxu0
    %4699 = vmatprep.subr.mxu0 0.0
    %4700 = vmatpush1.msra.mxu0 %v90
    %4701 = vmatprep.subr.mxu0 0.0
    %4702 = vmatpush1.msra.mxu0 %v104
    %4703 = vmatprep.subr.mxu0 0.0
    %4704 = vmatpush1.msra.mxu0 %v118
    %4705 = vmatprep.subr.mxu0 0.0
    %4706 = vmatpush1.msra.mxu0 %v132
    %4707 = vmatprep.subr.mxu0 0.0
    %4708 = vmatpush1.msra.mxu0 %v146
    %4709 = vmatprep.subr.mxu0 0.0
    %4710 = vmatpush1.msra.mxu0 %v160
    %4711 = vmatprep.subr.mxu0 0.0
    %4712 = vmatpush1.msra.mxu0 %v174
    %4713 = vmatprep.subr.mxu0 0.0
    %4714 = vmatpush1.msra.mxu0 %v188
    %4715 = vmatprep.subr.mxu0 0.0
    %4716 = vmatpush1.msra.mxu0 %v202
    %4717 = vmatprep.subr.mxu0 0.0
    %4718 = vmatpush1.msra.mxu0 %v216
    %4719 = vmatprep.subr.mxu0 0.0
    %4720 = vmatpush1.msra.mxu0 %v230
    %4721 = vmatprep.subr.mxu0 0.0
    %4722 = vmatpush1.msra.mxu0 %v244
    %4723 = vmatprep.subr.mxu0 0.0
    %4724 = vmatpush1.msra.mxu0 %v258
    %4725 = vmatprep.subr.mxu0 0.0
    %4726 = vmatpush1.msra.mxu0 %v272
    %4727 = vmatprep.subr.mxu0 0.0
    %4728 = vmatpush1.msra.mxu0 %v286
    %4729 = vmatprep.subr.mxu0 0.0
    %4730 = vmatpush1.msra.mxu0 %v300
    %4731 = vmatprep.subr.mxu0 0.0
    %4732 = vmatpush1.msra.mxu0 0.0
    %4733 = vmatprep.subr.mxu0 0.0
    %4734 = vmatpush1.msra.mxu0 0.0
    %4735 = vmatprep.subr.mxu0 0.0
    %4736 = vmatpush1.msra.mxu0 0.0
    %4737 = vmatprep.subr.mxu0 0.0
    %4738 = vmatpush1.msra.mxu0 0.0
    %4739 = vmatprep.subr.mxu0 0.0
    %4740 = vmatpush1.msra.mxu0 0.0
    %4741 = vmatprep.subr.mxu0 0.0
    %4742 = vmatpush1.msra.mxu0 0.0
    %4743 = vmatprep.subr.mxu0 0.0
    %4744 = vmatpush1.msra.mxu0 0.0
    %4745 = vmatprep.subr.mxu0 0.0
    %4746 = vmatpush1.msra.mxu0 0.0
    %4747 = vmatprep.subr.mxu0 0.0
    %4748 = vmatpush1.msra.mxu0 0.0
    %4749 = vmatprep.subr.mxu0 0.0
    %4750 = vmatpush1.msra.mxu0 0.0
    %4751 = vmatprep.subr.mxu0 0.0
    %4752 = vmatpush1.msra.mxu0 0.0
    %4753 = vmatprep.subr.mxu0 0.0
    %4754 = vmatpush1.msra.mxu0 0.0
    %4755 = vmatprep.subr.mxu0 0.0
    %4756 = vmatpush1.msra.mxu0 0.0
    %4757 = vmatprep.subr.mxu0 0.0
    %4758 = vmatpush1.msra.mxu0 0.0
    %4759 = vmatprep.subr.mxu0 0.0
    %4760 = vmatpush1.msra.mxu0 0.0
    %4761 = vmatprep.subr.mxu0 0.0
    %4762 = vmatpush1.msra.mxu0 0.0
    %4763 = vmatprep.mubr.f32.mxu0 0.0
    %4764 = vmatmul.mubr.f32.gmra.mrb[0].mxu0 %v4556
    %v4765 = vpop.f32.mrb[0].mxu0
    %v4766 = vadd.f32 0.0, %v4765
    %v4767 = vpop.f32.mrb[0].mxu0
    %4768 = vdwg.mxu0
    %v4769 = vadd.f32 %v4766, %v2735
    %s4770 = scalar_lea.vmem %s6, 40
    %4771 = vst [vmem:[%s4770] sm:$0xff] %v4769
    %v4772 = vadd.f32 %v4769, %v2741
    %4773 = vmax.xlane.f32.xlu0 %v4772
    %v4774 = vpop.xlane.xlu0 %4773
    %vm4775 = vcmp.eq.f32.partialorder %v4772, %v4774
    %v4776 = vsel %vm4775, %v308, 128
    %v4777 = vand.u32 %v4776, 65535
    %v4778 = vshra.s32 %v4776, 16
    %v4779 = vcvt.s32.f32 %v4777
    %v4780 = vcvt.s32.f32 %v4778
    %4781 = vmin.xlane.f32.xlu0 %v4780
    %v4782 = vpop.xlane.xlu0 %4781
    %vm4783 = vcmp.eq.f32.partialorder %v4780, %v4782
    %v4784 = vsel %vm4783, %v4779, inf
    %4785 = vmin.xlane.f32.xlu0 %v4784
    %v4786 = vpop.xlane.xlu0 %4785
    %v4787 = vcvt.f32.s32 %v4786
    %v4788 = vcvt.f32.s32 %v4782
    %v4789 = vshll.u32 %v4788, 16
    %v4790 = vadd.s32 %v4789, %v4787
    %vm4791 = vcmp.eq.s32.totalorder %v308, %v4790
    %v4792 = vsel %vm4791, 1, 0
    %v4793 = vcvt.s32.f32 %v4792
    %v4795 = vsel %vm365, %v4793, 0
    %4797 = vmatprep.subr.mxu0 %v55
    %4798 = vmatpush1.msra.mxu0 %v54
    %4799 = vmatprep.subr.mxu0 %v63
    %4800 = vmatpush1.msra.mxu0 %v62
    %4801 = vmatprep.subr.mxu0 %v71
    %4802 = vmatpush1.msra.mxu0 %v70
    %4803 = vmatprep.subr.mxu0 %v79
    %4804 = vmatpush1.msra.mxu0 %v78
    %4805 = vmatprep.subr.mxu0 0.0
    %4806 = vmatpush1.msra.mxu0 0.0
    %4807 = vmatprep.subr.mxu0 0.0
    %4808 = vmatpush1.msra.mxu0 0.0
    %4809 = vmatprep.subr.mxu0 0.0
    %4810 = vmatpush1.msra.mxu0 0.0
    %4811 = vmatprep.subr.mxu0 0.0
    %4812 = vmatpush1.msra.mxu0 0.0
    %4813 = vmatprep.subr.mxu0 0.0
    %4814 = vmatpush1.msra.mxu0 0.0
    %4815 = vmatprep.subr.mxu0 0.0
    %4816 = vmatpush1.msra.mxu0 0.0
    %4817 = vmatprep.subr.mxu0 0.0
    %4818 = vmatpush1.msra.mxu0 0.0
    %4819 = vmatprep.subr.mxu0 0.0
    %4820 = vmatpush1.msra.mxu0 0.0
    %4821 = vmatprep.subr.mxu0 0.0
    %4822 = vmatpush1.msra.mxu0 0.0
    %4823 = vmatprep.subr.mxu0 0.0
    %4824 = vmatpush1.msra.mxu0 0.0
    %4825 = vmatprep.subr.mxu0 0.0
    %4826 = vmatpush1.msra.mxu0 0.0
    %4827 = vmatprep.subr.mxu0 0.0
    %4828 = vmatpush1.msra.mxu0 0.0
    %4829 = vmatprep.subr.mxu0 0.0
    %4830 = vmatpush1.msra.mxu0 0.0
    %4831 = vmatprep.subr.mxu0 0.0
    %4832 = vmatpush1.msra.mxu0 0.0
    %4833 = vmatprep.subr.mxu0 0.0
    %4834 = vmatpush1.msra.mxu0 0.0
    %4835 = vmatprep.subr.mxu0 0.0
    %4836 = vmatpush1.msra.mxu0 0.0
    %4837 = vmatprep.subr.mxu0 0.0
    %4838 = vmatpush1.msra.mxu0 0.0
    %4839 = vmatprep.subr.mxu0 0.0
    %4840 = vmatpush1.msra.mxu0 0.0
    %4841 = vmatprep.subr.mxu0 0.0
    %4842 = vmatpush1.msra.mxu0 0.0
    %4843 = vmatprep.subr.mxu0 0.0
    %4844 = vmatpush1.msra.mxu0 0.0
    %4845 = vmatprep.subr.mxu0 0.0
    %4846 = vmatpush1.msra.mxu0 0.0
    %4847 = vmatprep.subr.mxu0 0.0
    %4848 = vmatpush1.msra.mxu0 0.0
    %4849 = vmatprep.subr.mxu0 0.0
    %4850 = vmatpush1.msra.mxu0 0.0
    %4851 = vmatprep.subr.mxu0 0.0
    %4852 = vmatpush1.msra.mxu0 0.0
    %4853 = vmatprep.subr.mxu0 0.0
    %4854 = vmatpush1.msra.mxu0 0.0
    %4855 = vmatprep.subr.mxu0 0.0
    %4856 = vmatpush1.msra.mxu0 0.0
    %4857 = vmatprep.subr.mxu0 0.0
    %4858 = vmatpush1.msra.mxu0 0.0
    %4859 = vmatprep.subr.mxu0 0.0
    %4860 = vmatpush1.msra.mxu0 0.0
    %4861 = vmatprep.mubr.f32.mxu0 0.0
    %4862 = vmatmul.mubr.f32.gmra.mrb[0].mxu0 %v4795
    %v4863 = vpop.f32.mrb[0].mxu0
    %v4864 = vadd.f32 %v4624, %v4863
    %v4865 = vpop.f32.mrb[0].mxu0
    %v4866 = vadd.f32 %v4626, %v4865
    %4867 = vdwg.mxu0
    %4868 = vmatprep.subr.mxu0 %v57
    %4869 = vmatpush1.msra.mxu0 %v56
    %4870 = vmatprep.subr.mxu0 %v65
    %4871 = vmatpush1.msra.mxu0 %v64
    %4872 = vmatprep.subr.mxu0 %v73
    %4873 = vmatpush1.msra.mxu0 %v72
    %4874 = vmatprep.subr.mxu0 %v81
    %4875 = vmatpush1.msra.mxu0 %v80
    %4876 = vmatprep.subr.mxu0 0.0
    %4877 = vmatpush1.msra.mxu0 0.0
    %4878 = vmatprep.subr.mxu0 0.0
    %4879 = vmatpush1.msra.mxu0 0.0
    %4880 = vmatprep.subr.mxu0 0.0
    %4881 = vmatpush1.msra.mxu0 0.0
    %4882 = vmatprep.subr.mxu0 0.0
    %4883 = vmatpush1.msra.mxu0 0.0
    %4884 = vmatprep.subr.mxu0 0.0
    %4885 = vmatpush1.msra.mxu0 0.0
    %4886 = vmatprep.subr.mxu0 0.0
    %4887 = vmatpush1.msra.mxu0 0.0
    %4888 = vmatprep.subr.mxu0 0.0
    %4889 = vmatpush1.msra.mxu0 0.0
    %4890 = vmatprep.subr.mxu0 0.0
    %4891 = vmatpush1.msra.mxu0 0.0
    %4892 = vmatprep.subr.mxu0 0.0
    %4893 = vmatpush1.msra.mxu0 0.0
    %4894 = vmatprep.subr.mxu0 0.0
    %4895 = vmatpush1.msra.mxu0 0.0
    %4896 = vmatprep.subr.mxu0 0.0
    %4897 = vmatpush1.msra.mxu0 0.0
    %4898 = vmatprep.subr.mxu0 0.0
    %4899 = vmatpush1.msra.mxu0 0.0
    %4900 = vmatprep.subr.mxu0 0.0
    %4901 = vmatpush1.msra.mxu0 0.0
    %4902 = vmatprep.subr.mxu0 0.0
    %4903 = vmatpush1.msra.mxu0 0.0
    %4904 = vmatprep.subr.mxu0 0.0
    %4905 = vmatpush1.msra.mxu0 0.0
    %4906 = vmatprep.subr.mxu0 0.0
    %4907 = vmatpush1.msra.mxu0 0.0
    %4908 = vmatprep.subr.mxu0 0.0
    %4909 = vmatpush1.msra.mxu0 0.0
    %4910 = vmatprep.subr.mxu0 0.0
    %4911 = vmatpush1.msra.mxu0 0.0
    %4912 = vmatprep.subr.mxu0 0.0
    %4913 = vmatpush1.msra.mxu0 0.0
    %4914 = vmatprep.subr.mxu0 0.0
    %4915 = vmatpush1.msra.mxu0 0.0
    %4916 = vmatprep.subr.mxu0 0.0
    %4917 = vmatpush1.msra.mxu0 0.0
    %4918 = vmatprep.subr.mxu0 0.0
    %4919 = vmatpush1.msra.mxu0 0.0
    %4920 = vmatprep.subr.mxu0 0.0
    %4921 = vmatpush1.msra.mxu0 0.0
    %4922 = vmatprep.subr.mxu0 0.0
    %4923 = vmatpush1.msra.mxu0 0.0
    %4924 = vmatprep.subr.mxu0 0.0
    %4925 = vmatpush1.msra.mxu0 0.0
    %4926 = vmatprep.subr.mxu0 0.0
    %4927 = vmatpush1.msra.mxu0 0.0
    %4928 = vmatprep.subr.mxu0 0.0
    %4929 = vmatpush1.msra.mxu0 0.0
    %4930 = vmatprep.subr.mxu0 0.0
    %4931 = vmatpush1.msra.mxu0 0.0
    %4932 = vmatprep.mubr.f32.mxu0 0.0
    %4933 = vmatmul.mubr.f32.gmra.mrb[0].mxu0 %v4795
    %v4934 = vpop.f32.mrb[0].mxu0
    %v4935 = vadd.f32 %v4695, %v4934
    %v4936 = vpop.f32.mrb[0].mxu0
    %v4937 = vadd.f32 %v4697, %v4936
    %4938 = vdwg.mxu0
    %v4939 = vxor.u32 %v4864, 2147483648
    %v4940 = vxor.u32 %v4866, 2147483648
    %v4941 = vxor.u32 %v4935, 2147483648
    %v4942 = vmul.f32 %v4939, 1.442695
    %v4943 = vpow.pop %v4942
    %v4944 = vmul.f32 %v4940, 1.442695
    %v4945 = vpow.pop %v4944
    %v4946 = vmul.f32 %v4941, 1.442695
    %v4947 = vpow.pop %v4946
    %v4948 = vadd.f32 %v4943, 1.0
    %v4949 = vadd.f32 %v4945, 1.0
    %v4950 = vadd.f32 %v4947, 1.0
    %v4951 = vrcp.pop %v4948
    %v4952 = vmul.f32 1.0, %v4951
    %v4953 = vrcp.pop %v4949
    %v4954 = vmul.f32 1.0, %v4953
    %v4955 = vrcp.pop %v4950
    %v4956 = vmul.f32 1.0, %v4955
    %v4957 = vtanh.pop %v4937
    %v4958 = vmul.f32 %v4954, %v4554
    %v4959 = vmul.f32 %v4952, %v4957
    %v4960 = vadd.f32 %v4958, %v4959
    %v4961 = vtanh.pop %v4960
    %v4962 = vmul.f32 %v4956, %v4961
    %4963 = vmatprep.subr.mxu0 %v87
    %4964 = vmatpush1.msra.mxu0 %v86
    %4965 = vmatprep.subr.mxu0 %v101
    %4966 = vmatpush1.msra.mxu0 %v100
    %4967 = vmatprep.subr.mxu0 %v115
    %4968 = vmatpush1.msra.mxu0 %v114
    %4969 = vmatprep.subr.mxu0 %v129
    %4970 = vmatpush1.msra.mxu0 %v128
    %4971 = vmatprep.subr.mxu0 %v143
    %4972 = vmatpush1.msra.mxu0 %v142
    %4973 = vmatprep.subr.mxu0 %v157
    %4974 = vmatpush1.msra.mxu0 %v156
    %4975 = vmatprep.subr.mxu0 %v171
    %4976 = vmatpush1.msra.mxu0 %v170
    %4977 = vmatprep.subr.mxu0 %v185
    %4978 = vmatpush1.msra.mxu0 %v184
    %4979 = vmatprep.subr.mxu0 %v199
    %4980 = vmatpush1.msra.mxu0 %v198
    %4981 = vmatprep.subr.mxu0 %v213
    %4982 = vmatpush1.msra.mxu0 %v212
    %4983 = vmatprep.subr.mxu0 %v227
    %4984 = vmatpush1.msra.mxu0 %v226
    %4985 = vmatprep.subr.mxu0 %v241
    %4986 = vmatpush1.msra.mxu0 %v240
    %4987 = vmatprep.subr.mxu0 %v255
    %4988 = vmatpush1.msra.mxu0 %v254
    %4989 = vmatprep.subr.mxu0 %v269
    %4990 = vmatpush1.msra.mxu0 %v268
    %4991 = vmatprep.subr.mxu0 %v283
    %4992 = vmatpush1.msra.mxu0 %v282
    %4993 = vmatprep.subr.mxu0 %v297
    %4994 = vmatpush1.msra.mxu0 %v296
    %4995 = vmatprep.subr.mxu0 0.0
    %4996 = vmatpush1.msra.mxu0 0.0
    %4997 = vmatprep.subr.mxu0 0.0
    %4998 = vmatpush1.msra.mxu0 0.0
    %4999 = vmatprep.subr.mxu0 0.0
    %5000 = vmatpush1.msra.mxu0 0.0
    %5001 = vmatprep.subr.mxu0 0.0
    %5002 = vmatpush1.msra.mxu0 0.0
    %5003 = vmatprep.subr.mxu0 0.0
    %5004 = vmatpush1.msra.mxu0 0.0
    %5005 = vmatprep.subr.mxu0 0.0
    %5006 = vmatpush1.msra.mxu0 0.0
    %5007 = vmatprep.subr.mxu0 0.0
    %5008 = vmatpush1.msra.mxu0 0.0
    %5009 = vmatprep.subr.mxu0 0.0
    %5010 = vmatpush1.msra.mxu0 0.0
    %5011 = vmatprep.subr.mxu0 0.0
    %5012 = vmatpush1.msra.mxu0 0.0
    %5013 = vmatprep.subr.mxu0 0.0
    %5014 = vmatpush1.msra.mxu0 0.0
    %5015 = vmatprep.subr.mxu0 0.0
    %5016 = vmatpush1.msra.mxu0 0.0
    %5017 = vmatprep.subr.mxu0 0.0
    %5018 = vmatpush1.msra.mxu0 0.0
    %5019 = vmatprep.subr.mxu0 0.0
    %5020 = vmatpush1.msra.mxu0 0.0
    %5021 = vmatprep.subr.mxu0 0.0
    %5022 = vmatpush1.msra.mxu0 0.0
    %5023 = vmatprep.subr.mxu0 0.0
    %5024 = vmatpush1.msra.mxu0 0.0
    %5025 = vmatprep.subr.mxu0 0.0
    %5026 = vmatpush1.msra.mxu0 0.0
    %5027 = vmatprep.mubr.f32.mxu0 0.0
    %5028 = vmatmul.mubr.f32.gmra.mrb[0].mxu0 %v4962
    %v5029 = vpop.f32.mrb[0].mxu0
    %v5030 = vadd.f32 0.0, %v5029
    %v5031 = vpop.f32.mrb[0].mxu0
    %v5032 = vadd.f32 0.0, %v5031
    %5033 = vdwg.mxu0
    %5034 = vmatprep.subr.mxu0 %v89
    %5035 = vmatpush1.msra.mxu0 %v88
    %5036 = vmatprep.subr.mxu0 %v103
    %5037 = vmatpush1.msra.mxu0 %v102
    %5038 = vmatprep.subr.mxu0 %v117
    %5039 = vmatpush1.msra.mxu0 %v116
    %5040 = vmatprep.subr.mxu0 %v131
    %5041 = vmatpush1.msra.mxu0 %v130
    %5042 = vmatprep.subr.mxu0 %v145
    %5043 = vmatpush1.msra.mxu0 %v144
    %5044 = vmatprep.subr.mxu0 %v159
    %5045 = vmatpush1.msra.mxu0 %v158
    %5046 = vmatprep.subr.mxu0 %v173
    %5047 = vmatpush1.msra.mxu0 %v172
    %5048 = vmatprep.subr.mxu0 %v187
    %5049 = vmatpush1.msra.mxu0 %v186
    %5050 = vmatprep.subr.mxu0 %v201
    %5051 = vmatpush1.msra.mxu0 %v200
    %5052 = vmatprep.subr.mxu0 %v215
    %5053 = vmatpush1.msra.mxu0 %v214
    %5054 = vmatprep.subr.mxu0 %v229
    %5055 = vmatpush1.msra.mxu0 %v228
    %5056 = vmatprep.subr.mxu0 %v243
    %5057 = vmatpush1.msra.mxu0 %v242
    %5058 = vmatprep.subr.mxu0 %v257
    %5059 = vmatpush1.msra.mxu0 %v256
    %5060 = vmatprep.subr.mxu0 %v271
    %5061 = vmatpush1.msra.mxu0 %v270
    %5062 = vmatprep.subr.mxu0 %v285
    %5063 = vmatpush1.msra.mxu0 %v284
    %5064 = vmatprep.subr.mxu0 %v299
    %5065 = vmatpush1.msra.mxu0 %v298
    %5066 = vmatprep.subr.mxu0 0.0
    %5067 = vmatpush1.msra.mxu0 0.0
    %5068 = vmatprep.subr.mxu0 0.0
    %5069 = vmatpush1.msra.mxu0 0.0
    %5070 = vmatprep.subr.mxu0 0.0
    %5071 = vmatpush1.msra.mxu0 0.0
    %5072 = vmatprep.subr.mxu0 0.0
    %5073 = vmatpush1.msra.mxu0 0.0
    %5074 = vmatprep.subr.mxu0 0.0
    %5075 = vmatpush1.msra.mxu0 0.0
    %5076 = vmatprep.subr.mxu0 0.0
    %5077 = vmatpush1.msra.mxu0 0.0
    %5078 = vmatprep.subr.mxu0 0.0
    %5079 = vmatpush1.msra.mxu0 0.0
    %5080 = vmatprep.subr.mxu0 0.0
    %5081 = vmatpush1.msra.mxu0 0.0
    %5082 = vmatprep.subr.mxu0 0.0
    %5083 = vmatpush1.msra.mxu0 0.0
    %5084 = vmatprep.subr.mxu0 0.0
    %5085 = vmatpush1.msra.mxu0 0.0
    %5086 = vmatprep.subr.mxu0 0.0
    %5087 = vmatpush1.msra.mxu0 0.0
    %5088 = vmatprep.subr.mxu0 0.0
    %5089 = vmatpush1.msra.mxu0 0.0
    %5090 = vmatprep.subr.mxu0 0.0
    %5091 = vmatpush1.msra.mxu0 0.0
    %5092 = vmatprep.subr.mxu0 0.0
    %5093 = vmatpush1.msra.mxu0 0.0
    %5094 = vmatprep.subr.mxu0 0.0
    %5095 = vmatpush1.msra.mxu0 0.0
    %5096 = vmatprep.subr.mxu0 0.0
    %5097 = vmatpush1.msra.mxu0 0.0
    %5098 = vmatprep.mubr.f32.mxu0 0.0
    %5099 = vmatmul.mubr.f32.gmra.mrb[0].mxu0 %v4962
    %v5100 = vpop.f32.mrb[0].mxu0
    %v5101 = vadd.f32 0.0, %v5100
    %v5102 = vpop.f32.mrb[0].mxu0
    %v5103 = vadd.f32 0.0, %v5102
    %5104 = vdwg.mxu0
    %5105 = vmatprep.subr.mxu0 0.0
    %5106 = vmatpush1.msra.mxu0 %v90
    %5107 = vmatprep.subr.mxu0 0.0
    %5108 = vmatpush1.msra.mxu0 %v104
    %5109 = vmatprep.subr.mxu0 0.0
    %5110 = vmatpush1.msra.mxu0 %v118
    %5111 = vmatprep.subr.mxu0 0.0
    %5112 = vmatpush1.msra.mxu0 %v132
    %5113 = vmatprep.subr.mxu0 0.0
    %5114 = vmatpush1.msra.mxu0 %v146
    %5115 = vmatprep.subr.mxu0 0.0
    %5116 = vmatpush1.msra.mxu0 %v160
    %5117 = vmatprep.subr.mxu0 0.0
    %5118 = vmatpush1.msra.mxu0 %v174
    %5119 = vmatprep.subr.mxu0 0.0
    %5120 = vmatpush1.msra.mxu0 %v188
    %5121 = vmatprep.subr.mxu0 0.0
    %5122 = vmatpush1.msra.mxu0 %v202
    %5123 = vmatprep.subr.mxu0 0.0
    %5124 = vmatpush1.msra.mxu0 %v216
    %5125 = vmatprep.subr.mxu0 0.0
    %5126 = vmatpush1.msra.mxu0 %v230
    %5127 = vmatprep.subr.mxu0 0.0
    %5128 = vmatpush1.msra.mxu0 %v244
    %5129 = vmatprep.subr.mxu0 0.0
    %5130 = vmatpush1.msra.mxu0 %v258
    %5131 = vmatprep.subr.mxu0 0.0
    %5132 = vmatpush1.msra.mxu0 %v272
    %5133 = vmatprep.subr.mxu0 0.0
    %5134 = vmatpush1.msra.mxu0 %v286
    %5135 = vmatprep.subr.mxu0 0.0
    %5136 = vmatpush1.msra.mxu0 %v300
    %5137 = vmatprep.subr.mxu0 0.0
    %5138 = vmatpush1.msra.mxu0 0.0
    %5139 = vmatprep.subr.mxu0 0.0
    %5140 = vmatpush1.msra.mxu0 0.0
    %5141 = vmatprep.subr.mxu0 0.0
    %5142 = vmatpush1.msra.mxu0 0.0
    %5143 = vmatprep.subr.mxu0 0.0
    %5144 = vmatpush1.msra.mxu0 0.0
    %5145 = vmatprep.subr.mxu0 0.0
    %5146 = vmatpush1.msra.mxu0 0.0
    %5147 = vmatprep.subr.mxu0 0.0
    %5148 = vmatpush1.msra.mxu0 0.0
    %5149 = vmatprep.subr.mxu0 0.0
    %5150 = vmatpush1.msra.mxu0 0.0
    %5151 = vmatprep.subr.mxu0 0.0
    %5152 = vmatpush1.msra.mxu0 0.0
    %5153 = vmatprep.subr.mxu0 0.0
    %5154 = vmatpush1.msra.mxu0 0.0
    %5155 = vmatprep.subr.mxu0 0.0
    %5156 = vmatpush1.msra.mxu0 0.0
    %5157 = vmatprep.subr.mxu0 0.0
    %5158 = vmatpush1.msra.mxu0 0.0
    %5159 = vmatprep.subr.mxu0 0.0
    %5160 = vmatpush1.msra.mxu0 0.0
    %5161 = vmatprep.subr.mxu0 0.0
    %5162 = vmatpush1.msra.mxu0 0.0
    %5163 = vmatprep.subr.mxu0 0.0
    %5164 = vmatpush1.msra.mxu0 0.0
    %5165 = vmatprep.subr.mxu0 0.0
    %5166 = vmatpush1.msra.mxu0 0.0
    %5167 = vmatprep.subr.mxu0 0.0
    %5168 = vmatpush1.msra.mxu0 0.0
    %5169 = vmatprep.mubr.f32.mxu0 0.0
    %5170 = vmatmul.mubr.f32.gmra.mrb[0].mxu0 %v4962
    %v5171 = vpop.f32.mrb[0].mxu0
    %v5172 = vadd.f32 0.0, %v5171
    %v5173 = vpop.f32.mrb[0].mxu0
    %5174 = vdwg.mxu0
    %v5175 = vadd.f32 %v5172, %v2735
    %s5176 = scalar_lea.vmem %s6, 48
    %5177 = vst [vmem:[%s5176] sm:$0xff] %v5175
    %v5178 = vadd.f32 %v5175, %v2741
    %5179 = vmax.xlane.f32.xlu0 %v5178
    %v5180 = vpop.xlane.xlu0 %5179
    %vm5181 = vcmp.eq.f32.partialorder %v5178, %v5180
    %v5182 = vsel %vm5181, %v308, 128
    %v5183 = vand.u32 %v5182, 65535
    %v5184 = vshra.s32 %v5182, 16
    %v5185 = vcvt.s32.f32 %v5183
    %v5186 = vcvt.s32.f32 %v5184
    %5187 = vmin.xlane.f32.xlu0 %v5186
    %v5188 = vpop.xlane.xlu0 %5187
    %vm5189 = vcmp.eq.f32.partialorder %v5186, %v5188
    %v5190 = vsel %vm5189, %v5185, inf
    %5191 = vmin.xlane.f32.xlu0 %v5190
    %v5192 = vpop.xlane.xlu0 %5191
    %v5193 = vcvt.f32.s32 %v5192
    %v5194 = vcvt.f32.s32 %v5188
    %v5195 = vshll.u32 %v5194, 16
    %v5196 = vadd.s32 %v5195, %v5193
    %vm5197 = vcmp.eq.s32.totalorder %v308, %v5196
    %v5198 = vsel %vm5197, 1, 0
    %v5199 = vcvt.s32.f32 %v5198
    %v5201 = vsel %vm365, %v5199, 0
    %5203 = vmatprep.subr.mxu0 %v55
    %5204 = vmatpush1.msra.mxu0 %v54
    %5205 = vmatprep.subr.mxu0 %v63
    %5206 = vmatpush1.msra.mxu0 %v62
    %5207 = vmatprep.subr.mxu0 %v71
    %5208 = vmatpush1.msra.mxu0 %v70
    %5209 = vmatprep.subr.mxu0 %v79
    %5210 = vmatpush1.msra.mxu0 %v78
    %5211 = vmatprep.subr.mxu0 0.0
    %5212 = vmatpush1.msra.mxu0 0.0
    %5213 = vmatprep.subr.mxu0 0.0
    %5214 = vmatpush1.msra.mxu0 0.0
    %5215 = vmatprep.subr.mxu0 0.0
    %5216 = vmatpush1.msra.mxu0 0.0
    %5217 = vmatprep.subr.mxu0 0.0
    %5218 = vmatpush1.msra.mxu0 0.0
    %5219 = vmatprep.subr.mxu0 0.0
    %5220 = vmatpush1.msra.mxu0 0.0
    %5221 = vmatprep.subr.mxu0 0.0
    %5222 = vmatpush1.msra.mxu0 0.0
    %5223 = vmatprep.subr.mxu0 0.0
    %5224 = vmatpush1.msra.mxu0 0.0
    %5225 = vmatprep.subr.mxu0 0.0
    %5226 = vmatpush1.msra.mxu0 0.0
    %5227 = vmatprep.subr.mxu0 0.0
    %5228 = vmatpush1.msra.mxu0 0.0
    %5229 = vmatprep.subr.mxu0 0.0
    %5230 = vmatpush1.msra.mxu0 0.0
    %5231 = vmatprep.subr.mxu0 0.0
    %5232 = vmatpush1.msra.mxu0 0.0
    %5233 = vmatprep.subr.mxu0 0.0
    %5234 = vmatpush1.msra.mxu0 0.0
    %5235 = vmatprep.subr.mxu0 0.0
    %5236 = vmatpush1.msra.mxu0 0.0
    %5237 = vmatprep.subr.mxu0 0.0
    %5238 = vmatpush1.msra.mxu0 0.0
    %5239 = vmatprep.subr.mxu0 0.0
    %5240 = vmatpush1.msra.mxu0 0.0
    %5241 = vmatprep.subr.mxu0 0.0
    %5242 = vmatpush1.msra.mxu0 0.0
    %5243 = vmatprep.subr.mxu0 0.0
    %5244 = vmatpush1.msra.mxu0 0.0
    %5245 = vmatprep.subr.mxu0 0.0
    %5246 = vmatpush1.msra.mxu0 0.0
    %5247 = vmatprep.subr.mxu0 0.0
    %5248 = vmatpush1.msra.mxu0 0.0
    %5249 = vmatprep.subr.mxu0 0.0
    %5250 = vmatpush1.msra.mxu0 0.0
    %5251 = vmatprep.subr.mxu0 0.0
    %5252 = vmatpush1.msra.mxu0 0.0
    %5253 = vmatprep.subr.mxu0 0.0
    %5254 = vmatpush1.msra.mxu0 0.0
    %5255 = vmatprep.subr.mxu0 0.0
    %5256 = vmatpush1.msra.mxu0 0.0
    %5257 = vmatprep.subr.mxu0 0.0
    %5258 = vmatpush1.msra.mxu0 0.0
    %5259 = vmatprep.subr.mxu0 0.0
    %5260 = vmatpush1.msra.mxu0 0.0
    %5261 = vmatprep.subr.mxu0 0.0
    %5262 = vmatpush1.msra.mxu0 0.0
    %5263 = vmatprep.subr.mxu0 0.0
    %5264 = vmatpush1.msra.mxu0 0.0
    %5265 = vmatprep.subr.mxu0 0.0
    %5266 = vmatpush1.msra.mxu0 0.0
    %5267 = vmatprep.mubr.f32.mxu0 0.0
    %5268 = vmatmul.mubr.f32.gmra.mrb[0].mxu0 %v5201
    %v5269 = vpop.f32.mrb[0].mxu0
    %v5270 = vadd.f32 %v5030, %v5269
    %v5271 = vpop.f32.mrb[0].mxu0
    %v5272 = vadd.f32 %v5032, %v5271
    %5273 = vdwg.mxu0
    %5274 = vmatprep.subr.mxu0 %v57
    %5275 = vmatpush1.msra.mxu0 %v56
    %5276 = vmatprep.subr.mxu0 %v65
    %5277 = vmatpush1.msra.mxu0 %v64
    %5278 = vmatprep.subr.mxu0 %v73
    %5279 = vmatpush1.msra.mxu0 %v72
    %5280 = vmatprep.subr.mxu0 %v81
    %5281 = vmatpush1.msra.mxu0 %v80
    %5282 = vmatprep.subr.mxu0 0.0
    %5283 = vmatpush1.msra.mxu0 0.0
    %5284 = vmatprep.subr.mxu0 0.0
    %5285 = vmatpush1.msra.mxu0 0.0
    %5286 = vmatprep.subr.mxu0 0.0
    %5287 = vmatpush1.msra.mxu0 0.0
    %5288 = vmatprep.subr.mxu0 0.0
    %5289 = vmatpush1.msra.mxu0 0.0
    %5290 = vmatprep.subr.mxu0 0.0
    %5291 = vmatpush1.msra.mxu0 0.0
    %5292 = vmatprep.subr.mxu0 0.0
    %5293 = vmatpush1.msra.mxu0 0.0
    %5294 = vmatprep.subr.mxu0 0.0
    %5295 = vmatpush1.msra.mxu0 0.0
    %5296 = vmatprep.subr.mxu0 0.0
    %5297 = vmatpush1.msra.mxu0 0.0
    %5298 = vmatprep.subr.mxu0 0.0
    %5299 = vmatpush1.msra.mxu0 0.0
    %5300 = vmatprep.subr.mxu0 0.0
    %5301 = vmatpush1.msra.mxu0 0.0
    %5302 = vmatprep.subr.mxu0 0.0
    %5303 = vmatpush1.msra.mxu0 0.0
    %5304 = vmatprep.subr.mxu0 0.0
    %5305 = vmatpush1.msra.mxu0 0.0
    %5306 = vmatprep.subr.mxu0 0.0
    %5307 = vmatpush1.msra.mxu0 0.0
    %5308 = vmatprep.subr.mxu0 0.0
    %5309 = vmatpush1.msra.mxu0 0.0
    %5310 = vmatprep.subr.mxu0 0.0
    %5311 = vmatpush1.msra.mxu0 0.0
    %5312 = vmatprep.subr.mxu0 0.0
    %5313 = vmatpush1.msra.mxu0 0.0
    %5314 = vmatprep.subr.mxu0 0.0
    %5315 = vmatpush1.msra.mxu0 0.0
    %5316 = vmatprep.subr.mxu0 0.0
    %5317 = vmatpush1.msra.mxu0 0.0
    %5318 = vmatprep.subr.mxu0 0.0
    %5319 = vmatpush1.msra.mxu0 0.0
    %5320 = vmatprep.subr.mxu0 0.0
    %5321 = vmatpush1.msra.mxu0 0.0
    %5322 = vmatprep.subr.mxu0 0.0
    %5323 = vmatpush1.msra.mxu0 0.0
    %5324 = vmatprep.subr.mxu0 0.0
    %5325 = vmatpush1.msra.mxu0 0.0
    %5326 = vmatprep.subr.mxu0 0.0
    %5327 = vmatpush1.msra.mxu0 0.0
    %5328 = vmatprep.subr.mxu0 0.0
    %5329 = vmatpush1.msra.mxu0 0.0
    %5330 = vmatprep.subr.mxu0 0.0
    %5331 = vmatpush1.msra.mxu0 0.0
    %5332 = vmatprep.subr.mxu0 0.0
    %5333 = vmatpush1.msra.mxu0 0.0
    %5334 = vmatprep.subr.mxu0 0.0
    %5335 = vmatpush1.msra.mxu0 0.0
    %5336 = vmatprep.subr.mxu0 0.0
    %5337 = vmatpush1.msra.mxu0 0.0
    %5338 = vmatprep.mubr.f32.mxu0 0.0
    %5339 = vmatmul.mubr.f32.gmra.mrb[0].mxu0 %v5201
    %v5340 = vpop.f32.mrb[0].mxu0
    %v5341 = vadd.f32 %v5101, %v5340
    %v5342 = vpop.f32.mrb[0].mxu0
    %v5343 = vadd.f32 %v5103, %v5342
    %5344 = vdwg.mxu0
    %v5345 = vxor.u32 %v5270, 2147483648
    %v5346 = vxor.u32 %v5272, 2147483648
    %v5347 = vxor.u32 %v5341, 2147483648
    %v5348 = vmul.f32 %v5345, 1.442695
    %v5349 = vpow.pop %v5348
    %v5350 = vmul.f32 %v5346, 1.442695
    %v5351 = vpow.pop %v5350
    %v5352 = vmul.f32 %v5347, 1.442695
    %v5353 = vpow.pop %v5352
    %v5354 = vadd.f32 %v5349, 1.0
    %v5355 = vadd.f32 %v5351, 1.0
    %v5356 = vadd.f32 %v5353, 1.0
    %v5357 = vrcp.pop %v5354
    %v5358 = vmul.f32 1.0, %v5357
    %v5359 = vrcp.pop %v5355
    %v5360 = vmul.f32 1.0, %v5359
    %v5361 = vrcp.pop %v5356
    %v5362 = vmul.f32 1.0, %v5361
    %v5363 = vtanh.pop %v5343
    %v5364 = vmul.f32 %v5360, %v4960
    %v5365 = vmul.f32 %v5358, %v5363
    %v5366 = vadd.f32 %v5364, %v5365
    %v5367 = vtanh.pop %v5366
    %v5368 = vmul.f32 %v5362, %v5367
    %5369 = vmatprep.subr.mxu0 0.0
    %5370 = vmatpush1.msra.mxu0 %v90
    %5371 = vmatprep.subr.mxu0 0.0
    %5372 = vmatpush1.msra.mxu0 %v104
    %5373 = vmatprep.subr.mxu0 0.0
    %5374 = vmatpush1.msra.mxu0 %v118
    %5375 = vmatprep.subr.mxu0 0.0
    %5376 = vmatpush1.msra.mxu0 %v132
    %5377 = vmatprep.subr.mxu0 0.0
    %5378 = vmatpush1.msra.mxu0 %v146
    %5379 = vmatprep.subr.mxu0 0.0
    %5380 = vmatpush1.msra.mxu0 %v160
    %5381 = vmatprep.subr.mxu0 0.0
    %5382 = vmatpush1.msra.mxu0 %v174
    %5383 = vmatprep.subr.mxu0 0.0
    %5384 = vmatpush1.msra.mxu0 %v188
    %5385 = vmatprep.subr.mxu0 0.0
    %5386 = vmatpush1.msra.mxu0 %v202
    %5387 = vmatprep.subr.mxu0 0.0
    %5388 = vmatpush1.msra.mxu0 %v216
    %5389 = vmatprep.subr.mxu0 0.0
    %5390 = vmatpush1.msra.mxu0 %v230
    %5391 = vmatprep.subr.mxu0 0.0
    %5392 = vmatpush1.msra.mxu0 %v244
    %5393 = vmatprep.subr.mxu0 0.0
    %5394 = vmatpush1.msra.mxu0 %v258
    %5395 = vmatprep.subr.mxu0 0.0
    %5396 = vmatpush1.msra.mxu0 %v272
    %5397 = vmatprep.subr.mxu0 0.0
    %5398 = vmatpush1.msra.mxu0 %v286
    %5399 = vmatprep.subr.mxu0 0.0
    %5400 = vmatpush1.msra.mxu0 %v300
    %5401 = vmatprep.subr.mxu0 0.0
    %5402 = vmatpush1.msra.mxu0 0.0
    %5403 = vmatprep.subr.mxu0 0.0
    %5404 = vmatpush1.msra.mxu0 0.0
    %5405 = vmatprep.subr.mxu0 0.0
    %5406 = vmatpush1.msra.mxu0 0.0
    %5407 = vmatprep.subr.mxu0 0.0
    %5408 = vmatpush1.msra.mxu0 0.0
    %5409 = vmatprep.subr.mxu0 0.0
    %5410 = vmatpush1.msra.mxu0 0.0
    %5411 = vmatprep.subr.mxu0 0.0
    %5412 = vmatpush1.msra.mxu0 0.0
    %5413 = vmatprep.subr.mxu0 0.0
    %5414 = vmatpush1.msra.mxu0 0.0
    %5415 = vmatprep.subr.mxu0 0.0
    %5416 = vmatpush1.msra.mxu0 0.0
    %5417 = vmatprep.subr.mxu0 0.0
    %5418 = vmatpush1.msra.mxu0 0.0
    %5419 = vmatprep.subr.mxu0 0.0
    %5420 = vmatpush1.msra.mxu0 0.0
    %5421 = vmatprep.subr.mxu0 0.0
    %5422 = vmatpush1.msra.mxu0 0.0
    %5423 = vmatprep.subr.mxu0 0.0
    %5424 = vmatpush1.msra.mxu0 0.0
    %5425 = vmatprep.subr.mxu0 0.0
    %5426 = vmatpush1.msra.mxu0 0.0
    %5427 = vmatprep.subr.mxu0 0.0
    %5428 = vmatpush1.msra.mxu0 0.0
    %5429 = vmatprep.subr.mxu0 0.0
    %5430 = vmatpush1.msra.mxu0 0.0
    %5431 = vmatprep.subr.mxu0 0.0
    %5432 = vmatpush1.msra.mxu0 0.0
    %5433 = vmatprep.mubr.f32.mxu0 0.0
    %5434 = vmatmul.mubr.f32.gmra.mrb[0].mxu0 %v5368
    %v5435 = vpop.f32.mrb[0].mxu0
    %v5436 = vadd.f32 0.0, %v5435
    %v5437 = vpop.f32.mrb[0].mxu0
    %5438 = vdwg.mxu0
    %v5439 = vadd.f32 %v5436, %v2735
    %s5440 = scalar_lea.vmem %s6, 56
    %5441 = vst [vmem:[%s5440] sm:$0xff] %v5439
    // Predicated region
    $region30: #{vqa_forward.1} parent=1 // pred_check
      _
    $region31: #{vqa_forward.1} parent=1 // pred_check_branch
      %5443 = sbr.rel (0) target = $region33
    $region32: #{vqa_forward.1} parent=1 // pred_region
      _
    $region33: #{vqa_forward.1} parent=1 // pred_fallthru
      _
    // Predicated region
    $region34: #{vqa_forward.1} parent=1 // pred_check
      _
    $region35: #{vqa_forward.1} parent=1 // pred_check_branch
      %5445 = sbr.rel (0) target = $region37
    $region36: #{vqa_forward.1} parent=1 // pred_region
      _
    $region37: #{vqa_forward.1} parent=1 // pred_fallthru
      _
    // Predicated region
    $region38: #{vqa_forward.1} parent=1 // pred_check
      _
    $region39: #{vqa_forward.1} parent=1 // pred_check_branch
      %5447 = sbr.rel (0) target = $region41
    $region40: #{vqa_forward.1} parent=1 // pred_region
      _
    $region41: #{vqa_forward.1} parent=1 // pred_fallthru
      _
    // Predicated region
    $region42: #{vqa_forward.1} parent=1 // pred_check
      _
    $region43: #{vqa_forward.1} parent=1 // pred_check_branch
      %5449 = sbr.rel (0) target = $region45
    $region44: #{vqa_forward.1} parent=1 // pred_region
      _
    $region45: #{vqa_forward.1} parent=1 // pred_fallthru
      _
    %5450 = vsyncpa [#allocation3], 1
    %5451 = vsyncpa [#allocation5], 1

</llo_original>
